<compile_context>
chip_gen: v7x
topology: tpu7x:2x2x1
jax: 0.10.0
libtpu: 0.0.40
codegen_flags: <defaults>
</compile_context>

<pallas_src>
import functools
import math

import jax
import jax.numpy as jnp
from jax.experimental import pallas as pl
from jax.experimental.pallas import tpu as pltpu


# ----------------------------------------------------------------------------
# Kernel bodies
# ----------------------------------------------------------------------------
_INV_SQRT2 = 0.7071067811865476


def _layernorm(x, g, beta, eps):
    # x: (N, C) f32; g/beta: (1, C) f32.  Biased variance (torch.nn.LayerNorm).
    mu = jnp.mean(x, axis=-1, keepdims=True)
    xc = x - mu
    var = jnp.mean(xc * xc, axis=-1, keepdims=True)
    return xc * jax.lax.rsqrt(var + eps) * g + beta


def _fused_attn_ln_kernel(q_ref, kv_ref, qw_ref, qb_ref, kw_ref, kb_ref,
                          vw_ref, vb_ref, pw_ref, pb_ref, g_ref, beta_ref,
                          o_ref, *, num_heads, scale, eps, kv_start, q_len):
    """{q,k,v}-proj + multi-head softmax(QK^T)V + out-proj + residual + LayerNorm."""
    C = qw_ref.shape[1]
    hd = C // num_heads

    q_full = q_ref[0]                                   # (QN_full, C) bf16
    q_in = q_full[:q_len, :] if q_len != q_full.shape[0] else q_full
    kv_full = kv_ref[0]                                 # (Nk_full, C) bf16
    kv_in = kv_full[kv_start:, :] if kv_start else kv_full

    # Projections (bf16 MXU, f32 accumulate), bias add in f32.
    qp = jnp.dot(q_in, qw_ref[...], preferred_element_type=jnp.float32) + qb_ref[...]
    kp = jnp.dot(kv_in, kw_ref[...], preferred_element_type=jnp.float32) + kb_ref[...]
    vp = jnp.dot(kv_in, vw_ref[...], preferred_element_type=jnp.float32) + vb_ref[...]

    # Per-head attention (static unroll; heads = dim // 32 is small).
    heads = []
    for h in range(num_heads):
        lo, hi = h * hd, (h + 1) * hd
        qh = qp[:, lo:hi].astype(jnp.bfloat16)
        kh = kp[:, lo:hi].astype(jnp.bfloat16)
        vh = vp[:, lo:hi].astype(jnp.bfloat16)
        # Contract the last axes directly (no explicit transpose of K).
        s = jax.lax.dot_general(qh, kh, (((1,), (1,)), ((), ())),
                                preferred_element_type=jnp.float32) * scale
        s = s - jnp.max(s, axis=-1, keepdims=True)
        p = jnp.exp(s)
        inv = pl.reciprocal(jnp.sum(p, axis=-1, keepdims=True), approx=True)
        p = (p * inv).astype(jnp.bfloat16)
        heads.append(jnp.dot(p, vh, preferred_element_type=jnp.float32))
    attn = heads[0] if num_heads == 1 else jnp.concatenate(heads, axis=-1)  # (q_len, C)

    proj = jnp.dot(attn.astype(jnp.bfloat16), pw_ref[...],
                   preferred_element_type=jnp.float32) + pb_ref[...]

    x = q_in.astype(jnp.float32) + proj                 # residual in f32
    o_ref[0] = _layernorm(x, g_ref[...], beta_ref[...], eps).astype(o_ref.dtype)


def _mlp_ln_body(x, w1, b1, w2, b2, g, beta, eps):
    h = jnp.dot(x, w1, preferred_element_type=jnp.float32) + b1
    h = 0.5 * h * (1.0 + jax.lax.erf(h * _INV_SQRT2))   # exact GELU (torch default), f32
    y = jnp.dot(h.astype(jnp.bfloat16), w2, preferred_element_type=jnp.float32) + b2
    r = x.astype(jnp.float32) + y                       # residual in f32
    return _layernorm(r, g, beta, eps)


def _fused_mlp_ln_kernel(x_ref, w1_ref, b1_ref, w2_ref, b2_ref, g_ref, beta_ref,
                         o_ref, *, eps):
    out = _mlp_ln_body(x_ref[0], w1_ref[...], b1_ref[...], w2_ref[...], b2_ref[...],
                       g_ref[...], beta_ref[...], eps)
    o_ref[0] = out.astype(o_ref.dtype)


def _fused_mlp_ln_fc_kernel(x_ref, w1_ref, b1_ref, w2_ref, b2_ref, g_ref, beta_ref,
                            fcw_ref, fcb_ref, o_ref, *, eps):
    feats = _mlp_ln_body(x_ref[0], w1_ref[...], b1_ref[...], w2_ref[...], b2_ref[...],
                         g_ref[...], beta_ref[...], eps)
    logits = jnp.dot(feats.astype(jnp.bfloat16), fcw_ref[...],
                     preferred_element_type=jnp.float32) + fcb_ref[...]
    o_ref[0] = logits.astype(o_ref.dtype)


# ----------------------------------------------------------------------------
# Pallas wrappers
# ----------------------------------------------------------------------------
def _wspec(shape):
    return pl.BlockSpec(shape, lambda b: (0,) * len(shape))


def fused_attn_ln(q, kv, qw, qb, kw, kb, vw, vb, pw, pb, g, beta, *,
                  num_heads, scale, eps=1e-6, kv_start=0, q_len=None):
    """LayerNorm(q[:, :q_len] + OutProj(MHA(q, kv[:, kv_start:])))  -> bf16."""
    B, QN_full, C = q.shape
    Nk_full = kv.shape[1]
    QN = QN_full if q_len is None else q_len
    Hd_hidden = None  # unused
    kernel = functools.partial(
        _fused_attn_ln_kernel, num_heads=num_heads, scale=scale, eps=eps,
        kv_start=kv_start, q_len=QN)
    return pl.pallas_call(
        kernel,
        out_shape=jax.ShapeDtypeStruct((B, QN, C), jnp.bfloat16),
        grid=(B,),
        in_specs=[
            pl.BlockSpec((1, QN_full, C), lambda b: (b, 0, 0)),
            pl.BlockSpec((1, Nk_full, C), lambda b: (b, 0, 0)),
            _wspec((C, C)), _wspec((1, C)),     # q proj
            _wspec((C, C)), _wspec((1, C)),     # k proj
            _wspec((C, C)), _wspec((1, C)),     # v proj
            _wspec((C, C)), _wspec((1, C)),     # out proj
            _wspec((1, C)), _wspec((1, C)),     # LN gamma / beta
        ],
        out_specs=pl.BlockSpec((1, QN, C), lambda b: (b, 0, 0)),
        compiler_params=pltpu.CompilerParams(dimension_semantics=("parallel",)),
    )(q, kv, qw, qb, kw, kb, vw, vb, pw, pb, g, beta)


def fused_mlp_ln(x, w1, b1, w2, b2, g, beta, *, eps=1e-6):
    """LayerNorm(x + fc2(GELU(fc1(x))))  -> bf16."""
    B, N, C = x.shape
    H = w1.shape[1]
    return pl.pallas_call(
        functools.partial(_fused_mlp_ln_kernel, eps=eps),
        out_shape=jax.ShapeDtypeStruct((B, N, C), jnp.bfloat16),
        grid=(B,),
        in_specs=[
            pl.BlockSpec((1, N, C), lambda b: (b, 0, 0)),
            _wspec((C, H)), _wspec((1, H)),
            _wspec((H, C)), _wspec((1, C)),
            _wspec((1, C)), _wspec((1, C)),
        ],
        out_specs=pl.BlockSpec((1, N, C), lambda b: (b, 0, 0)),
        compiler_params=pltpu.CompilerParams(dimension_semantics=("parallel",)),
    )(x, w1, b1, w2, b2, g, beta)


def fused_mlp_ln_fc(x, w1, b1, w2, b2, g, beta, fcw, fcb, *, eps=1e-6):
    """(LayerNorm(x + MLP(x))) @ fcw + fcb, with a lane-padded output (f32)."""
    B, N, C = x.shape
    H = w1.shape[1]
    O = fcw.shape[1]            # padded to a multiple of 128 by the caller
    return pl.pallas_call(
        functools.partial(_fused_mlp_ln_fc_kernel, eps=eps),
        out_shape=jax.ShapeDtypeStruct((B, N, O), jnp.float32),
        grid=(B,),
        in_specs=[
            pl.BlockSpec((1, N, C), lambda b: (b, 0, 0)),
            _wspec((C, H)), _wspec((1, H)),
            _wspec((H, C)), _wspec((1, C)),
            _wspec((1, C)), _wspec((1, C)),
            _wspec((C, O)), _wspec((1, O)),
        ],
        out_specs=pl.BlockSpec((1, N, O), lambda b: (b, 0, 0)),
        compiler_params=pltpu.CompilerParams(dimension_semantics=("parallel",)),
    )(x, w1, b1, w2, b2, g, beta, fcw, fcb)


# ----------------------------------------------------------------------------
# Forward (eval path of CPPDHead)
# ----------------------------------------------------------------------------
def cppd_head_forward_test(params, x, *, dim, num_heads, max_len_p1, out_channels):
    B = x.shape[0]
    head_dim = dim // num_heads
    scale = head_dim ** (-0.5)
    eps = 1e-6  # CPPDHead passes epsilon=1e-06 to its LayerNorms

    # Glue (tiny, outside kernels): positional embeds in f32, then cast to bf16.
    visual_feats = (x + params["vis_pos_embed"]).astype(jnp.bfloat16)        # (B, V, C)
    pos_embed = params["pos_node_embed_w"] * math.sqrt(dim)                  # (L, C)
    pos_node_embed = (pos_embed[None] + params["char_pos_embed"]).astype(jnp.bfloat16)
    pos_node_embed = jnp.broadcast_to(pos_node_embed, (B, max_len_p1, dim))

    char_vis = visual_feats                                                  # (B, V, C)
    pos_vis = jnp.concatenate([pos_node_embed, visual_feats], axis=1)        # (B, L+V, C)

    for cp, pp in zip(params["char_layers"], params["pos_layers"]):
        # char decoder layer: q = kv = char_vis
        a = fused_attn_ln(char_vis, char_vis,
                          cp["q_w"], cp["q_b"], cp["k_w"], cp["k_b"],
                          cp["v_w"], cp["v_b"], cp["proj_w"], cp["proj_b"],
                          cp["norm1_g"], cp["norm1_b"],
                          num_heads=num_heads, scale=scale, eps=eps)
        char_vis = fused_mlp_ln(a, cp["mlp_fc1_w"], cp["mlp_fc1_b"],
                                cp["mlp_fc2_w"], cp["mlp_fc2_b"],
                                cp["norm2_g"], cp["norm2_b"], eps=eps)
        # pos decoder layer: q = pos_vis, kv = pos_vis[:, max_len_p1:, :] (in-kernel slice)
        a = fused_attn_ln(pos_vis, pos_vis,
                          pp["q_w"], pp["q_b"], pp["k_w"], pp["k_b"],
                          pp["v_w"], pp["v_b"], pp["proj_w"], pp["proj_b"],
                          pp["norm1_g"], pp["norm1_b"],
                          num_heads=num_heads, scale=scale, eps=eps,
                          kv_start=max_len_p1)
        pos_vis = fused_mlp_ln(a, pp["mlp_fc1_w"], pp["mlp_fc1_b"],
                               pp["mlp_fc2_w"], pp["mlp_fc2_b"],
                               pp["norm2_g"], pp["norm2_b"], eps=eps)

    # Edge decoder: q = pos_vis[:, :max_len_p1, :] (in-kernel slice),
    # keys = pv(char_vis), values = cv(char_vis).  Reference applies NO scale here.
    ep = params["edge_decoder"]
    x1 = fused_attn_ln(pos_vis, char_vis,
                       ep["p_w"], ep["p_b"], ep["pv_w"], ep["pv_b"],
                       ep["cv_w"], ep["cv_b"], ep["p_proj_w"], ep["p_proj_b"],
                       ep["norm1_g"], ep["norm1_b"],
                       num_heads=num_heads, scale=1.0, eps=eps,
                       q_len=max_len_p1)
    logits_pad = fused_mlp_ln_fc(x1, ep["mlp_fc1_w"], ep["mlp_fc1_b"],
                                 ep["mlp_fc2_w"], ep["mlp_fc2_b"],
                                 ep["norm2_g"], ep["norm2_b"],
                                 params["edge_fc_w_pad"], params["edge_fc_b_pad"],
                                 eps=eps)
    return logits_pad[:, :, :out_channels]               # (B, L, out_channels), f32


# ----------------------------------------------------------------------------
# Deterministic parameter construction
# ----------------------------------------------------------------------------
def _lin(key, fan_in, fan_out, std=0.02):
    w = (std * jax.random.normal(key, (fan_in, fan_out), jnp.float32)).astype(jnp.bfloat16)
    b = jnp.zeros((1, fan_out), jnp.float32)
    return w, b


def _ln_params(dim):
    return jnp.ones((1, dim), jnp.float32), jnp.zeros((1, dim), jnp.float32)


def make_decoder_layer_params(key, dim):
    ks = jax.random.split(key, 5)
    hidden = int(dim * 4.0)
    q_w, q_b = _lin(ks[0], dim, dim)
    kv_w, kv_b = _lin(ks[1], dim, 2 * dim)          # torch kv Linear: first C -> k, second C -> v
    pr_w, pr_b = _lin(ks[2], dim, dim)
    f1_w, f1_b = _lin(ks[3], dim, hidden)
    f2_w, f2_b = _lin(ks[4], hidden, dim)
    n1g, n1b = _ln_params(dim)
    n2g, n2b = _ln_params(dim)
    return {
        "q_w": q_w, "q_b": q_b,
        "k_w": kv_w[:, :dim], "k_b": kv_b[:, :dim],
        "v_w": kv_w[:, dim:], "v_b": kv_b[:, dim:],
        "proj_w": pr_w, "proj_b": pr_b,
        "norm1_g": n1g, "norm1_b": n1b, "norm2_g": n2g, "norm2_b": n2b,
        "mlp_fc1_w": f1_w, "mlp_fc1_b": f1_b,
        "mlp_fc2_w": f2_w, "mlp_fc2_b": f2_b,
    }


def make_edge_decoder_params(key, dim):
    ks = jax.random.split(key, 6)
    hidden = int(dim * 4.0)
    p_w, p_b = _lin(ks[0], dim, dim)
    cv_w, cv_b = _lin(ks[1], dim, dim)
    pv_w, pv_b = _lin(ks[2], dim, dim)
    pp_w, pp_b = _lin(ks[3], dim, dim)
    f1_w, f1_b = _lin(ks[4], dim, hidden)
    f2_w, f2_b = _lin(ks[5], hidden, dim)
    n1g, n1b = _ln_params(dim)
    n2g, n2b = _ln_params(dim)
    return {
        "p_w": p_w, "p_b": p_b, "cv_w": cv_w, "cv_b": cv_b,
        "pv_w": pv_w, "pv_b": pv_b, "p_proj_w": pp_w, "p_proj_b": pp_b,
        "norm1_g": n1g, "norm1_b": n1b, "norm2_g": n2g, "norm2_b": n2b,
        "mlp_fc1_w": f1_w, "mlp_fc1_b": f1_b,
        "mlp_fc2_w": f2_w, "mlp_fc2_b": f2_b,
    }


def make_cppd_params(key, *, dim, out_channels, max_len_p1, vis_seq, num_layer):
    ks = jax.random.split(key, 2 * num_layer + 5)
    idx = 0
    char_layers, pos_layers = [], []
    for _ in range(num_layer):
        char_layers.append(make_decoder_layer_params(ks[idx], dim)); idx += 1
        pos_layers.append(make_decoder_layer_params(ks[idx], dim)); idx += 1
    edge_dec = make_edge_decoder_params(ks[idx], dim); idx += 1
    pos_node_embed_w = (dim ** -0.5) * jax.random.normal(ks[idx], (max_len_p1, dim), jnp.float32); idx += 1
    char_pos_embed = 0.02 * jax.random.normal(ks[idx], (1, max_len_p1, dim), jnp.float32); idx += 1
    vis_pos_embed = 0.02 * jax.random.normal(ks[idx], (1, vis_seq, dim), jnp.float32); idx += 1

    # Final classifier, padded to 128 output lanes for unmasked stores / dense MXU cols.
    fc_w, fc_b = _lin(ks[idx], dim, out_channels); idx += 1
    o_pad = max(128, 128 * pl.cdiv(out_channels, 128))
    fc_w_pad = jnp.zeros((dim, o_pad), jnp.bfloat16).at[:, :out_channels].set(fc_w)
    fc_b_pad = jnp.zeros((1, o_pad), jnp.float32).at[:, :out_channels].set(fc_b)

    return {
        "char_layers": char_layers,
        "pos_layers": pos_layers,
        "edge_decoder": edge_dec,
        "pos_node_embed_w": pos_node_embed_w,
        "char_pos_embed": char_pos_embed,
        "vis_pos_embed": vis_pos_embed,
        "edge_fc_w_pad": fc_w_pad,
        "edge_fc_b_pad": fc_b_pad,
    }


# ----------------------------------------------------------------------------
if __name__ == "__main__":
    # Small config consistent with the module: num_heads = dim // 32.
    B = 2
    dim = 64
    num_heads = dim // 32          # 2 heads, head_dim = 32
    out_channels = 10
    max_len = 7
    max_len_p1 = max_len + 1       # 8
    vis_seq = 16
    num_layer = 2

    root = jax.random.PRNGKey(0)
    k_params, k_x = jax.random.split(root)
    params = make_cppd_params(
        k_params, dim=dim, out_channels=out_channels,
        max_len_p1=max_len_p1, vis_seq=vis_seq, num_layer=num_layer,
    )
    x = jax.random.normal(k_x, (B, vis_seq, dim), dtype=jnp.float32)

    fwd = jax.jit(
        functools.partial(
            cppd_head_forward_test, dim=dim, num_heads=num_heads,
            max_len_p1=max_len_p1, out_channels=out_channels,
        )
    )
    edge_logits = fwd(params, x)
    jax.block_until_ready(edge_logits)
    assert edge_logits.shape == (B, max_len_p1, out_channels)
    assert bool(jnp.all(jnp.isfinite(edge_logits)))
    print("KERNEL_OK")
</pallas_src>

<mosaic_0001>
module attributes {stable_mosaic.version = 11 : i64} {
  func.func @_fused_attn_ln_kernel(%arg0: i32, %arg1: memref<1x24x64xbf16, #tpu.memory_space<vmem>>, %arg2: memref<1x24x64xbf16, #tpu.memory_space<vmem>>, %arg3: memref<64x64xbf16, #tpu.memory_space<vmem>>, %arg4: memref<1x64xf32, #tpu.memory_space<vmem>>, %arg5: memref<64x64xbf16, #tpu.memory_space<vmem>>, %arg6: memref<1x64xf32, #tpu.memory_space<vmem>>, %arg7: memref<64x64xbf16, #tpu.memory_space<vmem>>, %arg8: memref<1x64xf32, #tpu.memory_space<vmem>>, %arg9: memref<64x64xbf16, #tpu.memory_space<vmem>>, %arg10: memref<1x64xf32, #tpu.memory_space<vmem>>, %arg11: memref<1x64xf32, #tpu.memory_space<vmem>>, %arg12: memref<1x64xf32, #tpu.memory_space<vmem>>, %arg13: memref<1x24x64xbf16, #tpu.memory_space<vmem>>) attributes {dimension_semantics = [#tpu.dimension_semantics<parallel>], iteration_bounds = array<i64: 2>, scalar_prefetch = 0 : i64, scratch_operands = 0 : i64, tpu.core_type = #tpu.core_type<tc>, window_params = [{transform_indices = @transform_0, window_bounds = array<i64: 1, 24, 64>}, {transform_indices = @transform_1, window_bounds = array<i64: 1, 24, 64>}, {pipeline_mode = #tpu.pipeline_mode<synchronous>, transform_indices = @transform_2, window_bounds = array<i64: 64, 64>}, {pipeline_mode = #tpu.pipeline_mode<synchronous>, transform_indices = @transform_3, window_bounds = array<i64: 1, 64>}, {pipeline_mode = #tpu.pipeline_mode<synchronous>, transform_indices = @transform_4, window_bounds = array<i64: 64, 64>}, {pipeline_mode = #tpu.pipeline_mode<synchronous>, transform_indices = @transform_5, window_bounds = array<i64: 1, 64>}, {pipeline_mode = #tpu.pipeline_mode<synchronous>, transform_indices = @transform_6, window_bounds = array<i64: 64, 64>}, {pipeline_mode = #tpu.pipeline_mode<synchronous>, transform_indices = @transform_7, window_bounds = array<i64: 1, 64>}, {pipeline_mode = #tpu.pipeline_mode<synchronous>, transform_indices = @transform_8, window_bounds = array<i64: 64, 64>}, {pipeline_mode = #tpu.pipeline_mode<synchronous>, transform_indices = @transform_9, window_bounds = array<i64: 1, 64>}, {pipeline_mode = #tpu.pipeline_mode<synchronous>, transform_indices = @transform_10, window_bounds = array<i64: 1, 64>}, {pipeline_mode = #tpu.pipeline_mode<synchronous>, transform_indices = @transform_11, window_bounds = array<i64: 1, 64>}, {transform_indices = @transform_12, window_bounds = array<i64: 1, 24, 64>}]} {
    %c0 = arith.constant 0 : index
    %c0_0 = arith.constant 0 : index
    %c0_1 = arith.constant 0 : index
    %0 = vector.load %arg1[%c0, %c0_0, %c0_1] : memref<1x24x64xbf16, #tpu.memory_space<vmem>>, vector<1x24x64xbf16>
    %1 = vector.shape_cast %0 : vector<1x24x64xbf16> to vector<24x64xbf16>
    %c0_2 = arith.constant 0 : index
    %c0_3 = arith.constant 0 : index
    %c0_4 = arith.constant 0 : index
    %2 = vector.load %arg2[%c0_2, %c0_3, %c0_4] : memref<1x24x64xbf16, #tpu.memory_space<vmem>>, vector<1x24x64xbf16>
    %3 = vector.shape_cast %2 : vector<1x24x64xbf16> to vector<24x64xbf16>
    %4 = vector.extract_strided_slice %3 {offsets = [8, 0], sizes = [16, 64], strides = [1, 1]} : vector<24x64xbf16> to vector<16x64xbf16>
    %c0_5 = arith.constant 0 : index
    %c0_6 = arith.constant 0 : index
    %5 = vector.load %arg3[%c0_5, %c0_6] : memref<64x64xbf16, #tpu.memory_space<vmem>>, vector<64x64xbf16>
    %cst = arith.constant dense<0.000000e+00> : vector<24x64xf32>
    %6 = tpu.matmul %1, %5, %cst {dimension_numbers = #tpu.dot_dimension_numbers<[1], [0], [0], [1], [0, 0, 1, 1], [], []>} : vector<24x64xbf16>, vector<64x64xbf16>, vector<24x64xf32> -> vector<24x64xf32>
    %c0_7 = arith.constant 0 : index
    %c0_8 = arith.constant 0 : index
    %7 = vector.load %arg4[%c0_7, %c0_8] : memref<1x64xf32, #tpu.memory_space<vmem>>, vector<1x64xf32>
    %8 = vector.broadcast %7 : vector<1x64xf32> to vector<24x64xf32>
    %9 = arith.addf %6, %8 : vector<24x64xf32>
    %c0_9 = arith.constant 0 : index
    %c0_10 = arith.constant 0 : index
    %10 = vector.load %arg5[%c0_9, %c0_10] : memref<64x64xbf16, #tpu.memory_space<vmem>>, vector<64x64xbf16>
    %cst_11 = arith.constant dense<0.000000e+00> : vector<16x64xf32>
    %11 = tpu.matmul %4, %10, %cst_11 {dimension_numbers = #tpu.dot_dimension_numbers<[1], [0], [0], [1], [0, 0, 1, 1], [], []>} : vector<16x64xbf16>, vector<64x64xbf16>, vector<16x64xf32> -> vector<16x64xf32>
    %c0_12 = arith.constant 0 : index
    %c0_13 = arith.constant 0 : index
    %12 = vector.load %arg6[%c0_12, %c0_13] : memref<1x64xf32, #tpu.memory_space<vmem>>, vector<1x64xf32>
    %13 = vector.broadcast %12 : vector<1x64xf32> to vector<16x64xf32>
    %14 = arith.addf %11, %13 : vector<16x64xf32>
    %c0_14 = arith.constant 0 : index
    %c0_15 = arith.constant 0 : index
    %15 = vector.load %arg7[%c0_14, %c0_15] : memref<64x64xbf16, #tpu.memory_space<vmem>>, vector<64x64xbf16>
    %cst_16 = arith.constant dense<0.000000e+00> : vector<16x64xf32>
    %16 = tpu.matmul %4, %15, %cst_16 {dimension_numbers = #tpu.dot_dimension_numbers<[1], [0], [0], [1], [0, 0, 1, 1], [], []>} : vector<16x64xbf16>, vector<64x64xbf16>, vector<16x64xf32> -> vector<16x64xf32>
    %c0_17 = arith.constant 0 : index
    %c0_18 = arith.constant 0 : index
    %17 = vector.load %arg8[%c0_17, %c0_18] : memref<1x64xf32, #tpu.memory_space<vmem>>, vector<1x64xf32>
    %18 = vector.broadcast %17 : vector<1x64xf32> to vector<16x64xf32>
    %19 = arith.addf %16, %18 : vector<16x64xf32>
    %20 = vector.extract_strided_slice %9 {offsets = [0, 0], sizes = [24, 32], strides = [1, 1]} : vector<24x64xf32> to vector<24x32xf32>
    %21 = arith.truncf %20 : vector<24x32xf32> to vector<24x32xbf16>
    %22 = vector.extract_strided_slice %14 {offsets = [0, 0], sizes = [16, 32], strides = [1, 1]} : vector<16x64xf32> to vector<16x32xf32>
    %23 = arith.truncf %22 : vector<16x32xf32> to vector<16x32xbf16>
    %24 = vector.extract_strided_slice %19 {offsets = [0, 0], sizes = [16, 32], strides = [1, 1]} : vector<16x64xf32> to vector<16x32xf32>
    %25 = arith.truncf %24 : vector<16x32xf32> to vector<16x32xbf16>
    %cst_19 = arith.constant dense<0.000000e+00> : vector<24x16xf32>
    %26 = tpu.matmul %21, %23, %cst_19 {dimension_numbers = #tpu.dot_dimension_numbers<[1], [1], [0], [0], [0, 0, 1, 0], [], []>} : vector<24x32xbf16>, vector<16x32xbf16>, vector<24x16xf32> -> vector<24x16xf32>
    %cst_20 = arith.constant 0.176776692 : f32
    %27 = vector.broadcast %cst_20 : f32 to vector<24x16xf32>
    %28 = arith.mulf %26, %27 : vector<24x16xf32>
    %cst_21 = arith.constant dense<0xFF800000> : vector<24xf32>
    %29 = vector.multi_reduction <maximumf>, %28, %cst_21 [1] : vector<24x16xf32> to vector<24xf32>
    %30 = vector.shape_cast %29 : vector<24xf32> to vector<24x1xf32>
    %31 = vector.broadcast %30 : vector<24x1xf32> to vector<24x16xf32>
    %32 = arith.subf %28, %31 : vector<24x16xf32>
    %33 = math.exp %32 : vector<24x16xf32>
    %cst_22 = arith.constant dense<0.000000e+00> : vector<24xf32>
    %34 = vector.multi_reduction <add>, %33, %cst_22 [1] : vector<24x16xf32> to vector<24xf32>
    %35 = vector.shape_cast %34 : vector<24xf32> to vector<24x1xf32>
    %36 = tpu.reciprocal %35 {approx = true} : vector<24x1xf32> -> vector<24x1xf32>
    %37 = vector.broadcast %36 : vector<24x1xf32> to vector<24x16xf32>
    %38 = arith.mulf %33, %37 : vector<24x16xf32>
    %39 = arith.truncf %38 : vector<24x16xf32> to vector<24x16xbf16>
    %cst_23 = arith.constant dense<0.000000e+00> : vector<24x32xf32>
    %40 = tpu.matmul %39, %25, %cst_23 {dimension_numbers = #tpu.dot_dimension_numbers<[1], [0], [0], [1], [0, 0, 1, 1], [], []>} : vector<24x16xbf16>, vector<16x32xbf16>, vector<24x32xf32> -> vector<24x32xf32>
    %41 = vector.extract_strided_slice %9 {offsets = [0, 32], sizes = [24, 32], strides = [1, 1]} : vector<24x64xf32> to vector<24x32xf32>
    %42 = arith.truncf %41 : vector<24x32xf32> to vector<24x32xbf16>
    %43 = vector.extract_strided_slice %14 {offsets = [0, 32], sizes = [16, 32], strides = [1, 1]} : vector<16x64xf32> to vector<16x32xf32>
    %44 = arith.truncf %43 : vector<16x32xf32> to vector<16x32xbf16>
    %45 = vector.extract_strided_slice %19 {offsets = [0, 32], sizes = [16, 32], strides = [1, 1]} : vector<16x64xf32> to vector<16x32xf32>
    %46 = arith.truncf %45 : vector<16x32xf32> to vector<16x32xbf16>
    %cst_24 = arith.constant dense<0.000000e+00> : vector<24x16xf32>
    %47 = tpu.matmul %42, %44, %cst_24 {dimension_numbers = #tpu.dot_dimension_numbers<[1], [1], [0], [0], [0, 0, 1, 0], [], []>} : vector<24x32xbf16>, vector<16x32xbf16>, vector<24x16xf32> -> vector<24x16xf32>
    %cst_25 = arith.constant 0.176776692 : f32
    %48 = vector.broadcast %cst_25 : f32 to vector<24x16xf32>
    %49 = arith.mulf %47, %48 : vector<24x16xf32>
    %cst_26 = arith.constant dense<0xFF800000> : vector<24xf32>
    %50 = vector.multi_reduction <maximumf>, %49, %cst_26 [1] : vector<24x16xf32> to vector<24xf32>
    %51 = vector.shape_cast %50 : vector<24xf32> to vector<24x1xf32>
    %52 = vector.broadcast %51 : vector<24x1xf32> to vector<24x16xf32>
    %53 = arith.subf %49, %52 : vector<24x16xf32>
    %54 = math.exp %53 : vector<24x16xf32>
    %cst_27 = arith.constant dense<0.000000e+00> : vector<24xf32>
    %55 = vector.multi_reduction <add>, %54, %cst_27 [1] : vector<24x16xf32> to vector<24xf32>
    %56 = vector.shape_cast %55 : vector<24xf32> to vector<24x1xf32>
    %57 = tpu.reciprocal %56 {approx = true} : vector<24x1xf32> -> vector<24x1xf32>
    %58 = vector.broadcast %57 : vector<24x1xf32> to vector<24x16xf32>
    %59 = arith.mulf %54, %58 : vector<24x16xf32>
    %60 = arith.truncf %59 : vector<24x16xf32> to vector<24x16xbf16>
    %cst_28 = arith.constant dense<0.000000e+00> : vector<24x32xf32>
    %61 = tpu.matmul %60, %46, %cst_28 {dimension_numbers = #tpu.dot_dimension_numbers<[1], [0], [0], [1], [0, 0, 1, 1], [], []>} : vector<24x16xbf16>, vector<16x32xbf16>, vector<24x32xf32> -> vector<24x32xf32>
    %62 = tpu.concatenate %40, %61 in 1 : vector<24x32xf32>, vector<24x32xf32> -> vector<24x64xf32>
    %63 = arith.truncf %62 : vector<24x64xf32> to vector<24x64xbf16>
    %c0_29 = arith.constant 0 : index
    %c0_30 = arith.constant 0 : index
    %64 = vector.load %arg9[%c0_29, %c0_30] : memref<64x64xbf16, #tpu.memory_space<vmem>>, vector<64x64xbf16>
    %cst_31 = arith.constant dense<0.000000e+00> : vector<24x64xf32>
    %65 = tpu.matmul %63, %64, %cst_31 {dimension_numbers = #tpu.dot_dimension_numbers<[1], [0], [0], [1], [0, 0, 1, 1], [], []>} : vector<24x64xbf16>, vector<64x64xbf16>, vector<24x64xf32> -> vector<24x64xf32>
    %c0_32 = arith.constant 0 : index
    %c0_33 = arith.constant 0 : index
    %66 = vector.load %arg10[%c0_32, %c0_33] : memref<1x64xf32, #tpu.memory_space<vmem>>, vector<1x64xf32>
    %67 = vector.broadcast %66 : vector<1x64xf32> to vector<24x64xf32>
    %68 = arith.addf %65, %67 : vector<24x64xf32>
    %69 = arith.extf %1 : vector<24x64xbf16> to vector<24x64xf32>
    %70 = arith.addf %69, %68 : vector<24x64xf32>
    %c0_34 = arith.constant 0 : index
    %c0_35 = arith.constant 0 : index
    %71 = vector.load %arg11[%c0_34, %c0_35] : memref<1x64xf32, #tpu.memory_space<vmem>>, vector<1x64xf32>
    %c0_36 = arith.constant 0 : index
    %c0_37 = arith.constant 0 : index
    %72 = vector.load %arg12[%c0_36, %c0_37] : memref<1x64xf32, #tpu.memory_space<vmem>>, vector<1x64xf32>
    %cst_38 = arith.constant dense<0.000000e+00> : vector<24xf32>
    %73 = vector.multi_reduction <add>, %70, %cst_38 [1] : vector<24x64xf32> to vector<24xf32>
    %74 = vector.shape_cast %73 : vector<24xf32> to vector<24x1xf32>
    %cst_39 = arith.constant 6.400000e+01 : f32
    %75 = vector.broadcast %cst_39 : f32 to vector<24x1xf32>
    %76 = arith.divf %74, %75 : vector<24x1xf32>
    %77 = vector.broadcast %76 : vector<24x1xf32> to vector<24x64xf32>
    %78 = arith.subf %70, %77 : vector<24x64xf32>
    %79 = arith.mulf %78, %78 : vector<24x64xf32>
    %cst_40 = arith.constant dense<0.000000e+00> : vector<24xf32>
    %80 = vector.multi_reduction <add>, %79, %cst_40 [1] : vector<24x64xf32> to vector<24xf32>
    %81 = vector.shape_cast %80 : vector<24xf32> to vector<24x1xf32>
    %cst_41 = arith.constant 6.400000e+01 : f32
    %82 = vector.broadcast %cst_41 : f32 to vector<24x1xf32>
    %83 = arith.divf %81, %82 : vector<24x1xf32>
    %cst_42 = arith.constant 9.99999997E-7 : f32
    %84 = vector.broadcast %cst_42 : f32 to vector<24x1xf32>
    %85 = arith.addf %83, %84 : vector<24x1xf32>
    %86 = math.rsqrt %85 : vector<24x1xf32>
    %87 = vector.broadcast %86 : vector<24x1xf32> to vector<24x64xf32>
    %88 = arith.mulf %78, %87 : vector<24x64xf32>
    %89 = vector.broadcast %71 : vector<1x64xf32> to vector<24x64xf32>
    %90 = arith.mulf %88, %89 : vector<24x64xf32>
    %91 = vector.broadcast %72 : vector<1x64xf32> to vector<24x64xf32>
    %92 = arith.addf %90, %91 : vector<24x64xf32>
    %93 = arith.truncf %92 : vector<24x64xf32> to vector<24x64xbf16>
    %c0_43 = arith.constant 0 : index
    %c0_44 = arith.constant 0 : index
    %c0_45 = arith.constant 0 : index
    %94 = vector.load %arg13[%c0_43, %c0_44, %c0_45] : memref<1x24x64xbf16, #tpu.memory_space<vmem>>, vector<1x24x64xbf16>
    %95 = vector.shape_cast %94 : vector<1x24x64xbf16> to vector<24x64xbf16>
    %96 = vector.shape_cast %93 : vector<24x64xbf16> to vector<1x24x64xbf16>
    tpu.vector_store %arg13[%c0_43, %c0_44, %c0_45], %96 {strides = array<i32>} : memref<1x24x64xbf16, #tpu.memory_space<vmem>>, vector<1x24x64xbf16>,
    return
  }
  func.func @transform_0(%arg0: i32) -> (i32, i32, i32) {
    %c0_i32 = arith.constant 0 : i32
    %c0_i32_0 = arith.constant 0 : i32
    %c0_i32_1 = arith.constant 0 : i32
    return %arg0, %c0_i32, %c0_i32_0 : i32, i32, i32
  }
  func.func @transform_1(%arg0: i32) -> (i32, i32, i32) {
    %c0_i32 = arith.constant 0 : i32
    %c0_i32_0 = arith.constant 0 : i32
    %c0_i32_1 = arith.constant 0 : i32
    return %arg0, %c0_i32, %c0_i32_0 : i32, i32, i32
  }
  func.func @transform_2(%arg0: i32) -> (i32, i32) {
    %c0_i32 = arith.constant 0 : i32
    %c0_i32_0 = arith.constant 0 : i32
    %c0_i32_1 = arith.constant 0 : i32
    return %c0_i32, %c0_i32_0 : i32, i32
  }
  func.func @transform_3(%arg0: i32) -> (i32, i32) {
    %c0_i32 = arith.constant 0 : i32
    %c0_i32_0 = arith.constant 0 : i32
    %c0_i32_1 = arith.constant 0 : i32
    return %c0_i32, %c0_i32_0 : i32, i32
  }
  func.func @transform_4(%arg0: i32) -> (i32, i32) {
    %c0_i32 = arith.constant 0 : i32
    %c0_i32_0 = arith.constant 0 : i32
    %c0_i32_1 = arith.constant 0 : i32
    return %c0_i32, %c0_i32_0 : i32, i32
  }
  func.func @transform_5(%arg0: i32) -> (i32, i32) {
    %c0_i32 = arith.constant 0 : i32
    %c0_i32_0 = arith.constant 0 : i32
    %c0_i32_1 = arith.constant 0 : i32
    return %c0_i32, %c0_i32_0 : i32, i32
  }
  func.func @transform_6(%arg0: i32) -> (i32, i32) {
    %c0_i32 = arith.constant 0 : i32
    %c0_i32_0 = arith.constant 0 : i32
    %c0_i32_1 = arith.constant 0 : i32
    return %c0_i32, %c0_i32_0 : i32, i32
  }
  func.func @transform_7(%arg0: i32) -> (i32, i32) {
    %c0_i32 = arith.constant 0 : i32
    %c0_i32_0 = arith.constant 0 : i32
    %c0_i32_1 = arith.constant 0 : i32
    return %c0_i32, %c0_i32_0 : i32, i32
  }
  func.func @transform_8(%arg0: i32) -> (i32, i32) {
    %c0_i32 = arith.constant 0 : i32
    %c0_i32_0 = arith.constant 0 : i32
    %c0_i32_1 = arith.constant 0 : i32
    return %c0_i32, %c0_i32_0 : i32, i32
  }
  func.func @transform_9(%arg0: i32) -> (i32, i32) {
    %c0_i32 = arith.constant 0 : i32
    %c0_i32_0 = arith.constant 0 : i32
    %c0_i32_1 = arith.constant 0 : i32
    return %c0_i32, %c0_i32_0 : i32, i32
  }
  func.func @transform_10(%arg0: i32) -> (i32, i32) {
    %c0_i32 = arith.constant 0 : i32
    %c0_i32_0 = arith.constant 0 : i32
    %c0_i32_1 = arith.constant 0 : i32
    return %c0_i32, %c0_i32_0 : i32, i32
  }
  func.func @transform_11(%arg0: i32) -> (i32, i32) {
    %c0_i32 = arith.constant 0 : i32
    %c0_i32_0 = arith.constant 0 : i32
    %c0_i32_1 = arith.constant 0 : i32
    return %c0_i32, %c0_i32_0 : i32, i32
  }
  func.func @transform_12(%arg0: i32) -> (i32, i32, i32) {
    %c0_i32 = arith.constant 0 : i32
    %c0_i32_0 = arith.constant 0 : i32
    %c0_i32_1 = arith.constant 0 : i32
    return %arg0, %c0_i32, %c0_i32_0 : i32, i32, i32
  }
}

module attributes {stable_mosaic.version = 11 : i64} {
  func.func @_fused_attn_ln_kernel(%arg0: i32, %arg1: memref<1x16x64xbf16, #tpu.memory_space<vmem>>, %arg2: memref<1x16x64xbf16, #tpu.memory_space<vmem>>, %arg3: memref<64x64xbf16, #tpu.memory_space<vmem>>, %arg4: memref<1x64xf32, #tpu.memory_space<vmem>>, %arg5: memref<64x64xbf16, #tpu.memory_space<vmem>>, %arg6: memref<1x64xf32, #tpu.memory_space<vmem>>, %arg7: memref<64x64xbf16, #tpu.memory_space<vmem>>, %arg8: memref<1x64xf32, #tpu.memory_space<vmem>>, %arg9: memref<64x64xbf16, #tpu.memory_space<vmem>>, %arg10: memref<1x64xf32, #tpu.memory_space<vmem>>, %arg11: memref<1x64xf32, #tpu.memory_space<vmem>>, %arg12: memref<1x64xf32, #tpu.memory_space<vmem>>, %arg13: memref<1x16x64xbf16, #tpu.memory_space<vmem>>) attributes {dimension_semantics = [#tpu.dimension_semantics<parallel>], iteration_bounds = array<i64: 2>, scalar_prefetch = 0 : i64, scratch_operands = 0 : i64, tpu.core_type = #tpu.core_type<tc>, window_params = [{transform_indices = @transform_0, window_bounds = array<i64: 1, 16, 64>}, {transform_indices = @transform_1, window_bounds = array<i64: 1, 16, 64>}, {pipeline_mode = #tpu.pipeline_mode<synchronous>, transform_indices = @transform_2, window_bounds = array<i64: 64, 64>}, {pipeline_mode = #tpu.pipeline_mode<synchronous>, transform_indices = @transform_3, window_bounds = array<i64: 1, 64>}, {pipeline_mode = #tpu.pipeline_mode<synchronous>, transform_indices = @transform_4, window_bounds = array<i64: 64, 64>}, {pipeline_mode = #tpu.pipeline_mode<synchronous>, transform_indices = @transform_5, window_bounds = array<i64: 1, 64>}, {pipeline_mode = #tpu.pipeline_mode<synchronous>, transform_indices = @transform_6, window_bounds = array<i64: 64, 64>}, {pipeline_mode = #tpu.pipeline_mode<synchronous>, transform_indices = @transform_7, window_bounds = array<i64: 1, 64>}, {pipeline_mode = #tpu.pipeline_mode<synchronous>, transform_indices = @transform_8, window_bounds = array<i64: 64, 64>}, {pipeline_mode = #tpu.pipeline_mode<synchronous>, transform_indices = @transform_9, window_bounds = array<i64: 1, 64>}, {pipeline_mode = #tpu.pipeline_mode<synchronous>, transform_indices = @transform_10, window_bounds = array<i64: 1, 64>}, {pipeline_mode = #tpu.pipeline_mode<synchronous>, transform_indices = @transform_11, window_bounds = array<i64: 1, 64>}, {transform_indices = @transform_12, window_bounds = array<i64: 1, 16, 64>}]} {
    %c0 = arith.constant 0 : index
    %c0_0 = arith.constant 0 : index
    %c0_1 = arith.constant 0 : index
    %0 = vector.load %arg1[%c0, %c0_0, %c0_1] : memref<1x16x64xbf16, #tpu.memory_space<vmem>>, vector<1x16x64xbf16>
    %1 = vector.shape_cast %0 : vector<1x16x64xbf16> to vector<16x64xbf16>
    %c0_2 = arith.constant 0 : index
    %c0_3 = arith.constant 0 : index
    %c0_4 = arith.constant 0 : index
    %2 = vector.load %arg2[%c0_2, %c0_3, %c0_4] : memref<1x16x64xbf16, #tpu.memory_space<vmem>>, vector<1x16x64xbf16>
    %3 = vector.shape_cast %2 : vector<1x16x64xbf16> to vector<16x64xbf16>
    %c0_5 = arith.constant 0 : index
    %c0_6 = arith.constant 0 : index
    %4 = vector.load %arg3[%c0_5, %c0_6] : memref<64x64xbf16, #tpu.memory_space<vmem>>, vector<64x64xbf16>
    %cst = arith.constant dense<0.000000e+00> : vector<16x64xf32>
    %5 = tpu.matmul %1, %4, %cst {dimension_numbers = #tpu.dot_dimension_numbers<[1], [0], [0], [1], [0, 0, 1, 1], [], []>} : vector<16x64xbf16>, vector<64x64xbf16>, vector<16x64xf32> -> vector<16x64xf32>
    %c0_7 = arith.constant 0 : index
    %c0_8 = arith.constant 0 : index
    %6 = vector.load %arg4[%c0_7, %c0_8] : memref<1x64xf32, #tpu.memory_space<vmem>>, vector<1x64xf32>
    %7 = vector.broadcast %6 : vector<1x64xf32> to vector<16x64xf32>
    %8 = arith.addf %5, %7 : vector<16x64xf32>
    %c0_9 = arith.constant 0 : index
    %c0_10 = arith.constant 0 : index
    %9 = vector.load %arg5[%c0_9, %c0_10] : memref<64x64xbf16, #tpu.memory_space<vmem>>, vector<64x64xbf16>
    %cst_11 = arith.constant dense<0.000000e+00> : vector<16x64xf32>
    %10 = tpu.matmul %3, %9, %cst_11 {dimension_numbers = #tpu.dot_dimension_numbers<[1], [0], [0], [1], [0, 0, 1, 1], [], []>} : vector<16x64xbf16>, vector<64x64xbf16>, vector<16x64xf32> -> vector<16x64xf32>
    %c0_12 = arith.constant 0 : index
    %c0_13 = arith.constant 0 : index
    %11 = vector.load %arg6[%c0_12, %c0_13] : memref<1x64xf32, #tpu.memory_space<vmem>>, vector<1x64xf32>
    %12 = vector.broadcast %11 : vector<1x64xf32> to vector<16x64xf32>
    %13 = arith.addf %10, %12 : vector<16x64xf32>
    %c0_14 = arith.constant 0 : index
    %c0_15 = arith.constant 0 : index
    %14 = vector.load %arg7[%c0_14, %c0_15] : memref<64x64xbf16, #tpu.memory_space<vmem>>, vector<64x64xbf16>
    %cst_16 = arith.constant dense<0.000000e+00> : vector<16x64xf32>
    %15 = tpu.matmul %3, %14, %cst_16 {dimension_numbers = #tpu.dot_dimension_numbers<[1], [0], [0], [1], [0, 0, 1, 1], [], []>} : vector<16x64xbf16>, vector<64x64xbf16>, vector<16x64xf32> -> vector<16x64xf32>
    %c0_17 = arith.constant 0 : index
    %c0_18 = arith.constant 0 : index
    %16 = vector.load %arg8[%c0_17, %c0_18] : memref<1x64xf32, #tpu.memory_space<vmem>>, vector<1x64xf32>
    %17 = vector.broadcast %16 : vector<1x64xf32> to vector<16x64xf32>
    %18 = arith.addf %15, %17 : vector<16x64xf32>
    %19 = vector.extract_strided_slice %8 {offsets = [0, 0], sizes = [16, 32], strides = [1, 1]} : vector<16x64xf32> to vector<16x32xf32>
    %20 = arith.truncf %19 : vector<16x32xf32> to vector<16x32xbf16>
    %21 = vector.extract_strided_slice %13 {offsets = [0, 0], sizes = [16, 32], strides = [1, 1]} : vector<16x64xf32> to vector<16x32xf32>
    %22 = arith.truncf %21 : vector<16x32xf32> to vector<16x32xbf16>
    %23 = vector.extract_strided_slice %18 {offsets = [0, 0], sizes = [16, 32], strides = [1, 1]} : vector<16x64xf32> to vector<16x32xf32>
    %24 = arith.truncf %23 : vector<16x32xf32> to vector<16x32xbf16>
    %cst_19 = arith.constant dense<0.000000e+00> : vector<16x16xf32>
    %25 = tpu.matmul %20, %22, %cst_19 {dimension_numbers = #tpu.dot_dimension_numbers<[1], [1], [0], [0], [0, 0, 1, 0], [], []>} : vector<16x32xbf16>, vector<16x32xbf16>, vector<16x16xf32> -> vector<16x16xf32>
    %cst_20 = arith.constant 0.176776692 : f32
    %26 = vector.broadcast %cst_20 : f32 to vector<16x16xf32>
    %27 = arith.mulf %25, %26 : vector<16x16xf32>
    %cst_21 = arith.constant dense<0xFF800000> : vector<16xf32>
    %28 = vector.multi_reduction <maximumf>, %27, %cst_21 [1] : vector<16x16xf32> to vector<16xf32>
    %29 = vector.shape_cast %28 : vector<16xf32> to vector<16x1xf32>
    %30 = vector.broadcast %29 : vector<16x1xf32> to vector<16x16xf32>
    %31 = arith.subf %27, %30 : vector<16x16xf32>
    %32 = math.exp %31 : vector<16x16xf32>
    %cst_22 = arith.constant dense<0.000000e+00> : vector<16xf32>
    %33 = vector.multi_reduction <add>, %32, %cst_22 [1] : vector<16x16xf32> to vector<16xf32>
    %34 = vector.shape_cast %33 : vector<16xf32> to vector<16x1xf32>
    %35 = tpu.reciprocal %34 {approx = true} : vector<16x1xf32> -> vector<16x1xf32>
    %36 = vector.broadcast %35 : vector<16x1xf32> to vector<16x16xf32>
    %37 = arith.mulf %32, %36 : vector<16x16xf32>
    %38 = arith.truncf %37 : vector<16x16xf32> to vector<16x16xbf16>
    %cst_23 = arith.constant dense<0.000000e+00> : vector<16x32xf32>
    %39 = tpu.matmul %38, %24, %cst_23 {dimension_numbers = #tpu.dot_dimension_numbers<[1], [0], [0], [1], [0, 0, 1, 1], [], []>} : vector<16x16xbf16>, vector<16x32xbf16>, vector<16x32xf32> -> vector<16x32xf32>
    %40 = vector.extract_strided_slice %8 {offsets = [0, 32], sizes = [16, 32], strides = [1, 1]} : vector<16x64xf32> to vector<16x32xf32>
    %41 = arith.truncf %40 : vector<16x32xf32> to vector<16x32xbf16>
    %42 = vector.extract_strided_slice %13 {offsets = [0, 32], sizes = [16, 32], strides = [1, 1]} : vector<16x64xf32> to vector<16x32xf32>
    %43 = arith.truncf %42 : vector<16x32xf32> to vector<16x32xbf16>
    %44 = vector.extract_strided_slice %18 {offsets = [0, 32], sizes = [16, 32], strides = [1, 1]} : vector<16x64xf32> to vector<16x32xf32>
    %45 = arith.truncf %44 : vector<16x32xf32> to vector<16x32xbf16>
    %cst_24 = arith.constant dense<0.000000e+00> : vector<16x16xf32>
    %46 = tpu.matmul %41, %43, %cst_24 {dimension_numbers = #tpu.dot_dimension_numbers<[1], [1], [0], [0], [0, 0, 1, 0], [], []>} : vector<16x32xbf16>, vector<16x32xbf16>, vector<16x16xf32> -> vector<16x16xf32>
    %cst_25 = arith.constant 0.176776692 : f32
    %47 = vector.broadcast %cst_25 : f32 to vector<16x16xf32>
    %48 = arith.mulf %46, %47 : vector<16x16xf32>
    %cst_26 = arith.constant dense<0xFF800000> : vector<16xf32>
    %49 = vector.multi_reduction <maximumf>, %48, %cst_26 [1] : vector<16x16xf32> to vector<16xf32>
    %50 = vector.shape_cast %49 : vector<16xf32> to vector<16x1xf32>
    %51 = vector.broadcast %50 : vector<16x1xf32> to vector<16x16xf32>
    %52 = arith.subf %48, %51 : vector<16x16xf32>
    %53 = math.exp %52 : vector<16x16xf32>
    %cst_27 = arith.constant dense<0.000000e+00> : vector<16xf32>
    %54 = vector.multi_reduction <add>, %53, %cst_27 [1] : vector<16x16xf32> to vector<16xf32>
    %55 = vector.shape_cast %54 : vector<16xf32> to vector<16x1xf32>
    %56 = tpu.reciprocal %55 {approx = true} : vector<16x1xf32> -> vector<16x1xf32>
    %57 = vector.broadcast %56 : vector<16x1xf32> to vector<16x16xf32>
    %58 = arith.mulf %53, %57 : vector<16x16xf32>
    %59 = arith.truncf %58 : vector<16x16xf32> to vector<16x16xbf16>
    %cst_28 = arith.constant dense<0.000000e+00> : vector<16x32xf32>
    %60 = tpu.matmul %59, %45, %cst_28 {dimension_numbers = #tpu.dot_dimension_numbers<[1], [0], [0], [1], [0, 0, 1, 1], [], []>} : vector<16x16xbf16>, vector<16x32xbf16>, vector<16x32xf32> -> vector<16x32xf32>
    %61 = tpu.concatenate %39, %60 in 1 : vector<16x32xf32>, vector<16x32xf32> -> vector<16x64xf32>
    %62 = arith.truncf %61 : vector<16x64xf32> to vector<16x64xbf16>
    %c0_29 = arith.constant 0 : index
    %c0_30 = arith.constant 0 : index
    %63 = vector.load %arg9[%c0_29, %c0_30] : memref<64x64xbf16, #tpu.memory_space<vmem>>, vector<64x64xbf16>
    %cst_31 = arith.constant dense<0.000000e+00> : vector<16x64xf32>
    %64 = tpu.matmul %62, %63, %cst_31 {dimension_numbers = #tpu.dot_dimension_numbers<[1], [0], [0], [1], [0, 0, 1, 1], [], []>} : vector<16x64xbf16>, vector<64x64xbf16>, vector<16x64xf32> -> vector<16x64xf32>
    %c0_32 = arith.constant 0 : index
    %c0_33 = arith.constant 0 : index
    %65 = vector.load %arg10[%c0_32, %c0_33] : memref<1x64xf32, #tpu.memory_space<vmem>>, vector<1x64xf32>
    %66 = vector.broadcast %65 : vector<1x64xf32> to vector<16x64xf32>
    %67 = arith.addf %64, %66 : vector<16x64xf32>
    %68 = arith.extf %1 : vector<16x64xbf16> to vector<16x64xf32>
    %69 = arith.addf %68, %67 : vector<16x64xf32>
    %c0_34 = arith.constant 0 : index
    %c0_35 = arith.constant 0 : index
    %70 = vector.load %arg11[%c0_34, %c0_35] : memref<1x64xf32, #tpu.memory_space<vmem>>, vector<1x64xf32>
    %c0_36 = arith.constant 0 : index
    %c0_37 = arith.constant 0 : index
    %71 = vector.load %arg12[%c0_36, %c0_37] : memref<1x64xf32, #tpu.memory_space<vmem>>, vector<1x64xf32>
    %cst_38 = arith.constant dense<0.000000e+00> : vector<16xf32>
    %72 = vector.multi_reduction <add>, %69, %cst_38 [1] : vector<16x64xf32> to vector<16xf32>
    %73 = vector.shape_cast %72 : vector<16xf32> to vector<16x1xf32>
    %cst_39 = arith.constant 6.400000e+01 : f32
    %74 = vector.broadcast %cst_39 : f32 to vector<16x1xf32>
    %75 = arith.divf %73, %74 : vector<16x1xf32>
    %76 = vector.broadcast %75 : vector<16x1xf32> to vector<16x64xf32>
    %77 = arith.subf %69, %76 : vector<16x64xf32>
    %78 = arith.mulf %77, %77 : vector<16x64xf32>
    %cst_40 = arith.constant dense<0.000000e+00> : vector<16xf32>
    %79 = vector.multi_reduction <add>, %78, %cst_40 [1] : vector<16x64xf32> to vector<16xf32>
    %80 = vector.shape_cast %79 : vector<16xf32> to vector<16x1xf32>
    %cst_41 = arith.constant 6.400000e+01 : f32
    %81 = vector.broadcast %cst_41 : f32 to vector<16x1xf32>
    %82 = arith.divf %80, %81 : vector<16x1xf32>
    %cst_42 = arith.constant 9.99999997E-7 : f32
    %83 = vector.broadcast %cst_42 : f32 to vector<16x1xf32>
    %84 = arith.addf %82, %83 : vector<16x1xf32>
    %85 = math.rsqrt %84 : vector<16x1xf32>
    %86 = vector.broadcast %85 : vector<16x1xf32> to vector<16x64xf32>
    %87 = arith.mulf %77, %86 : vector<16x64xf32>
    %88 = vector.broadcast %70 : vector<1x64xf32> to vector<16x64xf32>
    %89 = arith.mulf %87, %88 : vector<16x64xf32>
    %90 = vector.broadcast %71 : vector<1x64xf32> to vector<16x64xf32>
    %91 = arith.addf %89, %90 : vector<16x64xf32>
    %92 = arith.truncf %91 : vector<16x64xf32> to vector<16x64xbf16>
    %c0_43 = arith.constant 0 : index
    %c0_44 = arith.constant 0 : index
    %c0_45 = arith.constant 0 : index
    %93 = vector.load %arg13[%c0_43, %c0_44, %c0_45] : memref<1x16x64xbf16, #tpu.memory_space<vmem>>, vector<1x16x64xbf16>
    %94 = vector.shape_cast %93 : vector<1x16x64xbf16> to vector<16x64xbf16>
    %95 = vector.shape_cast %92 : vector<16x64xbf16> to vector<1x16x64xbf16>
    tpu.vector_store %arg13[%c0_43, %c0_44, %c0_45], %95 {strides = array<i32>} : memref<1x16x64xbf16, #tpu.memory_space<vmem>>, vector<1x16x64xbf16>,
    return
  }
  func.func @transform_0(%arg0: i32) -> (i32, i32, i32) {
    %c0_i32 = arith.constant 0 : i32
    %c0_i32_0 = arith.constant 0 : i32
    %c0_i32_1 = arith.constant 0 : i32
    return %arg0, %c0_i32, %c0_i32_0 : i32, i32, i32
  }
  func.func @transform_1(%arg0: i32) -> (i32, i32, i32) {
    %c0_i32 = arith.constant 0 : i32
    %c0_i32_0 = arith.constant 0 : i32
    %c0_i32_1 = arith.constant 0 : i32
    return %arg0, %c0_i32, %c0_i32_0 : i32, i32, i32
  }
  func.func @transform_2(%arg0: i32) -> (i32, i32) {
    %c0_i32 = arith.constant 0 : i32
    %c0_i32_0 = arith.constant 0 : i32
    %c0_i32_1 = arith.constant 0 : i32
    return %c0_i32, %c0_i32_0 : i32, i32
  }
  func.func @transform_3(%arg0: i32) -> (i32, i32) {
    %c0_i32 = arith.constant 0 : i32
    %c0_i32_0 = arith.constant 0 : i32
    %c0_i32_1 = arith.constant 0 : i32
    return %c0_i32, %c0_i32_0 : i32, i32
  }
  func.func @transform_4(%arg0: i32) -> (i32, i32) {
    %c0_i32 = arith.constant 0 : i32
    %c0_i32_0 = arith.constant 0 : i32
    %c0_i32_1 = arith.constant 0 : i32
    return %c0_i32, %c0_i32_0 : i32, i32
  }
  func.func @transform_5(%arg0: i32) -> (i32, i32) {
    %c0_i32 = arith.constant 0 : i32
    %c0_i32_0 = arith.constant 0 : i32
    %c0_i32_1 = arith.constant 0 : i32
    return %c0_i32, %c0_i32_0 : i32, i32
  }
  func.func @transform_6(%arg0: i32) -> (i32, i32) {
    %c0_i32 = arith.constant 0 : i32
    %c0_i32_0 = arith.constant 0 : i32
    %c0_i32_1 = arith.constant 0 : i32
    return %c0_i32, %c0_i32_0 : i32, i32
  }
  func.func @transform_7(%arg0: i32) -> (i32, i32) {
    %c0_i32 = arith.constant 0 : i32
    %c0_i32_0 = arith.constant 0 : i32
    %c0_i32_1 = arith.constant 0 : i32
    return %c0_i32, %c0_i32_0 : i32, i32
  }
  func.func @transform_8(%arg0: i32) -> (i32, i32) {
    %c0_i32 = arith.constant 0 : i32
    %c0_i32_0 = arith.constant 0 : i32
    %c0_i32_1 = arith.constant 0 : i32
    return %c0_i32, %c0_i32_0 : i32, i32
  }
  func.func @transform_9(%arg0: i32) -> (i32, i32) {
    %c0_i32 = arith.constant 0 : i32
    %c0_i32_0 = arith.constant 0 : i32
    %c0_i32_1 = arith.constant 0 : i32
    return %c0_i32, %c0_i32_0 : i32, i32
  }
  func.func @transform_10(%arg0: i32) -> (i32, i32) {
    %c0_i32 = arith.constant 0 : i32
    %c0_i32_0 = arith.constant 0 : i32
    %c0_i32_1 = arith.constant 0 : i32
    return %c0_i32, %c0_i32_0 : i32, i32
  }
  func.func @transform_11(%arg0: i32) -> (i32, i32) {
    %c0_i32 = arith.constant 0 : i32
    %c0_i32_0 = arith.constant 0 : i32
    %c0_i32_1 = arith.constant 0 : i32
    return %c0_i32, %c0_i32_0 : i32, i32
  }
  func.func @transform_12(%arg0: i32) -> (i32, i32, i32) {
    %c0_i32 = arith.constant 0 : i32
    %c0_i32_0 = arith.constant 0 : i32
    %c0_i32_1 = arith.constant 0 : i32
    return %arg0, %c0_i32, %c0_i32_0 : i32, i32, i32
  }
}

module attributes {stable_mosaic.version = 11 : i64} {
  func.func @_fused_mlp_ln_kernel(%arg0: i32, %arg1: memref<1x24x64xbf16, #tpu.memory_space<vmem>>, %arg2: memref<64x256xbf16, #tpu.memory_space<vmem>>, %arg3: memref<1x256xf32, #tpu.memory_space<vmem>>, %arg4: memref<256x64xbf16, #tpu.memory_space<vmem>>, %arg5: memref<1x64xf32, #tpu.memory_space<vmem>>, %arg6: memref<1x64xf32, #tpu.memory_space<vmem>>, %arg7: memref<1x64xf32, #tpu.memory_space<vmem>>, %arg8: memref<1x24x64xbf16, #tpu.memory_space<vmem>>) attributes {dimension_semantics = [#tpu.dimension_semantics<parallel>], iteration_bounds = array<i64: 2>, scalar_prefetch = 0 : i64, scratch_operands = 0 : i64, tpu.core_type = #tpu.core_type<tc>, window_params = [{transform_indices = @transform_0, window_bounds = array<i64: 1, 24, 64>}, {pipeline_mode = #tpu.pipeline_mode<synchronous>, transform_indices = @transform_1, window_bounds = array<i64: 64, 256>}, {pipeline_mode = #tpu.pipeline_mode<synchronous>, transform_indices = @transform_2, window_bounds = array<i64: 1, 256>}, {pipeline_mode = #tpu.pipeline_mode<synchronous>, transform_indices = @transform_3, window_bounds = array<i64: 256, 64>}, {pipeline_mode = #tpu.pipeline_mode<synchronous>, transform_indices = @transform_4, window_bounds = array<i64: 1, 64>}, {pipeline_mode = #tpu.pipeline_mode<synchronous>, transform_indices = @transform_5, window_bounds = array<i64: 1, 64>}, {pipeline_mode = #tpu.pipeline_mode<synchronous>, transform_indices = @transform_6, window_bounds = array<i64: 1, 64>}, {transform_indices = @transform_7, window_bounds = array<i64: 1, 24, 64>}]} {
    %c0 = arith.constant 0 : index
    %c0_0 = arith.constant 0 : index
    %c0_1 = arith.constant 0 : index
    %0 = vector.load %arg1[%c0, %c0_0, %c0_1] : memref<1x24x64xbf16, #tpu.memory_space<vmem>>, vector<1x24x64xbf16>
    %1 = vector.shape_cast %0 : vector<1x24x64xbf16> to vector<24x64xbf16>
    %c0_2 = arith.constant 0 : index
    %c0_3 = arith.constant 0 : index
    %2 = vector.load %arg2[%c0_2, %c0_3] : memref<64x256xbf16, #tpu.memory_space<vmem>>, vector<64x256xbf16>
    %c0_4 = arith.constant 0 : index
    %c0_5 = arith.constant 0 : index
    %3 = vector.load %arg3[%c0_4, %c0_5] : memref<1x256xf32, #tpu.memory_space<vmem>>, vector<1x256xf32>
    %c0_6 = arith.constant 0 : index
    %c0_7 = arith.constant 0 : index
    %4 = vector.load %arg4[%c0_6, %c0_7] : memref<256x64xbf16, #tpu.memory_space<vmem>>, vector<256x64xbf16>
    %c0_8 = arith.constant 0 : index
    %c0_9 = arith.constant 0 : index
    %5 = vector.load %arg5[%c0_8, %c0_9] : memref<1x64xf32, #tpu.memory_space<vmem>>, vector<1x64xf32>
    %c0_10 = arith.constant 0 : index
    %c0_11 = arith.constant 0 : index
    %6 = vector.load %arg6[%c0_10, %c0_11] : memref<1x64xf32, #tpu.memory_space<vmem>>, vector<1x64xf32>
    %c0_12 = arith.constant 0 : index
    %c0_13 = arith.constant 0 : index
    %7 = vector.load %arg7[%c0_12, %c0_13] : memref<1x64xf32, #tpu.memory_space<vmem>>, vector<1x64xf32>
    %cst = arith.constant dense<0.000000e+00> : vector<24x256xf32>
    %8 = tpu.matmul %1, %2, %cst {dimension_numbers = #tpu.dot_dimension_numbers<[1], [0], [0], [1], [0, 0, 1, 1], [], []>} : vector<24x64xbf16>, vector<64x256xbf16>, vector<24x256xf32> -> vector<24x256xf32>
    %9 = vector.broadcast %3 : vector<1x256xf32> to vector<24x256xf32>
    %10 = arith.addf %8, %9 : vector<24x256xf32>
    %cst_14 = arith.constant 5.000000e-01 : f32
    %11 = vector.broadcast %cst_14 : f32 to vector<24x256xf32>
    %12 = arith.mulf %11, %10 : vector<24x256xf32>
    %cst_15 = arith.constant 0.707106769 : f32
    %13 = vector.broadcast %cst_15 : f32 to vector<24x256xf32>
    %14 = arith.mulf %10, %13 : vector<24x256xf32>
    %15 = math.erf %14 : vector<24x256xf32>
    %cst_16 = arith.constant 1.000000e+00 : f32
    %16 = vector.broadcast %cst_16 : f32 to vector<24x256xf32>
    %17 = arith.addf %16, %15 : vector<24x256xf32>
    %18 = arith.mulf %12, %17 : vector<24x256xf32>
    %19 = arith.truncf %18 : vector<24x256xf32> to vector<24x256xbf16>
    %cst_17 = arith.constant dense<0.000000e+00> : vector<24x64xf32>
    %20 = tpu.matmul %19, %4, %cst_17 {dimension_numbers = #tpu.dot_dimension_numbers<[1], [0], [0], [1], [0, 0, 1, 1], [], []>} : vector<24x256xbf16>, vector<256x64xbf16>, vector<24x64xf32> -> vector<24x64xf32>
    %21 = vector.broadcast %5 : vector<1x64xf32> to vector<24x64xf32>
    %22 = arith.addf %20, %21 : vector<24x64xf32>
    %23 = arith.extf %1 : vector<24x64xbf16> to vector<24x64xf32>
    %24 = arith.addf %23, %22 : vector<24x64xf32>
    %cst_18 = arith.constant dense<0.000000e+00> : vector<24xf32>
    %25 = vector.multi_reduction <add>, %24, %cst_18 [1] : vector<24x64xf32> to vector<24xf32>
    %26 = vector.shape_cast %25 : vector<24xf32> to vector<24x1xf32>
    %cst_19 = arith.constant 6.400000e+01 : f32
    %27 = vector.broadcast %cst_19 : f32 to vector<24x1xf32>
    %28 = arith.divf %26, %27 : vector<24x1xf32>
    %29 = vector.broadcast %28 : vector<24x1xf32> to vector<24x64xf32>
    %30 = arith.subf %24, %29 : vector<24x64xf32>
    %31 = arith.mulf %30, %30 : vector<24x64xf32>
    %cst_20 = arith.constant dense<0.000000e+00> : vector<24xf32>
    %32 = vector.multi_reduction <add>, %31, %cst_20 [1] : vector<24x64xf32> to vector<24xf32>
    %33 = vector.shape_cast %32 : vector<24xf32> to vector<24x1xf32>
    %cst_21 = arith.constant 6.400000e+01 : f32
    %34 = vector.broadcast %cst_21 : f32 to vector<24x1xf32>
    %35 = arith.divf %33, %34 : vector<24x1xf32>
    %cst_22 = arith.constant 9.99999997E-7 : f32
    %36 = vector.broadcast %cst_22 : f32 to vector<24x1xf32>
    %37 = arith.addf %35, %36 : vector<24x1xf32>
    %38 = math.rsqrt %37 : vector<24x1xf32>
    %39 = vector.broadcast %38 : vector<24x1xf32> to vector<24x64xf32>
    %40 = arith.mulf %30, %39 : vector<24x64xf32>
    %41 = vector.broadcast %6 : vector<1x64xf32> to vector<24x64xf32>
    %42 = arith.mulf %40, %41 : vector<24x64xf32>
    %43 = vector.broadcast %7 : vector<1x64xf32> to vector<24x64xf32>
    %44 = arith.addf %42, %43 : vector<24x64xf32>
    %45 = arith.truncf %44 : vector<24x64xf32> to vector<24x64xbf16>
    %c0_23 = arith.constant 0 : index
    %c0_24 = arith.constant 0 : index
    %c0_25 = arith.constant 0 : index
    %46 = vector.load %arg8[%c0_23, %c0_24, %c0_25] : memref<1x24x64xbf16, #tpu.memory_space<vmem>>, vector<1x24x64xbf16>
    %47 = vector.shape_cast %46 : vector<1x24x64xbf16> to vector<24x64xbf16>
    %48 = vector.shape_cast %45 : vector<24x64xbf16> to vector<1x24x64xbf16>
    tpu.vector_store %arg8[%c0_23, %c0_24, %c0_25], %48 {strides = array<i32>} : memref<1x24x64xbf16, #tpu.memory_space<vmem>>, vector<1x24x64xbf16>,
    return
  }
  func.func @transform_0(%arg0: i32) -> (i32, i32, i32) {
    %c0_i32 = arith.constant 0 : i32
    %c0_i32_0 = arith.constant 0 : i32
    %c0_i32_1 = arith.constant 0 : i32
    return %arg0, %c0_i32, %c0_i32_0 : i32, i32, i32
  }
  func.func @transform_1(%arg0: i32) -> (i32, i32) {
    %c0_i32 = arith.constant 0 : i32
    %c0_i32_0 = arith.constant 0 : i32
    %c0_i32_1 = arith.constant 0 : i32
    return %c0_i32, %c0_i32_0 : i32, i32
  }
  func.func @transform_2(%arg0: i32) -> (i32, i32) {
    %c0_i32 = arith.constant 0 : i32
    %c0_i32_0 = arith.constant 0 : i32
    %c0_i32_1 = arith.constant 0 : i32
    return %c0_i32, %c0_i32_0 : i32, i32
  }
  func.func @transform_3(%arg0: i32) -> (i32, i32) {
    %c0_i32 = arith.constant 0 : i32
    %c0_i32_0 = arith.constant 0 : i32
    %c0_i32_1 = arith.constant 0 : i32
    return %c0_i32, %c0_i32_0 : i32, i32
  }
  func.func @transform_4(%arg0: i32) -> (i32, i32) {
    %c0_i32 = arith.constant 0 : i32
    %c0_i32_0 = arith.constant 0 : i32
    %c0_i32_1 = arith.constant 0 : i32
    return %c0_i32, %c0_i32_0 : i32, i32
  }
  func.func @transform_5(%arg0: i32) -> (i32, i32) {
    %c0_i32 = arith.constant 0 : i32
    %c0_i32_0 = arith.constant 0 : i32
    %c0_i32_1 = arith.constant 0 : i32
    return %c0_i32, %c0_i32_0 : i32, i32
  }
  func.func @transform_6(%arg0: i32) -> (i32, i32) {
    %c0_i32 = arith.constant 0 : i32
    %c0_i32_0 = arith.constant 0 : i32
    %c0_i32_1 = arith.constant 0 : i32
    return %c0_i32, %c0_i32_0 : i32, i32
  }
  func.func @transform_7(%arg0: i32) -> (i32, i32, i32) {
    %c0_i32 = arith.constant 0 : i32
    %c0_i32_0 = arith.constant 0 : i32
    %c0_i32_1 = arith.constant 0 : i32
    return %arg0, %c0_i32, %c0_i32_0 : i32, i32, i32
  }
}

module attributes {stable_mosaic.version = 11 : i64} {
  func.func @_fused_mlp_ln_kernel(%arg0: i32, %arg1: memref<1x16x64xbf16, #tpu.memory_space<vmem>>, %arg2: memref<64x256xbf16, #tpu.memory_space<vmem>>, %arg3: memref<1x256xf32, #tpu.memory_space<vmem>>, %arg4: memref<256x64xbf16, #tpu.memory_space<vmem>>, %arg5: memref<1x64xf32, #tpu.memory_space<vmem>>, %arg6: memref<1x64xf32, #tpu.memory_space<vmem>>, %arg7: memref<1x64xf32, #tpu.memory_space<vmem>>, %arg8: memref<1x16x64xbf16, #tpu.memory_space<vmem>>) attributes {dimension_semantics = [#tpu.dimension_semantics<parallel>], iteration_bounds = array<i64: 2>, scalar_prefetch = 0 : i64, scratch_operands = 0 : i64, tpu.core_type = #tpu.core_type<tc>, window_params = [{transform_indices = @transform_0, window_bounds = array<i64: 1, 16, 64>}, {pipeline_mode = #tpu.pipeline_mode<synchronous>, transform_indices = @transform_1, window_bounds = array<i64: 64, 256>}, {pipeline_mode = #tpu.pipeline_mode<synchronous>, transform_indices = @transform_2, window_bounds = array<i64: 1, 256>}, {pipeline_mode = #tpu.pipeline_mode<synchronous>, transform_indices = @transform_3, window_bounds = array<i64: 256, 64>}, {pipeline_mode = #tpu.pipeline_mode<synchronous>, transform_indices = @transform_4, window_bounds = array<i64: 1, 64>}, {pipeline_mode = #tpu.pipeline_mode<synchronous>, transform_indices = @transform_5, window_bounds = array<i64: 1, 64>}, {pipeline_mode = #tpu.pipeline_mode<synchronous>, transform_indices = @transform_6, window_bounds = array<i64: 1, 64>}, {transform_indices = @transform_7, window_bounds = array<i64: 1, 16, 64>}]} {
    %c0 = arith.constant 0 : index
    %c0_0 = arith.constant 0 : index
    %c0_1 = arith.constant 0 : index
    %0 = vector.load %arg1[%c0, %c0_0, %c0_1] : memref<1x16x64xbf16, #tpu.memory_space<vmem>>, vector<1x16x64xbf16>
    %1 = vector.shape_cast %0 : vector<1x16x64xbf16> to vector<16x64xbf16>
    %c0_2 = arith.constant 0 : index
    %c0_3 = arith.constant 0 : index
    %2 = vector.load %arg2[%c0_2, %c0_3] : memref<64x256xbf16, #tpu.memory_space<vmem>>, vector<64x256xbf16>
    %c0_4 = arith.constant 0 : index
    %c0_5 = arith.constant 0 : index
    %3 = vector.load %arg3[%c0_4, %c0_5] : memref<1x256xf32, #tpu.memory_space<vmem>>, vector<1x256xf32>
    %c0_6 = arith.constant 0 : index
    %c0_7 = arith.constant 0 : index
    %4 = vector.load %arg4[%c0_6, %c0_7] : memref<256x64xbf16, #tpu.memory_space<vmem>>, vector<256x64xbf16>
    %c0_8 = arith.constant 0 : index
    %c0_9 = arith.constant 0 : index
    %5 = vector.load %arg5[%c0_8, %c0_9] : memref<1x64xf32, #tpu.memory_space<vmem>>, vector<1x64xf32>
    %c0_10 = arith.constant 0 : index
    %c0_11 = arith.constant 0 : index
    %6 = vector.load %arg6[%c0_10, %c0_11] : memref<1x64xf32, #tpu.memory_space<vmem>>, vector<1x64xf32>
    %c0_12 = arith.constant 0 : index
    %c0_13 = arith.constant 0 : index
    %7 = vector.load %arg7[%c0_12, %c0_13] : memref<1x64xf32, #tpu.memory_space<vmem>>, vector<1x64xf32>
    %cst = arith.constant dense<0.000000e+00> : vector<16x256xf32>
    %8 = tpu.matmul %1, %2, %cst {dimension_numbers = #tpu.dot_dimension_numbers<[1], [0], [0], [1], [0, 0, 1, 1], [], []>} : vector<16x64xbf16>, vector<64x256xbf16>, vector<16x256xf32> -> vector<16x256xf32>
    %9 = vector.broadcast %3 : vector<1x256xf32> to vector<16x256xf32>
    %10 = arith.addf %8, %9 : vector<16x256xf32>
    %cst_14 = arith.constant 5.000000e-01 : f32
    %11 = vector.broadcast %cst_14 : f32 to vector<16x256xf32>
    %12 = arith.mulf %11, %10 : vector<16x256xf32>
    %cst_15 = arith.constant 0.707106769 : f32
    %13 = vector.broadcast %cst_15 : f32 to vector<16x256xf32>
    %14 = arith.mulf %10, %13 : vector<16x256xf32>
    %15 = math.erf %14 : vector<16x256xf32>
    %cst_16 = arith.constant 1.000000e+00 : f32
    %16 = vector.broadcast %cst_16 : f32 to vector<16x256xf32>
    %17 = arith.addf %16, %15 : vector<16x256xf32>
    %18 = arith.mulf %12, %17 : vector<16x256xf32>
    %19 = arith.truncf %18 : vector<16x256xf32> to vector<16x256xbf16>
    %cst_17 = arith.constant dense<0.000000e+00> : vector<16x64xf32>
    %20 = tpu.matmul %19, %4, %cst_17 {dimension_numbers = #tpu.dot_dimension_numbers<[1], [0], [0], [1], [0, 0, 1, 1], [], []>} : vector<16x256xbf16>, vector<256x64xbf16>, vector<16x64xf32> -> vector<16x64xf32>
    %21 = vector.broadcast %5 : vector<1x64xf32> to vector<16x64xf32>
    %22 = arith.addf %20, %21 : vector<16x64xf32>
    %23 = arith.extf %1 : vector<16x64xbf16> to vector<16x64xf32>
    %24 = arith.addf %23, %22 : vector<16x64xf32>
    %cst_18 = arith.constant dense<0.000000e+00> : vector<16xf32>
    %25 = vector.multi_reduction <add>, %24, %cst_18 [1] : vector<16x64xf32> to vector<16xf32>
    %26 = vector.shape_cast %25 : vector<16xf32> to vector<16x1xf32>
    %cst_19 = arith.constant 6.400000e+01 : f32
    %27 = vector.broadcast %cst_19 : f32 to vector<16x1xf32>
    %28 = arith.divf %26, %27 : vector<16x1xf32>
    %29 = vector.broadcast %28 : vector<16x1xf32> to vector<16x64xf32>
    %30 = arith.subf %24, %29 : vector<16x64xf32>
    %31 = arith.mulf %30, %30 : vector<16x64xf32>
    %cst_20 = arith.constant dense<0.000000e+00> : vector<16xf32>
    %32 = vector.multi_reduction <add>, %31, %cst_20 [1] : vector<16x64xf32> to vector<16xf32>
    %33 = vector.shape_cast %32 : vector<16xf32> to vector<16x1xf32>
    %cst_21 = arith.constant 6.400000e+01 : f32
    %34 = vector.broadcast %cst_21 : f32 to vector<16x1xf32>
    %35 = arith.divf %33, %34 : vector<16x1xf32>
    %cst_22 = arith.constant 9.99999997E-7 : f32
    %36 = vector.broadcast %cst_22 : f32 to vector<16x1xf32>
    %37 = arith.addf %35, %36 : vector<16x1xf32>
    %38 = math.rsqrt %37 : vector<16x1xf32>
    %39 = vector.broadcast %38 : vector<16x1xf32> to vector<16x64xf32>
    %40 = arith.mulf %30, %39 : vector<16x64xf32>
    %41 = vector.broadcast %6 : vector<1x64xf32> to vector<16x64xf32>
    %42 = arith.mulf %40, %41 : vector<16x64xf32>
    %43 = vector.broadcast %7 : vector<1x64xf32> to vector<16x64xf32>
    %44 = arith.addf %42, %43 : vector<16x64xf32>
    %45 = arith.truncf %44 : vector<16x64xf32> to vector<16x64xbf16>
    %c0_23 = arith.constant 0 : index
    %c0_24 = arith.constant 0 : index
    %c0_25 = arith.constant 0 : index
    %46 = vector.load %arg8[%c0_23, %c0_24, %c0_25] : memref<1x16x64xbf16, #tpu.memory_space<vmem>>, vector<1x16x64xbf16>
    %47 = vector.shape_cast %46 : vector<1x16x64xbf16> to vector<16x64xbf16>
    %48 = vector.shape_cast %45 : vector<16x64xbf16> to vector<1x16x64xbf16>
    tpu.vector_store %arg8[%c0_23, %c0_24, %c0_25], %48 {strides = array<i32>} : memref<1x16x64xbf16, #tpu.memory_space<vmem>>, vector<1x16x64xbf16>,
    return
  }
  func.func @transform_0(%arg0: i32) -> (i32, i32, i32) {
    %c0_i32 = arith.constant 0 : i32
    %c0_i32_0 = arith.constant 0 : i32
    %c0_i32_1 = arith.constant 0 : i32
    return %arg0, %c0_i32, %c0_i32_0 : i32, i32, i32
  }
  func.func @transform_1(%arg0: i32) -> (i32, i32) {
    %c0_i32 = arith.constant 0 : i32
    %c0_i32_0 = arith.constant 0 : i32
    %c0_i32_1 = arith.constant 0 : i32
    return %c0_i32, %c0_i32_0 : i32, i32
  }
  func.func @transform_2(%arg0: i32) -> (i32, i32) {
    %c0_i32 = arith.constant 0 : i32
    %c0_i32_0 = arith.constant 0 : i32
    %c0_i32_1 = arith.constant 0 : i32
    return %c0_i32, %c0_i32_0 : i32, i32
  }
  func.func @transform_3(%arg0: i32) -> (i32, i32) {
    %c0_i32 = arith.constant 0 : i32
    %c0_i32_0 = arith.constant 0 : i32
    %c0_i32_1 = arith.constant 0 : i32
    return %c0_i32, %c0_i32_0 : i32, i32
  }
  func.func @transform_4(%arg0: i32) -> (i32, i32) {
    %c0_i32 = arith.constant 0 : i32
    %c0_i32_0 = arith.constant 0 : i32
    %c0_i32_1 = arith.constant 0 : i32
    return %c0_i32, %c0_i32_0 : i32, i32
  }
  func.func @transform_5(%arg0: i32) -> (i32, i32) {
    %c0_i32 = arith.constant 0 : i32
    %c0_i32_0 = arith.constant 0 : i32
    %c0_i32_1 = arith.constant 0 : i32
    return %c0_i32, %c0_i32_0 : i32, i32
  }
  func.func @transform_6(%arg0: i32) -> (i32, i32) {
    %c0_i32 = arith.constant 0 : i32
    %c0_i32_0 = arith.constant 0 : i32
    %c0_i32_1 = arith.constant 0 : i32
    return %c0_i32, %c0_i32_0 : i32, i32
  }
  func.func @transform_7(%arg0: i32) -> (i32, i32, i32) {
    %c0_i32 = arith.constant 0 : i32
    %c0_i32_0 = arith.constant 0 : i32
    %c0_i32_1 = arith.constant 0 : i32
    return %arg0, %c0_i32, %c0_i32_0 : i32, i32, i32
  }
}

module attributes {stable_mosaic.version = 11 : i64} {
  func.func @_fused_mlp_ln_fc_kernel(%arg0: i32, %arg1: memref<1x8x64xbf16, #tpu.memory_space<vmem>>, %arg2: memref<64x256xbf16, #tpu.memory_space<vmem>>, %arg3: memref<1x256xf32, #tpu.memory_space<vmem>>, %arg4: memref<256x64xbf16, #tpu.memory_space<vmem>>, %arg5: memref<1x64xf32, #tpu.memory_space<vmem>>, %arg6: memref<1x64xf32, #tpu.memory_space<vmem>>, %arg7: memref<1x64xf32, #tpu.memory_space<vmem>>, %arg8: memref<64x128xbf16, #tpu.memory_space<vmem>>, %arg9: memref<1x128xf32, #tpu.memory_space<vmem>>, %arg10: memref<1x8x128xf32, #tpu.memory_space<vmem>>) attributes {dimension_semantics = [#tpu.dimension_semantics<parallel>], iteration_bounds = array<i64: 2>, scalar_prefetch = 0 : i64, scratch_operands = 0 : i64, tpu.core_type = #tpu.core_type<tc>, window_params = [{transform_indices = @transform_0, window_bounds = array<i64: 1, 8, 64>}, {pipeline_mode = #tpu.pipeline_mode<synchronous>, transform_indices = @transform_1, window_bounds = array<i64: 64, 256>}, {pipeline_mode = #tpu.pipeline_mode<synchronous>, transform_indices = @transform_2, window_bounds = array<i64: 1, 256>}, {pipeline_mode = #tpu.pipeline_mode<synchronous>, transform_indices = @transform_3, window_bounds = array<i64: 256, 64>}, {pipeline_mode = #tpu.pipeline_mode<synchronous>, transform_indices = @transform_4, window_bounds = array<i64: 1, 64>}, {pipeline_mode = #tpu.pipeline_mode<synchronous>, transform_indices = @transform_5, window_bounds = array<i64: 1, 64>}, {pipeline_mode = #tpu.pipeline_mode<synchronous>, transform_indices = @transform_6, window_bounds = array<i64: 1, 64>}, {pipeline_mode = #tpu.pipeline_mode<synchronous>, transform_indices = @transform_7, window_bounds = array<i64: 64, 128>}, {pipeline_mode = #tpu.pipeline_mode<synchronous>, transform_indices = @transform_8, window_bounds = array<i64: 1, 128>}, {transform_indices = @transform_9, window_bounds = array<i64: 1, 8, 128>}]} {
    %c0 = arith.constant 0 : index
    %c0_0 = arith.constant 0 : index
    %c0_1 = arith.constant 0 : index
    %0 = vector.load %arg1[%c0, %c0_0, %c0_1] : memref<1x8x64xbf16, #tpu.memory_space<vmem>>, vector<1x8x64xbf16>
    %1 = vector.shape_cast %0 : vector<1x8x64xbf16> to vector<8x64xbf16>
    %c0_2 = arith.constant 0 : index
    %c0_3 = arith.constant 0 : index
    %2 = vector.load %arg2[%c0_2, %c0_3] : memref<64x256xbf16, #tpu.memory_space<vmem>>, vector<64x256xbf16>
    %c0_4 = arith.constant 0 : index
    %c0_5 = arith.constant 0 : index
    %3 = vector.load %arg3[%c0_4, %c0_5] : memref<1x256xf32, #tpu.memory_space<vmem>>, vector<1x256xf32>
    %c0_6 = arith.constant 0 : index
    %c0_7 = arith.constant 0 : index
    %4 = vector.load %arg4[%c0_6, %c0_7] : memref<256x64xbf16, #tpu.memory_space<vmem>>, vector<256x64xbf16>
    %c0_8 = arith.constant 0 : index
    %c0_9 = arith.constant 0 : index
    %5 = vector.load %arg5[%c0_8, %c0_9] : memref<1x64xf32, #tpu.memory_space<vmem>>, vector<1x64xf32>
    %c0_10 = arith.constant 0 : index
    %c0_11 = arith.constant 0 : index
    %6 = vector.load %arg6[%c0_10, %c0_11] : memref<1x64xf32, #tpu.memory_space<vmem>>, vector<1x64xf32>
    %c0_12 = arith.constant 0 : index
    %c0_13 = arith.constant 0 : index
    %7 = vector.load %arg7[%c0_12, %c0_13] : memref<1x64xf32, #tpu.memory_space<vmem>>, vector<1x64xf32>
    %cst = arith.constant dense<0.000000e+00> : vector<8x256xf32>
    %8 = tpu.matmul %1, %2, %cst {dimension_numbers = #tpu.dot_dimension_numbers<[1], [0], [0], [1], [0, 0, 1, 1], [], []>} : vector<8x64xbf16>, vector<64x256xbf16>, vector<8x256xf32> -> vector<8x256xf32>
    %9 = vector.broadcast %3 : vector<1x256xf32> to vector<8x256xf32>
    %10 = arith.addf %8, %9 : vector<8x256xf32>
    %cst_14 = arith.constant 5.000000e-01 : f32
    %11 = vector.broadcast %cst_14 : f32 to vector<8x256xf32>
    %12 = arith.mulf %11, %10 : vector<8x256xf32>
    %cst_15 = arith.constant 0.707106769 : f32
    %13 = vector.broadcast %cst_15 : f32 to vector<8x256xf32>
    %14 = arith.mulf %10, %13 : vector<8x256xf32>
    %15 = math.erf %14 : vector<8x256xf32>
    %cst_16 = arith.constant 1.000000e+00 : f32
    %16 = vector.broadcast %cst_16 : f32 to vector<8x256xf32>
    %17 = arith.addf %16, %15 : vector<8x256xf32>
    %18 = arith.mulf %12, %17 : vector<8x256xf32>
    %19 = arith.truncf %18 : vector<8x256xf32> to vector<8x256xbf16>
    %cst_17 = arith.constant dense<0.000000e+00> : vector<8x64xf32>
    %20 = tpu.matmul %19, %4, %cst_17 {dimension_numbers = #tpu.dot_dimension_numbers<[1], [0], [0], [1], [0, 0, 1, 1], [], []>} : vector<8x256xbf16>, vector<256x64xbf16>, vector<8x64xf32> -> vector<8x64xf32>
    %21 = vector.broadcast %5 : vector<1x64xf32> to vector<8x64xf32>
    %22 = arith.addf %20, %21 : vector<8x64xf32>
    %23 = arith.extf %1 : vector<8x64xbf16> to vector<8x64xf32>
    %24 = arith.addf %23, %22 : vector<8x64xf32>
    %cst_18 = arith.constant dense<0.000000e+00> : vector<8xf32>
    %25 = vector.multi_reduction <add>, %24, %cst_18 [1] : vector<8x64xf32> to vector<8xf32>
    %26 = vector.shape_cast %25 : vector<8xf32> to vector<8x1xf32>
    %cst_19 = arith.constant 6.400000e+01 : f32
    %27 = vector.broadcast %cst_19 : f32 to vector<8x1xf32>
    %28 = arith.divf %26, %27 : vector<8x1xf32>
    %29 = vector.broadcast %28 : vector<8x1xf32> to vector<8x64xf32>
    %30 = arith.subf %24, %29 : vector<8x64xf32>
    %31 = arith.mulf %30, %30 : vector<8x64xf32>
    %cst_20 = arith.constant dense<0.000000e+00> : vector<8xf32>
    %32 = vector.multi_reduction <add>, %31, %cst_20 [1] : vector<8x64xf32> to vector<8xf32>
    %33 = vector.shape_cast %32 : vector<8xf32> to vector<8x1xf32>
    %cst_21 = arith.constant 6.400000e+01 : f32
    %34 = vector.broadcast %cst_21 : f32 to vector<8x1xf32>
    %35 = arith.divf %33, %34 : vector<8x1xf32>
    %cst_22 = arith.constant 9.99999997E-7 : f32
    %36 = vector.broadcast %cst_22 : f32 to vector<8x1xf32>
    %37 = arith.addf %35, %36 : vector<8x1xf32>
    %38 = math.rsqrt %37 : vector<8x1xf32>
    %39 = vector.broadcast %38 : vector<8x1xf32> to vector<8x64xf32>
    %40 = arith.mulf %30, %39 : vector<8x64xf32>
    %41 = vector.broadcast %6 : vector<1x64xf32> to vector<8x64xf32>
    %42 = arith.mulf %40, %41 : vector<8x64xf32>
    %43 = vector.broadcast %7 : vector<1x64xf32> to vector<8x64xf32>
    %44 = arith.addf %42, %43 : vector<8x64xf32>
    %45 = arith.truncf %44 : vector<8x64xf32> to vector<8x64xbf16>
    %c0_23 = arith.constant 0 : index
    %c0_24 = arith.constant 0 : index
    %46 = vector.load %arg8[%c0_23, %c0_24] : memref<64x128xbf16, #tpu.memory_space<vmem>>, vector<64x128xbf16>
    %cst_25 = arith.constant dense<0.000000e+00> : vector<8x128xf32>
    %47 = tpu.matmul %45, %46, %cst_25 {dimension_numbers = #tpu.dot_dimension_numbers<[1], [0], [0], [1], [0, 0, 1, 1], [], []>} : vector<8x64xbf16>, vector<64x128xbf16>, vector<8x128xf32> -> vector<8x128xf32>
    %c0_26 = arith.constant 0 : index
    %c0_27 = arith.constant 0 : index
    %48 = vector.load %arg9[%c0_26, %c0_27] : memref<1x128xf32, #tpu.memory_space<vmem>>, vector<1x128xf32>
    %49 = vector.broadcast %48 : vector<1x128xf32> to vector<8x128xf32>
    %50 = arith.addf %47, %49 : vector<8x128xf32>
    %c0_28 = arith.constant 0 : index
    %c0_29 = arith.constant 0 : index
    %c0_30 = arith.constant 0 : index
    %51 = vector.load %arg10[%c0_28, %c0_29, %c0_30] : memref<1x8x128xf32, #tpu.memory_space<vmem>>, vector<1x8x128xf32>
    %52 = vector.shape_cast %51 : vector<1x8x128xf32> to vector<8x128xf32>
    %53 = vector.shape_cast %50 : vector<8x128xf32> to vector<1x8x128xf32>
    tpu.vector_store %arg10[%c0_28, %c0_29, %c0_30], %53 {strides = array<i32>} : memref<1x8x128xf32, #tpu.memory_space<vmem>>, vector<1x8x128xf32>,
    return
  }
  func.func @transform_0(%arg0: i32) -> (i32, i32, i32) {
    %c0_i32 = arith.constant 0 : i32
    %c0_i32_0 = arith.constant 0 : i32
    %c0_i32_1 = arith.constant 0 : i32
    return %arg0, %c0_i32, %c0_i32_0 : i32, i32, i32
  }
  func.func @transform_1(%arg0: i32) -> (i32, i32) {
    %c0_i32 = arith.constant 0 : i32
    %c0_i32_0 = arith.constant 0 : i32
    %c0_i32_1 = arith.constant 0 : i32
    return %c0_i32, %c0_i32_0 : i32, i32
  }
  func.func @transform_2(%arg0: i32) -> (i32, i32) {
    %c0_i32 = arith.constant 0 : i32
    %c0_i32_0 = arith.constant 0 : i32
    %c0_i32_1 = arith.constant 0 : i32
    return %c0_i32, %c0_i32_0 : i32, i32
  }
  func.func @transform_3(%arg0: i32) -> (i32, i32) {
    %c0_i32 = arith.constant 0 : i32
    %c0_i32_0 = arith.constant 0 : i32
    %c0_i32_1 = arith.constant 0 : i32
    return %c0_i32, %c0_i32_0 : i32, i32
  }
  func.func @transform_4(%arg0: i32) -> (i32, i32) {
    %c0_i32 = arith.constant 0 : i32
    %c0_i32_0 = arith.constant 0 : i32
    %c0_i32_1 = arith.constant 0 : i32
    return %c0_i32, %c0_i32_0 : i32, i32
  }
  func.func @transform_5(%arg0: i32) -> (i32, i32) {
    %c0_i32 = arith.constant 0 : i32
    %c0_i32_0 = arith.constant 0 : i32
    %c0_i32_1 = arith.constant 0 : i32
    return %c0_i32, %c0_i32_0 : i32, i32
  }
  func.func @transform_6(%arg0: i32) -> (i32, i32) {
    %c0_i32 = arith.constant 0 : i32
    %c0_i32_0 = arith.constant 0 : i32
    %c0_i32_1 = arith.constant 0 : i32
    return %c0_i32, %c0_i32_0 : i32, i32
  }
  func.func @transform_7(%arg0: i32) -> (i32, i32) {
    %c0_i32 = arith.constant 0 : i32
    %c0_i32_0 = arith.constant 0 : i32
    %c0_i32_1 = arith.constant 0 : i32
    return %c0_i32, %c0_i32_0 : i32, i32
  }
  func.func @transform_8(%arg0: i32) -> (i32, i32) {
    %c0_i32 = arith.constant 0 : i32
    %c0_i32_0 = arith.constant 0 : i32
    %c0_i32_1 = arith.constant 0 : i32
    return %c0_i32, %c0_i32_0 : i32, i32
  }
  func.func @transform_9(%arg0: i32) -> (i32, i32, i32) {
    %c0_i32 = arith.constant 0 : i32
    %c0_i32_0 = arith.constant 0 : i32
    %c0_i32_1 = arith.constant 0 : i32
    return %arg0, %c0_i32, %c0_i32_0 : i32, i32, i32
  }
}

module attributes {stable_mosaic.version = 11 : i64} {
  func.func @_fused_attn_ln_kernel(%arg0: i32, %arg1: memref<1x24x64xbf16, #tpu.memory_space<vmem>>, %arg2: memref<1x16x64xbf16, #tpu.memory_space<vmem>>, %arg3: memref<64x64xbf16, #tpu.memory_space<vmem>>, %arg4: memref<1x64xf32, #tpu.memory_space<vmem>>, %arg5: memref<64x64xbf16, #tpu.memory_space<vmem>>, %arg6: memref<1x64xf32, #tpu.memory_space<vmem>>, %arg7: memref<64x64xbf16, #tpu.memory_space<vmem>>, %arg8: memref<1x64xf32, #tpu.memory_space<vmem>>, %arg9: memref<64x64xbf16, #tpu.memory_space<vmem>>, %arg10: memref<1x64xf32, #tpu.memory_space<vmem>>, %arg11: memref<1x64xf32, #tpu.memory_space<vmem>>, %arg12: memref<1x64xf32, #tpu.memory_space<vmem>>, %arg13: memref<1x8x64xbf16, #tpu.memory_space<vmem>>) attributes {dimension_semantics = [#tpu.dimension_semantics<parallel>], iteration_bounds = array<i64: 2>, scalar_prefetch = 0 : i64, scratch_operands = 0 : i64, tpu.core_type = #tpu.core_type<tc>, window_params = [{transform_indices = @transform_0, window_bounds = array<i64: 1, 24, 64>}, {transform_indices = @transform_1, window_bounds = array<i64: 1, 16, 64>}, {pipeline_mode = #tpu.pipeline_mode<synchronous>, transform_indices = @transform_2, window_bounds = array<i64: 64, 64>}, {pipeline_mode = #tpu.pipeline_mode<synchronous>, transform_indices = @transform_3, window_bounds = array<i64: 1, 64>}, {pipeline_mode = #tpu.pipeline_mode<synchronous>, transform_indices = @transform_4, window_bounds = array<i64: 64, 64>}, {pipeline_mode = #tpu.pipeline_mode<synchronous>, transform_indices = @transform_5, window_bounds = array<i64: 1, 64>}, {pipeline_mode = #tpu.pipeline_mode<synchronous>, transform_indices = @transform_6, window_bounds = array<i64: 64, 64>}, {pipeline_mode = #tpu.pipeline_mode<synchronous>, transform_indices = @transform_7, window_bounds = array<i64: 1, 64>}, {pipeline_mode = #tpu.pipeline_mode<synchronous>, transform_indices = @transform_8, window_bounds = array<i64: 64, 64>}, {pipeline_mode = #tpu.pipeline_mode<synchronous>, transform_indices = @transform_9, window_bounds = array<i64: 1, 64>}, {pipeline_mode = #tpu.pipeline_mode<synchronous>, transform_indices = @transform_10, window_bounds = array<i64: 1, 64>}, {pipeline_mode = #tpu.pipeline_mode<synchronous>, transform_indices = @transform_11, window_bounds = array<i64: 1, 64>}, {transform_indices = @transform_12, window_bounds = array<i64: 1, 8, 64>}]} {
    %c0 = arith.constant 0 : index
    %c0_0 = arith.constant 0 : index
    %c0_1 = arith.constant 0 : index
    %0 = vector.load %arg1[%c0, %c0_0, %c0_1] : memref<1x24x64xbf16, #tpu.memory_space<vmem>>, vector<1x24x64xbf16>
    %1 = vector.shape_cast %0 : vector<1x24x64xbf16> to vector<24x64xbf16>
    %2 = vector.extract_strided_slice %1 {offsets = [0, 0], sizes = [8, 64], strides = [1, 1]} : vector<24x64xbf16> to vector<8x64xbf16>
    %c0_2 = arith.constant 0 : index
    %c0_3 = arith.constant 0 : index
    %c0_4 = arith.constant 0 : index
    %3 = vector.load %arg2[%c0_2, %c0_3, %c0_4] : memref<1x16x64xbf16, #tpu.memory_space<vmem>>, vector<1x16x64xbf16>
    %4 = vector.shape_cast %3 : vector<1x16x64xbf16> to vector<16x64xbf16>
    %c0_5 = arith.constant 0 : index
    %c0_6 = arith.constant 0 : index
    %5 = vector.load %arg3[%c0_5, %c0_6] : memref<64x64xbf16, #tpu.memory_space<vmem>>, vector<64x64xbf16>
    %cst = arith.constant dense<0.000000e+00> : vector<8x64xf32>
    %6 = tpu.matmul %2, %5, %cst {dimension_numbers = #tpu.dot_dimension_numbers<[1], [0], [0], [1], [0, 0, 1, 1], [], []>} : vector<8x64xbf16>, vector<64x64xbf16>, vector<8x64xf32> -> vector<8x64xf32>
    %c0_7 = arith.constant 0 : index
    %c0_8 = arith.constant 0 : index
    %7 = vector.load %arg4[%c0_7, %c0_8] : memref<1x64xf32, #tpu.memory_space<vmem>>, vector<1x64xf32>
    %8 = vector.broadcast %7 : vector<1x64xf32> to vector<8x64xf32>
    %9 = arith.addf %6, %8 : vector<8x64xf32>
    %c0_9 = arith.constant 0 : index
    %c0_10 = arith.constant 0 : index
    %10 = vector.load %arg5[%c0_9, %c0_10] : memref<64x64xbf16, #tpu.memory_space<vmem>>, vector<64x64xbf16>
    %cst_11 = arith.constant dense<0.000000e+00> : vector<16x64xf32>
    %11 = tpu.matmul %4, %10, %cst_11 {dimension_numbers = #tpu.dot_dimension_numbers<[1], [0], [0], [1], [0, 0, 1, 1], [], []>} : vector<16x64xbf16>, vector<64x64xbf16>, vector<16x64xf32> -> vector<16x64xf32>
    %c0_12 = arith.constant 0 : index
    %c0_13 = arith.constant 0 : index
    %12 = vector.load %arg6[%c0_12, %c0_13] : memref<1x64xf32, #tpu.memory_space<vmem>>, vector<1x64xf32>
    %13 = vector.broadcast %12 : vector<1x64xf32> to vector<16x64xf32>
    %14 = arith.addf %11, %13 : vector<16x64xf32>
    %c0_14 = arith.constant 0 : index
    %c0_15 = arith.constant 0 : index
    %15 = vector.load %arg7[%c0_14, %c0_15] : memref<64x64xbf16, #tpu.memory_space<vmem>>, vector<64x64xbf16>
    %cst_16 = arith.constant dense<0.000000e+00> : vector<16x64xf32>
    %16 = tpu.matmul %4, %15, %cst_16 {dimension_numbers = #tpu.dot_dimension_numbers<[1], [0], [0], [1], [0, 0, 1, 1], [], []>} : vector<16x64xbf16>, vector<64x64xbf16>, vector<16x64xf32> -> vector<16x64xf32>
    %c0_17 = arith.constant 0 : index
    %c0_18 = arith.constant 0 : index
    %17 = vector.load %arg8[%c0_17, %c0_18] : memref<1x64xf32, #tpu.memory_space<vmem>>, vector<1x64xf32>
    %18 = vector.broadcast %17 : vector<1x64xf32> to vector<16x64xf32>
    %19 = arith.addf %16, %18 : vector<16x64xf32>
    %20 = vector.extract_strided_slice %9 {offsets = [0, 0], sizes = [8, 32], strides = [1, 1]} : vector<8x64xf32> to vector<8x32xf32>
    %21 = arith.truncf %20 : vector<8x32xf32> to vector<8x32xbf16>
    %22 = vector.extract_strided_slice %14 {offsets = [0, 0], sizes = [16, 32], strides = [1, 1]} : vector<16x64xf32> to vector<16x32xf32>
    %23 = arith.truncf %22 : vector<16x32xf32> to vector<16x32xbf16>
    %24 = vector.extract_strided_slice %19 {offsets = [0, 0], sizes = [16, 32], strides = [1, 1]} : vector<16x64xf32> to vector<16x32xf32>
    %25 = arith.truncf %24 : vector<16x32xf32> to vector<16x32xbf16>
    %cst_19 = arith.constant dense<0.000000e+00> : vector<8x16xf32>
    %26 = tpu.matmul %21, %23, %cst_19 {dimension_numbers = #tpu.dot_dimension_numbers<[1], [1], [0], [0], [0, 0, 1, 0], [], []>} : vector<8x32xbf16>, vector<16x32xbf16>, vector<8x16xf32> -> vector<8x16xf32>
    %cst_20 = arith.constant 1.000000e+00 : f32
    %27 = vector.broadcast %cst_20 : f32 to vector<8x16xf32>
    %28 = arith.mulf %26, %27 : vector<8x16xf32>
    %cst_21 = arith.constant dense<0xFF800000> : vector<8xf32>
    %29 = vector.multi_reduction <maximumf>, %28, %cst_21 [1] : vector<8x16xf32> to vector<8xf32>
    %30 = vector.shape_cast %29 : vector<8xf32> to vector<8x1xf32>
    %31 = vector.broadcast %30 : vector<8x1xf32> to vector<8x16xf32>
    %32 = arith.subf %28, %31 : vector<8x16xf32>
    %33 = math.exp %32 : vector<8x16xf32>
    %cst_22 = arith.constant dense<0.000000e+00> : vector<8xf32>
    %34 = vector.multi_reduction <add>, %33, %cst_22 [1] : vector<8x16xf32> to vector<8xf32>
    %35 = vector.shape_cast %34 : vector<8xf32> to vector<8x1xf32>
    %36 = tpu.reciprocal %35 {approx = true} : vector<8x1xf32> -> vector<8x1xf32>
    %37 = vector.broadcast %36 : vector<8x1xf32> to vector<8x16xf32>
    %38 = arith.mulf %33, %37 : vector<8x16xf32>
    %39 = arith.truncf %38 : vector<8x16xf32> to vector<8x16xbf16>
    %cst_23 = arith.constant dense<0.000000e+00> : vector<8x32xf32>
    %40 = tpu.matmul %39, %25, %cst_23 {dimension_numbers = #tpu.dot_dimension_numbers<[1], [0], [0], [1], [0, 0, 1, 1], [], []>} : vector<8x16xbf16>, vector<16x32xbf16>, vector<8x32xf32> -> vector<8x32xf32>
    %41 = vector.extract_strided_slice %9 {offsets = [0, 32], sizes = [8, 32], strides = [1, 1]} : vector<8x64xf32> to vector<8x32xf32>
    %42 = arith.truncf %41 : vector<8x32xf32> to vector<8x32xbf16>
    %43 = vector.extract_strided_slice %14 {offsets = [0, 32], sizes = [16, 32], strides = [1, 1]} : vector<16x64xf32> to vector<16x32xf32>
    %44 = arith.truncf %43 : vector<16x32xf32> to vector<16x32xbf16>
    %45 = vector.extract_strided_slice %19 {offsets = [0, 32], sizes = [16, 32], strides = [1, 1]} : vector<16x64xf32> to vector<16x32xf32>
    %46 = arith.truncf %45 : vector<16x32xf32> to vector<16x32xbf16>
    %cst_24 = arith.constant dense<0.000000e+00> : vector<8x16xf32>
    %47 = tpu.matmul %42, %44, %cst_24 {dimension_numbers = #tpu.dot_dimension_numbers<[1], [1], [0], [0], [0, 0, 1, 0], [], []>} : vector<8x32xbf16>, vector<16x32xbf16>, vector<8x16xf32> -> vector<8x16xf32>
    %cst_25 = arith.constant 1.000000e+00 : f32
    %48 = vector.broadcast %cst_25 : f32 to vector<8x16xf32>
    %49 = arith.mulf %47, %48 : vector<8x16xf32>
    %cst_26 = arith.constant dense<0xFF800000> : vector<8xf32>
    %50 = vector.multi_reduction <maximumf>, %49, %cst_26 [1] : vector<8x16xf32> to vector<8xf32>
    %51 = vector.shape_cast %50 : vector<8xf32> to vector<8x1xf32>
    %52 = vector.broadcast %51 : vector<8x1xf32> to vector<8x16xf32>
    %53 = arith.subf %49, %52 : vector<8x16xf32>
    %54 = math.exp %53 : vector<8x16xf32>
    %cst_27 = arith.constant dense<0.000000e+00> : vector<8xf32>
    %55 = vector.multi_reduction <add>, %54, %cst_27 [1] : vector<8x16xf32> to vector<8xf32>
    %56 = vector.shape_cast %55 : vector<8xf32> to vector<8x1xf32>
    %57 = tpu.reciprocal %56 {approx = true} : vector<8x1xf32> -> vector<8x1xf32>
    %58 = vector.broadcast %57 : vector<8x1xf32> to vector<8x16xf32>
    %59 = arith.mulf %54, %58 : vector<8x16xf32>
    %60 = arith.truncf %59 : vector<8x16xf32> to vector<8x16xbf16>
    %cst_28 = arith.constant dense<0.000000e+00> : vector<8x32xf32>
    %61 = tpu.matmul %60, %46, %cst_28 {dimension_numbers = #tpu.dot_dimension_numbers<[1], [0], [0], [1], [0, 0, 1, 1], [], []>} : vector<8x16xbf16>, vector<16x32xbf16>, vector<8x32xf32> -> vector<8x32xf32>
    %62 = tpu.concatenate %40, %61 in 1 : vector<8x32xf32>, vector<8x32xf32> -> vector<8x64xf32>
    %63 = arith.truncf %62 : vector<8x64xf32> to vector<8x64xbf16>
    %c0_29 = arith.constant 0 : index
    %c0_30 = arith.constant 0 : index
    %64 = vector.load %arg9[%c0_29, %c0_30] : memref<64x64xbf16, #tpu.memory_space<vmem>>, vector<64x64xbf16>
    %cst_31 = arith.constant dense<0.000000e+00> : vector<8x64xf32>
    %65 = tpu.matmul %63, %64, %cst_31 {dimension_numbers = #tpu.dot_dimension_numbers<[1], [0], [0], [1], [0, 0, 1, 1], [], []>} : vector<8x64xbf16>, vector<64x64xbf16>, vector<8x64xf32> -> vector<8x64xf32>
    %c0_32 = arith.constant 0 : index
    %c0_33 = arith.constant 0 : index
    %66 = vector.load %arg10[%c0_32, %c0_33] : memref<1x64xf32, #tpu.memory_space<vmem>>, vector<1x64xf32>
    %67 = vector.broadcast %66 : vector<1x64xf32> to vector<8x64xf32>
    %68 = arith.addf %65, %67 : vector<8x64xf32>
    %69 = arith.extf %2 : vector<8x64xbf16> to vector<8x64xf32>
    %70 = arith.addf %69, %68 : vector<8x64xf32>
    %c0_34 = arith.constant 0 : index
    %c0_35 = arith.constant 0 : index
    %71 = vector.load %arg11[%c0_34, %c0_35] : memref<1x64xf32, #tpu.memory_space<vmem>>, vector<1x64xf32>
    %c0_36 = arith.constant 0 : index
    %c0_37 = arith.constant 0 : index
    %72 = vector.load %arg12[%c0_36, %c0_37] : memref<1x64xf32, #tpu.memory_space<vmem>>, vector<1x64xf32>
    %cst_38 = arith.constant dense<0.000000e+00> : vector<8xf32>
    %73 = vector.multi_reduction <add>, %70, %cst_38 [1] : vector<8x64xf32> to vector<8xf32>
    %74 = vector.shape_cast %73 : vector<8xf32> to vector<8x1xf32>
    %cst_39 = arith.constant 6.400000e+01 : f32
    %75 = vector.broadcast %cst_39 : f32 to vector<8x1xf32>
    %76 = arith.divf %74, %75 : vector<8x1xf32>
    %77 = vector.broadcast %76 : vector<8x1xf32> to vector<8x64xf32>
    %78 = arith.subf %70, %77 : vector<8x64xf32>
    %79 = arith.mulf %78, %78 : vector<8x64xf32>
    %cst_40 = arith.constant dense<0.000000e+00> : vector<8xf32>
    %80 = vector.multi_reduction <add>, %79, %cst_40 [1] : vector<8x64xf32> to vector<8xf32>
    %81 = vector.shape_cast %80 : vector<8xf32> to vector<8x1xf32>
    %cst_41 = arith.constant 6.400000e+01 : f32
    %82 = vector.broadcast %cst_41 : f32 to vector<8x1xf32>
    %83 = arith.divf %81, %82 : vector<8x1xf32>
    %cst_42 = arith.constant 9.99999997E-7 : f32
    %84 = vector.broadcast %cst_42 : f32 to vector<8x1xf32>
    %85 = arith.addf %83, %84 : vector<8x1xf32>
    %86 = math.rsqrt %85 : vector<8x1xf32>
    %87 = vector.broadcast %86 : vector<8x1xf32> to vector<8x64xf32>
    %88 = arith.mulf %78, %87 : vector<8x64xf32>
    %89 = vector.broadcast %71 : vector<1x64xf32> to vector<8x64xf32>
    %90 = arith.mulf %88, %89 : vector<8x64xf32>
    %91 = vector.broadcast %72 : vector<1x64xf32> to vector<8x64xf32>
    %92 = arith.addf %90, %91 : vector<8x64xf32>
    %93 = arith.truncf %92 : vector<8x64xf32> to vector<8x64xbf16>
    %c0_43 = arith.constant 0 : index
    %c0_44 = arith.constant 0 : index
    %c0_45 = arith.constant 0 : index
    %94 = vector.load %arg13[%c0_43, %c0_44, %c0_45] : memref<1x8x64xbf16, #tpu.memory_space<vmem>>, vector<1x8x64xbf16>
    %95 = vector.shape_cast %94 : vector<1x8x64xbf16> to vector<8x64xbf16>
    %96 = vector.shape_cast %93 : vector<8x64xbf16> to vector<1x8x64xbf16>
    tpu.vector_store %arg13[%c0_43, %c0_44, %c0_45], %96 {strides = array<i32>} : memref<1x8x64xbf16, #tpu.memory_space<vmem>>, vector<1x8x64xbf16>,
    return
  }
  func.func @transform_0(%arg0: i32) -> (i32, i32, i32) {
    %c0_i32 = arith.constant 0 : i32
    %c0_i32_0 = arith.constant 0 : i32
    %c0_i32_1 = arith.constant 0 : i32
    return %arg0, %c0_i32, %c0_i32_0 : i32, i32, i32
  }
  func.func @transform_1(%arg0: i32) -> (i32, i32, i32) {
    %c0_i32 = arith.constant 0 : i32
    %c0_i32_0 = arith.constant 0 : i32
    %c0_i32_1 = arith.constant 0 : i32
    return %arg0, %c0_i32, %c0_i32_0 : i32, i32, i32
  }
  func.func @transform_2(%arg0: i32) -> (i32, i32) {
    %c0_i32 = arith.constant 0 : i32
    %c0_i32_0 = arith.constant 0 : i32
    %c0_i32_1 = arith.constant 0 : i32
    return %c0_i32, %c0_i32_0 : i32, i32
  }
  func.func @transform_3(%arg0: i32) -> (i32, i32) {
    %c0_i32 = arith.constant 0 : i32
    %c0_i32_0 = arith.constant 0 : i32
    %c0_i32_1 = arith.constant 0 : i32
    return %c0_i32, %c0_i32_0 : i32, i32
  }
  func.func @transform_4(%arg0: i32) -> (i32, i32) {
    %c0_i32 = arith.constant 0 : i32
    %c0_i32_0 = arith.constant 0 : i32
    %c0_i32_1 = arith.constant 0 : i32
    return %c0_i32, %c0_i32_0 : i32, i32
  }
  func.func @transform_5(%arg0: i32) -> (i32, i32) {
    %c0_i32 = arith.constant 0 : i32
    %c0_i32_0 = arith.constant 0 : i32
    %c0_i32_1 = arith.constant 0 : i32
    return %c0_i32, %c0_i32_0 : i32, i32
  }
  func.func @transform_6(%arg0: i32) -> (i32, i32) {
    %c0_i32 = arith.constant 0 : i32
    %c0_i32_0 = arith.constant 0 : i32
    %c0_i32_1 = arith.constant 0 : i32
    return %c0_i32, %c0_i32_0 : i32, i32
  }
  func.func @transform_7(%arg0: i32) -> (i32, i32) {
    %c0_i32 = arith.constant 0 : i32
    %c0_i32_0 = arith.constant 0 : i32
    %c0_i32_1 = arith.constant 0 : i32
    return %c0_i32, %c0_i32_0 : i32, i32
  }
  func.func @transform_8(%arg0: i32) -> (i32, i32) {
    %c0_i32 = arith.constant 0 : i32
    %c0_i32_0 = arith.constant 0 : i32
    %c0_i32_1 = arith.constant 0 : i32
    return %c0_i32, %c0_i32_0 : i32, i32
  }
  func.func @transform_9(%arg0: i32) -> (i32, i32) {
    %c0_i32 = arith.constant 0 : i32
    %c0_i32_0 = arith.constant 0 : i32
    %c0_i32_1 = arith.constant 0 : i32
    return %c0_i32, %c0_i32_0 : i32, i32
  }
  func.func @transform_10(%arg0: i32) -> (i32, i32) {
    %c0_i32 = arith.constant 0 : i32
    %c0_i32_0 = arith.constant 0 : i32
    %c0_i32_1 = arith.constant 0 : i32
    return %c0_i32, %c0_i32_0 : i32, i32
  }
  func.func @transform_11(%arg0: i32) -> (i32, i32) {
    %c0_i32 = arith.constant 0 : i32
    %c0_i32_0 = arith.constant 0 : i32
    %c0_i32_1 = arith.constant 0 : i32
    return %c0_i32, %c0_i32_0 : i32, i32
  }
  func.func @transform_12(%arg0: i32) -> (i32, i32, i32) {
    %c0_i32 = arith.constant 0 : i32
    %c0_i32_0 = arith.constant 0 : i32
    %c0_i32_1 = arith.constant 0 : i32
    return %arg0, %c0_i32, %c0_i32_0 : i32, i32, i32
  }
}

</mosaic_0001>

<llo_original>
// kernel: cppd_head_forward_test.11
$region0: #{cppd_head_forward_test.11}
  #allocation0 [shape = 'u32[]', space=smem, size = 0x4, offset = 0x4, fixed_abs, tag = 'smem constant byte address 0x4 - core index']
  #allocation1 [shape = 'u32[144,128]{1,0:T(1,128)}', space=vmem, size = 0x12000, scoped, tag = 'internal scratch']
  %s0 = inlined_call_operand.vmem [shape: bf16[2,16,64], index: 0, kind: input, shape index: {}]
  %s1 = inlined_call_operand.vmem [shape: bf16[64,256], index: 1, kind: input, shape index: {}]
  %s2 = inlined_call_operand.vmem [shape: f32[1,256], index: 2, kind: input, shape index: {}]
  %s3 = inlined_call_operand.vmem [shape: bf16[256,64], index: 3, kind: input, shape index: {}]
  %s4 = inlined_call_operand.vmem [shape: f32[1,64], index: 4, kind: input, shape index: {}]
  %s5 = inlined_call_operand.vmem [shape: f32[1,64], index: 5, kind: input, shape index: {}]
  %s6 = inlined_call_operand.vmem [shape: f32[1,64], index: 6, kind: input, shape index: {}]
  %s7 = inlined_call_operand.vmem [shape: bf16[2,16,64], index: 7, kind: output, shape index: {}]
  %s8 = sld [smem:[#allocation0]]
  $region61: #{cppd_head_forward_test.11} parent=0
    _
  %s10 = ssub.s32 1, %s8
  %s11 = scalar_select 0, %s10, %s8
  loop: start=0, step=1, limit=4
  $region2: #{cppd_head_forward_test.11} parent=0 // loop_pre_header
    _
  $region3: #{cppd_head_forward_test.11} parent=0 // loop_header
    %s13 = sphi 0, %s17
    %p14 = scmp.ge.s32.totalorder %s13, 4
    %s23 = sphi 0, %s25
    %s26 = sphi 0, %s23
    %s27 = sphi 0, %s26
    %s43 = sphi 0, %s27
    %s47 = sphi 0, %s47
    %s49 = sphi 0, %s47
    %s50 = sphi 0, %s49
    %s64 = sphi 0, %s50
    %s68 = sphi 0, %s68
    %s70 = sphi 0, %s68
    %s71 = sphi 0, %s70
    %s85 = sphi 0, %s71
    %s89 = sphi 0, %s89
    %s91 = sphi 0, %s89
    %s92 = sphi 0, %s91
    %s106 = sphi 0, %s92
    %s110 = sphi 0, %s110
    %s112 = sphi 0, %s110
    %s113 = sphi 0, %s112
    %s127 = sphi 0, %s113
    %s131 = sphi 0, %s131
    %s133 = sphi 0, %s131
    %s134 = sphi 0, %s133
    %s148 = sphi 0, %s134
    %s152 = sphi 0, %s152
    %s154 = sphi 0, %s152
    %s155 = sphi 0, %s154
    %s169 = sphi 0, %s155
    %s175 = sphi 0, %s177
    %s178 = sphi 0, %s175
    %s179 = sphi 0, %s178
    %s195 = sphi 0, %s179
  $region4: #{cppd_head_forward_test.11} parent=0 // loop_header_branch
    %16 = sbr.rel (%p14) target = $region8
  $region5: #{cppd_head_forward_test.11} parent=0 // loop_body
    %s18 = ssub.s32 %s13, 1
    %s19 = ssub.s32 %s13, 2
    %s20 = sadd.s32 %s13, 1
    %s21 = ssub.s32 %s13, %s20
    %p22 = scmp.eq.s32.totalorder %s21, 0
    %s24 = sadd.s32 %s23, 1
    %s25 = scalar_select %p22, %s23, %s24
    %p28 = pneg %p22
    %p29 = scmp.eq.s32.totalorder %s13, 1
    %p30 = por %p28, %p29
    %p31 = scmp.ne.s32.totalorder %s23, %s26
    %p32 = scmp.eq.s32.totalorder %s13, 0
    %p33 = por %p31, %p32
    %p34 = scmp.ne.s32.totalorder %s23, %s26
    %p35 = scmp.eq.s32.totalorder %s18, 1
    %p36 = por %p34, %p35
    %p37 = scmp.ne.s32.totalorder %s26, %s27
    %p38 = scmp.eq.s32.totalorder %s18, 0
    %p39 = por %p37, %p38
    %p40 = scmp.ne.s32.totalorder %s26, %s27
    %p41 = scmp.eq.s32.totalorder %s19, 1
    %p42 = por %p40, %p41
    %p44 = scmp.ne.s32.totalorder %s27, %s43
    %p45 = scmp.eq.s32.totalorder %s19, 0
    %p46 = por %p44, %p45
    %s48 = sadd.s32 %s47, 1
    %p51 = scmp.eq.s32.totalorder %s13, 1
    %p52 = scmp.ne.s32.totalorder %s47, %s49
    %p53 = scmp.eq.s32.totalorder %s13, 0
    %p54 = por %p52, %p53
    %p55 = scmp.ne.s32.totalorder %s47, %s49
    %p56 = scmp.eq.s32.totalorder %s18, 1
    %p57 = por %p55, %p56
    %p58 = scmp.ne.s32.totalorder %s49, %s50
    %p59 = scmp.eq.s32.totalorder %s18, 0
    %p60 = por %p58, %p59
    %p61 = scmp.ne.s32.totalorder %s49, %s50
    %p62 = scmp.eq.s32.totalorder %s19, 1
    %p63 = por %p61, %p62
    %p65 = scmp.ne.s32.totalorder %s50, %s64
    %p66 = scmp.eq.s32.totalorder %s19, 0
    %p67 = por %p65, %p66
    %s69 = sadd.s32 %s68, 1
    %p72 = scmp.eq.s32.totalorder %s13, 1
    %p73 = scmp.ne.s32.totalorder %s68, %s70
    %p74 = scmp.eq.s32.totalorder %s13, 0
    %p75 = por %p73, %p74
    %p76 = scmp.ne.s32.totalorder %s68, %s70
    %p77 = scmp.eq.s32.totalorder %s18, 1
    %p78 = por %p76, %p77
    %p79 = scmp.ne.s32.totalorder %s70, %s71
    %p80 = scmp.eq.s32.totalorder %s18, 0
    %p81 = por %p79, %p80
    %p82 = scmp.ne.s32.totalorder %s70, %s71
    %p83 = scmp.eq.s32.totalorder %s19, 1
    %p84 = por %p82, %p83
    %p86 = scmp.ne.s32.totalorder %s71, %s85
    %p87 = scmp.eq.s32.totalorder %s19, 0
    %p88 = por %p86, %p87
    %s90 = sadd.s32 %s89, 1
    %p93 = scmp.eq.s32.totalorder %s13, 1
    %p94 = scmp.ne.s32.totalorder %s89, %s91
    %p95 = scmp.eq.s32.totalorder %s13, 0
    %p96 = por %p94, %p95
    %p97 = scmp.ne.s32.totalorder %s89, %s91
    %p98 = scmp.eq.s32.totalorder %s18, 1
    %p99 = por %p97, %p98
    %p100 = scmp.ne.s32.totalorder %s91, %s92
    %p101 = scmp.eq.s32.totalorder %s18, 0
    %p102 = por %p100, %p101
    %p103 = scmp.ne.s32.totalorder %s91, %s92
    %p104 = scmp.eq.s32.totalorder %s19, 1
    %p105 = por %p103, %p104
    %p107 = scmp.ne.s32.totalorder %s92, %s106
    %p108 = scmp.eq.s32.totalorder %s19, 0
    %p109 = por %p107, %p108
    %s111 = sadd.s32 %s110, 1
    %p114 = scmp.eq.s32.totalorder %s13, 1
    %p115 = scmp.ne.s32.totalorder %s110, %s112
    %p116 = scmp.eq.s32.totalorder %s13, 0
    %p117 = por %p115, %p116
    %p118 = scmp.ne.s32.totalorder %s110, %s112
    %p119 = scmp.eq.s32.totalorder %s18, 1
    %p120 = por %p118, %p119
    %p121 = scmp.ne.s32.totalorder %s112, %s113
    %p122 = scmp.eq.s32.totalorder %s18, 0
    %p123 = por %p121, %p122
    %p124 = scmp.ne.s32.totalorder %s112, %s113
    %p125 = scmp.eq.s32.totalorder %s19, 1
    %p126 = por %p124, %p125
    %p128 = scmp.ne.s32.totalorder %s113, %s127
    %p129 = scmp.eq.s32.totalorder %s19, 0
    %p130 = por %p128, %p129
    %s132 = sadd.s32 %s131, 1
    %p135 = scmp.eq.s32.totalorder %s13, 1
    %p136 = scmp.ne.s32.totalorder %s131, %s133
    %p137 = scmp.eq.s32.totalorder %s13, 0
    %p138 = por %p136, %p137
    %p139 = scmp.ne.s32.totalorder %s131, %s133
    %p140 = scmp.eq.s32.totalorder %s18, 1
    %p141 = por %p139, %p140
    %p142 = scmp.ne.s32.totalorder %s133, %s134
    %p143 = scmp.eq.s32.totalorder %s18, 0
    %p144 = por %p142, %p143
    %p145 = scmp.ne.s32.totalorder %s133, %s134
    %p146 = scmp.eq.s32.totalorder %s19, 1
    %p147 = por %p145, %p146
    %p149 = scmp.ne.s32.totalorder %s134, %s148
    %p150 = scmp.eq.s32.totalorder %s19, 0
    %p151 = por %p149, %p150
    %s153 = sadd.s32 %s152, 1
    %p156 = scmp.eq.s32.totalorder %s13, 1
    %p157 = scmp.ne.s32.totalorder %s152, %s154
    %p158 = scmp.eq.s32.totalorder %s13, 0
    %p159 = por %p157, %p158
    %p160 = scmp.ne.s32.totalorder %s152, %s154
    %p161 = scmp.eq.s32.totalorder %s18, 1
    %p162 = por %p160, %p161
    %p163 = scmp.ne.s32.totalorder %s154, %s155
    %p164 = scmp.eq.s32.totalorder %s18, 0
    %p165 = por %p163, %p164
    %p166 = scmp.ne.s32.totalorder %s154, %s155
    %p167 = scmp.eq.s32.totalorder %s19, 1
    %p168 = por %p166, %p167
    %p170 = scmp.ne.s32.totalorder %s155, %s169
    %p171 = scmp.eq.s32.totalorder %s19, 0
    %p172 = por %p170, %p171
    %s173 = ssub.s32 %s13, %s20
    %p174 = scmp.eq.s32.totalorder %s173, 0
    %s176 = sadd.s32 %s175, 1
    %s177 = scalar_select %p174, %s175, %s176
    %p180 = pneg %p174
    %p181 = scmp.eq.s32.totalorder %s13, 1
    %p182 = por %p180, %p181
    %p183 = scmp.ne.s32.totalorder %s175, %s178
    %p184 = scmp.eq.s32.totalorder %s13, 0
    %p185 = por %p183, %p184
    %p186 = scmp.ne.s32.totalorder %s175, %s178
    %p187 = scmp.eq.s32.totalorder %s18, 1
    %p188 = por %p186, %p187
    %p189 = scmp.ne.s32.totalorder %s178, %s179
    %p190 = scmp.eq.s32.totalorder %s18, 0
    %p191 = por %p189, %p190
    %p192 = scmp.ne.s32.totalorder %s178, %s179
    %p193 = scmp.eq.s32.totalorder %s19, 1
    %p194 = por %p192, %p193
    %p196 = scmp.ne.s32.totalorder %s179, %s195
    %p197 = scmp.eq.s32.totalorder %s19, 0
    %p198 = por %p196, %p197
    %p199 = scmp.le.s32.totalorder 1, %s13
    %p200 = scmp.lt.s32.totalorder %s13, 3
    %p201 = pnand %p199, %p200
    %p202 = pneg %p201
    // Predicated region
    $region9: #{cppd_head_forward_test.11} parent=5 // pred_check
      _
    $region10: #{cppd_head_forward_test.11} parent=5 // pred_check_branch
      %204 = sbr.rel (%p201) target = $region12
    $region11: #{cppd_head_forward_test.11} parent=5 // pred_region
      %s205 = ssub.s32 %s13, 1
      // Predicated region
      $region13: #{cppd_head_forward_test.11} parent=11 // pred_check
        %p206 = pneg %p60
      $region14: #{cppd_head_forward_test.11} parent=11 // pred_check_branch
        %208 = sbr.rel (%p206) target = $region16
      $region15: #{cppd_head_forward_test.11} parent=11 // pred_region
        _
      $region16: #{cppd_head_forward_test.11} parent=11 // pred_fallthru
        _
      // Predicated region
      $region17: #{cppd_head_forward_test.11} parent=11 // pred_check
        %p209 = pneg %p81
      $region18: #{cppd_head_forward_test.11} parent=11 // pred_check_branch
        %211 = sbr.rel (%p209) target = $region20
      $region19: #{cppd_head_forward_test.11} parent=11 // pred_region
        _
      $region20: #{cppd_head_forward_test.11} parent=11 // pred_fallthru
        _
      // Predicated region
      $region21: #{cppd_head_forward_test.11} parent=11 // pred_check
        %p212 = pneg %p102
      $region22: #{cppd_head_forward_test.11} parent=11 // pred_check_branch
        %214 = sbr.rel (%p212) target = $region24
      $region23: #{cppd_head_forward_test.11} parent=11 // pred_region
        _
      $region24: #{cppd_head_forward_test.11} parent=11 // pred_fallthru
        _
      // Predicated region
      $region25: #{cppd_head_forward_test.11} parent=11 // pred_check
        %p215 = pneg %p123
      $region26: #{cppd_head_forward_test.11} parent=11 // pred_check_branch
        %217 = sbr.rel (%p215) target = $region28
      $region27: #{cppd_head_forward_test.11} parent=11 // pred_region
        _
      $region28: #{cppd_head_forward_test.11} parent=11 // pred_fallthru
        _
      // Predicated region
      $region29: #{cppd_head_forward_test.11} parent=11 // pred_check
        %p218 = pneg %p144
      $region30: #{cppd_head_forward_test.11} parent=11 // pred_check_branch
        %220 = sbr.rel (%p218) target = $region32
      $region31: #{cppd_head_forward_test.11} parent=11 // pred_region
        _
      $region32: #{cppd_head_forward_test.11} parent=11 // pred_fallthru
        _
      // Predicated region
      $region33: #{cppd_head_forward_test.11} parent=11 // pred_check
        %p221 = pneg %p165
      $region34: #{cppd_head_forward_test.11} parent=11 // pred_check_branch
        %223 = sbr.rel (%p221) target = $region36
      $region35: #{cppd_head_forward_test.11} parent=11 // pred_region
        _
      $region36: #{cppd_head_forward_test.11} parent=11 // pred_fallthru
        _
    $region12: #{cppd_head_forward_test.11} parent=5 // pred_fallthru
      _
    %p224 = scmp.lt.s32.totalorder %s13, 2
    // Predicated region
    $region37: #{cppd_head_forward_test.11} parent=5 // pred_check
      %p225 = pneg %p224
    $region38: #{cppd_head_forward_test.11} parent=5 // pred_check_branch
      %227 = sbr.rel (%p225) target = $region40
    $region39: #{cppd_head_forward_test.11} parent=5 // pred_region
      // Predicated region
      $region41: #{cppd_head_forward_test.11} parent=39 // pred_check
        %p228 = pneg %p33
      $region42: #{cppd_head_forward_test.11} parent=39 // pred_check_branch
        %230 = sbr.rel (%p228) target = $region44
      $region43: #{cppd_head_forward_test.11} parent=39 // pred_region
        %p231 = scmp.lt.s32.totalorder %s13, 1
        %s232 = scalar_select %p231, %s13, 1
        %s233 = smul.addr %s232, 2
        %s234 = smul.addr %s233, 4
        %s235 = scalar_lea.vmem %s0, %s234
      $region44: #{cppd_head_forward_test.11} parent=39 // pred_fallthru
        _
    $region40: #{cppd_head_forward_test.11} parent=5 // pred_fallthru
      _
    %p236 = scmp.le.s32.totalorder 1, %s13
    %p237 = scmp.lt.s32.totalorder %s13, 3
    %p238 = pnand %p236, %p237
    %p239 = pneg %p238
    // Predicated region
    $region45: #{cppd_head_forward_test.11} parent=5 // pred_check
      _
    $region46: #{cppd_head_forward_test.11} parent=5 // pred_check_branch
      %241 = sbr.rel (%p238) target = $region48
    $region47: #{cppd_head_forward_test.11} parent=5 // pred_region
      %s242 = ssub.s32 %s13, 1
      %p243 = scmp.lt.s32.totalorder %s18, 1
      %s244 = scalar_select %p243, %s18, 1
      %s245 = smul.addr %s244, 2
      %s246 = smul.addr %s245, 4
      %s247 = scalar_lea.vmem %s0, %s246
      %p248 = pneg %p39
      %p249 = pneg %p36
      %p250 = pneg %p60
      %p251 = pneg %p57
      %p252 = pneg %p81
      %p253 = pneg %p78
      %p254 = pneg %p102
      %p255 = pneg %p99
      %p256 = pneg %p123
      %p257 = pneg %p120
      %p258 = pneg %p144
      %p259 = pneg %p141
      %p260 = pneg %p165
      %p261 = pneg %p162
      %p262 = pneg %p191
      %p263 = pneg %p188
      %p264 = scmp.lt.s32.totalorder %s18, 1
      %s265 = scalar_select %p264, %s18, 1
      %s266 = smul.addr %s265, 2
      %s267 = smul.addr %s266, 4
      %s268 = scalar_lea.vmem %s7, %s267
      %p269 = scmp.lt.s32.totalorder %s18, 1
      %s270 = scalar_select %p269, %s18, 1
      %s271 = smul.addr %s270, 2
      %s272 = smul.addr %s271, 4
      %s273 = scalar_lea.vmem %s0, %s272
      %p274 = scmp.lt.s32.totalorder %s18, 1
      %s275 = scalar_select %p274, %s18, 1
      %s276 = smul.addr %s275, 2
      %s277 = smul.addr %s276, 4
      %s278 = scalar_lea.vmem %s7, %s277
      %v280 = vld [vmem:[%s273] sm:$0xf]
      %v281 = vld [vmem:[%s273 + $0x4] sm:$0xf]
      %v282 = vld [vmem:[%s1] sm:$0xff]
      %v283 = vld [vmem:[%s1 + $0x8] sm:$0xff]
      %v284 = vld [vmem:[%s1 + $0x10] sm:$0xff]
      %v285 = vld [vmem:[%s1 + $0x18] sm:$0xff]
      %v286 = vld [vmem:[%s1 + $0x20] sm:$0xff]
      %v287 = vld [vmem:[%s1 + $0x28] sm:$0xff]
      %v288 = vld [vmem:[%s1 + $0x30] sm:$0xff]
      %v289 = vld [vmem:[%s1 + $0x38] sm:$0xff]
      %v290 = vld [vmem:[%s2] sm:$0x3]
      %v291 = vld [vmem:[%s3] sm:$0xf]
      %v292 = vld [vmem:[%s3 + $0x4] sm:$0xf]
      %v293 = vld [vmem:[%s3 + $0x8] sm:$0xf]
      %v294 = vld [vmem:[%s3 + $0xc] sm:$0xf]
      %v295 = vld [vmem:[%s3 + $0x10] sm:$0xf]
      %v296 = vld [vmem:[%s3 + $0x14] sm:$0xf]
      %v297 = vld [vmem:[%s3 + $0x18] sm:$0xf]
      %v298 = vld [vmem:[%s3 + $0x1c] sm:$0xf]
      %v299 = vld [vmem:[%s3 + $0x20] sm:$0xf]
      %v300 = vld [vmem:[%s3 + $0x24] sm:$0xf]
      %v301 = vld [vmem:[%s3 + $0x28] sm:$0xf]
      %v302 = vld [vmem:[%s3 + $0x2c] sm:$0xf]
      %v303 = vld [vmem:[%s3 + $0x30] sm:$0xf]
      %v304 = vld [vmem:[%s3 + $0x34] sm:$0xf]
      %v305 = vld [vmem:[%s3 + $0x38] sm:$0xf]
      %v306 = vld [vmem:[%s3 + $0x3c] sm:$0xf]
      %v307 = vld [vmem:[%s3 + $0x40] sm:$0xf]
      %v308 = vld [vmem:[%s3 + $0x44] sm:$0xf]
      %v309 = vld [vmem:[%s3 + $0x48] sm:$0xf]
      %v310 = vld [vmem:[%s3 + $0x4c] sm:$0xf]
      %v311 = vld [vmem:[%s3 + $0x50] sm:$0xf]
      %v312 = vld [vmem:[%s3 + $0x54] sm:$0xf]
      %v313 = vld [vmem:[%s3 + $0x58] sm:$0xf]
      %v314 = vld [vmem:[%s3 + $0x5c] sm:$0xf]
      %v315 = vld [vmem:[%s3 + $0x60] sm:$0xf]
      %v316 = vld [vmem:[%s3 + $0x64] sm:$0xf]
      %v317 = vld [vmem:[%s3 + $0x68] sm:$0xf]
      %v318 = vld [vmem:[%s3 + $0x6c] sm:$0xf]
      %v319 = vld [vmem:[%s3 + $0x70] sm:$0xf]
      %v320 = vld [vmem:[%s3 + $0x74] sm:$0xf]
      %v321 = vld [vmem:[%s3 + $0x78] sm:$0xf]
      %v322 = vld [vmem:[%s3 + $0x7c] sm:$0xf]
      %v323 = vld [vmem:[%s4] sm:$0x1]
      %v324 = vld [vmem:[%s5] sm:$0x1]
      %v325 = vld [vmem:[%s6] sm:$0x1]
      %v327 = vlaneseq
      %v328 = vshrl.u32 %v327, 7
      %v329 = vsub.s32 0, %v328
      %v330 = vrot.slane %v290, %v329
      %v331 = vlaneseq
      %v332 = vshrl.u32 %v331, 7
      %v333 = vsub.s32 1, %v332
      %v334 = vrot.slane %v290, %v333
      %v339 = vunpack.c.l.b16 %v280
      %v340 = vunpack.c.l.b16 %v281
      %v341 = vpack.c.b16 %v340, %v339
      %v350 = vunpack.c.l.b16 %v282
      %v351 = vunpack.c.h.b16 %v282
      %v352 = vunpack.c.l.b16 %v283
      %v353 = vunpack.c.h.b16 %v283
      %v354 = vunpack.c.l.b16 %v284
      %v355 = vunpack.c.h.b16 %v284
      %v356 = vunpack.c.l.b16 %v285
      %v357 = vunpack.c.h.b16 %v285
      %v358 = vunpack.c.l.b16 %v286
      %v359 = vunpack.c.h.b16 %v286
      %v360 = vunpack.c.l.b16 %v287
      %v361 = vunpack.c.h.b16 %v287
      %v362 = vunpack.c.l.b16 %v288
      %v363 = vunpack.c.h.b16 %v288
      %v364 = vunpack.c.l.b16 %v289
      %v365 = vunpack.c.h.b16 %v289
      %v366 = vpack.c.b16 %v352, %v350
      %v367 = vpack.c.b16 %v353, %v351
      %v368 = vpack.c.b16 %v356, %v354
      %v369 = vpack.c.b16 %v357, %v355
      %v370 = vpack.c.b16 %v360, %v358
      %v371 = vpack.c.b16 %v361, %v359
      %v372 = vpack.c.b16 %v364, %v362
      %v373 = vpack.c.b16 %v365, %v363
      %vm382 = vcmask 523264
      %v384 = vsel %vm382, %v341, 0
      %386 = vmatprep.subr.bf16.mxu0 %v367
      %387 = vmatpush1.bf16.msra.mxu0 %v366
      %388 = vmatprep.subr.bf16.mxu0 %v369
      %389 = vmatpush1.bf16.msra.mxu0 %v368
      %390 = vmatprep.subr.bf16.mxu0 %v371
      %391 = vmatpush1.bf16.msra.mxu0 %v370
      %392 = vmatprep.subr.bf16.mxu0 %v373
      %393 = vmatpush1.bf16.msra.mxu0 %v372
      %394 = vmatprep.subr.bf16.mxu0 0
      %395 = vmatpush1.bf16.msra.mxu0 0
      %396 = vmatprep.subr.bf16.mxu0 0
      %397 = vmatpush1.bf16.msra.mxu0 0
      %398 = vmatprep.subr.bf16.mxu0 0
      %399 = vmatpush1.bf16.msra.mxu0 0
      %400 = vmatprep.subr.bf16.mxu0 0
      %401 = vmatpush1.bf16.msra.mxu0 0
      %402 = vmatprep.subr.bf16.mxu0 0
      %403 = vmatpush1.bf16.msra.mxu0 0
      %404 = vmatprep.subr.bf16.mxu0 0
      %405 = vmatpush1.bf16.msra.mxu0 0
      %406 = vmatprep.subr.bf16.mxu0 0
      %407 = vmatpush1.bf16.msra.mxu0 0
      %408 = vmatprep.subr.bf16.mxu0 0
      %409 = vmatpush1.bf16.msra.mxu0 0
      %410 = vmatprep.subr.bf16.mxu0 0
      %411 = vmatpush1.bf16.msra.mxu0 0
      %412 = vmatprep.subr.bf16.mxu0 0
      %413 = vmatpush1.bf16.msra.mxu0 0
      %414 = vmatprep.subr.bf16.mxu0 0
      %415 = vmatpush1.bf16.msra.mxu0 0
      %416 = vmatprep.subr.bf16.mxu0 0
      %417 = vmatpush1.bf16.msra.mxu0 0
      %418 = vmatprep.mubr.bf16.mxu0 0
      %419 = vmatmul.mubr.bf16.gmra.mrb[0].mxu0 %v384
      %v420 = vpop.f32.mrb[0].mxu0
      %v421 = vadd.f32 %v330, %v420
      %v422 = vpop.f32.mrb[0].mxu0
      %v423 = vadd.f32 %v334, %v422
      %v424 = vpop.f32.mrb[0].mxu0
      %v425 = vadd.f32 %v330, %v424
      %v426 = vpop.f32.mrb[0].mxu0
      %v427 = vadd.f32 %v334, %v426
      %428 = vdwg.mxu0
      %v429 = vmul.f32 %v421, 0.5
      %v430 = vmul.f32 %v423, 0.5
      %v431 = vmul.f32 %v425, 0.5
      %v432 = vmul.f32 %v427, 0.5
      %v433 = vmul.f32 %v421, 0.70710677
      %v434 = vmul.f32 %v423, 0.70710677
      %v435 = vmul.f32 %v425, 0.70710677
      %v436 = vmul.f32 %v427, 0.70710677
      %v437 = verf.f32.pop %v433
      %v438 = verf.f32.pop %v434
      %v439 = verf.f32.pop %v435
      %v440 = verf.f32.pop %v436
      %v441 = vadd.f32 %v437, 1.0
      %v442 = vadd.f32 %v438, 1.0
      %v443 = vadd.f32 %v439, 1.0
      %v444 = vadd.f32 %v440, 1.0
      %v445 = vmul.f32 %v429, %v441
      %v446 = vmul.f32 %v430, %v442
      %v447 = vmul.f32 %v431, %v443
      %v448 = vmul.f32 %v432, %v444
      %v449 = vpack.c.bf16 %v447, %v445
      %v450 = vpack.c.bf16 %v448, %v446
      %v452 = vlaneseq
      %v453 = vshrl.u32 %v452, 7
      %v454 = vsub.s32 0, %v453
      %v455 = vrot.slane %v323, %v454
      %v489 = vunpack.c.l.b16 %v291
      %v490 = vunpack.c.l.b16 %v292
      %v491 = vunpack.c.l.b16 %v293
      %v492 = vunpack.c.l.b16 %v294
      %v493 = vunpack.c.l.b16 %v295
      %v494 = vunpack.c.l.b16 %v296
      %v495 = vunpack.c.l.b16 %v297
      %v496 = vunpack.c.l.b16 %v298
      %v497 = vunpack.c.l.b16 %v299
      %v498 = vunpack.c.l.b16 %v300
      %v499 = vunpack.c.l.b16 %v301
      %v500 = vunpack.c.l.b16 %v302
      %v501 = vunpack.c.l.b16 %v303
      %v502 = vunpack.c.l.b16 %v304
      %v503 = vunpack.c.l.b16 %v305
      %v504 = vunpack.c.l.b16 %v306
      %v505 = vunpack.c.l.b16 %v307
      %v506 = vunpack.c.l.b16 %v308
      %v507 = vunpack.c.l.b16 %v309
      %v508 = vunpack.c.l.b16 %v310
      %v509 = vunpack.c.l.b16 %v311
      %v510 = vunpack.c.l.b16 %v312
      %v511 = vunpack.c.l.b16 %v313
      %v512 = vunpack.c.l.b16 %v314
      %v513 = vunpack.c.l.b16 %v315
      %v514 = vunpack.c.l.b16 %v316
      %v515 = vunpack.c.l.b16 %v317
      %v516 = vunpack.c.l.b16 %v318
      %v517 = vunpack.c.l.b16 %v319
      %v518 = vunpack.c.l.b16 %v320
      %v519 = vunpack.c.l.b16 %v321
      %v520 = vunpack.c.l.b16 %v322
      %v521 = vpack.c.b16 %v490, %v489
      %v522 = vpack.c.b16 %v492, %v491
      %v523 = vpack.c.b16 %v494, %v493
      %v524 = vpack.c.b16 %v496, %v495
      %v525 = vpack.c.b16 %v498, %v497
      %v526 = vpack.c.b16 %v500, %v499
      %v527 = vpack.c.b16 %v502, %v501
      %v528 = vpack.c.b16 %v504, %v503
      %v529 = vpack.c.b16 %v506, %v505
      %v530 = vpack.c.b16 %v508, %v507
      %v531 = vpack.c.b16 %v510, %v509
      %v532 = vpack.c.b16 %v512, %v511
      %v533 = vpack.c.b16 %v514, %v513
      %v534 = vpack.c.b16 %v516, %v515
      %v535 = vpack.c.b16 %v518, %v517
      %v536 = vpack.c.b16 %v520, %v519
      %553 = vmatprep.subr.bf16.mxu0 0
      %554 = vmatpush1.bf16.msra.mxu0 %v521
      %555 = vmatprep.subr.bf16.mxu0 0
      %556 = vmatpush1.bf16.msra.mxu0 %v522
      %557 = vmatprep.subr.bf16.mxu0 0
      %558 = vmatpush1.bf16.msra.mxu0 %v523
      %559 = vmatprep.subr.bf16.mxu0 0
      %560 = vmatpush1.bf16.msra.mxu0 %v524
      %561 = vmatprep.subr.bf16.mxu0 0
      %562 = vmatpush1.bf16.msra.mxu0 %v525
      %563 = vmatprep.subr.bf16.mxu0 0
      %564 = vmatpush1.bf16.msra.mxu0 %v526
      %565 = vmatprep.subr.bf16.mxu0 0
      %566 = vmatpush1.bf16.msra.mxu0 %v527
      %567 = vmatprep.subr.bf16.mxu0 0
      %568 = vmatpush1.bf16.msra.mxu0 %v528
      %569 = vmatprep.subr.bf16.mxu0 0
      %570 = vmatpush1.bf16.msra.mxu0 %v529
      %571 = vmatprep.subr.bf16.mxu0 0
      %572 = vmatpush1.bf16.msra.mxu0 %v530
      %573 = vmatprep.subr.bf16.mxu0 0
      %574 = vmatpush1.bf16.msra.mxu0 %v531
      %575 = vmatprep.subr.bf16.mxu0 0
      %576 = vmatpush1.bf16.msra.mxu0 %v532
      %577 = vmatprep.subr.bf16.mxu0 0
      %578 = vmatpush1.bf16.msra.mxu0 %v533
      %579 = vmatprep.subr.bf16.mxu0 0
      %580 = vmatpush1.bf16.msra.mxu0 %v534
      %581 = vmatprep.subr.bf16.mxu0 0
      %582 = vmatpush1.bf16.msra.mxu0 %v535
      %583 = vmatprep.subr.bf16.mxu0 0
      %584 = vmatpush1.bf16.msra.mxu0 %v536
      %585 = vmatprep.mubr.bf16.mxu0 %v450
      %586 = vmatmul.mubr.bf16.gmra.mrb[0].mxu0 %v449
      %v587 = vpop.f32.mrb[0].mxu0
      %v588 = vadd.f32 %v455, %v587
      %v589 = vpop.f32.mrb[0].mxu0
      %v590 = vpop.f32.mrb[0].mxu0
      %v591 = vadd.f32 %v455, %v590
      %v592 = vpop.f32.mrb[0].mxu0
      %593 = vdwg.mxu0
      %v594 = vunpack.c.l.bf16 %v280
      %v595 = vunpack.c.l.bf16 %v281
      %v596 = vadd.f32 %v594, %v588
      %v597 = vadd.f32 %v595, %v591
      %v598 = vsel %vm382, %v596, 0.0
      %599 = vadd.xlane.f32.xlu0 %v598
      %v600 = vpop.xlane.xlu0 %599
      %v601 = vsel %vm382, %v597, 0.0
      %602 = vadd.xlane.f32.xlu0 %v601
      %v603 = vpop.xlane.xlu0 %602
      %v604 = vrcp.pop 64.0
      %v605 = vmul.f32 %v600, %v604
      %v606 = vmul.f32 %v603, %v604
      %v607 = vsub.f32 %v596, %v605
      %v608 = vsub.f32 %v597, %v606
      %v609 = vmul.f32 %v607, %v607
      %v610 = vmul.f32 %v608, %v608
      %v611 = vsel %vm382, %v609, 0.0
      %612 = vadd.xlane.f32.xlu0 %v611
      %v613 = vpop.xlane.xlu0 %612
      %v614 = vsel %vm382, %v610, 0.0
      %615 = vadd.xlane.f32.xlu0 %v614
      %v616 = vpop.xlane.xlu0 %615
      %v617 = vmul.f32 %v613, %v604
      %v618 = vmul.f32 %v616, %v604
      %v619 = vadd.f32 %v617, 1e-06
      %v620 = vadd.f32 %v618, 1e-06
      %v621 = vrsqrt.pop %v619
      %v622 = vrsqrt.pop %v620
      %v623 = vmul.f32 %v607, %v621
      %v624 = vmul.f32 %v608, %v622
      %v626 = vlaneseq
      %v627 = vshrl.u32 %v626, 7
      %v628 = vsub.s32 0, %v627
      %v629 = vrot.slane %v324, %v628
      %v631 = vmul.f32 %v623, %v629
      %v632 = vmul.f32 %v624, %v629
      %v634 = vlaneseq
      %v635 = vshrl.u32 %v634, 7
      %v636 = vsub.s32 0, %v635
      %v637 = vrot.slane %v325, %v636
      %v639 = vadd.f32 %v631, %v637
      %v640 = vadd.f32 %v632, %v637
      %v641 = vpack.c.bf16 %v640, %v639
      %v643 = vunpack.c.l.b16 %v641
      %v644 = vunpack.c.h.b16 %v641
      %v645 = vpack.c.b16 %v643, %v643
      %v646 = vpack.c.b16 %v644, %v644
      %vm649 = vcmask 519168
      %650 = vst.msk [vmem:[%s278] sm:$0xf] %vm649, %v645
      %651 = vst.msk [vmem:[%s278 + $0x4] sm:$0xf] %vm649, %v646
      %p652 = scmp.lt.s32.totalorder %s18, 1
      %s653 = scalar_select %p652, %s18, 1
      %s654 = smul.addr %s653, 2
      %s655 = smul.addr %s654, 4
      %s656 = scalar_lea.vmem %s7, %s655
      // Predicated region
      $region49: #{cppd_head_forward_test.11} parent=47 // pred_check
        %p657 = pneg %p188
      $region50: #{cppd_head_forward_test.11} parent=47 // pred_check_branch
        %659 = sbr.rel (%p657) target = $region52
      $region51: #{cppd_head_forward_test.11} parent=47 // pred_region
        _
      $region52: #{cppd_head_forward_test.11} parent=47 // pred_fallthru
        _
    $region48: #{cppd_head_forward_test.11} parent=5 // pred_fallthru
      _
    %p660 = scmp.le.s32.totalorder 2, %s13
    // Predicated region
    $region53: #{cppd_head_forward_test.11} parent=5 // pred_check
      %p661 = pneg %p660
    $region54: #{cppd_head_forward_test.11} parent=5 // pred_check_branch
      %663 = sbr.rel (%p661) target = $region56
    $region55: #{cppd_head_forward_test.11} parent=5 // pred_region
      %s664 = ssub.s32 %s13, 2
      // Predicated region
      $region57: #{cppd_head_forward_test.11} parent=55 // pred_check
        %p665 = pneg %p194
      $region58: #{cppd_head_forward_test.11} parent=55 // pred_check_branch
        %667 = sbr.rel (%p665) target = $region60
      $region59: #{cppd_head_forward_test.11} parent=55 // pred_region
        %p668 = scmp.lt.s32.totalorder %s19, 1
        %s669 = scalar_select %p668, %s19, 1
        %s670 = smul.addr %s669, 2
        %s671 = smul.addr %s670, 4
        %s672 = scalar_lea.vmem %s7, %s671
      $region60: #{cppd_head_forward_test.11} parent=55 // pred_fallthru
        _
    $region56: #{cppd_head_forward_test.11} parent=5 // pred_fallthru
      _
  $region6: #{cppd_head_forward_test.11} parent=0 // loop_footer
    %s17 = sadd.s32 1, %s13
  $region7: #{cppd_head_forward_test.11} parent=0 // loop_footer_branch
    %12 = sbr.rel target = $region3
  $region8: #{cppd_head_forward_test.11} parent=0 // loop_exit
    _

// kernel: cppd_head_forward_test.13
$region0: #{cppd_head_forward_test.13}
  #allocation0 [shape = 'u32[]', space=smem, size = 0x4, offset = 0x4, fixed_abs, tag = 'smem constant byte address 0x4 - core index']
  #allocation1 [shape = 'u32[144,128]{1,0:T(1,128)}', space=vmem, size = 0x12000, scoped, tag = 'internal scratch']
  %s0 = inlined_call_operand.vmem [shape: bf16[2,24,64], index: 0, kind: input, shape index: {}]
  %s1 = inlined_call_operand.vmem [shape: bf16[64,256], index: 1, kind: input, shape index: {}]
  %s2 = inlined_call_operand.vmem [shape: f32[1,256], index: 2, kind: input, shape index: {}]
  %s3 = inlined_call_operand.vmem [shape: bf16[256,64], index: 3, kind: input, shape index: {}]
  %s4 = inlined_call_operand.vmem [shape: f32[1,64], index: 4, kind: input, shape index: {}]
  %s5 = inlined_call_operand.vmem [shape: f32[1,64], index: 5, kind: input, shape index: {}]
  %s6 = inlined_call_operand.vmem [shape: f32[1,64], index: 6, kind: input, shape index: {}]
  %s7 = inlined_call_operand.vmem [shape: bf16[2,24,64], index: 7, kind: output, shape index: {}]
  %s8 = sld [smem:[#allocation0]]
  $region61: #{cppd_head_forward_test.13} parent=0
    _
  %s10 = ssub.s32 1, %s8
  %s11 = scalar_select 0, %s10, %s8
  loop: start=0, step=1, limit=4
  $region2: #{cppd_head_forward_test.13} parent=0 // loop_pre_header
    _
  $region3: #{cppd_head_forward_test.13} parent=0 // loop_header
    %s13 = sphi 0, %s17
    %p14 = scmp.ge.s32.totalorder %s13, 4
    %s23 = sphi 0, %s25
    %s26 = sphi 0, %s23
    %s27 = sphi 0, %s26
    %s43 = sphi 0, %s27
    %s47 = sphi 0, %s47
    %s49 = sphi 0, %s47
    %s50 = sphi 0, %s49
    %s64 = sphi 0, %s50
    %s68 = sphi 0, %s68
    %s70 = sphi 0, %s68
    %s71 = sphi 0, %s70
    %s85 = sphi 0, %s71
    %s89 = sphi 0, %s89
    %s91 = sphi 0, %s89
    %s92 = sphi 0, %s91
    %s106 = sphi 0, %s92
    %s110 = sphi 0, %s110
    %s112 = sphi 0, %s110
    %s113 = sphi 0, %s112
    %s127 = sphi 0, %s113
    %s131 = sphi 0, %s131
    %s133 = sphi 0, %s131
    %s134 = sphi 0, %s133
    %s148 = sphi 0, %s134
    %s152 = sphi 0, %s152
    %s154 = sphi 0, %s152
    %s155 = sphi 0, %s154
    %s169 = sphi 0, %s155
    %s175 = sphi 0, %s177
    %s178 = sphi 0, %s175
    %s179 = sphi 0, %s178
    %s195 = sphi 0, %s179
  $region4: #{cppd_head_forward_test.13} parent=0 // loop_header_branch
    %16 = sbr.rel (%p14) target = $region8
  $region5: #{cppd_head_forward_test.13} parent=0 // loop_body
    %s18 = ssub.s32 %s13, 1
    %s19 = ssub.s32 %s13, 2
    %s20 = sadd.s32 %s13, 1
    %s21 = ssub.s32 %s13, %s20
    %p22 = scmp.eq.s32.totalorder %s21, 0
    %s24 = sadd.s32 %s23, 1
    %s25 = scalar_select %p22, %s23, %s24
    %p28 = pneg %p22
    %p29 = scmp.eq.s32.totalorder %s13, 1
    %p30 = por %p28, %p29
    %p31 = scmp.ne.s32.totalorder %s23, %s26
    %p32 = scmp.eq.s32.totalorder %s13, 0
    %p33 = por %p31, %p32
    %p34 = scmp.ne.s32.totalorder %s23, %s26
    %p35 = scmp.eq.s32.totalorder %s18, 1
    %p36 = por %p34, %p35
    %p37 = scmp.ne.s32.totalorder %s26, %s27
    %p38 = scmp.eq.s32.totalorder %s18, 0
    %p39 = por %p37, %p38
    %p40 = scmp.ne.s32.totalorder %s26, %s27
    %p41 = scmp.eq.s32.totalorder %s19, 1
    %p42 = por %p40, %p41
    %p44 = scmp.ne.s32.totalorder %s27, %s43
    %p45 = scmp.eq.s32.totalorder %s19, 0
    %p46 = por %p44, %p45
    %s48 = sadd.s32 %s47, 1
    %p51 = scmp.eq.s32.totalorder %s13, 1
    %p52 = scmp.ne.s32.totalorder %s47, %s49
    %p53 = scmp.eq.s32.totalorder %s13, 0
    %p54 = por %p52, %p53
    %p55 = scmp.ne.s32.totalorder %s47, %s49
    %p56 = scmp.eq.s32.totalorder %s18, 1
    %p57 = por %p55, %p56
    %p58 = scmp.ne.s32.totalorder %s49, %s50
    %p59 = scmp.eq.s32.totalorder %s18, 0
    %p60 = por %p58, %p59
    %p61 = scmp.ne.s32.totalorder %s49, %s50
    %p62 = scmp.eq.s32.totalorder %s19, 1
    %p63 = por %p61, %p62
    %p65 = scmp.ne.s32.totalorder %s50, %s64
    %p66 = scmp.eq.s32.totalorder %s19, 0
    %p67 = por %p65, %p66
    %s69 = sadd.s32 %s68, 1
    %p72 = scmp.eq.s32.totalorder %s13, 1
    %p73 = scmp.ne.s32.totalorder %s68, %s70
    %p74 = scmp.eq.s32.totalorder %s13, 0
    %p75 = por %p73, %p74
    %p76 = scmp.ne.s32.totalorder %s68, %s70
    %p77 = scmp.eq.s32.totalorder %s18, 1
    %p78 = por %p76, %p77
    %p79 = scmp.ne.s32.totalorder %s70, %s71
    %p80 = scmp.eq.s32.totalorder %s18, 0
    %p81 = por %p79, %p80
    %p82 = scmp.ne.s32.totalorder %s70, %s71
    %p83 = scmp.eq.s32.totalorder %s19, 1
    %p84 = por %p82, %p83
    %p86 = scmp.ne.s32.totalorder %s71, %s85
    %p87 = scmp.eq.s32.totalorder %s19, 0
    %p88 = por %p86, %p87
    %s90 = sadd.s32 %s89, 1
    %p93 = scmp.eq.s32.totalorder %s13, 1
    %p94 = scmp.ne.s32.totalorder %s89, %s91
    %p95 = scmp.eq.s32.totalorder %s13, 0
    %p96 = por %p94, %p95
    %p97 = scmp.ne.s32.totalorder %s89, %s91
    %p98 = scmp.eq.s32.totalorder %s18, 1
    %p99 = por %p97, %p98
    %p100 = scmp.ne.s32.totalorder %s91, %s92
    %p101 = scmp.eq.s32.totalorder %s18, 0
    %p102 = por %p100, %p101
    %p103 = scmp.ne.s32.totalorder %s91, %s92
    %p104 = scmp.eq.s32.totalorder %s19, 1
    %p105 = por %p103, %p104
    %p107 = scmp.ne.s32.totalorder %s92, %s106
    %p108 = scmp.eq.s32.totalorder %s19, 0
    %p109 = por %p107, %p108
    %s111 = sadd.s32 %s110, 1
    %p114 = scmp.eq.s32.totalorder %s13, 1
    %p115 = scmp.ne.s32.totalorder %s110, %s112
    %p116 = scmp.eq.s32.totalorder %s13, 0
    %p117 = por %p115, %p116
    %p118 = scmp.ne.s32.totalorder %s110, %s112
    %p119 = scmp.eq.s32.totalorder %s18, 1
    %p120 = por %p118, %p119
    %p121 = scmp.ne.s32.totalorder %s112, %s113
    %p122 = scmp.eq.s32.totalorder %s18, 0
    %p123 = por %p121, %p122
    %p124 = scmp.ne.s32.totalorder %s112, %s113
    %p125 = scmp.eq.s32.totalorder %s19, 1
    %p126 = por %p124, %p125
    %p128 = scmp.ne.s32.totalorder %s113, %s127
    %p129 = scmp.eq.s32.totalorder %s19, 0
    %p130 = por %p128, %p129
    %s132 = sadd.s32 %s131, 1
    %p135 = scmp.eq.s32.totalorder %s13, 1
    %p136 = scmp.ne.s32.totalorder %s131, %s133
    %p137 = scmp.eq.s32.totalorder %s13, 0
    %p138 = por %p136, %p137
    %p139 = scmp.ne.s32.totalorder %s131, %s133
    %p140 = scmp.eq.s32.totalorder %s18, 1
    %p141 = por %p139, %p140
    %p142 = scmp.ne.s32.totalorder %s133, %s134
    %p143 = scmp.eq.s32.totalorder %s18, 0
    %p144 = por %p142, %p143
    %p145 = scmp.ne.s32.totalorder %s133, %s134
    %p146 = scmp.eq.s32.totalorder %s19, 1
    %p147 = por %p145, %p146
    %p149 = scmp.ne.s32.totalorder %s134, %s148
    %p150 = scmp.eq.s32.totalorder %s19, 0
    %p151 = por %p149, %p150
    %s153 = sadd.s32 %s152, 1
    %p156 = scmp.eq.s32.totalorder %s13, 1
    %p157 = scmp.ne.s32.totalorder %s152, %s154
    %p158 = scmp.eq.s32.totalorder %s13, 0
    %p159 = por %p157, %p158
    %p160 = scmp.ne.s32.totalorder %s152, %s154
    %p161 = scmp.eq.s32.totalorder %s18, 1
    %p162 = por %p160, %p161
    %p163 = scmp.ne.s32.totalorder %s154, %s155
    %p164 = scmp.eq.s32.totalorder %s18, 0
    %p165 = por %p163, %p164
    %p166 = scmp.ne.s32.totalorder %s154, %s155
    %p167 = scmp.eq.s32.totalorder %s19, 1
    %p168 = por %p166, %p167
    %p170 = scmp.ne.s32.totalorder %s155, %s169
    %p171 = scmp.eq.s32.totalorder %s19, 0
    %p172 = por %p170, %p171
    %s173 = ssub.s32 %s13, %s20
    %p174 = scmp.eq.s32.totalorder %s173, 0
    %s176 = sadd.s32 %s175, 1
    %s177 = scalar_select %p174, %s175, %s176
    %p180 = pneg %p174
    %p181 = scmp.eq.s32.totalorder %s13, 1
    %p182 = por %p180, %p181
    %p183 = scmp.ne.s32.totalorder %s175, %s178
    %p184 = scmp.eq.s32.totalorder %s13, 0
    %p185 = por %p183, %p184
    %p186 = scmp.ne.s32.totalorder %s175, %s178
    %p187 = scmp.eq.s32.totalorder %s18, 1
    %p188 = por %p186, %p187
    %p189 = scmp.ne.s32.totalorder %s178, %s179
    %p190 = scmp.eq.s32.totalorder %s18, 0
    %p191 = por %p189, %p190
    %p192 = scmp.ne.s32.totalorder %s178, %s179
    %p193 = scmp.eq.s32.totalorder %s19, 1
    %p194 = por %p192, %p193
    %p196 = scmp.ne.s32.totalorder %s179, %s195
    %p197 = scmp.eq.s32.totalorder %s19, 0
    %p198 = por %p196, %p197
    %p199 = scmp.le.s32.totalorder 1, %s13
    %p200 = scmp.lt.s32.totalorder %s13, 3
    %p201 = pnand %p199, %p200
    %p202 = pneg %p201
    // Predicated region
    $region9: #{cppd_head_forward_test.13} parent=5 // pred_check
      _
    $region10: #{cppd_head_forward_test.13} parent=5 // pred_check_branch
      %204 = sbr.rel (%p201) target = $region12
    $region11: #{cppd_head_forward_test.13} parent=5 // pred_region
      %s205 = ssub.s32 %s13, 1
      // Predicated region
      $region13: #{cppd_head_forward_test.13} parent=11 // pred_check
        %p206 = pneg %p60
      $region14: #{cppd_head_forward_test.13} parent=11 // pred_check_branch
        %208 = sbr.rel (%p206) target = $region16
      $region15: #{cppd_head_forward_test.13} parent=11 // pred_region
        _
      $region16: #{cppd_head_forward_test.13} parent=11 // pred_fallthru
        _
      // Predicated region
      $region17: #{cppd_head_forward_test.13} parent=11 // pred_check
        %p209 = pneg %p81
      $region18: #{cppd_head_forward_test.13} parent=11 // pred_check_branch
        %211 = sbr.rel (%p209) target = $region20
      $region19: #{cppd_head_forward_test.13} parent=11 // pred_region
        _
      $region20: #{cppd_head_forward_test.13} parent=11 // pred_fallthru
        _
      // Predicated region
      $region21: #{cppd_head_forward_test.13} parent=11 // pred_check
        %p212 = pneg %p102
      $region22: #{cppd_head_forward_test.13} parent=11 // pred_check_branch
        %214 = sbr.rel (%p212) target = $region24
      $region23: #{cppd_head_forward_test.13} parent=11 // pred_region
        _
      $region24: #{cppd_head_forward_test.13} parent=11 // pred_fallthru
        _
      // Predicated region
      $region25: #{cppd_head_forward_test.13} parent=11 // pred_check
        %p215 = pneg %p123
      $region26: #{cppd_head_forward_test.13} parent=11 // pred_check_branch
        %217 = sbr.rel (%p215) target = $region28
      $region27: #{cppd_head_forward_test.13} parent=11 // pred_region
        _
      $region28: #{cppd_head_forward_test.13} parent=11 // pred_fallthru
        _
      // Predicated region
      $region29: #{cppd_head_forward_test.13} parent=11 // pred_check
        %p218 = pneg %p144
      $region30: #{cppd_head_forward_test.13} parent=11 // pred_check_branch
        %220 = sbr.rel (%p218) target = $region32
      $region31: #{cppd_head_forward_test.13} parent=11 // pred_region
        _
      $region32: #{cppd_head_forward_test.13} parent=11 // pred_fallthru
        _
      // Predicated region
      $region33: #{cppd_head_forward_test.13} parent=11 // pred_check
        %p221 = pneg %p165
      $region34: #{cppd_head_forward_test.13} parent=11 // pred_check_branch
        %223 = sbr.rel (%p221) target = $region36
      $region35: #{cppd_head_forward_test.13} parent=11 // pred_region
        _
      $region36: #{cppd_head_forward_test.13} parent=11 // pred_fallthru
        _
    $region12: #{cppd_head_forward_test.13} parent=5 // pred_fallthru
      _
    %p224 = scmp.lt.s32.totalorder %s13, 2
    // Predicated region
    $region37: #{cppd_head_forward_test.13} parent=5 // pred_check
      %p225 = pneg %p224
    $region38: #{cppd_head_forward_test.13} parent=5 // pred_check_branch
      %227 = sbr.rel (%p225) target = $region40
    $region39: #{cppd_head_forward_test.13} parent=5 // pred_region
      // Predicated region
      $region41: #{cppd_head_forward_test.13} parent=39 // pred_check
        %p228 = pneg %p33
      $region42: #{cppd_head_forward_test.13} parent=39 // pred_check_branch
        %230 = sbr.rel (%p228) target = $region44
      $region43: #{cppd_head_forward_test.13} parent=39 // pred_region
        %p231 = scmp.lt.s32.totalorder %s13, 1
        %s232 = scalar_select %p231, %s13, 1
        %s233 = smul.addr %s232, 3
        %s234 = smul.addr %s233, 4
        %s235 = scalar_lea.vmem %s0, %s234
      $region44: #{cppd_head_forward_test.13} parent=39 // pred_fallthru
        _
    $region40: #{cppd_head_forward_test.13} parent=5 // pred_fallthru
      _
    %p236 = scmp.le.s32.totalorder 1, %s13
    %p237 = scmp.lt.s32.totalorder %s13, 3
    %p238 = pnand %p236, %p237
    %p239 = pneg %p238
    // Predicated region
    $region45: #{cppd_head_forward_test.13} parent=5 // pred_check
      _
    $region46: #{cppd_head_forward_test.13} parent=5 // pred_check_branch
      %241 = sbr.rel (%p238) target = $region48
    $region47: #{cppd_head_forward_test.13} parent=5 // pred_region
      %s242 = ssub.s32 %s13, 1
      %p243 = scmp.lt.s32.totalorder %s18, 1
      %s244 = scalar_select %p243, %s18, 1
      %s245 = smul.addr %s244, 3
      %s246 = smul.addr %s245, 4
      %s247 = scalar_lea.vmem %s0, %s246
      %p248 = pneg %p39
      %p249 = pneg %p36
      %p250 = pneg %p60
      %p251 = pneg %p57
      %p252 = pneg %p81
      %p253 = pneg %p78
      %p254 = pneg %p102
      %p255 = pneg %p99
      %p256 = pneg %p123
      %p257 = pneg %p120
      %p258 = pneg %p144
      %p259 = pneg %p141
      %p260 = pneg %p165
      %p261 = pneg %p162
      %p262 = pneg %p191
      %p263 = pneg %p188
      %p264 = scmp.lt.s32.totalorder %s18, 1
      %s265 = scalar_select %p264, %s18, 1
      %s266 = smul.addr %s265, 3
      %s267 = smul.addr %s266, 4
      %s268 = scalar_lea.vmem %s7, %s267
      %p269 = scmp.lt.s32.totalorder %s18, 1
      %s270 = scalar_select %p269, %s18, 1
      %s271 = smul.addr %s270, 3
      %s272 = smul.addr %s271, 4
      %s273 = scalar_lea.vmem %s0, %s272
      %p274 = scmp.lt.s32.totalorder %s18, 1
      %s275 = scalar_select %p274, %s18, 1
      %s276 = smul.addr %s275, 3
      %s277 = smul.addr %s276, 4
      %s278 = scalar_lea.vmem %s7, %s277
      %v280 = vld [vmem:[%s273] sm:$0xf]
      %v281 = vld [vmem:[%s273 + $0x4] sm:$0xf]
      %v282 = vld [vmem:[%s273 + $0x8] sm:$0xf]
      %v283 = vld [vmem:[%s1] sm:$0xff]
      %v284 = vld [vmem:[%s1 + $0x8] sm:$0xff]
      %v285 = vld [vmem:[%s1 + $0x10] sm:$0xff]
      %v286 = vld [vmem:[%s1 + $0x18] sm:$0xff]
      %v287 = vld [vmem:[%s1 + $0x20] sm:$0xff]
      %v288 = vld [vmem:[%s1 + $0x28] sm:$0xff]
      %v289 = vld [vmem:[%s1 + $0x30] sm:$0xff]
      %v290 = vld [vmem:[%s1 + $0x38] sm:$0xff]
      %v291 = vld [vmem:[%s2] sm:$0x3]
      %v292 = vld [vmem:[%s3] sm:$0xf]
      %v293 = vld [vmem:[%s3 + $0x4] sm:$0xf]
      %v294 = vld [vmem:[%s3 + $0x8] sm:$0xf]
      %v295 = vld [vmem:[%s3 + $0xc] sm:$0xf]
      %v296 = vld [vmem:[%s3 + $0x10] sm:$0xf]
      %v297 = vld [vmem:[%s3 + $0x14] sm:$0xf]
      %v298 = vld [vmem:[%s3 + $0x18] sm:$0xf]
      %v299 = vld [vmem:[%s3 + $0x1c] sm:$0xf]
      %v300 = vld [vmem:[%s3 + $0x20] sm:$0xf]
      %v301 = vld [vmem:[%s3 + $0x24] sm:$0xf]
      %v302 = vld [vmem:[%s3 + $0x28] sm:$0xf]
      %v303 = vld [vmem:[%s3 + $0x2c] sm:$0xf]
      %v304 = vld [vmem:[%s3 + $0x30] sm:$0xf]
      %v305 = vld [vmem:[%s3 + $0x34] sm:$0xf]
      %v306 = vld [vmem:[%s3 + $0x38] sm:$0xf]
      %v307 = vld [vmem:[%s3 + $0x3c] sm:$0xf]
      %v308 = vld [vmem:[%s3 + $0x40] sm:$0xf]
      %v309 = vld [vmem:[%s3 + $0x44] sm:$0xf]
      %v310 = vld [vmem:[%s3 + $0x48] sm:$0xf]
      %v311 = vld [vmem:[%s3 + $0x4c] sm:$0xf]
      %v312 = vld [vmem:[%s3 + $0x50] sm:$0xf]
      %v313 = vld [vmem:[%s3 + $0x54] sm:$0xf]
      %v314 = vld [vmem:[%s3 + $0x58] sm:$0xf]
      %v315 = vld [vmem:[%s3 + $0x5c] sm:$0xf]
      %v316 = vld [vmem:[%s3 + $0x60] sm:$0xf]
      %v317 = vld [vmem:[%s3 + $0x64] sm:$0xf]
      %v318 = vld [vmem:[%s3 + $0x68] sm:$0xf]
      %v319 = vld [vmem:[%s3 + $0x6c] sm:$0xf]
      %v320 = vld [vmem:[%s3 + $0x70] sm:$0xf]
      %v321 = vld [vmem:[%s3 + $0x74] sm:$0xf]
      %v322 = vld [vmem:[%s3 + $0x78] sm:$0xf]
      %v323 = vld [vmem:[%s3 + $0x7c] sm:$0xf]
      %v324 = vld [vmem:[%s4] sm:$0x1]
      %v325 = vld [vmem:[%s5] sm:$0x1]
      %v326 = vld [vmem:[%s6] sm:$0x1]
      %v328 = vlaneseq
      %v329 = vshrl.u32 %v328, 7
      %v330 = vsub.s32 0, %v329
      %v331 = vrot.slane %v291, %v330
      %v332 = vlaneseq
      %v333 = vshrl.u32 %v332, 7
      %v334 = vsub.s32 1, %v333
      %v335 = vrot.slane %v291, %v334
      %v341 = vunpack.c.l.b16 %v280
      %v342 = vunpack.c.l.b16 %v281
      %v343 = vunpack.c.l.b16 %v282
      %v344 = vpack.c.b16 %v342, %v341
      %v345 = vpack.c.b16 %v343, %v343
      %v354 = vunpack.c.l.b16 %v283
      %v355 = vunpack.c.h.b16 %v283
      %v356 = vunpack.c.l.b16 %v284
      %v357 = vunpack.c.h.b16 %v284
      %v358 = vunpack.c.l.b16 %v285
      %v359 = vunpack.c.h.b16 %v285
      %v360 = vunpack.c.l.b16 %v286
      %v361 = vunpack.c.h.b16 %v286
      %v362 = vunpack.c.l.b16 %v287
      %v363 = vunpack.c.h.b16 %v287
      %v364 = vunpack.c.l.b16 %v288
      %v365 = vunpack.c.h.b16 %v288
      %v366 = vunpack.c.l.b16 %v289
      %v367 = vunpack.c.h.b16 %v289
      %v368 = vunpack.c.l.b16 %v290
      %v369 = vunpack.c.h.b16 %v290
      %v370 = vpack.c.b16 %v356, %v354
      %v371 = vpack.c.b16 %v357, %v355
      %v372 = vpack.c.b16 %v360, %v358
      %v373 = vpack.c.b16 %v361, %v359
      %v374 = vpack.c.b16 %v364, %v362
      %v375 = vpack.c.b16 %v365, %v363
      %v376 = vpack.c.b16 %v368, %v366
      %v377 = vpack.c.b16 %v369, %v367
      %vm386 = vcmask 523264
      %v388 = vsel %vm386, %v344, 0
      %v391 = vsel %vm386, %v345, 0
      %393 = vmatprep.subr.bf16.mxu0 %v371
      %394 = vmatpush1.bf16.msra.mxu0 %v370
      %395 = vmatprep.subr.bf16.mxu0 %v373
      %396 = vmatpush1.bf16.msra.mxu0 %v372
      %397 = vmatprep.subr.bf16.mxu0 %v375
      %398 = vmatpush1.bf16.msra.mxu0 %v374
      %399 = vmatprep.subr.bf16.mxu0 %v377
      %400 = vmatpush1.bf16.msra.mxu0 %v376
      %401 = vmatprep.subr.bf16.mxu0 0
      %402 = vmatpush1.bf16.msra.mxu0 0
      %403 = vmatprep.subr.bf16.mxu0 0
      %404 = vmatpush1.bf16.msra.mxu0 0
      %405 = vmatprep.subr.bf16.mxu0 0
      %406 = vmatpush1.bf16.msra.mxu0 0
      %407 = vmatprep.subr.bf16.mxu0 0
      %408 = vmatpush1.bf16.msra.mxu0 0
      %409 = vmatprep.subr.bf16.mxu0 0
      %410 = vmatpush1.bf16.msra.mxu0 0
      %411 = vmatprep.subr.bf16.mxu0 0
      %412 = vmatpush1.bf16.msra.mxu0 0
      %413 = vmatprep.subr.bf16.mxu0 0
      %414 = vmatpush1.bf16.msra.mxu0 0
      %415 = vmatprep.subr.bf16.mxu0 0
      %416 = vmatpush1.bf16.msra.mxu0 0
      %417 = vmatprep.subr.bf16.mxu0 0
      %418 = vmatpush1.bf16.msra.mxu0 0
      %419 = vmatprep.subr.bf16.mxu0 0
      %420 = vmatpush1.bf16.msra.mxu0 0
      %421 = vmatprep.subr.bf16.mxu0 0
      %422 = vmatpush1.bf16.msra.mxu0 0
      %423 = vmatprep.subr.bf16.mxu0 0
      %424 = vmatpush1.bf16.msra.mxu0 0
      %425 = vmatprep.mubr.bf16.mxu0 0
      %426 = vmatmul.mubr.bf16.gmra.mrb[0].mxu0 %v388
      %v427 = vpop.f32.mrb[0].mxu0
      %v428 = vadd.f32 %v331, %v427
      %v429 = vpop.f32.mrb[0].mxu0
      %v430 = vadd.f32 %v335, %v429
      %v431 = vpop.f32.mrb[0].mxu0
      %v432 = vadd.f32 %v331, %v431
      %v433 = vpop.f32.mrb[0].mxu0
      %v434 = vadd.f32 %v335, %v433
      %435 = vmatprep.mubr.bf16.mxu0 0
      %436 = vmatmul.mubr.bf16.gmra.mrb[0].mxu0 %v391
      %v437 = vpop.f32.mrb[0].mxu0
      %v438 = vadd.f32 %v331, %v437
      %v439 = vpop.f32.mrb[0].mxu0
      %v440 = vadd.f32 %v335, %v439
      %v441 = vpop.f32.mrb[0].mxu0
      %v442 = vpop.f32.mrb[0].mxu0
      %443 = vdwg.mxu0
      %v444 = vmul.f32 %v428, 0.5
      %v445 = vmul.f32 %v430, 0.5
      %v446 = vmul.f32 %v432, 0.5
      %v447 = vmul.f32 %v434, 0.5
      %v448 = vmul.f32 %v438, 0.5
      %v449 = vmul.f32 %v440, 0.5
      %v450 = vmul.f32 %v428, 0.70710677
      %v451 = vmul.f32 %v430, 0.70710677
      %v452 = vmul.f32 %v432, 0.70710677
      %v453 = vmul.f32 %v434, 0.70710677
      %v454 = vmul.f32 %v438, 0.70710677
      %v455 = vmul.f32 %v440, 0.70710677
      %v456 = verf.f32.pop %v450
      %v457 = verf.f32.pop %v451
      %v458 = verf.f32.pop %v452
      %v459 = verf.f32.pop %v453
      %v460 = verf.f32.pop %v454
      %v461 = verf.f32.pop %v455
      %v462 = vadd.f32 %v456, 1.0
      %v463 = vadd.f32 %v457, 1.0
      %v464 = vadd.f32 %v458, 1.0
      %v465 = vadd.f32 %v459, 1.0
      %v466 = vadd.f32 %v460, 1.0
      %v467 = vadd.f32 %v461, 1.0
      %v468 = vmul.f32 %v444, %v462
      %v469 = vmul.f32 %v445, %v463
      %v470 = vmul.f32 %v446, %v464
      %v471 = vmul.f32 %v447, %v465
      %v472 = vmul.f32 %v448, %v466
      %v473 = vmul.f32 %v449, %v467
      %v474 = vpack.c.bf16 %v470, %v468
      %v475 = vpack.c.bf16 %v471, %v469
      %v476 = vpack.c.bf16 %v472, %v472
      %v477 = vpack.c.bf16 %v473, %v473
      %v479 = vlaneseq
      %v480 = vshrl.u32 %v479, 7
      %v481 = vsub.s32 0, %v480
      %v482 = vrot.slane %v324, %v481
      %v516 = vunpack.c.l.b16 %v292
      %v517 = vunpack.c.l.b16 %v293
      %v518 = vunpack.c.l.b16 %v294
      %v519 = vunpack.c.l.b16 %v295
      %v520 = vunpack.c.l.b16 %v296
      %v521 = vunpack.c.l.b16 %v297
      %v522 = vunpack.c.l.b16 %v298
      %v523 = vunpack.c.l.b16 %v299
      %v524 = vunpack.c.l.b16 %v300
      %v525 = vunpack.c.l.b16 %v301
      %v526 = vunpack.c.l.b16 %v302
      %v527 = vunpack.c.l.b16 %v303
      %v528 = vunpack.c.l.b16 %v304
      %v529 = vunpack.c.l.b16 %v305
      %v530 = vunpack.c.l.b16 %v306
      %v531 = vunpack.c.l.b16 %v307
      %v532 = vunpack.c.l.b16 %v308
      %v533 = vunpack.c.l.b16 %v309
      %v534 = vunpack.c.l.b16 %v310
      %v535 = vunpack.c.l.b16 %v311
      %v536 = vunpack.c.l.b16 %v312
      %v537 = vunpack.c.l.b16 %v313
      %v538 = vunpack.c.l.b16 %v314
      %v539 = vunpack.c.l.b16 %v315
      %v540 = vunpack.c.l.b16 %v316
      %v541 = vunpack.c.l.b16 %v317
      %v542 = vunpack.c.l.b16 %v318
      %v543 = vunpack.c.l.b16 %v319
      %v544 = vunpack.c.l.b16 %v320
      %v545 = vunpack.c.l.b16 %v321
      %v546 = vunpack.c.l.b16 %v322
      %v547 = vunpack.c.l.b16 %v323
      %v548 = vpack.c.b16 %v517, %v516
      %v549 = vpack.c.b16 %v519, %v518
      %v550 = vpack.c.b16 %v521, %v520
      %v551 = vpack.c.b16 %v523, %v522
      %v552 = vpack.c.b16 %v525, %v524
      %v553 = vpack.c.b16 %v527, %v526
      %v554 = vpack.c.b16 %v529, %v528
      %v555 = vpack.c.b16 %v531, %v530
      %v556 = vpack.c.b16 %v533, %v532
      %v557 = vpack.c.b16 %v535, %v534
      %v558 = vpack.c.b16 %v537, %v536
      %v559 = vpack.c.b16 %v539, %v538
      %v560 = vpack.c.b16 %v541, %v540
      %v561 = vpack.c.b16 %v543, %v542
      %v562 = vpack.c.b16 %v545, %v544
      %v563 = vpack.c.b16 %v547, %v546
      %580 = vmatprep.subr.bf16.mxu0 0
      %581 = vmatpush1.bf16.msra.mxu0 %v548
      %582 = vmatprep.subr.bf16.mxu0 0
      %583 = vmatpush1.bf16.msra.mxu0 %v549
      %584 = vmatprep.subr.bf16.mxu0 0
      %585 = vmatpush1.bf16.msra.mxu0 %v550
      %586 = vmatprep.subr.bf16.mxu0 0
      %587 = vmatpush1.bf16.msra.mxu0 %v551
      %588 = vmatprep.subr.bf16.mxu0 0
      %589 = vmatpush1.bf16.msra.mxu0 %v552
      %590 = vmatprep.subr.bf16.mxu0 0
      %591 = vmatpush1.bf16.msra.mxu0 %v553
      %592 = vmatprep.subr.bf16.mxu0 0
      %593 = vmatpush1.bf16.msra.mxu0 %v554
      %594 = vmatprep.subr.bf16.mxu0 0
      %595 = vmatpush1.bf16.msra.mxu0 %v555
      %596 = vmatprep.subr.bf16.mxu0 0
      %597 = vmatpush1.bf16.msra.mxu0 %v556
      %598 = vmatprep.subr.bf16.mxu0 0
      %599 = vmatpush1.bf16.msra.mxu0 %v557
      %600 = vmatprep.subr.bf16.mxu0 0
      %601 = vmatpush1.bf16.msra.mxu0 %v558
      %602 = vmatprep.subr.bf16.mxu0 0
      %603 = vmatpush1.bf16.msra.mxu0 %v559
      %604 = vmatprep.subr.bf16.mxu0 0
      %605 = vmatpush1.bf16.msra.mxu0 %v560
      %606 = vmatprep.subr.bf16.mxu0 0
      %607 = vmatpush1.bf16.msra.mxu0 %v561
      %608 = vmatprep.subr.bf16.mxu0 0
      %609 = vmatpush1.bf16.msra.mxu0 %v562
      %610 = vmatprep.subr.bf16.mxu0 0
      %611 = vmatpush1.bf16.msra.mxu0 %v563
      %612 = vmatprep.mubr.bf16.mxu0 %v475
      %613 = vmatmul.mubr.bf16.gmra.mrb[0].mxu0 %v474
      %v614 = vpop.f32.mrb[0].mxu0
      %v615 = vadd.f32 %v482, %v614
      %v616 = vpop.f32.mrb[0].mxu0
      %v617 = vpop.f32.mrb[0].mxu0
      %v618 = vadd.f32 %v482, %v617
      %v619 = vpop.f32.mrb[0].mxu0
      %620 = vmatprep.mubr.bf16.mxu0 %v477
      %621 = vmatmul.mubr.bf16.gmra.mrb[0].mxu0 %v476
      %v622 = vpop.f32.mrb[0].mxu0
      %v623 = vadd.f32 %v482, %v622
      %v624 = vpop.f32.mrb[0].mxu0
      %v625 = vpop.f32.mrb[0].mxu0
      %v626 = vpop.f32.mrb[0].mxu0
      %627 = vdwg.mxu0
      %v628 = vunpack.c.l.bf16 %v280
      %v629 = vunpack.c.l.bf16 %v281
      %v630 = vunpack.c.l.bf16 %v282
      %v631 = vadd.f32 %v628, %v615
      %v632 = vadd.f32 %v629, %v618
      %v633 = vadd.f32 %v630, %v623
      %v634 = vsel %vm386, %v631, 0.0
      %635 = vadd.xlane.f32.xlu0 %v634
      %v636 = vpop.xlane.xlu0 %635
      %v637 = vsel %vm386, %v632, 0.0
      %638 = vadd.xlane.f32.xlu0 %v637
      %v639 = vpop.xlane.xlu0 %638
      %v640 = vsel %vm386, %v633, 0.0
      %641 = vadd.xlane.f32.xlu0 %v640
      %v642 = vpop.xlane.xlu0 %641
      %v643 = vrcp.pop 64.0
      %v644 = vmul.f32 %v636, %v643
      %v645 = vmul.f32 %v639, %v643
      %v646 = vmul.f32 %v642, %v643
      %v647 = vsub.f32 %v631, %v644
      %v648 = vsub.f32 %v632, %v645
      %v649 = vsub.f32 %v633, %v646
      %v650 = vmul.f32 %v647, %v647
      %v651 = vmul.f32 %v648, %v648
      %v652 = vmul.f32 %v649, %v649
      %v653 = vsel %vm386, %v650, 0.0
      %654 = vadd.xlane.f32.xlu0 %v653
      %v655 = vpop.xlane.xlu0 %654
      %v656 = vsel %vm386, %v651, 0.0
      %657 = vadd.xlane.f32.xlu0 %v656
      %v658 = vpop.xlane.xlu0 %657
      %v659 = vsel %vm386, %v652, 0.0
      %660 = vadd.xlane.f32.xlu0 %v659
      %v661 = vpop.xlane.xlu0 %660
      %v662 = vmul.f32 %v655, %v643
      %v663 = vmul.f32 %v658, %v643
      %v664 = vmul.f32 %v661, %v643
      %v665 = vadd.f32 %v662, 1e-06
      %v666 = vadd.f32 %v663, 1e-06
      %v667 = vadd.f32 %v664, 1e-06
      %v668 = vrsqrt.pop %v665
      %v669 = vrsqrt.pop %v666
      %v670 = vrsqrt.pop %v667
      %v671 = vmul.f32 %v647, %v668
      %v672 = vmul.f32 %v648, %v669
      %v673 = vmul.f32 %v649, %v670
      %v675 = vlaneseq
      %v676 = vshrl.u32 %v675, 7
      %v677 = vsub.s32 0, %v676
      %v678 = vrot.slane %v325, %v677
      %v680 = vmul.f32 %v671, %v678
      %v681 = vmul.f32 %v672, %v678
      %v682 = vmul.f32 %v673, %v678
      %v684 = vlaneseq
      %v685 = vshrl.u32 %v684, 7
      %v686 = vsub.s32 0, %v685
      %v687 = vrot.slane %v326, %v686
      %v689 = vadd.f32 %v680, %v687
      %v690 = vadd.f32 %v681, %v687
      %v691 = vadd.f32 %v682, %v687
      %v692 = vpack.c.bf16 %v690, %v689
      %v693 = vpack.c.bf16 %v691, %v691
      %v696 = vunpack.c.l.b16 %v692
      %v697 = vunpack.c.h.b16 %v692
      %v698 = vunpack.c.l.b16 %v693
      %v699 = vpack.c.b16 %v696, %v696
      %v700 = vpack.c.b16 %v697, %v697
      %v701 = vpack.c.b16 %v698, %v698
      %vm705 = vcmask 519168
      %706 = vst.msk [vmem:[%s278] sm:$0xf] %vm705, %v699
      %707 = vst.msk [vmem:[%s278 + $0x4] sm:$0xf] %vm705, %v700
      %708 = vst.msk [vmem:[%s278 + $0x8] sm:$0xf] %vm705, %v701
      %p709 = scmp.lt.s32.totalorder %s18, 1
      %s710 = scalar_select %p709, %s18, 1
      %s711 = smul.addr %s710, 3
      %s712 = smul.addr %s711, 4
      %s713 = scalar_lea.vmem %s7, %s712
      // Predicated region
      $region49: #{cppd_head_forward_test.13} parent=47 // pred_check
        %p714 = pneg %p188
      $region50: #{cppd_head_forward_test.13} parent=47 // pred_check_branch
        %716 = sbr.rel (%p714) target = $region52
      $region51: #{cppd_head_forward_test.13} parent=47 // pred_region
        _
      $region52: #{cppd_head_forward_test.13} parent=47 // pred_fallthru
        _
    $region48: #{cppd_head_forward_test.13} parent=5 // pred_fallthru
      _
    %p717 = scmp.le.s32.totalorder 2, %s13
    // Predicated region
    $region53: #{cppd_head_forward_test.13} parent=5 // pred_check
      %p718 = pneg %p717
    $region54: #{cppd_head_forward_test.13} parent=5 // pred_check_branch
      %720 = sbr.rel (%p718) target = $region56
    $region55: #{cppd_head_forward_test.13} parent=5 // pred_region
      %s721 = ssub.s32 %s13, 2
      // Predicated region
      $region57: #{cppd_head_forward_test.13} parent=55 // pred_check
        %p722 = pneg %p194
      $region58: #{cppd_head_forward_test.13} parent=55 // pred_check_branch
        %724 = sbr.rel (%p722) target = $region60
      $region59: #{cppd_head_forward_test.13} parent=55 // pred_region
        %p725 = scmp.lt.s32.totalorder %s19, 1
        %s726 = scalar_select %p725, %s19, 1
        %s727 = smul.addr %s726, 3
        %s728 = smul.addr %s727, 4
        %s729 = scalar_lea.vmem %s7, %s728
      $region60: #{cppd_head_forward_test.13} parent=55 // pred_fallthru
        _
    $region56: #{cppd_head_forward_test.13} parent=5 // pred_fallthru
      _
  $region6: #{cppd_head_forward_test.13} parent=0 // loop_footer
    %s17 = sadd.s32 1, %s13
  $region7: #{cppd_head_forward_test.13} parent=0 // loop_footer_branch
    %12 = sbr.rel target = $region3
  $region8: #{cppd_head_forward_test.13} parent=0 // loop_exit
    _

// kernel: cppd_head_forward_test.12
$region0: #{cppd_head_forward_test.12}
  #allocation0 [shape = 'u32[]', space=smem, size = 0x4, offset = 0x4, fixed_abs, tag = 'smem constant byte address 0x4 - core index']
  #allocation1 [shape = 'u32[144,128]{1,0:T(1,128)}', space=vmem, size = 0x12000, scoped, tag = 'internal scratch']
  %s0 = inlined_call_operand.vmem [shape: bf16[2,24,64], index: 0, kind: input, shape index: {}, may-alias: {0,1}]
  %s1 = inlined_call_operand.vmem [shape: bf16[2,24,64], index: 1, kind: input, shape index: {}, may-alias: {0,1}]
  %s2 = inlined_call_operand.vmem [shape: bf16[64,64], index: 2, kind: input, shape index: {}]
  %s3 = inlined_call_operand.vmem [shape: f32[1,64], index: 3, kind: input, shape index: {}]
  %s4 = inlined_call_operand.vmem [shape: bf16[64,64], index: 4, kind: input, shape index: {}]
  %s5 = inlined_call_operand.vmem [shape: f32[1,64], index: 5, kind: input, shape index: {}]
  %s6 = inlined_call_operand.vmem [shape: bf16[64,64], index: 6, kind: input, shape index: {}]
  %s7 = inlined_call_operand.vmem [shape: f32[1,64], index: 7, kind: input, shape index: {}]
  %s8 = inlined_call_operand.vmem [shape: bf16[64,64], index: 8, kind: input, shape index: {}]
  %s9 = inlined_call_operand.vmem [shape: f32[1,64], index: 9, kind: input, shape index: {}]
  %s10 = inlined_call_operand.vmem [shape: f32[1,64], index: 10, kind: input, shape index: {}]
  %s11 = inlined_call_operand.vmem [shape: f32[1,64], index: 11, kind: input, shape index: {}]
  %s12 = inlined_call_operand.vmem [shape: bf16[2,24,64], index: 12, kind: output, shape index: {}]
  %s13 = sld [smem:[#allocation0]]
  $region81: #{cppd_head_forward_test.12} parent=0
    _
  %s15 = ssub.s32 1, %s13
  %s16 = scalar_select 0, %s15, %s13
  loop: start=0, step=1, limit=4
  $region2: #{cppd_head_forward_test.12} parent=0 // loop_pre_header
    _
  $region3: #{cppd_head_forward_test.12} parent=0 // loop_header
    %s18 = sphi 0, %s22
    %p19 = scmp.ge.s32.totalorder %s18, 4
    %s28 = sphi 0, %s30
    %s31 = sphi 0, %s28
    %s32 = sphi 0, %s31
    %s48 = sphi 0, %s32
    %s54 = sphi 0, %s56
    %s57 = sphi 0, %s54
    %s58 = sphi 0, %s57
    %s74 = sphi 0, %s58
    %s78 = sphi 0, %s78
    %s80 = sphi 0, %s78
    %s81 = sphi 0, %s80
    %s95 = sphi 0, %s81
    %s99 = sphi 0, %s99
    %s101 = sphi 0, %s99
    %s102 = sphi 0, %s101
    %s116 = sphi 0, %s102
    %s120 = sphi 0, %s120
    %s122 = sphi 0, %s120
    %s123 = sphi 0, %s122
    %s137 = sphi 0, %s123
    %s141 = sphi 0, %s141
    %s143 = sphi 0, %s141
    %s144 = sphi 0, %s143
    %s158 = sphi 0, %s144
    %s162 = sphi 0, %s162
    %s164 = sphi 0, %s162
    %s165 = sphi 0, %s164
    %s179 = sphi 0, %s165
    %s183 = sphi 0, %s183
    %s185 = sphi 0, %s183
    %s186 = sphi 0, %s185
    %s200 = sphi 0, %s186
    %s204 = sphi 0, %s204
    %s206 = sphi 0, %s204
    %s207 = sphi 0, %s206
    %s221 = sphi 0, %s207
    %s225 = sphi 0, %s225
    %s227 = sphi 0, %s225
    %s228 = sphi 0, %s227
    %s242 = sphi 0, %s228
    %s246 = sphi 0, %s246
    %s248 = sphi 0, %s246
    %s249 = sphi 0, %s248
    %s263 = sphi 0, %s249
    %s267 = sphi 0, %s267
    %s269 = sphi 0, %s267
    %s270 = sphi 0, %s269
    %s284 = sphi 0, %s270
    %s290 = sphi 0, %s292
    %s293 = sphi 0, %s290
    %s294 = sphi 0, %s293
    %s310 = sphi 0, %s294
  $region4: #{cppd_head_forward_test.12} parent=0 // loop_header_branch
    %21 = sbr.rel (%p19) target = $region8
  $region5: #{cppd_head_forward_test.12} parent=0 // loop_body
    %s23 = ssub.s32 %s18, 1
    %s24 = ssub.s32 %s18, 2
    %s25 = sadd.s32 %s18, 1
    %s26 = ssub.s32 %s18, %s25
    %p27 = scmp.eq.s32.totalorder %s26, 0
    %s29 = sadd.s32 %s28, 1
    %s30 = scalar_select %p27, %s28, %s29
    %p33 = pneg %p27
    %p34 = scmp.eq.s32.totalorder %s18, 1
    %p35 = por %p33, %p34
    %p36 = scmp.ne.s32.totalorder %s28, %s31
    %p37 = scmp.eq.s32.totalorder %s18, 0
    %p38 = por %p36, %p37
    %p39 = scmp.ne.s32.totalorder %s28, %s31
    %p40 = scmp.eq.s32.totalorder %s23, 1
    %p41 = por %p39, %p40
    %p42 = scmp.ne.s32.totalorder %s31, %s32
    %p43 = scmp.eq.s32.totalorder %s23, 0
    %p44 = por %p42, %p43
    %p45 = scmp.ne.s32.totalorder %s31, %s32
    %p46 = scmp.eq.s32.totalorder %s24, 1
    %p47 = por %p45, %p46
    %p49 = scmp.ne.s32.totalorder %s32, %s48
    %p50 = scmp.eq.s32.totalorder %s24, 0
    %p51 = por %p49, %p50
    %s52 = ssub.s32 %s18, %s25
    %p53 = scmp.eq.s32.totalorder %s52, 0
    %s55 = sadd.s32 %s54, 1
    %s56 = scalar_select %p53, %s54, %s55
    %p59 = pneg %p53
    %p60 = scmp.eq.s32.totalorder %s18, 1
    %p61 = por %p59, %p60
    %p62 = scmp.ne.s32.totalorder %s54, %s57
    %p63 = scmp.eq.s32.totalorder %s18, 0
    %p64 = por %p62, %p63
    %p65 = scmp.ne.s32.totalorder %s54, %s57
    %p66 = scmp.eq.s32.totalorder %s23, 1
    %p67 = por %p65, %p66
    %p68 = scmp.ne.s32.totalorder %s57, %s58
    %p69 = scmp.eq.s32.totalorder %s23, 0
    %p70 = por %p68, %p69
    %p71 = scmp.ne.s32.totalorder %s57, %s58
    %p72 = scmp.eq.s32.totalorder %s24, 1
    %p73 = por %p71, %p72
    %p75 = scmp.ne.s32.totalorder %s58, %s74
    %p76 = scmp.eq.s32.totalorder %s24, 0
    %p77 = por %p75, %p76
    %s79 = sadd.s32 %s78, 1
    %p82 = scmp.eq.s32.totalorder %s18, 1
    %p83 = scmp.ne.s32.totalorder %s78, %s80
    %p84 = scmp.eq.s32.totalorder %s18, 0
    %p85 = por %p83, %p84
    %p86 = scmp.ne.s32.totalorder %s78, %s80
    %p87 = scmp.eq.s32.totalorder %s23, 1
    %p88 = por %p86, %p87
    %p89 = scmp.ne.s32.totalorder %s80, %s81
    %p90 = scmp.eq.s32.totalorder %s23, 0
    %p91 = por %p89, %p90
    %p92 = scmp.ne.s32.totalorder %s80, %s81
    %p93 = scmp.eq.s32.totalorder %s24, 1
    %p94 = por %p92, %p93
    %p96 = scmp.ne.s32.totalorder %s81, %s95
    %p97 = scmp.eq.s32.totalorder %s24, 0
    %p98 = por %p96, %p97
    %s100 = sadd.s32 %s99, 1
    %p103 = scmp.eq.s32.totalorder %s18, 1
    %p104 = scmp.ne.s32.totalorder %s99, %s101
    %p105 = scmp.eq.s32.totalorder %s18, 0
    %p106 = por %p104, %p105
    %p107 = scmp.ne.s32.totalorder %s99, %s101
    %p108 = scmp.eq.s32.totalorder %s23, 1
    %p109 = por %p107, %p108
    %p110 = scmp.ne.s32.totalorder %s101, %s102
    %p111 = scmp.eq.s32.totalorder %s23, 0
    %p112 = por %p110, %p111
    %p113 = scmp.ne.s32.totalorder %s101, %s102
    %p114 = scmp.eq.s32.totalorder %s24, 1
    %p115 = por %p113, %p114
    %p117 = scmp.ne.s32.totalorder %s102, %s116
    %p118 = scmp.eq.s32.totalorder %s24, 0
    %p119 = por %p117, %p118
    %s121 = sadd.s32 %s120, 1
    %p124 = scmp.eq.s32.totalorder %s18, 1
    %p125 = scmp.ne.s32.totalorder %s120, %s122
    %p126 = scmp.eq.s32.totalorder %s18, 0
    %p127 = por %p125, %p126
    %p128 = scmp.ne.s32.totalorder %s120, %s122
    %p129 = scmp.eq.s32.totalorder %s23, 1
    %p130 = por %p128, %p129
    %p131 = scmp.ne.s32.totalorder %s122, %s123
    %p132 = scmp.eq.s32.totalorder %s23, 0
    %p133 = por %p131, %p132
    %p134 = scmp.ne.s32.totalorder %s122, %s123
    %p135 = scmp.eq.s32.totalorder %s24, 1
    %p136 = por %p134, %p135
    %p138 = scmp.ne.s32.totalorder %s123, %s137
    %p139 = scmp.eq.s32.totalorder %s24, 0
    %p140 = por %p138, %p139
    %s142 = sadd.s32 %s141, 1
    %p145 = scmp.eq.s32.totalorder %s18, 1
    %p146 = scmp.ne.s32.totalorder %s141, %s143
    %p147 = scmp.eq.s32.totalorder %s18, 0
    %p148 = por %p146, %p147
    %p149 = scmp.ne.s32.totalorder %s141, %s143
    %p150 = scmp.eq.s32.totalorder %s23, 1
    %p151 = por %p149, %p150
    %p152 = scmp.ne.s32.totalorder %s143, %s144
    %p153 = scmp.eq.s32.totalorder %s23, 0
    %p154 = por %p152, %p153
    %p155 = scmp.ne.s32.totalorder %s143, %s144
    %p156 = scmp.eq.s32.totalorder %s24, 1
    %p157 = por %p155, %p156
    %p159 = scmp.ne.s32.totalorder %s144, %s158
    %p160 = scmp.eq.s32.totalorder %s24, 0
    %p161 = por %p159, %p160
    %s163 = sadd.s32 %s162, 1
    %p166 = scmp.eq.s32.totalorder %s18, 1
    %p167 = scmp.ne.s32.totalorder %s162, %s164
    %p168 = scmp.eq.s32.totalorder %s18, 0
    %p169 = por %p167, %p168
    %p170 = scmp.ne.s32.totalorder %s162, %s164
    %p171 = scmp.eq.s32.totalorder %s23, 1
    %p172 = por %p170, %p171
    %p173 = scmp.ne.s32.totalorder %s164, %s165
    %p174 = scmp.eq.s32.totalorder %s23, 0
    %p175 = por %p173, %p174
    %p176 = scmp.ne.s32.totalorder %s164, %s165
    %p177 = scmp.eq.s32.totalorder %s24, 1
    %p178 = por %p176, %p177
    %p180 = scmp.ne.s32.totalorder %s165, %s179
    %p181 = scmp.eq.s32.totalorder %s24, 0
    %p182 = por %p180, %p181
    %s184 = sadd.s32 %s183, 1
    %p187 = scmp.eq.s32.totalorder %s18, 1
    %p188 = scmp.ne.s32.totalorder %s183, %s185
    %p189 = scmp.eq.s32.totalorder %s18, 0
    %p190 = por %p188, %p189
    %p191 = scmp.ne.s32.totalorder %s183, %s185
    %p192 = scmp.eq.s32.totalorder %s23, 1
    %p193 = por %p191, %p192
    %p194 = scmp.ne.s32.totalorder %s185, %s186
    %p195 = scmp.eq.s32.totalorder %s23, 0
    %p196 = por %p194, %p195
    %p197 = scmp.ne.s32.totalorder %s185, %s186
    %p198 = scmp.eq.s32.totalorder %s24, 1
    %p199 = por %p197, %p198
    %p201 = scmp.ne.s32.totalorder %s186, %s200
    %p202 = scmp.eq.s32.totalorder %s24, 0
    %p203 = por %p201, %p202
    %s205 = sadd.s32 %s204, 1
    %p208 = scmp.eq.s32.totalorder %s18, 1
    %p209 = scmp.ne.s32.totalorder %s204, %s206
    %p210 = scmp.eq.s32.totalorder %s18, 0
    %p211 = por %p209, %p210
    %p212 = scmp.ne.s32.totalorder %s204, %s206
    %p213 = scmp.eq.s32.totalorder %s23, 1
    %p214 = por %p212, %p213
    %p215 = scmp.ne.s32.totalorder %s206, %s207
    %p216 = scmp.eq.s32.totalorder %s23, 0
    %p217 = por %p215, %p216
    %p218 = scmp.ne.s32.totalorder %s206, %s207
    %p219 = scmp.eq.s32.totalorder %s24, 1
    %p220 = por %p218, %p219
    %p222 = scmp.ne.s32.totalorder %s207, %s221
    %p223 = scmp.eq.s32.totalorder %s24, 0
    %p224 = por %p222, %p223
    %s226 = sadd.s32 %s225, 1
    %p229 = scmp.eq.s32.totalorder %s18, 1
    %p230 = scmp.ne.s32.totalorder %s225, %s227
    %p231 = scmp.eq.s32.totalorder %s18, 0
    %p232 = por %p230, %p231
    %p233 = scmp.ne.s32.totalorder %s225, %s227
    %p234 = scmp.eq.s32.totalorder %s23, 1
    %p235 = por %p233, %p234
    %p236 = scmp.ne.s32.totalorder %s227, %s228
    %p237 = scmp.eq.s32.totalorder %s23, 0
    %p238 = por %p236, %p237
    %p239 = scmp.ne.s32.totalorder %s227, %s228
    %p240 = scmp.eq.s32.totalorder %s24, 1
    %p241 = por %p239, %p240
    %p243 = scmp.ne.s32.totalorder %s228, %s242
    %p244 = scmp.eq.s32.totalorder %s24, 0
    %p245 = por %p243, %p244
    %s247 = sadd.s32 %s246, 1
    %p250 = scmp.eq.s32.totalorder %s18, 1
    %p251 = scmp.ne.s32.totalorder %s246, %s248
    %p252 = scmp.eq.s32.totalorder %s18, 0
    %p253 = por %p251, %p252
    %p254 = scmp.ne.s32.totalorder %s246, %s248
    %p255 = scmp.eq.s32.totalorder %s23, 1
    %p256 = por %p254, %p255
    %p257 = scmp.ne.s32.totalorder %s248, %s249
    %p258 = scmp.eq.s32.totalorder %s23, 0
    %p259 = por %p257, %p258
    %p260 = scmp.ne.s32.totalorder %s248, %s249
    %p261 = scmp.eq.s32.totalorder %s24, 1
    %p262 = por %p260, %p261
    %p264 = scmp.ne.s32.totalorder %s249, %s263
    %p265 = scmp.eq.s32.totalorder %s24, 0
    %p266 = por %p264, %p265
    %s268 = sadd.s32 %s267, 1
    %p271 = scmp.eq.s32.totalorder %s18, 1
    %p272 = scmp.ne.s32.totalorder %s267, %s269
    %p273 = scmp.eq.s32.totalorder %s18, 0
    %p274 = por %p272, %p273
    %p275 = scmp.ne.s32.totalorder %s267, %s269
    %p276 = scmp.eq.s32.totalorder %s23, 1
    %p277 = por %p275, %p276
    %p278 = scmp.ne.s32.totalorder %s269, %s270
    %p279 = scmp.eq.s32.totalorder %s23, 0
    %p280 = por %p278, %p279
    %p281 = scmp.ne.s32.totalorder %s269, %s270
    %p282 = scmp.eq.s32.totalorder %s24, 1
    %p283 = por %p281, %p282
    %p285 = scmp.ne.s32.totalorder %s270, %s284
    %p286 = scmp.eq.s32.totalorder %s24, 0
    %p287 = por %p285, %p286
    %s288 = ssub.s32 %s18, %s25
    %p289 = scmp.eq.s32.totalorder %s288, 0
    %s291 = sadd.s32 %s290, 1
    %s292 = scalar_select %p289, %s290, %s291
    %p295 = pneg %p289
    %p296 = scmp.eq.s32.totalorder %s18, 1
    %p297 = por %p295, %p296
    %p298 = scmp.ne.s32.totalorder %s290, %s293
    %p299 = scmp.eq.s32.totalorder %s18, 0
    %p300 = por %p298, %p299
    %p301 = scmp.ne.s32.totalorder %s290, %s293
    %p302 = scmp.eq.s32.totalorder %s23, 1
    %p303 = por %p301, %p302
    %p304 = scmp.ne.s32.totalorder %s293, %s294
    %p305 = scmp.eq.s32.totalorder %s23, 0
    %p306 = por %p304, %p305
    %p307 = scmp.ne.s32.totalorder %s293, %s294
    %p308 = scmp.eq.s32.totalorder %s24, 1
    %p309 = por %p307, %p308
    %p311 = scmp.ne.s32.totalorder %s294, %s310
    %p312 = scmp.eq.s32.totalorder %s24, 0
    %p313 = por %p311, %p312
    %p314 = scmp.le.s32.totalorder 1, %s18
    %p315 = scmp.lt.s32.totalorder %s18, 3
    %p316 = pnand %p314, %p315
    %p317 = pneg %p316
    // Predicated region
    $region9: #{cppd_head_forward_test.12} parent=5 // pred_check
      _
    $region10: #{cppd_head_forward_test.12} parent=5 // pred_check_branch
      %319 = sbr.rel (%p316) target = $region12
    $region11: #{cppd_head_forward_test.12} parent=5 // pred_region
      %s320 = ssub.s32 %s18, 1
      // Predicated region
      $region13: #{cppd_head_forward_test.12} parent=11 // pred_check
        %p321 = pneg %p91
      $region14: #{cppd_head_forward_test.12} parent=11 // pred_check_branch
        %323 = sbr.rel (%p321) target = $region16
      $region15: #{cppd_head_forward_test.12} parent=11 // pred_region
        _
      $region16: #{cppd_head_forward_test.12} parent=11 // pred_fallthru
        _
      // Predicated region
      $region17: #{cppd_head_forward_test.12} parent=11 // pred_check
        %p324 = pneg %p112
      $region18: #{cppd_head_forward_test.12} parent=11 // pred_check_branch
        %326 = sbr.rel (%p324) target = $region20
      $region19: #{cppd_head_forward_test.12} parent=11 // pred_region
        _
      $region20: #{cppd_head_forward_test.12} parent=11 // pred_fallthru
        _
      // Predicated region
      $region21: #{cppd_head_forward_test.12} parent=11 // pred_check
        %p327 = pneg %p133
      $region22: #{cppd_head_forward_test.12} parent=11 // pred_check_branch
        %329 = sbr.rel (%p327) target = $region24
      $region23: #{cppd_head_forward_test.12} parent=11 // pred_region
        _
      $region24: #{cppd_head_forward_test.12} parent=11 // pred_fallthru
        _
      // Predicated region
      $region25: #{cppd_head_forward_test.12} parent=11 // pred_check
        %p330 = pneg %p154
      $region26: #{cppd_head_forward_test.12} parent=11 // pred_check_branch
        %332 = sbr.rel (%p330) target = $region28
      $region27: #{cppd_head_forward_test.12} parent=11 // pred_region
        _
      $region28: #{cppd_head_forward_test.12} parent=11 // pred_fallthru
        _
      // Predicated region
      $region29: #{cppd_head_forward_test.12} parent=11 // pred_check
        %p333 = pneg %p175
      $region30: #{cppd_head_forward_test.12} parent=11 // pred_check_branch
        %335 = sbr.rel (%p333) target = $region32
      $region31: #{cppd_head_forward_test.12} parent=11 // pred_region
        _
      $region32: #{cppd_head_forward_test.12} parent=11 // pred_fallthru
        _
      // Predicated region
      $region33: #{cppd_head_forward_test.12} parent=11 // pred_check
        %p336 = pneg %p196
      $region34: #{cppd_head_forward_test.12} parent=11 // pred_check_branch
        %338 = sbr.rel (%p336) target = $region36
      $region35: #{cppd_head_forward_test.12} parent=11 // pred_region
        _
      $region36: #{cppd_head_forward_test.12} parent=11 // pred_fallthru
        _
      // Predicated region
      $region37: #{cppd_head_forward_test.12} parent=11 // pred_check
        %p339 = pneg %p217
      $region38: #{cppd_head_forward_test.12} parent=11 // pred_check_branch
        %341 = sbr.rel (%p339) target = $region40
      $region39: #{cppd_head_forward_test.12} parent=11 // pred_region
        _
      $region40: #{cppd_head_forward_test.12} parent=11 // pred_fallthru
        _
      // Predicated region
      $region41: #{cppd_head_forward_test.12} parent=11 // pred_check
        %p342 = pneg %p238
      $region42: #{cppd_head_forward_test.12} parent=11 // pred_check_branch
        %344 = sbr.rel (%p342) target = $region44
      $region43: #{cppd_head_forward_test.12} parent=11 // pred_region
        _
      $region44: #{cppd_head_forward_test.12} parent=11 // pred_fallthru
        _
      // Predicated region
      $region45: #{cppd_head_forward_test.12} parent=11 // pred_check
        %p345 = pneg %p259
      $region46: #{cppd_head_forward_test.12} parent=11 // pred_check_branch
        %347 = sbr.rel (%p345) target = $region48
      $region47: #{cppd_head_forward_test.12} parent=11 // pred_region
        _
      $region48: #{cppd_head_forward_test.12} parent=11 // pred_fallthru
        _
      // Predicated region
      $region49: #{cppd_head_forward_test.12} parent=11 // pred_check
        %p348 = pneg %p280
      $region50: #{cppd_head_forward_test.12} parent=11 // pred_check_branch
        %350 = sbr.rel (%p348) target = $region52
      $region51: #{cppd_head_forward_test.12} parent=11 // pred_region
        _
      $region52: #{cppd_head_forward_test.12} parent=11 // pred_fallthru
        _
    $region12: #{cppd_head_forward_test.12} parent=5 // pred_fallthru
      _
    %p351 = scmp.lt.s32.totalorder %s18, 2
    // Predicated region
    $region53: #{cppd_head_forward_test.12} parent=5 // pred_check
      %p352 = pneg %p351
    $region54: #{cppd_head_forward_test.12} parent=5 // pred_check_branch
      %354 = sbr.rel (%p352) target = $region56
    $region55: #{cppd_head_forward_test.12} parent=5 // pred_region
      // Predicated region
      $region57: #{cppd_head_forward_test.12} parent=55 // pred_check
        %p355 = pneg %p38
      $region58: #{cppd_head_forward_test.12} parent=55 // pred_check_branch
        %357 = sbr.rel (%p355) target = $region60
      $region59: #{cppd_head_forward_test.12} parent=55 // pred_region
        %p358 = scmp.lt.s32.totalorder %s18, 1
        %s359 = scalar_select %p358, %s18, 1
        %s360 = smul.addr %s359, 3
        %s361 = smul.addr %s360, 4
        %s362 = scalar_lea.vmem %s0, %s361
      $region60: #{cppd_head_forward_test.12} parent=55 // pred_fallthru
        _
      // Predicated region
      $region61: #{cppd_head_forward_test.12} parent=55 // pred_check
        %p363 = pneg %p64
      $region62: #{cppd_head_forward_test.12} parent=55 // pred_check_branch
        %365 = sbr.rel (%p363) target = $region64
      $region63: #{cppd_head_forward_test.12} parent=55 // pred_region
        %p366 = scmp.lt.s32.totalorder %s18, 1
        %s367 = scalar_select %p366, %s18, 1
        %s368 = smul.addr %s367, 3
        %s369 = smul.addr %s368, 4
        %s370 = scalar_lea.vmem %s1, %s369
      $region64: #{cppd_head_forward_test.12} parent=55 // pred_fallthru
        _
    $region56: #{cppd_head_forward_test.12} parent=5 // pred_fallthru
      _
    %p371 = scmp.le.s32.totalorder 1, %s18
    %p372 = scmp.lt.s32.totalorder %s18, 3
    %p373 = pnand %p371, %p372
    %p374 = pneg %p373
    // Predicated region
    $region65: #{cppd_head_forward_test.12} parent=5 // pred_check
      _
    $region66: #{cppd_head_forward_test.12} parent=5 // pred_check_branch
      %376 = sbr.rel (%p373) target = $region68
    $region67: #{cppd_head_forward_test.12} parent=5 // pred_region
      %s377 = ssub.s32 %s18, 1
      %p378 = scmp.lt.s32.totalorder %s23, 1
      %s379 = scalar_select %p378, %s23, 1
      %s380 = smul.addr %s379, 3
      %s381 = smul.addr %s380, 4
      %s382 = scalar_lea.vmem %s0, %s381
      %p383 = pneg %p44
      %p384 = pneg %p41
      %p385 = scmp.lt.s32.totalorder %s23, 1
      %s386 = scalar_select %p385, %s23, 1
      %s387 = smul.addr %s386, 3
      %s388 = smul.addr %s387, 4
      %s389 = scalar_lea.vmem %s1, %s388
      %p390 = pneg %p70
      %p391 = pneg %p67
      %p392 = pneg %p91
      %p393 = pneg %p88
      %p394 = pneg %p112
      %p395 = pneg %p109
      %p396 = pneg %p133
      %p397 = pneg %p130
      %p398 = pneg %p154
      %p399 = pneg %p151
      %p400 = pneg %p175
      %p401 = pneg %p172
      %p402 = pneg %p196
      %p403 = pneg %p193
      %p404 = pneg %p217
      %p405 = pneg %p214
      %p406 = pneg %p238
      %p407 = pneg %p235
      %p408 = pneg %p259
      %p409 = pneg %p256
      %p410 = pneg %p280
      %p411 = pneg %p277
      %p412 = pneg %p306
      %p413 = pneg %p303
      %p414 = scmp.lt.s32.totalorder %s23, 1
      %s415 = scalar_select %p414, %s23, 1
      %s416 = smul.addr %s415, 3
      %s417 = smul.addr %s416, 4
      %s418 = scalar_lea.vmem %s12, %s417
      %p419 = scmp.lt.s32.totalorder %s23, 1
      %s420 = scalar_select %p419, %s23, 1
      %s421 = smul.addr %s420, 3
      %s422 = smul.addr %s421, 4
      %s423 = scalar_lea.vmem %s0, %s422
      %p424 = scmp.lt.s32.totalorder %s23, 1
      %s425 = scalar_select %p424, %s23, 1
      %s426 = smul.addr %s425, 3
      %s427 = smul.addr %s426, 4
      %s428 = scalar_lea.vmem %s1, %s427
      %p429 = scmp.lt.s32.totalorder %s23, 1
      %s430 = scalar_select %p429, %s23, 1
      %s431 = smul.addr %s430, 3
      %s432 = smul.addr %s431, 4
      %s433 = scalar_lea.vmem %s12, %s432
      %v435 = vld [vmem:[%s423] sm:$0xf]
      %v436 = vld [vmem:[%s423 + $0x4] sm:$0xf]
      %v437 = vld [vmem:[%s423 + $0x8] sm:$0xf]
      %v438 = vld [vmem:[%s428 + $0x4] sm:$0xf]
      %v439 = vld [vmem:[%s428 + $0x8] sm:$0xf]
      %v440 = vld [vmem:[%s2] sm:$0xf]
      %v441 = vld [vmem:[%s2 + $0x4] sm:$0xf]
      %v442 = vld [vmem:[%s2 + $0x8] sm:$0xf]
      %v443 = vld [vmem:[%s2 + $0xc] sm:$0xf]
      %v444 = vld [vmem:[%s2 + $0x10] sm:$0xf]
      %v445 = vld [vmem:[%s2 + $0x14] sm:$0xf]
      %v446 = vld [vmem:[%s2 + $0x18] sm:$0xf]
      %v447 = vld [vmem:[%s2 + $0x1c] sm:$0xf]
      %v448 = vld [vmem:[%s3] sm:$0x1]
      %v450 = vlaneseq
      %v451 = vshrl.u32 %v450, 7
      %v452 = vsub.s32 0, %v451
      %v453 = vrot.slane %v448, %v452
      %v458 = vunpack.c.l.b16 %v435
      %v459 = vunpack.c.l.b16 %v436
      %v460 = vunpack.c.l.b16 %v437
      %v461 = vpack.c.b16 %v459, %v458
      %v462 = vpack.c.b16 %v460, %v460
      %v471 = vunpack.c.l.b16 %v440
      %v472 = vunpack.c.l.b16 %v441
      %v473 = vunpack.c.l.b16 %v442
      %v474 = vunpack.c.l.b16 %v443
      %v475 = vunpack.c.l.b16 %v444
      %v476 = vunpack.c.l.b16 %v445
      %v477 = vunpack.c.l.b16 %v446
      %v478 = vunpack.c.l.b16 %v447
      %v479 = vpack.c.b16 %v472, %v471
      %v480 = vpack.c.b16 %v474, %v473
      %v481 = vpack.c.b16 %v476, %v475
      %v482 = vpack.c.b16 %v478, %v477
      %vm487 = vcmask 523264
      %v489 = vsel %vm487, %v461, 0
      %v492 = vsel %vm487, %v462, 0
      %494 = vmatprep.subr.bf16.mxu0 0
      %495 = vmatpush1.bf16.msra.mxu0 %v479
      %496 = vmatprep.subr.bf16.mxu0 0
      %497 = vmatpush1.bf16.msra.mxu0 %v480
      %498 = vmatprep.subr.bf16.mxu0 0
      %499 = vmatpush1.bf16.msra.mxu0 %v481
      %500 = vmatprep.subr.bf16.mxu0 0
      %501 = vmatpush1.bf16.msra.mxu0 %v482
      %502 = vmatprep.subr.bf16.mxu0 0
      %503 = vmatpush1.bf16.msra.mxu0 0
      %504 = vmatprep.subr.bf16.mxu0 0
      %505 = vmatpush1.bf16.msra.mxu0 0
      %506 = vmatprep.subr.bf16.mxu0 0
      %507 = vmatpush1.bf16.msra.mxu0 0
      %508 = vmatprep.subr.bf16.mxu0 0
      %509 = vmatpush1.bf16.msra.mxu0 0
      %510 = vmatprep.subr.bf16.mxu0 0
      %511 = vmatpush1.bf16.msra.mxu0 0
      %512 = vmatprep.subr.bf16.mxu0 0
      %513 = vmatpush1.bf16.msra.mxu0 0
      %514 = vmatprep.subr.bf16.mxu0 0
      %515 = vmatpush1.bf16.msra.mxu0 0
      %516 = vmatprep.subr.bf16.mxu0 0
      %517 = vmatpush1.bf16.msra.mxu0 0
      %518 = vmatprep.subr.bf16.mxu0 0
      %519 = vmatpush1.bf16.msra.mxu0 0
      %520 = vmatprep.subr.bf16.mxu0 0
      %521 = vmatpush1.bf16.msra.mxu0 0
      %522 = vmatprep.subr.bf16.mxu0 0
      %523 = vmatpush1.bf16.msra.mxu0 0
      %524 = vmatprep.subr.bf16.mxu0 0
      %525 = vmatpush1.bf16.msra.mxu0 0
      %526 = vmatprep.mubr.bf16.mxu0 0
      %527 = vmatmul.mubr.bf16.gmra.mrb[0].mxu0 %v489
      %v528 = vpop.f32.mrb[0].mxu0
      %v529 = vadd.f32 %v453, %v528
      %v530 = vpop.f32.mrb[0].mxu0
      %v531 = vpop.f32.mrb[0].mxu0
      %v532 = vadd.f32 %v453, %v531
      %v533 = vpop.f32.mrb[0].mxu0
      %534 = vmatprep.mubr.bf16.mxu0 0
      %535 = vmatmul.mubr.bf16.gmra.mrb[0].mxu0 %v492
      %v536 = vpop.f32.mrb[0].mxu0
      %v537 = vadd.f32 %v453, %v536
      %v538 = vpop.f32.mrb[0].mxu0
      %v539 = vpop.f32.mrb[0].mxu0
      %v540 = vpop.f32.mrb[0].mxu0
      %541 = vdwg.mxu0
      %v542 = vld [vmem:[%s4] sm:$0xf]
      %v543 = vld [vmem:[%s4 + $0x4] sm:$0xf]
      %v544 = vld [vmem:[%s4 + $0x8] sm:$0xf]
      %v545 = vld [vmem:[%s4 + $0xc] sm:$0xf]
      %v546 = vld [vmem:[%s4 + $0x10] sm:$0xf]
      %v547 = vld [vmem:[%s4 + $0x14] sm:$0xf]
      %v548 = vld [vmem:[%s4 + $0x18] sm:$0xf]
      %v549 = vld [vmem:[%s4 + $0x1c] sm:$0xf]
      %v550 = vld [vmem:[%s5] sm:$0x1]
      %v552 = vlaneseq
      %v553 = vshrl.u32 %v552, 7
      %v554 = vsub.s32 0, %v553
      %v555 = vrot.slane %v550, %v554
      %v559 = vunpack.c.l.b16 %v438
      %v560 = vunpack.c.l.b16 %v439
      %v561 = vpack.c.b16 %v560, %v559
      %v570 = vunpack.c.l.b16 %v542
      %v571 = vunpack.c.l.b16 %v543
      %v572 = vunpack.c.l.b16 %v544
      %v573 = vunpack.c.l.b16 %v545
      %v574 = vunpack.c.l.b16 %v546
      %v575 = vunpack.c.l.b16 %v547
      %v576 = vunpack.c.l.b16 %v548
      %v577 = vunpack.c.l.b16 %v549
      %v578 = vpack.c.b16 %v571, %v570
      %v579 = vpack.c.b16 %v573, %v572
      %v580 = vpack.c.b16 %v575, %v574
      %v581 = vpack.c.b16 %v577, %v576
      %v587 = vsel %vm487, %v561, 0
      %589 = vmatprep.subr.bf16.mxu0 0
      %590 = vmatpush1.bf16.msra.mxu0 %v578
      %591 = vmatprep.subr.bf16.mxu0 0
      %592 = vmatpush1.bf16.msra.mxu0 %v579
      %593 = vmatprep.subr.bf16.mxu0 0
      %594 = vmatpush1.bf16.msra.mxu0 %v580
      %595 = vmatprep.subr.bf16.mxu0 0
      %596 = vmatpush1.bf16.msra.mxu0 %v581
      %597 = vmatprep.subr.bf16.mxu0 0
      %598 = vmatpush1.bf16.msra.mxu0 0
      %599 = vmatprep.subr.bf16.mxu0 0
      %600 = vmatpush1.bf16.msra.mxu0 0
      %601 = vmatprep.subr.bf16.mxu0 0
      %602 = vmatpush1.bf16.msra.mxu0 0
      %603 = vmatprep.subr.bf16.mxu0 0
      %604 = vmatpush1.bf16.msra.mxu0 0
      %605 = vmatprep.subr.bf16.mxu0 0
      %606 = vmatpush1.bf16.msra.mxu0 0
      %607 = vmatprep.subr.bf16.mxu0 0
      %608 = vmatpush1.bf16.msra.mxu0 0
      %609 = vmatprep.subr.bf16.mxu0 0
      %610 = vmatpush1.bf16.msra.mxu0 0
      %611 = vmatprep.subr.bf16.mxu0 0
      %612 = vmatpush1.bf16.msra.mxu0 0
      %613 = vmatprep.subr.bf16.mxu0 0
      %614 = vmatpush1.bf16.msra.mxu0 0
      %615 = vmatprep.subr.bf16.mxu0 0
      %616 = vmatpush1.bf16.msra.mxu0 0
      %617 = vmatprep.subr.bf16.mxu0 0
      %618 = vmatpush1.bf16.msra.mxu0 0
      %619 = vmatprep.subr.bf16.mxu0 0
      %620 = vmatpush1.bf16.msra.mxu0 0
      %621 = vmatprep.mubr.bf16.mxu0 0
      %622 = vmatmul.mubr.bf16.gmra.mrb[0].mxu0 %v587
      %v623 = vpop.f32.mrb[0].mxu0
      %v624 = vadd.f32 %v555, %v623
      %v625 = vpop.f32.mrb[0].mxu0
      %v626 = vpop.f32.mrb[0].mxu0
      %v627 = vadd.f32 %v555, %v626
      %v628 = vpop.f32.mrb[0].mxu0
      %629 = vdwg.mxu0
      %v630 = vld [vmem:[%s6] sm:$0xf]
      %v631 = vld [vmem:[%s6 + $0x4] sm:$0xf]
      %v632 = vld [vmem:[%s6 + $0x8] sm:$0xf]
      %v633 = vld [vmem:[%s6 + $0xc] sm:$0xf]
      %v634 = vld [vmem:[%s6 + $0x10] sm:$0xf]
      %v635 = vld [vmem:[%s6 + $0x14] sm:$0xf]
      %v636 = vld [vmem:[%s6 + $0x18] sm:$0xf]
      %v637 = vld [vmem:[%s6 + $0x1c] sm:$0xf]
      %v638 = vld [vmem:[%s7] sm:$0x1]
      %v640 = vlaneseq
      %v641 = vshrl.u32 %v640, 7
      %v642 = vsub.s32 0, %v641
      %v643 = vrot.slane %v638, %v642
      %v653 = vunpack.c.l.b16 %v630
      %v654 = vunpack.c.l.b16 %v631
      %v655 = vunpack.c.l.b16 %v632
      %v656 = vunpack.c.l.b16 %v633
      %v657 = vunpack.c.l.b16 %v634
      %v658 = vunpack.c.l.b16 %v635
      %v659 = vunpack.c.l.b16 %v636
      %v660 = vunpack.c.l.b16 %v637
      %v661 = vpack.c.b16 %v654, %v653
      %v662 = vpack.c.b16 %v656, %v655
      %v663 = vpack.c.b16 %v658, %v657
      %v664 = vpack.c.b16 %v660, %v659
      %669 = vmatprep.subr.bf16.mxu0 0
      %670 = vmatpush1.bf16.msra.mxu0 %v661
      %671 = vmatprep.subr.bf16.mxu0 0
      %672 = vmatpush1.bf16.msra.mxu0 %v662
      %673 = vmatprep.subr.bf16.mxu0 0
      %674 = vmatpush1.bf16.msra.mxu0 %v663
      %675 = vmatprep.subr.bf16.mxu0 0
      %676 = vmatpush1.bf16.msra.mxu0 %v664
      %677 = vmatprep.subr.bf16.mxu0 0
      %678 = vmatpush1.bf16.msra.mxu0 0
      %679 = vmatprep.subr.bf16.mxu0 0
      %680 = vmatpush1.bf16.msra.mxu0 0
      %681 = vmatprep.subr.bf16.mxu0 0
      %682 = vmatpush1.bf16.msra.mxu0 0
      %683 = vmatprep.subr.bf16.mxu0 0
      %684 = vmatpush1.bf16.msra.mxu0 0
      %685 = vmatprep.subr.bf16.mxu0 0
      %686 = vmatpush1.bf16.msra.mxu0 0
      %687 = vmatprep.subr.bf16.mxu0 0
      %688 = vmatpush1.bf16.msra.mxu0 0
      %689 = vmatprep.subr.bf16.mxu0 0
      %690 = vmatpush1.bf16.msra.mxu0 0
      %691 = vmatprep.subr.bf16.mxu0 0
      %692 = vmatpush1.bf16.msra.mxu0 0
      %693 = vmatprep.subr.bf16.mxu0 0
      %694 = vmatpush1.bf16.msra.mxu0 0
      %695 = vmatprep.subr.bf16.mxu0 0
      %696 = vmatpush1.bf16.msra.mxu0 0
      %697 = vmatprep.subr.bf16.mxu0 0
      %698 = vmatpush1.bf16.msra.mxu0 0
      %699 = vmatprep.subr.bf16.mxu0 0
      %700 = vmatpush1.bf16.msra.mxu0 0
      %701 = vmatprep.mubr.bf16.mxu0 0
      %702 = vmatmul.mubr.bf16.gmra.mrb[0].mxu0 %v587
      %v703 = vpop.f32.mrb[0].mxu0
      %v704 = vadd.f32 %v643, %v703
      %v705 = vpop.f32.mrb[0].mxu0
      %v706 = vpop.f32.mrb[0].mxu0
      %v707 = vadd.f32 %v643, %v706
      %v708 = vpop.f32.mrb[0].mxu0
      %709 = vdwg.mxu0
      %v710 = vpack.c.bf16 %v532, %v529
      %v711 = vpack.c.bf16 %v537, %v537
      %v712 = vpack.c.bf16 %v627, %v624
      %v713 = vpack.c.bf16 %v707, %v704
      %vm714 = vcmask 261120
      %v716 = vsel %vm714, %v710, 0
      %v719 = vsel %vm714, %v711, 0
      %v722 = vsel %vm714, %v712, 0
      %724 = vmatprep.subr.bf16.mxu0 0
      %725 = vmatpush1.bf16.xpose.msra.mxu0 %v722
      %726 = vmatprep.subr.bf16.mxu0 0
      %727 = vmatpush1.bf16.xpose.msra.mxu0 0
      %728 = vmatprep.subr.bf16.mxu0 0
      %729 = vmatpush1.bf16.xpose.msra.mxu0 0
      %730 = vmatprep.subr.bf16.mxu0 0
      %731 = vmatpush1.bf16.xpose.msra.mxu0 0
      %732 = vmatprep.subr.bf16.mxu0 0
      %733 = vmatpush1.bf16.xpose.msra.mxu0 0
      %734 = vmatprep.subr.bf16.mxu0 0
      %735 = vmatpush1.bf16.xpose.msra.mxu0 0
      %736 = vmatprep.subr.bf16.mxu0 0
      %737 = vmatpush1.bf16.xpose.msra.mxu0 0
      %738 = vmatprep.subr.bf16.mxu0 0
      %739 = vmatpush1.bf16.xpose.msra.mxu0 0
      %740 = vmatprep.subr.bf16.mxu0 0
      %741 = vmatpush1.bf16.xpose.msra.mxu0 0
      %742 = vmatprep.subr.bf16.mxu0 0
      %743 = vmatpush1.bf16.xpose.msra.mxu0 0
      %744 = vmatprep.subr.bf16.mxu0 0
      %745 = vmatpush1.bf16.xpose.msra.mxu0 0
      %746 = vmatprep.subr.bf16.mxu0 0
      %747 = vmatpush1.bf16.xpose.msra.mxu0 0
      %748 = vmatprep.subr.bf16.mxu0 0
      %749 = vmatpush1.bf16.xpose.msra.mxu0 0
      %750 = vmatprep.subr.bf16.mxu0 0
      %751 = vmatpush1.bf16.xpose.msra.mxu0 0
      %752 = vmatprep.subr.bf16.mxu0 0
      %753 = vmatpush1.bf16.xpose.msra.mxu0 0
      %754 = vmatprep.subr.bf16.mxu0 0
      %755 = vmatpush1.bf16.xpose.msra.mxu0 0
      %756 = vmatprep.mubr.bf16.mxu0 0
      %757 = vmatmul.mubr.bf16.gmra.mrb[0].mxu0 %v716
      %v758 = vpop.f32.mrb[0].mxu0
      %v759 = vadd.f32 0.0, %v758
      %v760 = vpop.f32.mrb[0].mxu0
      %v761 = vpop.f32.mrb[0].mxu0
      %v762 = vadd.f32 0.0, %v761
      %v763 = vpop.f32.mrb[0].mxu0
      %764 = vmatprep.mubr.bf16.mxu0 0
      %765 = vmatmul.mubr.bf16.gmra.mrb[0].mxu0 %v719
      %v766 = vpop.f32.mrb[0].mxu0
      %v767 = vadd.f32 0.0, %v766
      %v768 = vpop.f32.mrb[0].mxu0
      %v769 = vpop.f32.mrb[0].mxu0
      %v770 = vpop.f32.mrb[0].mxu0
      %771 = vdwg.mxu0
      %v772 = vmul.f32 %v759, 0.17677669
      %v773 = vmul.f32 %v762, 0.17677669
      %v774 = vmul.f32 %v767, 0.17677669
      %vm775 = vcmask 130048
      %v776 = vsel %vm775, %v772, -inf
      %777 = vmax.xlane.f32.xlu0 %v776
      %v778 = vpop.xlane.xlu0 %777
      %v779 = vsel %vm775, %v773, -inf
      %780 = vmax.xlane.f32.xlu0 %v779
      %v781 = vpop.xlane.xlu0 %780
      %v782 = vsel %vm775, %v774, -inf
      %783 = vmax.xlane.f32.xlu0 %v782
      %v784 = vpop.xlane.xlu0 %783
      %v785 = vsub.f32 %v772, %v778
      %v786 = vsub.f32 %v773, %v781
      %v787 = vsub.f32 %v774, %v784
      %v788 = vmul.f32 %v785, 1.442695
      %v789 = vpow.pop %v788
      %v790 = vmul.f32 %v786, 1.442695
      %v791 = vpow.pop %v790
      %v792 = vmul.f32 %v787, 1.442695
      %v793 = vpow.pop %v792
      %v794 = vsel %vm775, %v789, 0.0
      %795 = vadd.xlane.f32.xlu0 %v794
      %v796 = vpop.xlane.xlu0 %795
      %v797 = vsel %vm775, %v791, 0.0
      %798 = vadd.xlane.f32.xlu0 %v797
      %v799 = vpop.xlane.xlu0 %798
      %v800 = vsel %vm775, %v793, 0.0
      %801 = vadd.xlane.f32.xlu0 %v800
      %v802 = vpop.xlane.xlu0 %801
      %v803 = vrcp.pop %v796
      %v804 = vrcp.pop %v799
      %v805 = vrcp.pop %v802
      %v806 = vmul.f32 %v789, %v803
      %v807 = vmul.f32 %v791, %v804
      %v808 = vmul.f32 %v793, %v805
      %v809 = vpack.c.bf16 %v807, %v806
      %v810 = vpack.c.bf16 %v808, %v808
      %v812 = vsel %vm775, %v809, 0
      %v815 = vsel %vm775, %v810, 0
      %817 = vmatprep.subr.bf16.mxu0 0
      %818 = vmatpush1.bf16.msra.mxu0 %v713
      %819 = vmatprep.subr.bf16.mxu0 0
      %820 = vmatpush1.bf16.msra.mxu0 0
      %821 = vmatprep.subr.bf16.mxu0 0
      %822 = vmatpush1.bf16.msra.mxu0 0
      %823 = vmatprep.subr.bf16.mxu0 0
      %824 = vmatpush1.bf16.msra.mxu0 0
      %825 = vmatprep.subr.bf16.mxu0 0
      %826 = vmatpush1.bf16.msra.mxu0 0
      %827 = vmatprep.subr.bf16.mxu0 0
      %828 = vmatpush1.bf16.msra.mxu0 0
      %829 = vmatprep.subr.bf16.mxu0 0
      %830 = vmatpush1.bf16.msra.mxu0 0
      %831 = vmatprep.subr.bf16.mxu0 0
      %832 = vmatpush1.bf16.msra.mxu0 0
      %833 = vmatprep.subr.bf16.mxu0 0
      %834 = vmatpush1.bf16.msra.mxu0 0
      %835 = vmatprep.subr.bf16.mxu0 0
      %836 = vmatpush1.bf16.msra.mxu0 0
      %837 = vmatprep.subr.bf16.mxu0 0
      %838 = vmatpush1.bf16.msra.mxu0 0
      %839 = vmatprep.subr.bf16.mxu0 0
      %840 = vmatpush1.bf16.msra.mxu0 0
      %841 = vmatprep.subr.bf16.mxu0 0
      %842 = vmatpush1.bf16.msra.mxu0 0
      %843 = vmatprep.subr.bf16.mxu0 0
      %844 = vmatpush1.bf16.msra.mxu0 0
      %845 = vmatprep.subr.bf16.mxu0 0
      %846 = vmatpush1.bf16.msra.mxu0 0
      %847 = vmatprep.subr.bf16.mxu0 0
      %848 = vmatpush1.bf16.msra.mxu0 0
      %849 = vmatprep.mubr.bf16.mxu0 0
      %850 = vmatmul.mubr.bf16.gmra.mrb[0].mxu0 %v812
      %v851 = vpop.f32.mrb[0].mxu0
      %v852 = vadd.f32 0.0, %v851
      %v853 = vpop.f32.mrb[0].mxu0
      %v854 = vpop.f32.mrb[0].mxu0
      %v855 = vadd.f32 0.0, %v854
      %v856 = vpop.f32.mrb[0].mxu0
      %857 = vmatprep.mubr.bf16.mxu0 0
      %858 = vmatmul.mubr.bf16.gmra.mrb[0].mxu0 %v815
      %v859 = vpop.f32.mrb[0].mxu0
      %v860 = vadd.f32 0.0, %v859
      %v861 = vpop.f32.mrb[0].mxu0
      %v862 = vpop.f32.mrb[0].mxu0
      %v863 = vpop.f32.mrb[0].mxu0
      %864 = vdwg.mxu0
      %867 = vrot.lane.b32.xlu0 %v710, 96
      %v868 = vpop.permute.xlu0 %867
      %869 = vrot.lane.b32.xlu0 %v711, 96
      %v870 = vpop.permute.xlu0 %869
      %872 = vrot.lane.b32.xlu0 %v712, 96
      %v873 = vpop.permute.xlu0 %872
      %v875 = vsel %vm714, %v868, 0
      %v878 = vsel %vm714, %v870, 0
      %v881 = vsel %vm714, %v873, 0
      %883 = vmatprep.subr.bf16.mxu0 0
      %884 = vmatpush1.bf16.xpose.msra.mxu0 %v881
      %885 = vmatprep.subr.bf16.mxu0 0
      %886 = vmatpush1.bf16.xpose.msra.mxu0 0
      %887 = vmatprep.subr.bf16.mxu0 0
      %888 = vmatpush1.bf16.xpose.msra.mxu0 0
      %889 = vmatprep.subr.bf16.mxu0 0
      %890 = vmatpush1.bf16.xpose.msra.mxu0 0
      %891 = vmatprep.subr.bf16.mxu0 0
      %892 = vmatpush1.bf16.xpose.msra.mxu0 0
      %893 = vmatprep.subr.bf16.mxu0 0
      %894 = vmatpush1.bf16.xpose.msra.mxu0 0
      %895 = vmatprep.subr.bf16.mxu0 0
      %896 = vmatpush1.bf16.xpose.msra.mxu0 0
      %897 = vmatprep.subr.bf16.mxu0 0
      %898 = vmatpush1.bf16.xpose.msra.mxu0 0
      %899 = vmatprep.subr.bf16.mxu0 0
      %900 = vmatpush1.bf16.xpose.msra.mxu0 0
      %901 = vmatprep.subr.bf16.mxu0 0
      %902 = vmatpush1.bf16.xpose.msra.mxu0 0
      %903 = vmatprep.subr.bf16.mxu0 0
      %904 = vmatpush1.bf16.xpose.msra.mxu0 0
      %905 = vmatprep.subr.bf16.mxu0 0
      %906 = vmatpush1.bf16.xpose.msra.mxu0 0
      %907 = vmatprep.subr.bf16.mxu0 0
      %908 = vmatpush1.bf16.xpose.msra.mxu0 0
      %909 = vmatprep.subr.bf16.mxu0 0
      %910 = vmatpush1.bf16.xpose.msra.mxu0 0
      %911 = vmatprep.subr.bf16.mxu0 0
      %912 = vmatpush1.bf16.xpose.msra.mxu0 0
      %913 = vmatprep.subr.bf16.mxu0 0
      %914 = vmatpush1.bf16.xpose.msra.mxu0 0
      %915 = vmatprep.mubr.bf16.mxu0 0
      %916 = vmatmul.mubr.bf16.gmra.mrb[0].mxu0 %v875
      %v917 = vpop.f32.mrb[0].mxu0
      %v918 = vadd.f32 0.0, %v917
      %v919 = vpop.f32.mrb[0].mxu0
      %v920 = vpop.f32.mrb[0].mxu0
      %v921 = vadd.f32 0.0, %v920
      %v922 = vpop.f32.mrb[0].mxu0
      %923 = vmatprep.mubr.bf16.mxu0 0
      %924 = vmatmul.mubr.bf16.gmra.mrb[0].mxu0 %v878
      %v925 = vpop.f32.mrb[0].mxu0
      %v926 = vadd.f32 0.0, %v925
      %v927 = vpop.f32.mrb[0].mxu0
      %v928 = vpop.f32.mrb[0].mxu0
      %v929 = vpop.f32.mrb[0].mxu0
      %930 = vdwg.mxu0
      %v931 = vmul.f32 %v918, 0.17677669
      %v932 = vmul.f32 %v921, 0.17677669
      %v933 = vmul.f32 %v926, 0.17677669
      %v934 = vsel %vm775, %v931, -inf
      %935 = vmax.xlane.f32.xlu0 %v934
      %v936 = vpop.xlane.xlu0 %935
      %v937 = vsel %vm775, %v932, -inf
      %938 = vmax.xlane.f32.xlu0 %v937
      %v939 = vpop.xlane.xlu0 %938
      %v940 = vsel %vm775, %v933, -inf
      %941 = vmax.xlane.f32.xlu0 %v940
      %v942 = vpop.xlane.xlu0 %941
      %v943 = vsub.f32 %v931, %v936
      %v944 = vsub.f32 %v932, %v939
      %v945 = vsub.f32 %v933, %v942
      %v946 = vmul.f32 %v943, 1.442695
      %v947 = vpow.pop %v946
      %v948 = vmul.f32 %v944, 1.442695
      %v949 = vpow.pop %v948
      %v950 = vmul.f32 %v945, 1.442695
      %v951 = vpow.pop %v950
      %v952 = vsel %vm775, %v947, 0.0
      %953 = vadd.xlane.f32.xlu0 %v952
      %v954 = vpop.xlane.xlu0 %953
      %v955 = vsel %vm775, %v949, 0.0
      %956 = vadd.xlane.f32.xlu0 %v955
      %v957 = vpop.xlane.xlu0 %956
      %v958 = vsel %vm775, %v951, 0.0
      %959 = vadd.xlane.f32.xlu0 %v958
      %v960 = vpop.xlane.xlu0 %959
      %v961 = vrcp.pop %v954
      %v962 = vrcp.pop %v957
      %v963 = vrcp.pop %v960
      %v964 = vmul.f32 %v947, %v961
      %v965 = vmul.f32 %v949, %v962
      %v966 = vmul.f32 %v951, %v963
      %v967 = vpack.c.bf16 %v965, %v964
      %v968 = vpack.c.bf16 %v966, %v966
      %970 = vrot.lane.b32.xlu0 %v713, 96
      %v971 = vpop.permute.xlu0 %970
      %v974 = vsel %vm775, %v967, 0
      %v977 = vsel %vm775, %v968, 0
      %979 = vmatprep.subr.bf16.mxu0 0
      %980 = vmatpush1.bf16.msra.mxu0 %v971
      %981 = vmatprep.subr.bf16.mxu0 0
      %982 = vmatpush1.bf16.msra.mxu0 0
      %983 = vmatprep.subr.bf16.mxu0 0
      %984 = vmatpush1.bf16.msra.mxu0 0
      %985 = vmatprep.subr.bf16.mxu0 0
      %986 = vmatpush1.bf16.msra.mxu0 0
      %987 = vmatprep.subr.bf16.mxu0 0
      %988 = vmatpush1.bf16.msra.mxu0 0
      %989 = vmatprep.subr.bf16.mxu0 0
      %990 = vmatpush1.bf16.msra.mxu0 0
      %991 = vmatprep.subr.bf16.mxu0 0
      %992 = vmatpush1.bf16.msra.mxu0 0
      %993 = vmatprep.subr.bf16.mxu0 0
      %994 = vmatpush1.bf16.msra.mxu0 0
      %995 = vmatprep.subr.bf16.mxu0 0
      %996 = vmatpush1.bf16.msra.mxu0 0
      %997 = vmatprep.subr.bf16.mxu0 0
      %998 = vmatpush1.bf16.msra.mxu0 0
      %999 = vmatprep.subr.bf16.mxu0 0
      %1000 = vmatpush1.bf16.msra.mxu0 0
      %1001 = vmatprep.subr.bf16.mxu0 0
      %1002 = vmatpush1.bf16.msra.mxu0 0
      %1003 = vmatprep.subr.bf16.mxu0 0
      %1004 = vmatpush1.bf16.msra.mxu0 0
      %1005 = vmatprep.subr.bf16.mxu0 0
      %1006 = vmatpush1.bf16.msra.mxu0 0
      %1007 = vmatprep.subr.bf16.mxu0 0
      %1008 = vmatpush1.bf16.msra.mxu0 0
      %1009 = vmatprep.subr.bf16.mxu0 0
      %1010 = vmatpush1.bf16.msra.mxu0 0
      %1011 = vmatprep.mubr.bf16.mxu0 0
      %1012 = vmatmul.mubr.bf16.gmra.mrb[0].mxu0 %v974
      %v1013 = vpop.f32.mrb[0].mxu0
      %v1014 = vadd.f32 0.0, %v1013
      %v1015 = vpop.f32.mrb[0].mxu0
      %v1016 = vpop.f32.mrb[0].mxu0
      %v1017 = vadd.f32 0.0, %v1016
      %v1018 = vpop.f32.mrb[0].mxu0
      %1019 = vmatprep.mubr.bf16.mxu0 0
      %1020 = vmatmul.mubr.bf16.gmra.mrb[0].mxu0 %v977
      %v1021 = vpop.f32.mrb[0].mxu0
      %v1022 = vadd.f32 0.0, %v1021
      %v1023 = vpop.f32.mrb[0].mxu0
      %v1024 = vpop.f32.mrb[0].mxu0
      %v1025 = vpop.f32.mrb[0].mxu0
      %1026 = vdwg.mxu0
      %1030 = vrot.lane.b32.xlu0 %v1014, 32
      %v1031 = vpop.permute.xlu0 %1030
      %1032 = vrot.lane.b32.xlu0 %v1017, 32
      %v1033 = vpop.permute.xlu0 %1032
      %1034 = vrot.lane.b32.xlu0 %v1022, 32
      %v1035 = vpop.permute.xlu0 %1034
      %v1039 = vsel %vm714, %v852, %v1031
      %v1040 = vsel %vm714, %v855, %v1033
      %v1041 = vsel %vm714, %v860, %v1035
      %v1042 = vpack.c.bf16 %v1040, %v1039
      %v1043 = vpack.c.bf16 %v1041, %v1041
      %v1044 = vld [vmem:[%s8] sm:$0xf]
      %v1045 = vld [vmem:[%s8 + $0x4] sm:$0xf]
      %v1046 = vld [vmem:[%s8 + $0x8] sm:$0xf]
      %v1047 = vld [vmem:[%s8 + $0xc] sm:$0xf]
      %v1048 = vld [vmem:[%s8 + $0x10] sm:$0xf]
      %v1049 = vld [vmem:[%s8 + $0x14] sm:$0xf]
      %v1050 = vld [vmem:[%s8 + $0x18] sm:$0xf]
      %v1051 = vld [vmem:[%s8 + $0x1c] sm:$0xf]
      %v1052 = vld [vmem:[%s9] sm:$0x1]
      %v1054 = vlaneseq
      %v1055 = vshrl.u32 %v1054, 7
      %v1056 = vsub.s32 0, %v1055
      %v1057 = vrot.slane %v1052, %v1056
      %v1067 = vunpack.c.l.b16 %v1044
      %v1068 = vunpack.c.l.b16 %v1045
      %v1069 = vunpack.c.l.b16 %v1046
      %v1070 = vunpack.c.l.b16 %v1047
      %v1071 = vunpack.c.l.b16 %v1048
      %v1072 = vunpack.c.l.b16 %v1049
      %v1073 = vunpack.c.l.b16 %v1050
      %v1074 = vunpack.c.l.b16 %v1051
      %v1075 = vpack.c.b16 %v1068, %v1067
      %v1076 = vpack.c.b16 %v1070, %v1069
      %v1077 = vpack.c.b16 %v1072, %v1071
      %v1078 = vpack.c.b16 %v1074, %v1073
      %v1084 = vsel %vm487, %v1042, 0
      %v1087 = vsel %vm487, %v1043, 0
      %1089 = vmatprep.subr.bf16.mxu0 0
      %1090 = vmatpush1.bf16.msra.mxu0 %v1075
      %1091 = vmatprep.subr.bf16.mxu0 0
      %1092 = vmatpush1.bf16.msra.mxu0 %v1076
      %1093 = vmatprep.subr.bf16.mxu0 0
      %1094 = vmatpush1.bf16.msra.mxu0 %v1077
      %1095 = vmatprep.subr.bf16.mxu0 0
      %1096 = vmatpush1.bf16.msra.mxu0 %v1078
      %1097 = vmatprep.subr.bf16.mxu0 0
      %1098 = vmatpush1.bf16.msra.mxu0 0
      %1099 = vmatprep.subr.bf16.mxu0 0
      %1100 = vmatpush1.bf16.msra.mxu0 0
      %1101 = vmatprep.subr.bf16.mxu0 0
      %1102 = vmatpush1.bf16.msra.mxu0 0
      %1103 = vmatprep.subr.bf16.mxu0 0
      %1104 = vmatpush1.bf16.msra.mxu0 0
      %1105 = vmatprep.subr.bf16.mxu0 0
      %1106 = vmatpush1.bf16.msra.mxu0 0
      %1107 = vmatprep.subr.bf16.mxu0 0
      %1108 = vmatpush1.bf16.msra.mxu0 0
      %1109 = vmatprep.subr.bf16.mxu0 0
      %1110 = vmatpush1.bf16.msra.mxu0 0
      %1111 = vmatprep.subr.bf16.mxu0 0
      %1112 = vmatpush1.bf16.msra.mxu0 0
      %1113 = vmatprep.subr.bf16.mxu0 0
      %1114 = vmatpush1.bf16.msra.mxu0 0
      %1115 = vmatprep.subr.bf16.mxu0 0
      %1116 = vmatpush1.bf16.msra.mxu0 0
      %1117 = vmatprep.subr.bf16.mxu0 0
      %1118 = vmatpush1.bf16.msra.mxu0 0
      %1119 = vmatprep.subr.bf16.mxu0 0
      %1120 = vmatpush1.bf16.msra.mxu0 0
      %1121 = vmatprep.mubr.bf16.mxu0 0
      %1122 = vmatmul.mubr.bf16.gmra.mrb[0].mxu0 %v1084
      %v1123 = vpop.f32.mrb[0].mxu0
      %v1124 = vadd.f32 %v1057, %v1123
      %v1125 = vpop.f32.mrb[0].mxu0
      %v1126 = vpop.f32.mrb[0].mxu0
      %v1127 = vadd.f32 %v1057, %v1126
      %v1128 = vpop.f32.mrb[0].mxu0
      %1129 = vmatprep.mubr.bf16.mxu0 0
      %1130 = vmatmul.mubr.bf16.gmra.mrb[0].mxu0 %v1087
      %v1131 = vpop.f32.mrb[0].mxu0
      %v1132 = vadd.f32 %v1057, %v1131
      %v1133 = vpop.f32.mrb[0].mxu0
      %v1134 = vpop.f32.mrb[0].mxu0
      %v1135 = vpop.f32.mrb[0].mxu0
      %1136 = vdwg.mxu0
      %v1137 = vunpack.c.l.bf16 %v435
      %v1138 = vunpack.c.l.bf16 %v436
      %v1139 = vunpack.c.l.bf16 %v437
      %v1140 = vadd.f32 %v1137, %v1124
      %v1141 = vadd.f32 %v1138, %v1127
      %v1142 = vadd.f32 %v1139, %v1132
      %v1143 = vld [vmem:[%s10] sm:$0x1]
      %v1144 = vld [vmem:[%s11] sm:$0x1]
      %v1145 = vsel %vm487, %v1140, 0.0
      %1146 = vadd.xlane.f32.xlu0 %v1145
      %v1147 = vpop.xlane.xlu0 %1146
      %v1148 = vsel %vm487, %v1141, 0.0
      %1149 = vadd.xlane.f32.xlu0 %v1148
      %v1150 = vpop.xlane.xlu0 %1149
      %v1151 = vsel %vm487, %v1142, 0.0
      %1152 = vadd.xlane.f32.xlu0 %v1151
      %v1153 = vpop.xlane.xlu0 %1152
      %v1154 = vrcp.pop 64.0
      %v1155 = vmul.f32 %v1147, %v1154
      %v1156 = vmul.f32 %v1150, %v1154
      %v1157 = vmul.f32 %v1153, %v1154
      %v1158 = vsub.f32 %v1140, %v1155
      %v1159 = vsub.f32 %v1141, %v1156
      %v1160 = vsub.f32 %v1142, %v1157
      %v1161 = vmul.f32 %v1158, %v1158
      %v1162 = vmul.f32 %v1159, %v1159
      %v1163 = vmul.f32 %v1160, %v1160
      %v1164 = vsel %vm487, %v1161, 0.0
      %1165 = vadd.xlane.f32.xlu0 %v1164
      %v1166 = vpop.xlane.xlu0 %1165
      %v1167 = vsel %vm487, %v1162, 0.0
      %1168 = vadd.xlane.f32.xlu0 %v1167
      %v1169 = vpop.xlane.xlu0 %1168
      %v1170 = vsel %vm487, %v1163, 0.0
      %1171 = vadd.xlane.f32.xlu0 %v1170
      %v1172 = vpop.xlane.xlu0 %1171
      %v1173 = vmul.f32 %v1166, %v1154
      %v1174 = vmul.f32 %v1169, %v1154
      %v1175 = vmul.f32 %v1172, %v1154
      %v1176 = vadd.f32 %v1173, 1e-06
      %v1177 = vadd.f32 %v1174, 1e-06
      %v1178 = vadd.f32 %v1175, 1e-06
      %v1179 = vrsqrt.pop %v1176
      %v1180 = vrsqrt.pop %v1177
      %v1181 = vrsqrt.pop %v1178
      %v1182 = vmul.f32 %v1158, %v1179
      %v1183 = vmul.f32 %v1159, %v1180
      %v1184 = vmul.f32 %v1160, %v1181
      %v1186 = vlaneseq
      %v1187 = vshrl.u32 %v1186, 7
      %v1188 = vsub.s32 0, %v1187
      %v1189 = vrot.slane %v1143, %v1188
      %v1191 = vmul.f32 %v1182, %v1189
      %v1192 = vmul.f32 %v1183, %v1189
      %v1193 = vmul.f32 %v1184, %v1189
      %v1195 = vlaneseq
      %v1196 = vshrl.u32 %v1195, 7
      %v1197 = vsub.s32 0, %v1196
      %v1198 = vrot.slane %v1144, %v1197
      %v1200 = vadd.f32 %v1191, %v1198
      %v1201 = vadd.f32 %v1192, %v1198
      %v1202 = vadd.f32 %v1193, %v1198
      %v1203 = vpack.c.bf16 %v1201, %v1200
      %v1204 = vpack.c.bf16 %v1202, %v1202
      %v1207 = vunpack.c.l.b16 %v1203
      %v1208 = vunpack.c.h.b16 %v1203
      %v1209 = vunpack.c.l.b16 %v1204
      %v1210 = vpack.c.b16 %v1207, %v1207
      %v1211 = vpack.c.b16 %v1208, %v1208
      %v1212 = vpack.c.b16 %v1209, %v1209
      %vm1216 = vcmask 519168
      %1217 = vst.msk [vmem:[%s433] sm:$0xf] %vm1216, %v1210
      %1218 = vst.msk [vmem:[%s433 + $0x4] sm:$0xf] %vm1216, %v1211
      %1219 = vst.msk [vmem:[%s433 + $0x8] sm:$0xf] %vm1216, %v1212
      %p1220 = scmp.lt.s32.totalorder %s23, 1
      %s1221 = scalar_select %p1220, %s23, 1
      %s1222 = smul.addr %s1221, 3
      %s1223 = smul.addr %s1222, 4
      %s1224 = scalar_lea.vmem %s12, %s1223
      // Predicated region
      $region69: #{cppd_head_forward_test.12} parent=67 // pred_check
        %p1225 = pneg %p303
      $region70: #{cppd_head_forward_test.12} parent=67 // pred_check_branch
        %1227 = sbr.rel (%p1225) target = $region72
      $region71: #{cppd_head_forward_test.12} parent=67 // pred_region
        _
      $region72: #{cppd_head_forward_test.12} parent=67 // pred_fallthru
        _
    $region68: #{cppd_head_forward_test.12} parent=5 // pred_fallthru
      _
    %p1228 = scmp.le.s32.totalorder 2, %s18
    // Predicated region
    $region73: #{cppd_head_forward_test.12} parent=5 // pred_check
      %p1229 = pneg %p1228
    $region74: #{cppd_head_forward_test.12} parent=5 // pred_check_branch
      %1231 = sbr.rel (%p1229) target = $region76
    $region75: #{cppd_head_forward_test.12} parent=5 // pred_region
      %s1232 = ssub.s32 %s18, 2
      // Predicated region
      $region77: #{cppd_head_forward_test.12} parent=75 // pred_check
        %p1233 = pneg %p309
      $region78: #{cppd_head_forward_test.12} parent=75 // pred_check_branch
        %1235 = sbr.rel (%p1233) target = $region80
      $region79: #{cppd_head_forward_test.12} parent=75 // pred_region
        %p1236 = scmp.lt.s32.totalorder %s24, 1
        %s1237 = scalar_select %p1236, %s24, 1
        %s1238 = smul.addr %s1237, 3
        %s1239 = smul.addr %s1238, 4
        %s1240 = scalar_lea.vmem %s12, %s1239
      $region80: #{cppd_head_forward_test.12} parent=75 // pred_fallthru
        _
    $region76: #{cppd_head_forward_test.12} parent=5 // pred_fallthru
      _
  $region6: #{cppd_head_forward_test.12} parent=0 // loop_footer
    %s22 = sadd.s32 1, %s18
  $region7: #{cppd_head_forward_test.12} parent=0 // loop_footer_branch
    %17 = sbr.rel target = $region3
  $region8: #{cppd_head_forward_test.12} parent=0 // loop_exit
    _

// kernel: cppd_head_forward_test.10
$region0: #{cppd_head_forward_test.10}
  #allocation0 [shape = 'u32[]', space=smem, size = 0x4, offset = 0x4, fixed_abs, tag = 'smem constant byte address 0x4 - core index']
  #allocation1 [shape = 'u32[144,128]{1,0:T(1,128)}', space=vmem, size = 0x12000, scoped, tag = 'internal scratch']
  %s0 = inlined_call_operand.vmem [shape: bf16[2,16,64], index: 0, kind: input, shape index: {}, may-alias: {0,1}]
  %s1 = inlined_call_operand.vmem [shape: bf16[2,16,64], index: 1, kind: input, shape index: {}, may-alias: {0,1}]
  %s2 = inlined_call_operand.vmem [shape: bf16[64,64], index: 2, kind: input, shape index: {}]
  %s3 = inlined_call_operand.vmem [shape: f32[1,64], index: 3, kind: input, shape index: {}]
  %s4 = inlined_call_operand.vmem [shape: bf16[64,64], index: 4, kind: input, shape index: {}]
  %s5 = inlined_call_operand.vmem [shape: f32[1,64], index: 5, kind: input, shape index: {}]
  %s6 = inlined_call_operand.vmem [shape: bf16[64,64], index: 6, kind: input, shape index: {}]
  %s7 = inlined_call_operand.vmem [shape: f32[1,64], index: 7, kind: input, shape index: {}]
  %s8 = inlined_call_operand.vmem [shape: bf16[64,64], index: 8, kind: input, shape index: {}]
  %s9 = inlined_call_operand.vmem [shape: f32[1,64], index: 9, kind: input, shape index: {}]
  %s10 = inlined_call_operand.vmem [shape: f32[1,64], index: 10, kind: input, shape index: {}]
  %s11 = inlined_call_operand.vmem [shape: f32[1,64], index: 11, kind: input, shape index: {}]
  %s12 = inlined_call_operand.vmem [shape: bf16[2,16,64], index: 12, kind: output, shape index: {}]
  %s13 = sld [smem:[#allocation0]]
  $region81: #{cppd_head_forward_test.10} parent=0
    _
  %s15 = ssub.s32 1, %s13
  %s16 = scalar_select 0, %s15, %s13
  loop: start=0, step=1, limit=4
  $region2: #{cppd_head_forward_test.10} parent=0 // loop_pre_header
    _
  $region3: #{cppd_head_forward_test.10} parent=0 // loop_header
    %s18 = sphi 0, %s22
    %p19 = scmp.ge.s32.totalorder %s18, 4
    %s28 = sphi 0, %s30
    %s31 = sphi 0, %s28
    %s32 = sphi 0, %s31
    %s48 = sphi 0, %s32
    %s54 = sphi 0, %s56
    %s57 = sphi 0, %s54
    %s58 = sphi 0, %s57
    %s74 = sphi 0, %s58
    %s78 = sphi 0, %s78
    %s80 = sphi 0, %s78
    %s81 = sphi 0, %s80
    %s95 = sphi 0, %s81
    %s99 = sphi 0, %s99
    %s101 = sphi 0, %s99
    %s102 = sphi 0, %s101
    %s116 = sphi 0, %s102
    %s120 = sphi 0, %s120
    %s122 = sphi 0, %s120
    %s123 = sphi 0, %s122
    %s137 = sphi 0, %s123
    %s141 = sphi 0, %s141
    %s143 = sphi 0, %s141
    %s144 = sphi 0, %s143
    %s158 = sphi 0, %s144
    %s162 = sphi 0, %s162
    %s164 = sphi 0, %s162
    %s165 = sphi 0, %s164
    %s179 = sphi 0, %s165
    %s183 = sphi 0, %s183
    %s185 = sphi 0, %s183
    %s186 = sphi 0, %s185
    %s200 = sphi 0, %s186
    %s204 = sphi 0, %s204
    %s206 = sphi 0, %s204
    %s207 = sphi 0, %s206
    %s221 = sphi 0, %s207
    %s225 = sphi 0, %s225
    %s227 = sphi 0, %s225
    %s228 = sphi 0, %s227
    %s242 = sphi 0, %s228
    %s246 = sphi 0, %s246
    %s248 = sphi 0, %s246
    %s249 = sphi 0, %s248
    %s263 = sphi 0, %s249
    %s267 = sphi 0, %s267
    %s269 = sphi 0, %s267
    %s270 = sphi 0, %s269
    %s284 = sphi 0, %s270
    %s290 = sphi 0, %s292
    %s293 = sphi 0, %s290
    %s294 = sphi 0, %s293
    %s310 = sphi 0, %s294
  $region4: #{cppd_head_forward_test.10} parent=0 // loop_header_branch
    %21 = sbr.rel (%p19) target = $region8
  $region5: #{cppd_head_forward_test.10} parent=0 // loop_body
    %s23 = ssub.s32 %s18, 1
    %s24 = ssub.s32 %s18, 2
    %s25 = sadd.s32 %s18, 1
    %s26 = ssub.s32 %s18, %s25
    %p27 = scmp.eq.s32.totalorder %s26, 0
    %s29 = sadd.s32 %s28, 1
    %s30 = scalar_select %p27, %s28, %s29
    %p33 = pneg %p27
    %p34 = scmp.eq.s32.totalorder %s18, 1
    %p35 = por %p33, %p34
    %p36 = scmp.ne.s32.totalorder %s28, %s31
    %p37 = scmp.eq.s32.totalorder %s18, 0
    %p38 = por %p36, %p37
    %p39 = scmp.ne.s32.totalorder %s28, %s31
    %p40 = scmp.eq.s32.totalorder %s23, 1
    %p41 = por %p39, %p40
    %p42 = scmp.ne.s32.totalorder %s31, %s32
    %p43 = scmp.eq.s32.totalorder %s23, 0
    %p44 = por %p42, %p43
    %p45 = scmp.ne.s32.totalorder %s31, %s32
    %p46 = scmp.eq.s32.totalorder %s24, 1
    %p47 = por %p45, %p46
    %p49 = scmp.ne.s32.totalorder %s32, %s48
    %p50 = scmp.eq.s32.totalorder %s24, 0
    %p51 = por %p49, %p50
    %s52 = ssub.s32 %s18, %s25
    %p53 = scmp.eq.s32.totalorder %s52, 0
    %s55 = sadd.s32 %s54, 1
    %s56 = scalar_select %p53, %s54, %s55
    %p59 = pneg %p53
    %p60 = scmp.eq.s32.totalorder %s18, 1
    %p61 = por %p59, %p60
    %p62 = scmp.ne.s32.totalorder %s54, %s57
    %p63 = scmp.eq.s32.totalorder %s18, 0
    %p64 = por %p62, %p63
    %p65 = scmp.ne.s32.totalorder %s54, %s57
    %p66 = scmp.eq.s32.totalorder %s23, 1
    %p67 = por %p65, %p66
    %p68 = scmp.ne.s32.totalorder %s57, %s58
    %p69 = scmp.eq.s32.totalorder %s23, 0
    %p70 = por %p68, %p69
    %p71 = scmp.ne.s32.totalorder %s57, %s58
    %p72 = scmp.eq.s32.totalorder %s24, 1
    %p73 = por %p71, %p72
    %p75 = scmp.ne.s32.totalorder %s58, %s74
    %p76 = scmp.eq.s32.totalorder %s24, 0
    %p77 = por %p75, %p76
    %s79 = sadd.s32 %s78, 1
    %p82 = scmp.eq.s32.totalorder %s18, 1
    %p83 = scmp.ne.s32.totalorder %s78, %s80
    %p84 = scmp.eq.s32.totalorder %s18, 0
    %p85 = por %p83, %p84
    %p86 = scmp.ne.s32.totalorder %s78, %s80
    %p87 = scmp.eq.s32.totalorder %s23, 1
    %p88 = por %p86, %p87
    %p89 = scmp.ne.s32.totalorder %s80, %s81
    %p90 = scmp.eq.s32.totalorder %s23, 0
    %p91 = por %p89, %p90
    %p92 = scmp.ne.s32.totalorder %s80, %s81
    %p93 = scmp.eq.s32.totalorder %s24, 1
    %p94 = por %p92, %p93
    %p96 = scmp.ne.s32.totalorder %s81, %s95
    %p97 = scmp.eq.s32.totalorder %s24, 0
    %p98 = por %p96, %p97
    %s100 = sadd.s32 %s99, 1
    %p103 = scmp.eq.s32.totalorder %s18, 1
    %p104 = scmp.ne.s32.totalorder %s99, %s101
    %p105 = scmp.eq.s32.totalorder %s18, 0
    %p106 = por %p104, %p105
    %p107 = scmp.ne.s32.totalorder %s99, %s101
    %p108 = scmp.eq.s32.totalorder %s23, 1
    %p109 = por %p107, %p108
    %p110 = scmp.ne.s32.totalorder %s101, %s102
    %p111 = scmp.eq.s32.totalorder %s23, 0
    %p112 = por %p110, %p111
    %p113 = scmp.ne.s32.totalorder %s101, %s102
    %p114 = scmp.eq.s32.totalorder %s24, 1
    %p115 = por %p113, %p114
    %p117 = scmp.ne.s32.totalorder %s102, %s116
    %p118 = scmp.eq.s32.totalorder %s24, 0
    %p119 = por %p117, %p118
    %s121 = sadd.s32 %s120, 1
    %p124 = scmp.eq.s32.totalorder %s18, 1
    %p125 = scmp.ne.s32.totalorder %s120, %s122
    %p126 = scmp.eq.s32.totalorder %s18, 0
    %p127 = por %p125, %p126
    %p128 = scmp.ne.s32.totalorder %s120, %s122
    %p129 = scmp.eq.s32.totalorder %s23, 1
    %p130 = por %p128, %p129
    %p131 = scmp.ne.s32.totalorder %s122, %s123
    %p132 = scmp.eq.s32.totalorder %s23, 0
    %p133 = por %p131, %p132
    %p134 = scmp.ne.s32.totalorder %s122, %s123
    %p135 = scmp.eq.s32.totalorder %s24, 1
    %p136 = por %p134, %p135
    %p138 = scmp.ne.s32.totalorder %s123, %s137
    %p139 = scmp.eq.s32.totalorder %s24, 0
    %p140 = por %p138, %p139
    %s142 = sadd.s32 %s141, 1
    %p145 = scmp.eq.s32.totalorder %s18, 1
    %p146 = scmp.ne.s32.totalorder %s141, %s143
    %p147 = scmp.eq.s32.totalorder %s18, 0
    %p148 = por %p146, %p147
    %p149 = scmp.ne.s32.totalorder %s141, %s143
    %p150 = scmp.eq.s32.totalorder %s23, 1
    %p151 = por %p149, %p150
    %p152 = scmp.ne.s32.totalorder %s143, %s144
    %p153 = scmp.eq.s32.totalorder %s23, 0
    %p154 = por %p152, %p153
    %p155 = scmp.ne.s32.totalorder %s143, %s144
    %p156 = scmp.eq.s32.totalorder %s24, 1
    %p157 = por %p155, %p156
    %p159 = scmp.ne.s32.totalorder %s144, %s158
    %p160 = scmp.eq.s32.totalorder %s24, 0
    %p161 = por %p159, %p160
    %s163 = sadd.s32 %s162, 1
    %p166 = scmp.eq.s32.totalorder %s18, 1
    %p167 = scmp.ne.s32.totalorder %s162, %s164
    %p168 = scmp.eq.s32.totalorder %s18, 0
    %p169 = por %p167, %p168
    %p170 = scmp.ne.s32.totalorder %s162, %s164
    %p171 = scmp.eq.s32.totalorder %s23, 1
    %p172 = por %p170, %p171
    %p173 = scmp.ne.s32.totalorder %s164, %s165
    %p174 = scmp.eq.s32.totalorder %s23, 0
    %p175 = por %p173, %p174
    %p176 = scmp.ne.s32.totalorder %s164, %s165
    %p177 = scmp.eq.s32.totalorder %s24, 1
    %p178 = por %p176, %p177
    %p180 = scmp.ne.s32.totalorder %s165, %s179
    %p181 = scmp.eq.s32.totalorder %s24, 0
    %p182 = por %p180, %p181
    %s184 = sadd.s32 %s183, 1
    %p187 = scmp.eq.s32.totalorder %s18, 1
    %p188 = scmp.ne.s32.totalorder %s183, %s185
    %p189 = scmp.eq.s32.totalorder %s18, 0
    %p190 = por %p188, %p189
    %p191 = scmp.ne.s32.totalorder %s183, %s185
    %p192 = scmp.eq.s32.totalorder %s23, 1
    %p193 = por %p191, %p192
    %p194 = scmp.ne.s32.totalorder %s185, %s186
    %p195 = scmp.eq.s32.totalorder %s23, 0
    %p196 = por %p194, %p195
    %p197 = scmp.ne.s32.totalorder %s185, %s186
    %p198 = scmp.eq.s32.totalorder %s24, 1
    %p199 = por %p197, %p198
    %p201 = scmp.ne.s32.totalorder %s186, %s200
    %p202 = scmp.eq.s32.totalorder %s24, 0
    %p203 = por %p201, %p202
    %s205 = sadd.s32 %s204, 1
    %p208 = scmp.eq.s32.totalorder %s18, 1
    %p209 = scmp.ne.s32.totalorder %s204, %s206
    %p210 = scmp.eq.s32.totalorder %s18, 0
    %p211 = por %p209, %p210
    %p212 = scmp.ne.s32.totalorder %s204, %s206
    %p213 = scmp.eq.s32.totalorder %s23, 1
    %p214 = por %p212, %p213
    %p215 = scmp.ne.s32.totalorder %s206, %s207
    %p216 = scmp.eq.s32.totalorder %s23, 0
    %p217 = por %p215, %p216
    %p218 = scmp.ne.s32.totalorder %s206, %s207
    %p219 = scmp.eq.s32.totalorder %s24, 1
    %p220 = por %p218, %p219
    %p222 = scmp.ne.s32.totalorder %s207, %s221
    %p223 = scmp.eq.s32.totalorder %s24, 0
    %p224 = por %p222, %p223
    %s226 = sadd.s32 %s225, 1
    %p229 = scmp.eq.s32.totalorder %s18, 1
    %p230 = scmp.ne.s32.totalorder %s225, %s227
    %p231 = scmp.eq.s32.totalorder %s18, 0
    %p232 = por %p230, %p231
    %p233 = scmp.ne.s32.totalorder %s225, %s227
    %p234 = scmp.eq.s32.totalorder %s23, 1
    %p235 = por %p233, %p234
    %p236 = scmp.ne.s32.totalorder %s227, %s228
    %p237 = scmp.eq.s32.totalorder %s23, 0
    %p238 = por %p236, %p237
    %p239 = scmp.ne.s32.totalorder %s227, %s228
    %p240 = scmp.eq.s32.totalorder %s24, 1
    %p241 = por %p239, %p240
    %p243 = scmp.ne.s32.totalorder %s228, %s242
    %p244 = scmp.eq.s32.totalorder %s24, 0
    %p245 = por %p243, %p244
    %s247 = sadd.s32 %s246, 1
    %p250 = scmp.eq.s32.totalorder %s18, 1
    %p251 = scmp.ne.s32.totalorder %s246, %s248
    %p252 = scmp.eq.s32.totalorder %s18, 0
    %p253 = por %p251, %p252
    %p254 = scmp.ne.s32.totalorder %s246, %s248
    %p255 = scmp.eq.s32.totalorder %s23, 1
    %p256 = por %p254, %p255
    %p257 = scmp.ne.s32.totalorder %s248, %s249
    %p258 = scmp.eq.s32.totalorder %s23, 0
    %p259 = por %p257, %p258
    %p260 = scmp.ne.s32.totalorder %s248, %s249
    %p261 = scmp.eq.s32.totalorder %s24, 1
    %p262 = por %p260, %p261
    %p264 = scmp.ne.s32.totalorder %s249, %s263
    %p265 = scmp.eq.s32.totalorder %s24, 0
    %p266 = por %p264, %p265
    %s268 = sadd.s32 %s267, 1
    %p271 = scmp.eq.s32.totalorder %s18, 1
    %p272 = scmp.ne.s32.totalorder %s267, %s269
    %p273 = scmp.eq.s32.totalorder %s18, 0
    %p274 = por %p272, %p273
    %p275 = scmp.ne.s32.totalorder %s267, %s269
    %p276 = scmp.eq.s32.totalorder %s23, 1
    %p277 = por %p275, %p276
    %p278 = scmp.ne.s32.totalorder %s269, %s270
    %p279 = scmp.eq.s32.totalorder %s23, 0
    %p280 = por %p278, %p279
    %p281 = scmp.ne.s32.totalorder %s269, %s270
    %p282 = scmp.eq.s32.totalorder %s24, 1
    %p283 = por %p281, %p282
    %p285 = scmp.ne.s32.totalorder %s270, %s284
    %p286 = scmp.eq.s32.totalorder %s24, 0
    %p287 = por %p285, %p286
    %s288 = ssub.s32 %s18, %s25
    %p289 = scmp.eq.s32.totalorder %s288, 0
    %s291 = sadd.s32 %s290, 1
    %s292 = scalar_select %p289, %s290, %s291
    %p295 = pneg %p289
    %p296 = scmp.eq.s32.totalorder %s18, 1
    %p297 = por %p295, %p296
    %p298 = scmp.ne.s32.totalorder %s290, %s293
    %p299 = scmp.eq.s32.totalorder %s18, 0
    %p300 = por %p298, %p299
    %p301 = scmp.ne.s32.totalorder %s290, %s293
    %p302 = scmp.eq.s32.totalorder %s23, 1
    %p303 = por %p301, %p302
    %p304 = scmp.ne.s32.totalorder %s293, %s294
    %p305 = scmp.eq.s32.totalorder %s23, 0
    %p306 = por %p304, %p305
    %p307 = scmp.ne.s32.totalorder %s293, %s294
    %p308 = scmp.eq.s32.totalorder %s24, 1
    %p309 = por %p307, %p308
    %p311 = scmp.ne.s32.totalorder %s294, %s310
    %p312 = scmp.eq.s32.totalorder %s24, 0
    %p313 = por %p311, %p312
    %p314 = scmp.le.s32.totalorder 1, %s18
    %p315 = scmp.lt.s32.totalorder %s18, 3
    %p316 = pnand %p314, %p315
    %p317 = pneg %p316
    // Predicated region
    $region9: #{cppd_head_forward_test.10} parent=5 // pred_check
      _
    $region10: #{cppd_head_forward_test.10} parent=5 // pred_check_branch
      %319 = sbr.rel (%p316) target = $region12
    $region11: #{cppd_head_forward_test.10} parent=5 // pred_region
      %s320 = ssub.s32 %s18, 1
      // Predicated region
      $region13: #{cppd_head_forward_test.10} parent=11 // pred_check
        %p321 = pneg %p91
      $region14: #{cppd_head_forward_test.10} parent=11 // pred_check_branch
        %323 = sbr.rel (%p321) target = $region16
      $region15: #{cppd_head_forward_test.10} parent=11 // pred_region
        _
      $region16: #{cppd_head_forward_test.10} parent=11 // pred_fallthru
        _
      // Predicated region
      $region17: #{cppd_head_forward_test.10} parent=11 // pred_check
        %p324 = pneg %p112
      $region18: #{cppd_head_forward_test.10} parent=11 // pred_check_branch
        %326 = sbr.rel (%p324) target = $region20
      $region19: #{cppd_head_forward_test.10} parent=11 // pred_region
        _
      $region20: #{cppd_head_forward_test.10} parent=11 // pred_fallthru
        _
      // Predicated region
      $region21: #{cppd_head_forward_test.10} parent=11 // pred_check
        %p327 = pneg %p133
      $region22: #{cppd_head_forward_test.10} parent=11 // pred_check_branch
        %329 = sbr.rel (%p327) target = $region24
      $region23: #{cppd_head_forward_test.10} parent=11 // pred_region
        _
      $region24: #{cppd_head_forward_test.10} parent=11 // pred_fallthru
        _
      // Predicated region
      $region25: #{cppd_head_forward_test.10} parent=11 // pred_check
        %p330 = pneg %p154
      $region26: #{cppd_head_forward_test.10} parent=11 // pred_check_branch
        %332 = sbr.rel (%p330) target = $region28
      $region27: #{cppd_head_forward_test.10} parent=11 // pred_region
        _
      $region28: #{cppd_head_forward_test.10} parent=11 // pred_fallthru
        _
      // Predicated region
      $region29: #{cppd_head_forward_test.10} parent=11 // pred_check
        %p333 = pneg %p175
      $region30: #{cppd_head_forward_test.10} parent=11 // pred_check_branch
        %335 = sbr.rel (%p333) target = $region32
      $region31: #{cppd_head_forward_test.10} parent=11 // pred_region
        _
      $region32: #{cppd_head_forward_test.10} parent=11 // pred_fallthru
        _
      // Predicated region
      $region33: #{cppd_head_forward_test.10} parent=11 // pred_check
        %p336 = pneg %p196
      $region34: #{cppd_head_forward_test.10} parent=11 // pred_check_branch
        %338 = sbr.rel (%p336) target = $region36
      $region35: #{cppd_head_forward_test.10} parent=11 // pred_region
        _
      $region36: #{cppd_head_forward_test.10} parent=11 // pred_fallthru
        _
      // Predicated region
      $region37: #{cppd_head_forward_test.10} parent=11 // pred_check
        %p339 = pneg %p217
      $region38: #{cppd_head_forward_test.10} parent=11 // pred_check_branch
        %341 = sbr.rel (%p339) target = $region40
      $region39: #{cppd_head_forward_test.10} parent=11 // pred_region
        _
      $region40: #{cppd_head_forward_test.10} parent=11 // pred_fallthru
        _
      // Predicated region
      $region41: #{cppd_head_forward_test.10} parent=11 // pred_check
        %p342 = pneg %p238
      $region42: #{cppd_head_forward_test.10} parent=11 // pred_check_branch
        %344 = sbr.rel (%p342) target = $region44
      $region43: #{cppd_head_forward_test.10} parent=11 // pred_region
        _
      $region44: #{cppd_head_forward_test.10} parent=11 // pred_fallthru
        _
      // Predicated region
      $region45: #{cppd_head_forward_test.10} parent=11 // pred_check
        %p345 = pneg %p259
      $region46: #{cppd_head_forward_test.10} parent=11 // pred_check_branch
        %347 = sbr.rel (%p345) target = $region48
      $region47: #{cppd_head_forward_test.10} parent=11 // pred_region
        _
      $region48: #{cppd_head_forward_test.10} parent=11 // pred_fallthru
        _
      // Predicated region
      $region49: #{cppd_head_forward_test.10} parent=11 // pred_check
        %p348 = pneg %p280
      $region50: #{cppd_head_forward_test.10} parent=11 // pred_check_branch
        %350 = sbr.rel (%p348) target = $region52
      $region51: #{cppd_head_forward_test.10} parent=11 // pred_region
        _
      $region52: #{cppd_head_forward_test.10} parent=11 // pred_fallthru
        _
    $region12: #{cppd_head_forward_test.10} parent=5 // pred_fallthru
      _
    %p351 = scmp.lt.s32.totalorder %s18, 2
    // Predicated region
    $region53: #{cppd_head_forward_test.10} parent=5 // pred_check
      %p352 = pneg %p351
    $region54: #{cppd_head_forward_test.10} parent=5 // pred_check_branch
      %354 = sbr.rel (%p352) target = $region56
    $region55: #{cppd_head_forward_test.10} parent=5 // pred_region
      // Predicated region
      $region57: #{cppd_head_forward_test.10} parent=55 // pred_check
        %p355 = pneg %p38
      $region58: #{cppd_head_forward_test.10} parent=55 // pred_check_branch
        %357 = sbr.rel (%p355) target = $region60
      $region59: #{cppd_head_forward_test.10} parent=55 // pred_region
        %p358 = scmp.lt.s32.totalorder %s18, 1
        %s359 = scalar_select %p358, %s18, 1
        %s360 = smul.addr %s359, 2
        %s361 = smul.addr %s360, 4
        %s362 = scalar_lea.vmem %s0, %s361
      $region60: #{cppd_head_forward_test.10} parent=55 // pred_fallthru
        _
      // Predicated region
      $region61: #{cppd_head_forward_test.10} parent=55 // pred_check
        %p363 = pneg %p64
      $region62: #{cppd_head_forward_test.10} parent=55 // pred_check_branch
        %365 = sbr.rel (%p363) target = $region64
      $region63: #{cppd_head_forward_test.10} parent=55 // pred_region
        %p366 = scmp.lt.s32.totalorder %s18, 1
        %s367 = scalar_select %p366, %s18, 1
        %s368 = smul.addr %s367, 2
        %s369 = smul.addr %s368, 4
        %s370 = scalar_lea.vmem %s1, %s369
      $region64: #{cppd_head_forward_test.10} parent=55 // pred_fallthru
        _
    $region56: #{cppd_head_forward_test.10} parent=5 // pred_fallthru
      _
    %p371 = scmp.le.s32.totalorder 1, %s18
    %p372 = scmp.lt.s32.totalorder %s18, 3
    %p373 = pnand %p371, %p372
    %p374 = pneg %p373
    // Predicated region
    $region65: #{cppd_head_forward_test.10} parent=5 // pred_check
      _
    $region66: #{cppd_head_forward_test.10} parent=5 // pred_check_branch
      %376 = sbr.rel (%p373) target = $region68
    $region67: #{cppd_head_forward_test.10} parent=5 // pred_region
      %s377 = ssub.s32 %s18, 1
      %p378 = scmp.lt.s32.totalorder %s23, 1
      %s379 = scalar_select %p378, %s23, 1
      %s380 = smul.addr %s379, 2
      %s381 = smul.addr %s380, 4
      %s382 = scalar_lea.vmem %s0, %s381
      %p383 = pneg %p44
      %p384 = pneg %p41
      %p385 = scmp.lt.s32.totalorder %s23, 1
      %s386 = scalar_select %p385, %s23, 1
      %s387 = smul.addr %s386, 2
      %s388 = smul.addr %s387, 4
      %s389 = scalar_lea.vmem %s1, %s388
      %p390 = pneg %p70
      %p391 = pneg %p67
      %p392 = pneg %p91
      %p393 = pneg %p88
      %p394 = pneg %p112
      %p395 = pneg %p109
      %p396 = pneg %p133
      %p397 = pneg %p130
      %p398 = pneg %p154
      %p399 = pneg %p151
      %p400 = pneg %p175
      %p401 = pneg %p172
      %p402 = pneg %p196
      %p403 = pneg %p193
      %p404 = pneg %p217
      %p405 = pneg %p214
      %p406 = pneg %p238
      %p407 = pneg %p235
      %p408 = pneg %p259
      %p409 = pneg %p256
      %p410 = pneg %p280
      %p411 = pneg %p277
      %p412 = pneg %p306
      %p413 = pneg %p303
      %p414 = scmp.lt.s32.totalorder %s23, 1
      %s415 = scalar_select %p414, %s23, 1
      %s416 = smul.addr %s415, 2
      %s417 = smul.addr %s416, 4
      %s418 = scalar_lea.vmem %s12, %s417
      %p419 = scmp.lt.s32.totalorder %s23, 1
      %s420 = scalar_select %p419, %s23, 1
      %s421 = smul.addr %s420, 2
      %s422 = smul.addr %s421, 4
      %s423 = scalar_lea.vmem %s0, %s422
      %p424 = scmp.lt.s32.totalorder %s23, 1
      %s425 = scalar_select %p424, %s23, 1
      %s426 = smul.addr %s425, 2
      %s427 = smul.addr %s426, 4
      %s428 = scalar_lea.vmem %s1, %s427
      %p429 = scmp.lt.s32.totalorder %s23, 1
      %s430 = scalar_select %p429, %s23, 1
      %s431 = smul.addr %s430, 2
      %s432 = smul.addr %s431, 4
      %s433 = scalar_lea.vmem %s12, %s432
      %v435 = vld [vmem:[%s423] sm:$0xf]
      %v436 = vld [vmem:[%s423 + $0x4] sm:$0xf]
      %v437 = vld [vmem:[%s428] sm:$0xf]
      %v438 = vld [vmem:[%s428 + $0x4] sm:$0xf]
      %v439 = vld [vmem:[%s2] sm:$0xf]
      %v440 = vld [vmem:[%s2 + $0x4] sm:$0xf]
      %v441 = vld [vmem:[%s2 + $0x8] sm:$0xf]
      %v442 = vld [vmem:[%s2 + $0xc] sm:$0xf]
      %v443 = vld [vmem:[%s2 + $0x10] sm:$0xf]
      %v444 = vld [vmem:[%s2 + $0x14] sm:$0xf]
      %v445 = vld [vmem:[%s2 + $0x18] sm:$0xf]
      %v446 = vld [vmem:[%s2 + $0x1c] sm:$0xf]
      %v447 = vld [vmem:[%s3] sm:$0x1]
      %v449 = vlaneseq
      %v450 = vshrl.u32 %v449, 7
      %v451 = vsub.s32 0, %v450
      %v452 = vrot.slane %v447, %v451
      %v456 = vunpack.c.l.b16 %v435
      %v457 = vunpack.c.l.b16 %v436
      %v458 = vpack.c.b16 %v457, %v456
      %v467 = vunpack.c.l.b16 %v439
      %v468 = vunpack.c.l.b16 %v440
      %v469 = vunpack.c.l.b16 %v441
      %v470 = vunpack.c.l.b16 %v442
      %v471 = vunpack.c.l.b16 %v443
      %v472 = vunpack.c.l.b16 %v444
      %v473 = vunpack.c.l.b16 %v445
      %v474 = vunpack.c.l.b16 %v446
      %v475 = vpack.c.b16 %v468, %v467
      %v476 = vpack.c.b16 %v470, %v469
      %v477 = vpack.c.b16 %v472, %v471
      %v478 = vpack.c.b16 %v474, %v473
      %vm483 = vcmask 523264
      %v485 = vsel %vm483, %v458, 0
      %487 = vmatprep.subr.bf16.mxu0 0
      %488 = vmatpush1.bf16.msra.mxu0 %v475
      %489 = vmatprep.subr.bf16.mxu0 0
      %490 = vmatpush1.bf16.msra.mxu0 %v476
      %491 = vmatprep.subr.bf16.mxu0 0
      %492 = vmatpush1.bf16.msra.mxu0 %v477
      %493 = vmatprep.subr.bf16.mxu0 0
      %494 = vmatpush1.bf16.msra.mxu0 %v478
      %495 = vmatprep.subr.bf16.mxu0 0
      %496 = vmatpush1.bf16.msra.mxu0 0
      %497 = vmatprep.subr.bf16.mxu0 0
      %498 = vmatpush1.bf16.msra.mxu0 0
      %499 = vmatprep.subr.bf16.mxu0 0
      %500 = vmatpush1.bf16.msra.mxu0 0
      %501 = vmatprep.subr.bf16.mxu0 0
      %502 = vmatpush1.bf16.msra.mxu0 0
      %503 = vmatprep.subr.bf16.mxu0 0
      %504 = vmatpush1.bf16.msra.mxu0 0
      %505 = vmatprep.subr.bf16.mxu0 0
      %506 = vmatpush1.bf16.msra.mxu0 0
      %507 = vmatprep.subr.bf16.mxu0 0
      %508 = vmatpush1.bf16.msra.mxu0 0
      %509 = vmatprep.subr.bf16.mxu0 0
      %510 = vmatpush1.bf16.msra.mxu0 0
      %511 = vmatprep.subr.bf16.mxu0 0
      %512 = vmatpush1.bf16.msra.mxu0 0
      %513 = vmatprep.subr.bf16.mxu0 0
      %514 = vmatpush1.bf16.msra.mxu0 0
      %515 = vmatprep.subr.bf16.mxu0 0
      %516 = vmatpush1.bf16.msra.mxu0 0
      %517 = vmatprep.subr.bf16.mxu0 0
      %518 = vmatpush1.bf16.msra.mxu0 0
      %519 = vmatprep.mubr.bf16.mxu0 0
      %520 = vmatmul.mubr.bf16.gmra.mrb[0].mxu0 %v485
      %v521 = vpop.f32.mrb[0].mxu0
      %v522 = vadd.f32 %v452, %v521
      %v523 = vpop.f32.mrb[0].mxu0
      %v524 = vpop.f32.mrb[0].mxu0
      %v525 = vadd.f32 %v452, %v524
      %v526 = vpop.f32.mrb[0].mxu0
      %527 = vdwg.mxu0
      %v528 = vld [vmem:[%s4] sm:$0xf]
      %v529 = vld [vmem:[%s4 + $0x4] sm:$0xf]
      %v530 = vld [vmem:[%s4 + $0x8] sm:$0xf]
      %v531 = vld [vmem:[%s4 + $0xc] sm:$0xf]
      %v532 = vld [vmem:[%s4 + $0x10] sm:$0xf]
      %v533 = vld [vmem:[%s4 + $0x14] sm:$0xf]
      %v534 = vld [vmem:[%s4 + $0x18] sm:$0xf]
      %v535 = vld [vmem:[%s4 + $0x1c] sm:$0xf]
      %v536 = vld [vmem:[%s5] sm:$0x1]
      %v538 = vlaneseq
      %v539 = vshrl.u32 %v538, 7
      %v540 = vsub.s32 0, %v539
      %v541 = vrot.slane %v536, %v540
      %v545 = vunpack.c.l.b16 %v437
      %v546 = vunpack.c.l.b16 %v438
      %v547 = vpack.c.b16 %v546, %v545
      %v556 = vunpack.c.l.b16 %v528
      %v557 = vunpack.c.l.b16 %v529
      %v558 = vunpack.c.l.b16 %v530
      %v559 = vunpack.c.l.b16 %v531
      %v560 = vunpack.c.l.b16 %v532
      %v561 = vunpack.c.l.b16 %v533
      %v562 = vunpack.c.l.b16 %v534
      %v563 = vunpack.c.l.b16 %v535
      %v564 = vpack.c.b16 %v557, %v556
      %v565 = vpack.c.b16 %v559, %v558
      %v566 = vpack.c.b16 %v561, %v560
      %v567 = vpack.c.b16 %v563, %v562
      %v573 = vsel %vm483, %v547, 0
      %575 = vmatprep.subr.bf16.mxu0 0
      %576 = vmatpush1.bf16.msra.mxu0 %v564
      %577 = vmatprep.subr.bf16.mxu0 0
      %578 = vmatpush1.bf16.msra.mxu0 %v565
      %579 = vmatprep.subr.bf16.mxu0 0
      %580 = vmatpush1.bf16.msra.mxu0 %v566
      %581 = vmatprep.subr.bf16.mxu0 0
      %582 = vmatpush1.bf16.msra.mxu0 %v567
      %583 = vmatprep.subr.bf16.mxu0 0
      %584 = vmatpush1.bf16.msra.mxu0 0
      %585 = vmatprep.subr.bf16.mxu0 0
      %586 = vmatpush1.bf16.msra.mxu0 0
      %587 = vmatprep.subr.bf16.mxu0 0
      %588 = vmatpush1.bf16.msra.mxu0 0
      %589 = vmatprep.subr.bf16.mxu0 0
      %590 = vmatpush1.bf16.msra.mxu0 0
      %591 = vmatprep.subr.bf16.mxu0 0
      %592 = vmatpush1.bf16.msra.mxu0 0
      %593 = vmatprep.subr.bf16.mxu0 0
      %594 = vmatpush1.bf16.msra.mxu0 0
      %595 = vmatprep.subr.bf16.mxu0 0
      %596 = vmatpush1.bf16.msra.mxu0 0
      %597 = vmatprep.subr.bf16.mxu0 0
      %598 = vmatpush1.bf16.msra.mxu0 0
      %599 = vmatprep.subr.bf16.mxu0 0
      %600 = vmatpush1.bf16.msra.mxu0 0
      %601 = vmatprep.subr.bf16.mxu0 0
      %602 = vmatpush1.bf16.msra.mxu0 0
      %603 = vmatprep.subr.bf16.mxu0 0
      %604 = vmatpush1.bf16.msra.mxu0 0
      %605 = vmatprep.subr.bf16.mxu0 0
      %606 = vmatpush1.bf16.msra.mxu0 0
      %607 = vmatprep.mubr.bf16.mxu0 0
      %608 = vmatmul.mubr.bf16.gmra.mrb[0].mxu0 %v573
      %v609 = vpop.f32.mrb[0].mxu0
      %v610 = vadd.f32 %v541, %v609
      %v611 = vpop.f32.mrb[0].mxu0
      %v612 = vpop.f32.mrb[0].mxu0
      %v613 = vadd.f32 %v541, %v612
      %v614 = vpop.f32.mrb[0].mxu0
      %615 = vdwg.mxu0
      %v616 = vld [vmem:[%s6] sm:$0xf]
      %v617 = vld [vmem:[%s6 + $0x4] sm:$0xf]
      %v618 = vld [vmem:[%s6 + $0x8] sm:$0xf]
      %v619 = vld [vmem:[%s6 + $0xc] sm:$0xf]
      %v620 = vld [vmem:[%s6 + $0x10] sm:$0xf]
      %v621 = vld [vmem:[%s6 + $0x14] sm:$0xf]
      %v622 = vld [vmem:[%s6 + $0x18] sm:$0xf]
      %v623 = vld [vmem:[%s6 + $0x1c] sm:$0xf]
      %v624 = vld [vmem:[%s7] sm:$0x1]
      %v626 = vlaneseq
      %v627 = vshrl.u32 %v626, 7
      %v628 = vsub.s32 0, %v627
      %v629 = vrot.slane %v624, %v628
      %v639 = vunpack.c.l.b16 %v616
      %v640 = vunpack.c.l.b16 %v617
      %v641 = vunpack.c.l.b16 %v618
      %v642 = vunpack.c.l.b16 %v619
      %v643 = vunpack.c.l.b16 %v620
      %v644 = vunpack.c.l.b16 %v621
      %v645 = vunpack.c.l.b16 %v622
      %v646 = vunpack.c.l.b16 %v623
      %v647 = vpack.c.b16 %v640, %v639
      %v648 = vpack.c.b16 %v642, %v641
      %v649 = vpack.c.b16 %v644, %v643
      %v650 = vpack.c.b16 %v646, %v645
      %655 = vmatprep.subr.bf16.mxu0 0
      %656 = vmatpush1.bf16.msra.mxu0 %v647
      %657 = vmatprep.subr.bf16.mxu0 0
      %658 = vmatpush1.bf16.msra.mxu0 %v648
      %659 = vmatprep.subr.bf16.mxu0 0
      %660 = vmatpush1.bf16.msra.mxu0 %v649
      %661 = vmatprep.subr.bf16.mxu0 0
      %662 = vmatpush1.bf16.msra.mxu0 %v650
      %663 = vmatprep.subr.bf16.mxu0 0
      %664 = vmatpush1.bf16.msra.mxu0 0
      %665 = vmatprep.subr.bf16.mxu0 0
      %666 = vmatpush1.bf16.msra.mxu0 0
      %667 = vmatprep.subr.bf16.mxu0 0
      %668 = vmatpush1.bf16.msra.mxu0 0
      %669 = vmatprep.subr.bf16.mxu0 0
      %670 = vmatpush1.bf16.msra.mxu0 0
      %671 = vmatprep.subr.bf16.mxu0 0
      %672 = vmatpush1.bf16.msra.mxu0 0
      %673 = vmatprep.subr.bf16.mxu0 0
      %674 = vmatpush1.bf16.msra.mxu0 0
      %675 = vmatprep.subr.bf16.mxu0 0
      %676 = vmatpush1.bf16.msra.mxu0 0
      %677 = vmatprep.subr.bf16.mxu0 0
      %678 = vmatpush1.bf16.msra.mxu0 0
      %679 = vmatprep.subr.bf16.mxu0 0
      %680 = vmatpush1.bf16.msra.mxu0 0
      %681 = vmatprep.subr.bf16.mxu0 0
      %682 = vmatpush1.bf16.msra.mxu0 0
      %683 = vmatprep.subr.bf16.mxu0 0
      %684 = vmatpush1.bf16.msra.mxu0 0
      %685 = vmatprep.subr.bf16.mxu0 0
      %686 = vmatpush1.bf16.msra.mxu0 0
      %687 = vmatprep.mubr.bf16.mxu0 0
      %688 = vmatmul.mubr.bf16.gmra.mrb[0].mxu0 %v573
      %v689 = vpop.f32.mrb[0].mxu0
      %v690 = vadd.f32 %v629, %v689
      %v691 = vpop.f32.mrb[0].mxu0
      %v692 = vpop.f32.mrb[0].mxu0
      %v693 = vadd.f32 %v629, %v692
      %v694 = vpop.f32.mrb[0].mxu0
      %695 = vdwg.mxu0
      %v696 = vpack.c.bf16 %v525, %v522
      %v697 = vpack.c.bf16 %v613, %v610
      %v698 = vpack.c.bf16 %v693, %v690
      %vm699 = vcmask 261120
      %v701 = vsel %vm699, %v696, 0
      %v704 = vsel %vm699, %v697, 0
      %706 = vmatprep.subr.bf16.mxu0 0
      %707 = vmatpush1.bf16.xpose.msra.mxu0 %v704
      %708 = vmatprep.subr.bf16.mxu0 0
      %709 = vmatpush1.bf16.xpose.msra.mxu0 0
      %710 = vmatprep.subr.bf16.mxu0 0
      %711 = vmatpush1.bf16.xpose.msra.mxu0 0
      %712 = vmatprep.subr.bf16.mxu0 0
      %713 = vmatpush1.bf16.xpose.msra.mxu0 0
      %714 = vmatprep.subr.bf16.mxu0 0
      %715 = vmatpush1.bf16.xpose.msra.mxu0 0
      %716 = vmatprep.subr.bf16.mxu0 0
      %717 = vmatpush1.bf16.xpose.msra.mxu0 0
      %718 = vmatprep.subr.bf16.mxu0 0
      %719 = vmatpush1.bf16.xpose.msra.mxu0 0
      %720 = vmatprep.subr.bf16.mxu0 0
      %721 = vmatpush1.bf16.xpose.msra.mxu0 0
      %722 = vmatprep.subr.bf16.mxu0 0
      %723 = vmatpush1.bf16.xpose.msra.mxu0 0
      %724 = vmatprep.subr.bf16.mxu0 0
      %725 = vmatpush1.bf16.xpose.msra.mxu0 0
      %726 = vmatprep.subr.bf16.mxu0 0
      %727 = vmatpush1.bf16.xpose.msra.mxu0 0
      %728 = vmatprep.subr.bf16.mxu0 0
      %729 = vmatpush1.bf16.xpose.msra.mxu0 0
      %730 = vmatprep.subr.bf16.mxu0 0
      %731 = vmatpush1.bf16.xpose.msra.mxu0 0
      %732 = vmatprep.subr.bf16.mxu0 0
      %733 = vmatpush1.bf16.xpose.msra.mxu0 0
      %734 = vmatprep.subr.bf16.mxu0 0
      %735 = vmatpush1.bf16.xpose.msra.mxu0 0
      %736 = vmatprep.subr.bf16.mxu0 0
      %737 = vmatpush1.bf16.xpose.msra.mxu0 0
      %738 = vmatprep.mubr.bf16.mxu0 0
      %739 = vmatmul.mubr.bf16.gmra.mrb[0].mxu0 %v701
      %v740 = vpop.f32.mrb[0].mxu0
      %v741 = vadd.f32 0.0, %v740
      %v742 = vpop.f32.mrb[0].mxu0
      %v743 = vpop.f32.mrb[0].mxu0
      %v744 = vadd.f32 0.0, %v743
      %v745 = vpop.f32.mrb[0].mxu0
      %746 = vdwg.mxu0
      %v747 = vmul.f32 %v741, 0.17677669
      %v748 = vmul.f32 %v744, 0.17677669
      %vm749 = vcmask 130048
      %v750 = vsel %vm749, %v747, -inf
      %751 = vmax.xlane.f32.xlu0 %v750
      %v752 = vpop.xlane.xlu0 %751
      %v753 = vsel %vm749, %v748, -inf
      %754 = vmax.xlane.f32.xlu0 %v753
      %v755 = vpop.xlane.xlu0 %754
      %v756 = vsub.f32 %v747, %v752
      %v757 = vsub.f32 %v748, %v755
      %v758 = vmul.f32 %v756, 1.442695
      %v759 = vpow.pop %v758
      %v760 = vmul.f32 %v757, 1.442695
      %v761 = vpow.pop %v760
      %v762 = vsel %vm749, %v759, 0.0
      %763 = vadd.xlane.f32.xlu0 %v762
      %v764 = vpop.xlane.xlu0 %763
      %v765 = vsel %vm749, %v761, 0.0
      %766 = vadd.xlane.f32.xlu0 %v765
      %v767 = vpop.xlane.xlu0 %766
      %v768 = vrcp.pop %v764
      %v769 = vrcp.pop %v767
      %v770 = vmul.f32 %v759, %v768
      %v771 = vmul.f32 %v761, %v769
      %v772 = vpack.c.bf16 %v771, %v770
      %v774 = vsel %vm749, %v772, 0
      %776 = vmatprep.subr.bf16.mxu0 0
      %777 = vmatpush1.bf16.msra.mxu0 %v698
      %778 = vmatprep.subr.bf16.mxu0 0
      %779 = vmatpush1.bf16.msra.mxu0 0
      %780 = vmatprep.subr.bf16.mxu0 0
      %781 = vmatpush1.bf16.msra.mxu0 0
      %782 = vmatprep.subr.bf16.mxu0 0
      %783 = vmatpush1.bf16.msra.mxu0 0
      %784 = vmatprep.subr.bf16.mxu0 0
      %785 = vmatpush1.bf16.msra.mxu0 0
      %786 = vmatprep.subr.bf16.mxu0 0
      %787 = vmatpush1.bf16.msra.mxu0 0
      %788 = vmatprep.subr.bf16.mxu0 0
      %789 = vmatpush1.bf16.msra.mxu0 0
      %790 = vmatprep.subr.bf16.mxu0 0
      %791 = vmatpush1.bf16.msra.mxu0 0
      %792 = vmatprep.subr.bf16.mxu0 0
      %793 = vmatpush1.bf16.msra.mxu0 0
      %794 = vmatprep.subr.bf16.mxu0 0
      %795 = vmatpush1.bf16.msra.mxu0 0
      %796 = vmatprep.subr.bf16.mxu0 0
      %797 = vmatpush1.bf16.msra.mxu0 0
      %798 = vmatprep.subr.bf16.mxu0 0
      %799 = vmatpush1.bf16.msra.mxu0 0
      %800 = vmatprep.subr.bf16.mxu0 0
      %801 = vmatpush1.bf16.msra.mxu0 0
      %802 = vmatprep.subr.bf16.mxu0 0
      %803 = vmatpush1.bf16.msra.mxu0 0
      %804 = vmatprep.subr.bf16.mxu0 0
      %805 = vmatpush1.bf16.msra.mxu0 0
      %806 = vmatprep.subr.bf16.mxu0 0
      %807 = vmatpush1.bf16.msra.mxu0 0
      %808 = vmatprep.mubr.bf16.mxu0 0
      %809 = vmatmul.mubr.bf16.gmra.mrb[0].mxu0 %v774
      %v810 = vpop.f32.mrb[0].mxu0
      %v811 = vadd.f32 0.0, %v810
      %v812 = vpop.f32.mrb[0].mxu0
      %v813 = vpop.f32.mrb[0].mxu0
      %v814 = vadd.f32 0.0, %v813
      %v815 = vpop.f32.mrb[0].mxu0
      %816 = vdwg.mxu0
      %818 = vrot.lane.b32.xlu0 %v696, 96
      %v819 = vpop.permute.xlu0 %818
      %821 = vrot.lane.b32.xlu0 %v697, 96
      %v822 = vpop.permute.xlu0 %821
      %v824 = vsel %vm699, %v819, 0
      %v827 = vsel %vm699, %v822, 0
      %829 = vmatprep.subr.bf16.mxu0 0
      %830 = vmatpush1.bf16.xpose.msra.mxu0 %v827
      %831 = vmatprep.subr.bf16.mxu0 0
      %832 = vmatpush1.bf16.xpose.msra.mxu0 0
      %833 = vmatprep.subr.bf16.mxu0 0
      %834 = vmatpush1.bf16.xpose.msra.mxu0 0
      %835 = vmatprep.subr.bf16.mxu0 0
      %836 = vmatpush1.bf16.xpose.msra.mxu0 0
      %837 = vmatprep.subr.bf16.mxu0 0
      %838 = vmatpush1.bf16.xpose.msra.mxu0 0
      %839 = vmatprep.subr.bf16.mxu0 0
      %840 = vmatpush1.bf16.xpose.msra.mxu0 0
      %841 = vmatprep.subr.bf16.mxu0 0
      %842 = vmatpush1.bf16.xpose.msra.mxu0 0
      %843 = vmatprep.subr.bf16.mxu0 0
      %844 = vmatpush1.bf16.xpose.msra.mxu0 0
      %845 = vmatprep.subr.bf16.mxu0 0
      %846 = vmatpush1.bf16.xpose.msra.mxu0 0
      %847 = vmatprep.subr.bf16.mxu0 0
      %848 = vmatpush1.bf16.xpose.msra.mxu0 0
      %849 = vmatprep.subr.bf16.mxu0 0
      %850 = vmatpush1.bf16.xpose.msra.mxu0 0
      %851 = vmatprep.subr.bf16.mxu0 0
      %852 = vmatpush1.bf16.xpose.msra.mxu0 0
      %853 = vmatprep.subr.bf16.mxu0 0
      %854 = vmatpush1.bf16.xpose.msra.mxu0 0
      %855 = vmatprep.subr.bf16.mxu0 0
      %856 = vmatpush1.bf16.xpose.msra.mxu0 0
      %857 = vmatprep.subr.bf16.mxu0 0
      %858 = vmatpush1.bf16.xpose.msra.mxu0 0
      %859 = vmatprep.subr.bf16.mxu0 0
      %860 = vmatpush1.bf16.xpose.msra.mxu0 0
      %861 = vmatprep.mubr.bf16.mxu0 0
      %862 = vmatmul.mubr.bf16.gmra.mrb[0].mxu0 %v824
      %v863 = vpop.f32.mrb[0].mxu0
      %v864 = vadd.f32 0.0, %v863
      %v865 = vpop.f32.mrb[0].mxu0
      %v866 = vpop.f32.mrb[0].mxu0
      %v867 = vadd.f32 0.0, %v866
      %v868 = vpop.f32.mrb[0].mxu0
      %869 = vdwg.mxu0
      %v870 = vmul.f32 %v864, 0.17677669
      %v871 = vmul.f32 %v867, 0.17677669
      %v872 = vsel %vm749, %v870, -inf
      %873 = vmax.xlane.f32.xlu0 %v872
      %v874 = vpop.xlane.xlu0 %873
      %v875 = vsel %vm749, %v871, -inf
      %876 = vmax.xlane.f32.xlu0 %v875
      %v877 = vpop.xlane.xlu0 %876
      %v878 = vsub.f32 %v870, %v874
      %v879 = vsub.f32 %v871, %v877
      %v880 = vmul.f32 %v878, 1.442695
      %v881 = vpow.pop %v880
      %v882 = vmul.f32 %v879, 1.442695
      %v883 = vpow.pop %v882
      %v884 = vsel %vm749, %v881, 0.0
      %885 = vadd.xlane.f32.xlu0 %v884
      %v886 = vpop.xlane.xlu0 %885
      %v887 = vsel %vm749, %v883, 0.0
      %888 = vadd.xlane.f32.xlu0 %v887
      %v889 = vpop.xlane.xlu0 %888
      %v890 = vrcp.pop %v886
      %v891 = vrcp.pop %v889
      %v892 = vmul.f32 %v881, %v890
      %v893 = vmul.f32 %v883, %v891
      %v894 = vpack.c.bf16 %v893, %v892
      %896 = vrot.lane.b32.xlu0 %v698, 96
      %v897 = vpop.permute.xlu0 %896
      %v900 = vsel %vm749, %v894, 0
      %902 = vmatprep.subr.bf16.mxu0 0
      %903 = vmatpush1.bf16.msra.mxu0 %v897
      %904 = vmatprep.subr.bf16.mxu0 0
      %905 = vmatpush1.bf16.msra.mxu0 0
      %906 = vmatprep.subr.bf16.mxu0 0
      %907 = vmatpush1.bf16.msra.mxu0 0
      %908 = vmatprep.subr.bf16.mxu0 0
      %909 = vmatpush1.bf16.msra.mxu0 0
      %910 = vmatprep.subr.bf16.mxu0 0
      %911 = vmatpush1.bf16.msra.mxu0 0
      %912 = vmatprep.subr.bf16.mxu0 0
      %913 = vmatpush1.bf16.msra.mxu0 0
      %914 = vmatprep.subr.bf16.mxu0 0
      %915 = vmatpush1.bf16.msra.mxu0 0
      %916 = vmatprep.subr.bf16.mxu0 0
      %917 = vmatpush1.bf16.msra.mxu0 0
      %918 = vmatprep.subr.bf16.mxu0 0
      %919 = vmatpush1.bf16.msra.mxu0 0
      %920 = vmatprep.subr.bf16.mxu0 0
      %921 = vmatpush1.bf16.msra.mxu0 0
      %922 = vmatprep.subr.bf16.mxu0 0
      %923 = vmatpush1.bf16.msra.mxu0 0
      %924 = vmatprep.subr.bf16.mxu0 0
      %925 = vmatpush1.bf16.msra.mxu0 0
      %926 = vmatprep.subr.bf16.mxu0 0
      %927 = vmatpush1.bf16.msra.mxu0 0
      %928 = vmatprep.subr.bf16.mxu0 0
      %929 = vmatpush1.bf16.msra.mxu0 0
      %930 = vmatprep.subr.bf16.mxu0 0
      %931 = vmatpush1.bf16.msra.mxu0 0
      %932 = vmatprep.subr.bf16.mxu0 0
      %933 = vmatpush1.bf16.msra.mxu0 0
      %934 = vmatprep.mubr.bf16.mxu0 0
      %935 = vmatmul.mubr.bf16.gmra.mrb[0].mxu0 %v900
      %v936 = vpop.f32.mrb[0].mxu0
      %v937 = vadd.f32 0.0, %v936
      %v938 = vpop.f32.mrb[0].mxu0
      %v939 = vpop.f32.mrb[0].mxu0
      %v940 = vadd.f32 0.0, %v939
      %v941 = vpop.f32.mrb[0].mxu0
      %942 = vdwg.mxu0
      %945 = vrot.lane.b32.xlu0 %v937, 32
      %v946 = vpop.permute.xlu0 %945
      %947 = vrot.lane.b32.xlu0 %v940, 32
      %v948 = vpop.permute.xlu0 %947
      %v951 = vsel %vm699, %v811, %v946
      %v952 = vsel %vm699, %v814, %v948
      %v953 = vpack.c.bf16 %v952, %v951
      %v954 = vld [vmem:[%s8] sm:$0xf]
      %v955 = vld [vmem:[%s8 + $0x4] sm:$0xf]
      %v956 = vld [vmem:[%s8 + $0x8] sm:$0xf]
      %v957 = vld [vmem:[%s8 + $0xc] sm:$0xf]
      %v958 = vld [vmem:[%s8 + $0x10] sm:$0xf]
      %v959 = vld [vmem:[%s8 + $0x14] sm:$0xf]
      %v960 = vld [vmem:[%s8 + $0x18] sm:$0xf]
      %v961 = vld [vmem:[%s8 + $0x1c] sm:$0xf]
      %v962 = vld [vmem:[%s9] sm:$0x1]
      %v964 = vlaneseq
      %v965 = vshrl.u32 %v964, 7
      %v966 = vsub.s32 0, %v965
      %v967 = vrot.slane %v962, %v966
      %v977 = vunpack.c.l.b16 %v954
      %v978 = vunpack.c.l.b16 %v955
      %v979 = vunpack.c.l.b16 %v956
      %v980 = vunpack.c.l.b16 %v957
      %v981 = vunpack.c.l.b16 %v958
      %v982 = vunpack.c.l.b16 %v959
      %v983 = vunpack.c.l.b16 %v960
      %v984 = vunpack.c.l.b16 %v961
      %v985 = vpack.c.b16 %v978, %v977
      %v986 = vpack.c.b16 %v980, %v979
      %v987 = vpack.c.b16 %v982, %v981
      %v988 = vpack.c.b16 %v984, %v983
      %v994 = vsel %vm483, %v953, 0
      %996 = vmatprep.subr.bf16.mxu0 0
      %997 = vmatpush1.bf16.msra.mxu0 %v985
      %998 = vmatprep.subr.bf16.mxu0 0
      %999 = vmatpush1.bf16.msra.mxu0 %v986
      %1000 = vmatprep.subr.bf16.mxu0 0
      %1001 = vmatpush1.bf16.msra.mxu0 %v987
      %1002 = vmatprep.subr.bf16.mxu0 0
      %1003 = vmatpush1.bf16.msra.mxu0 %v988
      %1004 = vmatprep.subr.bf16.mxu0 0
      %1005 = vmatpush1.bf16.msra.mxu0 0
      %1006 = vmatprep.subr.bf16.mxu0 0
      %1007 = vmatpush1.bf16.msra.mxu0 0
      %1008 = vmatprep.subr.bf16.mxu0 0
      %1009 = vmatpush1.bf16.msra.mxu0 0
      %1010 = vmatprep.subr.bf16.mxu0 0
      %1011 = vmatpush1.bf16.msra.mxu0 0
      %1012 = vmatprep.subr.bf16.mxu0 0
      %1013 = vmatpush1.bf16.msra.mxu0 0
      %1014 = vmatprep.subr.bf16.mxu0 0
      %1015 = vmatpush1.bf16.msra.mxu0 0
      %1016 = vmatprep.subr.bf16.mxu0 0
      %1017 = vmatpush1.bf16.msra.mxu0 0
      %1018 = vmatprep.subr.bf16.mxu0 0
      %1019 = vmatpush1.bf16.msra.mxu0 0
      %1020 = vmatprep.subr.bf16.mxu0 0
      %1021 = vmatpush1.bf16.msra.mxu0 0
      %1022 = vmatprep.subr.bf16.mxu0 0
      %1023 = vmatpush1.bf16.msra.mxu0 0
      %1024 = vmatprep.subr.bf16.mxu0 0
      %1025 = vmatpush1.bf16.msra.mxu0 0
      %1026 = vmatprep.subr.bf16.mxu0 0
      %1027 = vmatpush1.bf16.msra.mxu0 0
      %1028 = vmatprep.mubr.bf16.mxu0 0
      %1029 = vmatmul.mubr.bf16.gmra.mrb[0].mxu0 %v994
      %v1030 = vpop.f32.mrb[0].mxu0
      %v1031 = vadd.f32 %v967, %v1030
      %v1032 = vpop.f32.mrb[0].mxu0
      %v1033 = vpop.f32.mrb[0].mxu0
      %v1034 = vadd.f32 %v967, %v1033
      %v1035 = vpop.f32.mrb[0].mxu0
      %1036 = vdwg.mxu0
      %v1037 = vunpack.c.l.bf16 %v435
      %v1038 = vunpack.c.l.bf16 %v436
      %v1039 = vadd.f32 %v1037, %v1031
      %v1040 = vadd.f32 %v1038, %v1034
      %v1041 = vld [vmem:[%s10] sm:$0x1]
      %v1042 = vld [vmem:[%s11] sm:$0x1]
      %v1043 = vsel %vm483, %v1039, 0.0
      %1044 = vadd.xlane.f32.xlu0 %v1043
      %v1045 = vpop.xlane.xlu0 %1044
      %v1046 = vsel %vm483, %v1040, 0.0
      %1047 = vadd.xlane.f32.xlu0 %v1046
      %v1048 = vpop.xlane.xlu0 %1047
      %v1049 = vrcp.pop 64.0
      %v1050 = vmul.f32 %v1045, %v1049
      %v1051 = vmul.f32 %v1048, %v1049
      %v1052 = vsub.f32 %v1039, %v1050
      %v1053 = vsub.f32 %v1040, %v1051
      %v1054 = vmul.f32 %v1052, %v1052
      %v1055 = vmul.f32 %v1053, %v1053
      %v1056 = vsel %vm483, %v1054, 0.0
      %1057 = vadd.xlane.f32.xlu0 %v1056
      %v1058 = vpop.xlane.xlu0 %1057
      %v1059 = vsel %vm483, %v1055, 0.0
      %1060 = vadd.xlane.f32.xlu0 %v1059
      %v1061 = vpop.xlane.xlu0 %1060
      %v1062 = vmul.f32 %v1058, %v1049
      %v1063 = vmul.f32 %v1061, %v1049
      %v1064 = vadd.f32 %v1062, 1e-06
      %v1065 = vadd.f32 %v1063, 1e-06
      %v1066 = vrsqrt.pop %v1064
      %v1067 = vrsqrt.pop %v1065
      %v1068 = vmul.f32 %v1052, %v1066
      %v1069 = vmul.f32 %v1053, %v1067
      %v1071 = vlaneseq
      %v1072 = vshrl.u32 %v1071, 7
      %v1073 = vsub.s32 0, %v1072
      %v1074 = vrot.slane %v1041, %v1073
      %v1076 = vmul.f32 %v1068, %v1074
      %v1077 = vmul.f32 %v1069, %v1074
      %v1079 = vlaneseq
      %v1080 = vshrl.u32 %v1079, 7
      %v1081 = vsub.s32 0, %v1080
      %v1082 = vrot.slane %v1042, %v1081
      %v1084 = vadd.f32 %v1076, %v1082
      %v1085 = vadd.f32 %v1077, %v1082
      %v1086 = vpack.c.bf16 %v1085, %v1084
      %v1088 = vunpack.c.l.b16 %v1086
      %v1089 = vunpack.c.h.b16 %v1086
      %v1090 = vpack.c.b16 %v1088, %v1088
      %v1091 = vpack.c.b16 %v1089, %v1089
      %vm1094 = vcmask 519168
      %1095 = vst.msk [vmem:[%s433] sm:$0xf] %vm1094, %v1090
      %1096 = vst.msk [vmem:[%s433 + $0x4] sm:$0xf] %vm1094, %v1091
      %p1097 = scmp.lt.s32.totalorder %s23, 1
      %s1098 = scalar_select %p1097, %s23, 1
      %s1099 = smul.addr %s1098, 2
      %s1100 = smul.addr %s1099, 4
      %s1101 = scalar_lea.vmem %s12, %s1100
      // Predicated region
      $region69: #{cppd_head_forward_test.10} parent=67 // pred_check
        %p1102 = pneg %p303
      $region70: #{cppd_head_forward_test.10} parent=67 // pred_check_branch
        %1104 = sbr.rel (%p1102) target = $region72
      $region71: #{cppd_head_forward_test.10} parent=67 // pred_region
        _
      $region72: #{cppd_head_forward_test.10} parent=67 // pred_fallthru
        _
    $region68: #{cppd_head_forward_test.10} parent=5 // pred_fallthru
      _
    %p1105 = scmp.le.s32.totalorder 2, %s18
    // Predicated region
    $region73: #{cppd_head_forward_test.10} parent=5 // pred_check
      %p1106 = pneg %p1105
    $region74: #{cppd_head_forward_test.10} parent=5 // pred_check_branch
      %1108 = sbr.rel (%p1106) target = $region76
    $region75: #{cppd_head_forward_test.10} parent=5 // pred_region
      %s1109 = ssub.s32 %s18, 2
      // Predicated region
      $region77: #{cppd_head_forward_test.10} parent=75 // pred_check
        %p1110 = pneg %p309
      $region78: #{cppd_head_forward_test.10} parent=75 // pred_check_branch
        %1112 = sbr.rel (%p1110) target = $region80
      $region79: #{cppd_head_forward_test.10} parent=75 // pred_region
        %p1113 = scmp.lt.s32.totalorder %s24, 1
        %s1114 = scalar_select %p1113, %s24, 1
        %s1115 = smul.addr %s1114, 2
        %s1116 = smul.addr %s1115, 4
        %s1117 = scalar_lea.vmem %s12, %s1116
      $region80: #{cppd_head_forward_test.10} parent=75 // pred_fallthru
        _
    $region76: #{cppd_head_forward_test.10} parent=5 // pred_fallthru
      _
  $region6: #{cppd_head_forward_test.10} parent=0 // loop_footer
    %s22 = sadd.s32 1, %s18
  $region7: #{cppd_head_forward_test.10} parent=0 // loop_footer_branch
    %17 = sbr.rel target = $region3
  $region8: #{cppd_head_forward_test.10} parent=0 // loop_exit
    _

// kernel: cppd_head_forward_test.19
$region0: #{cppd_head_forward_test.19}
  #allocation0 [shape = 'u32[]', space=smem, size = 0x4, offset = 0x4, fixed_abs, tag = 'smem constant byte address 0x4 - core index']
  #allocation1 [shape = 'u32[144,128]{1,0:T(1,128)}', space=vmem, size = 0x12000, scoped, tag = 'internal scratch']
  %s0 = inlined_call_operand.vmem [shape: bf16[2,8,64], index: 0, kind: input, shape index: {}]
  %s1 = inlined_call_operand.vmem [shape: bf16[64,256], index: 1, kind: input, shape index: {}]
  %s2 = inlined_call_operand.vmem [shape: f32[1,256], index: 2, kind: input, shape index: {}]
  %s3 = inlined_call_operand.vmem [shape: bf16[256,64], index: 3, kind: input, shape index: {}]
  %s4 = inlined_call_operand.vmem [shape: f32[1,64], index: 4, kind: input, shape index: {}]
  %s5 = inlined_call_operand.vmem [shape: f32[1,64], index: 5, kind: input, shape index: {}]
  %s6 = inlined_call_operand.vmem [shape: f32[1,64], index: 6, kind: input, shape index: {}]
  %s7 = inlined_call_operand.vmem [shape: bf16[64,128], index: 7, kind: input, shape index: {}]
  %s8 = inlined_call_operand.vmem [shape: f32[1,128], index: 8, kind: input, shape index: {}]
  %s9 = inlined_call_operand.hbm [shape: f32[2,8,128], index: 9, kind: output, shape index: {}]
  %s10 = sld [smem:[#allocation0]]
  $region69: #{cppd_head_forward_test.19} parent=0
    _
  %s12 = ssub.s32 1, %s10
  %s13 = scalar_select 0, %s12, %s10
  $region1: #{cppd_head_forward_test.19} parent=0
    #allocation2 [shape = 'u8[8192]{0}', space=vmem, size = 0x2000, scoped, tag = 'output window, operand 0']
    #allocation3 [shape = 's32[2]{0}', space=sflag, size = 0x8, scoped, tag = 'scoped memory for cppd_head_forward_test.19']
    %14 = vsyncpa [#allocation3], 0
    %s15 = scalar_lea.sflag [#allocation3], 1
    %16 = vsyncpa %s15, 0
    loop: start=0, step=1, limit=4
    $region2: #{cppd_head_forward_test.19} parent=1 // loop_pre_header
      _
    $region3: #{cppd_head_forward_test.19} parent=1 // loop_header
      %s18 = sphi 0, %s22
      %p19 = scmp.ge.s32.totalorder %s18, 4
      %s28 = sphi 0, %s30
      %s31 = sphi 0, %s28
      %s32 = sphi 0, %s31
      %s48 = sphi 0, %s32
      %s52 = sphi 0, %s52
      %s54 = sphi 0, %s52
      %s55 = sphi 0, %s54
      %s69 = sphi 0, %s55
      %s73 = sphi 0, %s73
      %s75 = sphi 0, %s73
      %s76 = sphi 0, %s75
      %s90 = sphi 0, %s76
      %s94 = sphi 0, %s94
      %s96 = sphi 0, %s94
      %s97 = sphi 0, %s96
      %s111 = sphi 0, %s97
      %s115 = sphi 0, %s115
      %s117 = sphi 0, %s115
      %s118 = sphi 0, %s117
      %s132 = sphi 0, %s118
      %s136 = sphi 0, %s136
      %s138 = sphi 0, %s136
      %s139 = sphi 0, %s138
      %s153 = sphi 0, %s139
      %s157 = sphi 0, %s157
      %s159 = sphi 0, %s157
      %s160 = sphi 0, %s159
      %s174 = sphi 0, %s160
      %s178 = sphi 0, %s178
      %s180 = sphi 0, %s178
      %s181 = sphi 0, %s180
      %s195 = sphi 0, %s181
      %s199 = sphi 0, %s199
      %s201 = sphi 0, %s199
      %s202 = sphi 0, %s201
      %s216 = sphi 0, %s202
      %s222 = sphi 0, %s224
      %s225 = sphi 0, %s222
      %s226 = sphi 0, %s225
      %s242 = sphi 0, %s226
    $region4: #{cppd_head_forward_test.19} parent=1 // loop_header_branch
      %21 = sbr.rel (%p19) target = $region8
    $region5: #{cppd_head_forward_test.19} parent=1 // loop_body
      %s23 = ssub.s32 %s18, 1
      %s24 = ssub.s32 %s18, 2
      %s25 = sadd.s32 %s18, 1
      %s26 = ssub.s32 %s18, %s25
      %p27 = scmp.eq.s32.totalorder %s26, 0
      %s29 = sadd.s32 %s28, 1
      %s30 = scalar_select %p27, %s28, %s29
      %p33 = pneg %p27
      %p34 = scmp.eq.s32.totalorder %s18, 1
      %p35 = por %p33, %p34
      %p36 = scmp.ne.s32.totalorder %s28, %s31
      %p37 = scmp.eq.s32.totalorder %s18, 0
      %p38 = por %p36, %p37
      %p39 = scmp.ne.s32.totalorder %s28, %s31
      %p40 = scmp.eq.s32.totalorder %s23, 1
      %p41 = por %p39, %p40
      %p42 = scmp.ne.s32.totalorder %s31, %s32
      %p43 = scmp.eq.s32.totalorder %s23, 0
      %p44 = por %p42, %p43
      %p45 = scmp.ne.s32.totalorder %s31, %s32
      %p46 = scmp.eq.s32.totalorder %s24, 1
      %p47 = por %p45, %p46
      %p49 = scmp.ne.s32.totalorder %s32, %s48
      %p50 = scmp.eq.s32.totalorder %s24, 0
      %p51 = por %p49, %p50
      %s53 = sadd.s32 %s52, 1
      %p56 = scmp.eq.s32.totalorder %s18, 1
      %p57 = scmp.ne.s32.totalorder %s52, %s54
      %p58 = scmp.eq.s32.totalorder %s18, 0
      %p59 = por %p57, %p58
      %p60 = scmp.ne.s32.totalorder %s52, %s54
      %p61 = scmp.eq.s32.totalorder %s23, 1
      %p62 = por %p60, %p61
      %p63 = scmp.ne.s32.totalorder %s54, %s55
      %p64 = scmp.eq.s32.totalorder %s23, 0
      %p65 = por %p63, %p64
      %p66 = scmp.ne.s32.totalorder %s54, %s55
      %p67 = scmp.eq.s32.totalorder %s24, 1
      %p68 = por %p66, %p67
      %p70 = scmp.ne.s32.totalorder %s55, %s69
      %p71 = scmp.eq.s32.totalorder %s24, 0
      %p72 = por %p70, %p71
      %s74 = sadd.s32 %s73, 1
      %p77 = scmp.eq.s32.totalorder %s18, 1
      %p78 = scmp.ne.s32.totalorder %s73, %s75
      %p79 = scmp.eq.s32.totalorder %s18, 0
      %p80 = por %p78, %p79
      %p81 = scmp.ne.s32.totalorder %s73, %s75
      %p82 = scmp.eq.s32.totalorder %s23, 1
      %p83 = por %p81, %p82
      %p84 = scmp.ne.s32.totalorder %s75, %s76
      %p85 = scmp.eq.s32.totalorder %s23, 0
      %p86 = por %p84, %p85
      %p87 = scmp.ne.s32.totalorder %s75, %s76
      %p88 = scmp.eq.s32.totalorder %s24, 1
      %p89 = por %p87, %p88
      %p91 = scmp.ne.s32.totalorder %s76, %s90
      %p92 = scmp.eq.s32.totalorder %s24, 0
      %p93 = por %p91, %p92
      %s95 = sadd.s32 %s94, 1
      %p98 = scmp.eq.s32.totalorder %s18, 1
      %p99 = scmp.ne.s32.totalorder %s94, %s96
      %p100 = scmp.eq.s32.totalorder %s18, 0
      %p101 = por %p99, %p100
      %p102 = scmp.ne.s32.totalorder %s94, %s96
      %p103 = scmp.eq.s32.totalorder %s23, 1
      %p104 = por %p102, %p103
      %p105 = scmp.ne.s32.totalorder %s96, %s97
      %p106 = scmp.eq.s32.totalorder %s23, 0
      %p107 = por %p105, %p106
      %p108 = scmp.ne.s32.totalorder %s96, %s97
      %p109 = scmp.eq.s32.totalorder %s24, 1
      %p110 = por %p108, %p109
      %p112 = scmp.ne.s32.totalorder %s97, %s111
      %p113 = scmp.eq.s32.totalorder %s24, 0
      %p114 = por %p112, %p113
      %s116 = sadd.s32 %s115, 1
      %p119 = scmp.eq.s32.totalorder %s18, 1
      %p120 = scmp.ne.s32.totalorder %s115, %s117
      %p121 = scmp.eq.s32.totalorder %s18, 0
      %p122 = por %p120, %p121
      %p123 = scmp.ne.s32.totalorder %s115, %s117
      %p124 = scmp.eq.s32.totalorder %s23, 1
      %p125 = por %p123, %p124
      %p126 = scmp.ne.s32.totalorder %s117, %s118
      %p127 = scmp.eq.s32.totalorder %s23, 0
      %p128 = por %p126, %p127
      %p129 = scmp.ne.s32.totalorder %s117, %s118
      %p130 = scmp.eq.s32.totalorder %s24, 1
      %p131 = por %p129, %p130
      %p133 = scmp.ne.s32.totalorder %s118, %s132
      %p134 = scmp.eq.s32.totalorder %s24, 0
      %p135 = por %p133, %p134
      %s137 = sadd.s32 %s136, 1
      %p140 = scmp.eq.s32.totalorder %s18, 1
      %p141 = scmp.ne.s32.totalorder %s136, %s138
      %p142 = scmp.eq.s32.totalorder %s18, 0
      %p143 = por %p141, %p142
      %p144 = scmp.ne.s32.totalorder %s136, %s138
      %p145 = scmp.eq.s32.totalorder %s23, 1
      %p146 = por %p144, %p145
      %p147 = scmp.ne.s32.totalorder %s138, %s139
      %p148 = scmp.eq.s32.totalorder %s23, 0
      %p149 = por %p147, %p148
      %p150 = scmp.ne.s32.totalorder %s138, %s139
      %p151 = scmp.eq.s32.totalorder %s24, 1
      %p152 = por %p150, %p151
      %p154 = scmp.ne.s32.totalorder %s139, %s153
      %p155 = scmp.eq.s32.totalorder %s24, 0
      %p156 = por %p154, %p155
      %s158 = sadd.s32 %s157, 1
      %p161 = scmp.eq.s32.totalorder %s18, 1
      %p162 = scmp.ne.s32.totalorder %s157, %s159
      %p163 = scmp.eq.s32.totalorder %s18, 0
      %p164 = por %p162, %p163
      %p165 = scmp.ne.s32.totalorder %s157, %s159
      %p166 = scmp.eq.s32.totalorder %s23, 1
      %p167 = por %p165, %p166
      %p168 = scmp.ne.s32.totalorder %s159, %s160
      %p169 = scmp.eq.s32.totalorder %s23, 0
      %p170 = por %p168, %p169
      %p171 = scmp.ne.s32.totalorder %s159, %s160
      %p172 = scmp.eq.s32.totalorder %s24, 1
      %p173 = por %p171, %p172
      %p175 = scmp.ne.s32.totalorder %s160, %s174
      %p176 = scmp.eq.s32.totalorder %s24, 0
      %p177 = por %p175, %p176
      %s179 = sadd.s32 %s178, 1
      %p182 = scmp.eq.s32.totalorder %s18, 1
      %p183 = scmp.ne.s32.totalorder %s178, %s180
      %p184 = scmp.eq.s32.totalorder %s18, 0
      %p185 = por %p183, %p184
      %p186 = scmp.ne.s32.totalorder %s178, %s180
      %p187 = scmp.eq.s32.totalorder %s23, 1
      %p188 = por %p186, %p187
      %p189 = scmp.ne.s32.totalorder %s180, %s181
      %p190 = scmp.eq.s32.totalorder %s23, 0
      %p191 = por %p189, %p190
      %p192 = scmp.ne.s32.totalorder %s180, %s181
      %p193 = scmp.eq.s32.totalorder %s24, 1
      %p194 = por %p192, %p193
      %p196 = scmp.ne.s32.totalorder %s181, %s195
      %p197 = scmp.eq.s32.totalorder %s24, 0
      %p198 = por %p196, %p197
      %s200 = sadd.s32 %s199, 1
      %p203 = scmp.eq.s32.totalorder %s18, 1
      %p204 = scmp.ne.s32.totalorder %s199, %s201
      %p205 = scmp.eq.s32.totalorder %s18, 0
      %p206 = por %p204, %p205
      %p207 = scmp.ne.s32.totalorder %s199, %s201
      %p208 = scmp.eq.s32.totalorder %s23, 1
      %p209 = por %p207, %p208
      %p210 = scmp.ne.s32.totalorder %s201, %s202
      %p211 = scmp.eq.s32.totalorder %s23, 0
      %p212 = por %p210, %p211
      %p213 = scmp.ne.s32.totalorder %s201, %s202
      %p214 = scmp.eq.s32.totalorder %s24, 1
      %p215 = por %p213, %p214
      %p217 = scmp.ne.s32.totalorder %s202, %s216
      %p218 = scmp.eq.s32.totalorder %s24, 0
      %p219 = por %p217, %p218
      %s220 = ssub.s32 %s18, %s25
      %p221 = scmp.eq.s32.totalorder %s220, 0
      %s223 = sadd.s32 %s222, 1
      %s224 = scalar_select %p221, %s222, %s223
      %p227 = pneg %p221
      %p228 = scmp.eq.s32.totalorder %s18, 1
      %p229 = por %p227, %p228
      %p230 = scmp.ne.s32.totalorder %s222, %s225
      %p231 = scmp.eq.s32.totalorder %s18, 0
      %p232 = por %p230, %p231
      %p233 = scmp.ne.s32.totalorder %s222, %s225
      %p234 = scmp.eq.s32.totalorder %s23, 1
      %p235 = por %p233, %p234
      %p236 = scmp.ne.s32.totalorder %s225, %s226
      %p237 = scmp.eq.s32.totalorder %s23, 0
      %p238 = por %p236, %p237
      %p239 = scmp.ne.s32.totalorder %s225, %s226
      %p240 = scmp.eq.s32.totalorder %s24, 1
      %p241 = por %p239, %p240
      %p243 = scmp.ne.s32.totalorder %s226, %s242
      %p244 = scmp.eq.s32.totalorder %s24, 0
      %p245 = por %p243, %p244
      %p246 = scmp.le.s32.totalorder 1, %s18
      %p247 = scmp.lt.s32.totalorder %s18, 3
      %p248 = pnand %p246, %p247
      %p249 = pneg %p248
      // Predicated region
      $region9: #{cppd_head_forward_test.19} parent=5 // pred_check
        _
      $region10: #{cppd_head_forward_test.19} parent=5 // pred_check_branch
        %251 = sbr.rel (%p248) target = $region12
      $region11: #{cppd_head_forward_test.19} parent=5 // pred_region
        %s252 = ssub.s32 %s18, 1
        // Predicated region
        $region13: #{cppd_head_forward_test.19} parent=11 // pred_check
          %p253 = pneg %p65
        $region14: #{cppd_head_forward_test.19} parent=11 // pred_check_branch
          %255 = sbr.rel (%p253) target = $region16
        $region15: #{cppd_head_forward_test.19} parent=11 // pred_region
          _
        $region16: #{cppd_head_forward_test.19} parent=11 // pred_fallthru
          _
        // Predicated region
        $region17: #{cppd_head_forward_test.19} parent=11 // pred_check
          %p256 = pneg %p86
        $region18: #{cppd_head_forward_test.19} parent=11 // pred_check_branch
          %258 = sbr.rel (%p256) target = $region20
        $region19: #{cppd_head_forward_test.19} parent=11 // pred_region
          _
        $region20: #{cppd_head_forward_test.19} parent=11 // pred_fallthru
          _
        // Predicated region
        $region21: #{cppd_head_forward_test.19} parent=11 // pred_check
          %p259 = pneg %p107
        $region22: #{cppd_head_forward_test.19} parent=11 // pred_check_branch
          %261 = sbr.rel (%p259) target = $region24
        $region23: #{cppd_head_forward_test.19} parent=11 // pred_region
          _
        $region24: #{cppd_head_forward_test.19} parent=11 // pred_fallthru
          _
        // Predicated region
        $region25: #{cppd_head_forward_test.19} parent=11 // pred_check
          %p262 = pneg %p128
        $region26: #{cppd_head_forward_test.19} parent=11 // pred_check_branch
          %264 = sbr.rel (%p262) target = $region28
        $region27: #{cppd_head_forward_test.19} parent=11 // pred_region
          _
        $region28: #{cppd_head_forward_test.19} parent=11 // pred_fallthru
          _
        // Predicated region
        $region29: #{cppd_head_forward_test.19} parent=11 // pred_check
          %p265 = pneg %p149
        $region30: #{cppd_head_forward_test.19} parent=11 // pred_check_branch
          %267 = sbr.rel (%p265) target = $region32
        $region31: #{cppd_head_forward_test.19} parent=11 // pred_region
          _
        $region32: #{cppd_head_forward_test.19} parent=11 // pred_fallthru
          _
        // Predicated region
        $region33: #{cppd_head_forward_test.19} parent=11 // pred_check
          %p268 = pneg %p170
        $region34: #{cppd_head_forward_test.19} parent=11 // pred_check_branch
          %270 = sbr.rel (%p268) target = $region36
        $region35: #{cppd_head_forward_test.19} parent=11 // pred_region
          _
        $region36: #{cppd_head_forward_test.19} parent=11 // pred_fallthru
          _
        // Predicated region
        $region37: #{cppd_head_forward_test.19} parent=11 // pred_check
          %p271 = pneg %p191
        $region38: #{cppd_head_forward_test.19} parent=11 // pred_check_branch
          %273 = sbr.rel (%p271) target = $region40
        $region39: #{cppd_head_forward_test.19} parent=11 // pred_region
          _
        $region40: #{cppd_head_forward_test.19} parent=11 // pred_fallthru
          _
        // Predicated region
        $region41: #{cppd_head_forward_test.19} parent=11 // pred_check
          %p274 = pneg %p212
        $region42: #{cppd_head_forward_test.19} parent=11 // pred_check_branch
          %276 = sbr.rel (%p274) target = $region44
        $region43: #{cppd_head_forward_test.19} parent=11 // pred_region
          _
        $region44: #{cppd_head_forward_test.19} parent=11 // pred_fallthru
          _
      $region12: #{cppd_head_forward_test.19} parent=5 // pred_fallthru
        _
      %p277 = scmp.lt.s32.totalorder %s18, 2
      // Predicated region
      $region45: #{cppd_head_forward_test.19} parent=5 // pred_check
        %p278 = pneg %p277
      $region46: #{cppd_head_forward_test.19} parent=5 // pred_check_branch
        %280 = sbr.rel (%p278) target = $region48
      $region47: #{cppd_head_forward_test.19} parent=5 // pred_region
        // Predicated region
        $region49: #{cppd_head_forward_test.19} parent=47 // pred_check
          %p281 = pneg %p38
        $region50: #{cppd_head_forward_test.19} parent=47 // pred_check_branch
          %283 = sbr.rel (%p281) target = $region52
        $region51: #{cppd_head_forward_test.19} parent=47 // pred_region
          %p284 = scmp.lt.s32.totalorder %s18, 1
          %s285 = scalar_select %p284, %s18, 1
          %s286 = smul.addr %s285, 4
          %s287 = scalar_lea.vmem %s0, %s286
        $region52: #{cppd_head_forward_test.19} parent=47 // pred_fallthru
          _
      $region48: #{cppd_head_forward_test.19} parent=5 // pred_fallthru
        _
      %p288 = scmp.le.s32.totalorder 1, %s18
      %p289 = scmp.lt.s32.totalorder %s18, 3
      %p290 = pnand %p288, %p289
      %p291 = pneg %p290
      // Predicated region
      $region53: #{cppd_head_forward_test.19} parent=5 // pred_check
        _
      $region54: #{cppd_head_forward_test.19} parent=5 // pred_check_branch
        %293 = sbr.rel (%p290) target = $region56
      $region55: #{cppd_head_forward_test.19} parent=5 // pred_region
        %s294 = ssub.s32 %s18, 1
        %p295 = scmp.lt.s32.totalorder %s23, 1
        %s296 = scalar_select %p295, %s23, 1
        %s297 = smul.addr %s296, 4
        %s298 = scalar_lea.vmem %s0, %s297
        %p299 = pneg %p44
        %p300 = pneg %p41
        %p301 = pneg %p65
        %p302 = pneg %p62
        %p303 = pneg %p86
        %p304 = pneg %p83
        %p305 = pneg %p107
        %p306 = pneg %p104
        %p307 = pneg %p128
        %p308 = pneg %p125
        %p309 = pneg %p149
        %p310 = pneg %p146
        %p311 = pneg %p170
        %p312 = pneg %p167
        %p313 = pneg %p191
        %p314 = pneg %p188
        %p315 = pneg %p212
        %p316 = pneg %p209
        %p317 = pneg %p238
        %p318 = pneg %p235
        %s319 = sand.u32 %s225, 1
        %s320 = scalar_lea.sflag [#allocation3], %s319
        %s321 = sand.u32 %s225, 1
        %s322 = smul.addr %s321, 8
        %s323 = scalar_lea.vmem [#allocation2], %s322
        %p324 = scmp.lt.s32.totalorder %s23, 1
        %s325 = scalar_select %p324, %s23, 1
        %s326 = smul.addr %s325, 4
        %s327 = scalar_lea.vmem %s0, %s326
        %v329 = vld [vmem:[%s327] sm:$0xf]
        %v330 = vld [vmem:[%s1] sm:$0xff]
        %v331 = vld [vmem:[%s1 + $0x8] sm:$0xff]
        %v332 = vld [vmem:[%s1 + $0x10] sm:$0xff]
        %v333 = vld [vmem:[%s1 + $0x18] sm:$0xff]
        %v334 = vld [vmem:[%s1 + $0x20] sm:$0xff]
        %v335 = vld [vmem:[%s1 + $0x28] sm:$0xff]
        %v336 = vld [vmem:[%s1 + $0x30] sm:$0xff]
        %v337 = vld [vmem:[%s1 + $0x38] sm:$0xff]
        %v338 = vld [vmem:[%s2] sm:$0x3]
        %v339 = vld [vmem:[%s3] sm:$0xf]
        %v340 = vld [vmem:[%s3 + $0x4] sm:$0xf]
        %v341 = vld [vmem:[%s3 + $0x8] sm:$0xf]
        %v342 = vld [vmem:[%s3 + $0xc] sm:$0xf]
        %v343 = vld [vmem:[%s3 + $0x10] sm:$0xf]
        %v344 = vld [vmem:[%s3 + $0x14] sm:$0xf]
        %v345 = vld [vmem:[%s3 + $0x18] sm:$0xf]
        %v346 = vld [vmem:[%s3 + $0x1c] sm:$0xf]
        %v347 = vld [vmem:[%s3 + $0x20] sm:$0xf]
        %v348 = vld [vmem:[%s3 + $0x24] sm:$0xf]
        %v349 = vld [vmem:[%s3 + $0x28] sm:$0xf]
        %v350 = vld [vmem:[%s3 + $0x2c] sm:$0xf]
        %v351 = vld [vmem:[%s3 + $0x30] sm:$0xf]
        %v352 = vld [vmem:[%s3 + $0x34] sm:$0xf]
        %v353 = vld [vmem:[%s3 + $0x38] sm:$0xf]
        %v354 = vld [vmem:[%s3 + $0x3c] sm:$0xf]
        %v355 = vld [vmem:[%s3 + $0x40] sm:$0xf]
        %v356 = vld [vmem:[%s3 + $0x44] sm:$0xf]
        %v357 = vld [vmem:[%s3 + $0x48] sm:$0xf]
        %v358 = vld [vmem:[%s3 + $0x4c] sm:$0xf]
        %v359 = vld [vmem:[%s3 + $0x50] sm:$0xf]
        %v360 = vld [vmem:[%s3 + $0x54] sm:$0xf]
        %v361 = vld [vmem:[%s3 + $0x58] sm:$0xf]
        %v362 = vld [vmem:[%s3 + $0x5c] sm:$0xf]
        %v363 = vld [vmem:[%s3 + $0x60] sm:$0xf]
        %v364 = vld [vmem:[%s3 + $0x64] sm:$0xf]
        %v365 = vld [vmem:[%s3 + $0x68] sm:$0xf]
        %v366 = vld [vmem:[%s3 + $0x6c] sm:$0xf]
        %v367 = vld [vmem:[%s3 + $0x70] sm:$0xf]
        %v368 = vld [vmem:[%s3 + $0x74] sm:$0xf]
        %v369 = vld [vmem:[%s3 + $0x78] sm:$0xf]
        %v370 = vld [vmem:[%s3 + $0x7c] sm:$0xf]
        %v371 = vld [vmem:[%s4] sm:$0x1]
        %v372 = vld [vmem:[%s5] sm:$0x1]
        %v373 = vld [vmem:[%s6] sm:$0x1]
        %v375 = vlaneseq
        %v376 = vshrl.u32 %v375, 7
        %v377 = vsub.s32 0, %v376
        %v378 = vrot.slane %v338, %v377
        %v379 = vlaneseq
        %v380 = vshrl.u32 %v379, 7
        %v381 = vsub.s32 1, %v380
        %v382 = vrot.slane %v338, %v381
        %v393 = vunpack.c.l.b16 %v330
        %v394 = vunpack.c.h.b16 %v330
        %v395 = vunpack.c.l.b16 %v331
        %v396 = vunpack.c.h.b16 %v331
        %v397 = vunpack.c.l.b16 %v332
        %v398 = vunpack.c.h.b16 %v332
        %v399 = vunpack.c.l.b16 %v333
        %v400 = vunpack.c.h.b16 %v333
        %v401 = vunpack.c.l.b16 %v334
        %v402 = vunpack.c.h.b16 %v334
        %v403 = vunpack.c.l.b16 %v335
        %v404 = vunpack.c.h.b16 %v335
        %v405 = vunpack.c.l.b16 %v336
        %v406 = vunpack.c.h.b16 %v336
        %v407 = vunpack.c.l.b16 %v337
        %v408 = vunpack.c.h.b16 %v337
        %v409 = vpack.c.b16 %v395, %v393
        %v410 = vpack.c.b16 %v396, %v394
        %v411 = vpack.c.b16 %v399, %v397
        %v412 = vpack.c.b16 %v400, %v398
        %v413 = vpack.c.b16 %v403, %v401
        %v414 = vpack.c.b16 %v404, %v402
        %v415 = vpack.c.b16 %v407, %v405
        %v416 = vpack.c.b16 %v408, %v406
        %vm425 = vcmask 523264
        %v427 = vsel %vm425, %v329, 0
        %429 = vmatprep.subr.bf16.mxu0 %v410
        %430 = vmatpush1.bf16.msra.mxu0 %v409
        %431 = vmatprep.subr.bf16.mxu0 %v412
        %432 = vmatpush1.bf16.msra.mxu0 %v411
        %433 = vmatprep.subr.bf16.mxu0 %v414
        %434 = vmatpush1.bf16.msra.mxu0 %v413
        %435 = vmatprep.subr.bf16.mxu0 %v416
        %436 = vmatpush1.bf16.msra.mxu0 %v415
        %437 = vmatprep.subr.bf16.mxu0 0
        %438 = vmatpush1.bf16.msra.mxu0 0
        %439 = vmatprep.subr.bf16.mxu0 0
        %440 = vmatpush1.bf16.msra.mxu0 0
        %441 = vmatprep.subr.bf16.mxu0 0
        %442 = vmatpush1.bf16.msra.mxu0 0
        %443 = vmatprep.subr.bf16.mxu0 0
        %444 = vmatpush1.bf16.msra.mxu0 0
        %445 = vmatprep.subr.bf16.mxu0 0
        %446 = vmatpush1.bf16.msra.mxu0 0
        %447 = vmatprep.subr.bf16.mxu0 0
        %448 = vmatpush1.bf16.msra.mxu0 0
        %449 = vmatprep.subr.bf16.mxu0 0
        %450 = vmatpush1.bf16.msra.mxu0 0
        %451 = vmatprep.subr.bf16.mxu0 0
        %452 = vmatpush1.bf16.msra.mxu0 0
        %453 = vmatprep.subr.bf16.mxu0 0
        %454 = vmatpush1.bf16.msra.mxu0 0
        %455 = vmatprep.subr.bf16.mxu0 0
        %456 = vmatpush1.bf16.msra.mxu0 0
        %457 = vmatprep.subr.bf16.mxu0 0
        %458 = vmatpush1.bf16.msra.mxu0 0
        %459 = vmatprep.subr.bf16.mxu0 0
        %460 = vmatpush1.bf16.msra.mxu0 0
        %461 = vmatprep.mubr.bf16.mxu0 0
        %462 = vmatmul.mubr.bf16.gmra.mrb[0].mxu0 %v427
        %v463 = vpop.f32.mrb[0].mxu0
        %v464 = vadd.f32 %v378, %v463
        %v465 = vpop.f32.mrb[0].mxu0
        %v466 = vadd.f32 %v382, %v465
        %v467 = vpop.f32.mrb[0].mxu0
        %v468 = vpop.f32.mrb[0].mxu0
        %469 = vdwg.mxu0
        %v470 = vmul.f32 %v464, 0.5
        %v471 = vmul.f32 %v466, 0.5
        %v472 = vmul.f32 %v464, 0.70710677
        %v473 = vmul.f32 %v466, 0.70710677
        %v474 = verf.f32.pop %v472
        %v475 = verf.f32.pop %v473
        %v476 = vadd.f32 %v474, 1.0
        %v477 = vadd.f32 %v475, 1.0
        %v478 = vmul.f32 %v470, %v476
        %v479 = vmul.f32 %v471, %v477
        %v480 = vpack.c.bf16 %v478, %v478
        %v481 = vpack.c.bf16 %v479, %v479
        %v483 = vlaneseq
        %v484 = vshrl.u32 %v483, 7
        %v485 = vsub.s32 0, %v484
        %v486 = vrot.slane %v371, %v485
        %v520 = vunpack.c.l.b16 %v339
        %v521 = vunpack.c.l.b16 %v340
        %v522 = vunpack.c.l.b16 %v341
        %v523 = vunpack.c.l.b16 %v342
        %v524 = vunpack.c.l.b16 %v343
        %v525 = vunpack.c.l.b16 %v344
        %v526 = vunpack.c.l.b16 %v345
        %v527 = vunpack.c.l.b16 %v346
        %v528 = vunpack.c.l.b16 %v347
        %v529 = vunpack.c.l.b16 %v348
        %v530 = vunpack.c.l.b16 %v349
        %v531 = vunpack.c.l.b16 %v350
        %v532 = vunpack.c.l.b16 %v351
        %v533 = vunpack.c.l.b16 %v352
        %v534 = vunpack.c.l.b16 %v353
        %v535 = vunpack.c.l.b16 %v354
        %v536 = vunpack.c.l.b16 %v355
        %v537 = vunpack.c.l.b16 %v356
        %v538 = vunpack.c.l.b16 %v357
        %v539 = vunpack.c.l.b16 %v358
        %v540 = vunpack.c.l.b16 %v359
        %v541 = vunpack.c.l.b16 %v360
        %v542 = vunpack.c.l.b16 %v361
        %v543 = vunpack.c.l.b16 %v362
        %v544 = vunpack.c.l.b16 %v363
        %v545 = vunpack.c.l.b16 %v364
        %v546 = vunpack.c.l.b16 %v365
        %v547 = vunpack.c.l.b16 %v366
        %v548 = vunpack.c.l.b16 %v367
        %v549 = vunpack.c.l.b16 %v368
        %v550 = vunpack.c.l.b16 %v369
        %v551 = vunpack.c.l.b16 %v370
        %v552 = vpack.c.b16 %v521, %v520
        %v553 = vpack.c.b16 %v523, %v522
        %v554 = vpack.c.b16 %v525, %v524
        %v555 = vpack.c.b16 %v527, %v526
        %v556 = vpack.c.b16 %v529, %v528
        %v557 = vpack.c.b16 %v531, %v530
        %v558 = vpack.c.b16 %v533, %v532
        %v559 = vpack.c.b16 %v535, %v534
        %v560 = vpack.c.b16 %v537, %v536
        %v561 = vpack.c.b16 %v539, %v538
        %v562 = vpack.c.b16 %v541, %v540
        %v563 = vpack.c.b16 %v543, %v542
        %v564 = vpack.c.b16 %v545, %v544
        %v565 = vpack.c.b16 %v547, %v546
        %v566 = vpack.c.b16 %v549, %v548
        %v567 = vpack.c.b16 %v551, %v550
        %584 = vmatprep.subr.bf16.mxu0 0
        %585 = vmatpush1.bf16.msra.mxu0 %v552
        %586 = vmatprep.subr.bf16.mxu0 0
        %587 = vmatpush1.bf16.msra.mxu0 %v553
        %588 = vmatprep.subr.bf16.mxu0 0
        %589 = vmatpush1.bf16.msra.mxu0 %v554
        %590 = vmatprep.subr.bf16.mxu0 0
        %591 = vmatpush1.bf16.msra.mxu0 %v555
        %592 = vmatprep.subr.bf16.mxu0 0
        %593 = vmatpush1.bf16.msra.mxu0 %v556
        %594 = vmatprep.subr.bf16.mxu0 0
        %595 = vmatpush1.bf16.msra.mxu0 %v557
        %596 = vmatprep.subr.bf16.mxu0 0
        %597 = vmatpush1.bf16.msra.mxu0 %v558
        %598 = vmatprep.subr.bf16.mxu0 0
        %599 = vmatpush1.bf16.msra.mxu0 %v559
        %600 = vmatprep.subr.bf16.mxu0 0
        %601 = vmatpush1.bf16.msra.mxu0 %v560
        %602 = vmatprep.subr.bf16.mxu0 0
        %603 = vmatpush1.bf16.msra.mxu0 %v561
        %604 = vmatprep.subr.bf16.mxu0 0
        %605 = vmatpush1.bf16.msra.mxu0 %v562
        %606 = vmatprep.subr.bf16.mxu0 0
        %607 = vmatpush1.bf16.msra.mxu0 %v563
        %608 = vmatprep.subr.bf16.mxu0 0
        %609 = vmatpush1.bf16.msra.mxu0 %v564
        %610 = vmatprep.subr.bf16.mxu0 0
        %611 = vmatpush1.bf16.msra.mxu0 %v565
        %612 = vmatprep.subr.bf16.mxu0 0
        %613 = vmatpush1.bf16.msra.mxu0 %v566
        %614 = vmatprep.subr.bf16.mxu0 0
        %615 = vmatpush1.bf16.msra.mxu0 %v567
        %616 = vmatprep.mubr.bf16.mxu0 %v481
        %617 = vmatmul.mubr.bf16.gmra.mrb[0].mxu0 %v480
        %v618 = vpop.f32.mrb[0].mxu0
        %v619 = vadd.f32 %v486, %v618
        %v620 = vpop.f32.mrb[0].mxu0
        %v621 = vpop.f32.mrb[0].mxu0
        %v622 = vpop.f32.mrb[0].mxu0
        %623 = vdwg.mxu0
        %v624 = vunpack.c.l.bf16 %v329
        %v625 = vadd.f32 %v624, %v619
        %v626 = vsel %vm425, %v625, 0.0
        %627 = vadd.xlane.f32.xlu0 %v626
        %v628 = vpop.xlane.xlu0 %627
        %v629 = vrcp.pop 64.0
        %v630 = vmul.f32 %v628, %v629
        %v631 = vsub.f32 %v625, %v630
        %v632 = vmul.f32 %v631, %v631
        %v633 = vsel %vm425, %v632, 0.0
        %634 = vadd.xlane.f32.xlu0 %v633
        %v635 = vpop.xlane.xlu0 %634
        %v636 = vmul.f32 %v635, %v629
        %v637 = vadd.f32 %v636, 1e-06
        %v638 = vrsqrt.pop %v637
        %v639 = vmul.f32 %v631, %v638
        %v641 = vlaneseq
        %v642 = vshrl.u32 %v641, 7
        %v643 = vsub.s32 0, %v642
        %v644 = vrot.slane %v372, %v643
        %v646 = vmul.f32 %v639, %v644
        %v648 = vlaneseq
        %v649 = vshrl.u32 %v648, 7
        %v650 = vsub.s32 0, %v649
        %v651 = vrot.slane %v373, %v650
        %v653 = vadd.f32 %v646, %v651
        %v654 = vpack.c.bf16 %v653, %v653
        %v655 = vld [vmem:[%s7] sm:$0xf]
        %v656 = vld [vmem:[%s7 + $0x4] sm:$0xf]
        %v657 = vld [vmem:[%s7 + $0x8] sm:$0xf]
        %v658 = vld [vmem:[%s7 + $0xc] sm:$0xf]
        %v659 = vld [vmem:[%s7 + $0x10] sm:$0xf]
        %v660 = vld [vmem:[%s7 + $0x14] sm:$0xf]
        %v661 = vld [vmem:[%s7 + $0x18] sm:$0xf]
        %v662 = vld [vmem:[%s7 + $0x1c] sm:$0xf]
        %v663 = vld [vmem:[%s8] sm:$0x1]
        %v665 = vlaneseq
        %v666 = vshrl.u32 %v665, 7
        %v667 = vsub.s32 0, %v666
        %v668 = vrot.slane %v663, %v667
        %v678 = vunpack.c.l.b16 %v655
        %v679 = vunpack.c.l.b16 %v656
        %v680 = vunpack.c.l.b16 %v657
        %v681 = vunpack.c.l.b16 %v658
        %v682 = vunpack.c.l.b16 %v659
        %v683 = vunpack.c.l.b16 %v660
        %v684 = vunpack.c.l.b16 %v661
        %v685 = vunpack.c.l.b16 %v662
        %v686 = vpack.c.b16 %v679, %v678
        %v687 = vpack.c.b16 %v681, %v680
        %v688 = vpack.c.b16 %v683, %v682
        %v689 = vpack.c.b16 %v685, %v684
        %v695 = vsel %vm425, %v654, 0
        %697 = vmatprep.subr.bf16.mxu0 0
        %698 = vmatpush1.bf16.msra.mxu0 %v686
        %699 = vmatprep.subr.bf16.mxu0 0
        %700 = vmatpush1.bf16.msra.mxu0 %v687
        %701 = vmatprep.subr.bf16.mxu0 0
        %702 = vmatpush1.bf16.msra.mxu0 %v688
        %703 = vmatprep.subr.bf16.mxu0 0
        %704 = vmatpush1.bf16.msra.mxu0 %v689
        %705 = vmatprep.subr.bf16.mxu0 0
        %706 = vmatpush1.bf16.msra.mxu0 0
        %707 = vmatprep.subr.bf16.mxu0 0
        %708 = vmatpush1.bf16.msra.mxu0 0
        %709 = vmatprep.subr.bf16.mxu0 0
        %710 = vmatpush1.bf16.msra.mxu0 0
        %711 = vmatprep.subr.bf16.mxu0 0
        %712 = vmatpush1.bf16.msra.mxu0 0
        %713 = vmatprep.subr.bf16.mxu0 0
        %714 = vmatpush1.bf16.msra.mxu0 0
        %715 = vmatprep.subr.bf16.mxu0 0
        %716 = vmatpush1.bf16.msra.mxu0 0
        %717 = vmatprep.subr.bf16.mxu0 0
        %718 = vmatpush1.bf16.msra.mxu0 0
        %719 = vmatprep.subr.bf16.mxu0 0
        %720 = vmatpush1.bf16.msra.mxu0 0
        %721 = vmatprep.subr.bf16.mxu0 0
        %722 = vmatpush1.bf16.msra.mxu0 0
        %723 = vmatprep.subr.bf16.mxu0 0
        %724 = vmatpush1.bf16.msra.mxu0 0
        %725 = vmatprep.subr.bf16.mxu0 0
        %726 = vmatpush1.bf16.msra.mxu0 0
        %727 = vmatprep.subr.bf16.mxu0 0
        %728 = vmatpush1.bf16.msra.mxu0 0
        %729 = vmatprep.mubr.bf16.mxu0 0
        %730 = vmatmul.mubr.bf16.gmra.mrb[0].mxu0 %v695
        %v731 = vpop.f32.mrb[0].mxu0
        %v732 = vadd.f32 %v668, %v731
        %v733 = vpop.f32.mrb[0].mxu0
        %v734 = vpop.f32.mrb[0].mxu0
        %v735 = vpop.f32.mrb[0].mxu0
        %736 = vdwg.mxu0
        %737 = vst [vmem:[%s323] sm:$0xff] %v732
        %s738 = sand.u32 %s225, 1
        %s739 = scalar_lea.sflag [#allocation3], %s738
        %s740 = sand.u32 %s225, 1
        %s741 = smul.addr %s740, 8
        %s742 = scalar_lea.vmem [#allocation2], %s741
        // Predicated region
        $region57: #{cppd_head_forward_test.19} parent=55 // pred_check
          %p743 = pneg %p235
        $region58: #{cppd_head_forward_test.19} parent=55 // pred_check_branch
          %745 = sbr.rel (%p743) target = $region60
        $region59: #{cppd_head_forward_test.19} parent=55 // pred_region
          %s747 = ssub.s32 128, 128
          %748 = vsyncadd %s739, %s747
          %s749 = smul.addr %s23, 128
          %s750 = scalar_lea.hbm %s9, %s749
          %s752 = sshll.u32 %s742, 4
          %s753 = int_to_ptr.vmem [resolvable:$true] %s752
          %755 = dma.vmem_to_hbm [thread:$0]  %s753, 128, %s750, %s739
        $region60: #{cppd_head_forward_test.19} parent=55 // pred_fallthru
          _
      $region56: #{cppd_head_forward_test.19} parent=5 // pred_fallthru
        _
      %p756 = scmp.le.s32.totalorder 2, %s18
      // Predicated region
      $region61: #{cppd_head_forward_test.19} parent=5 // pred_check
        %p757 = pneg %p756
      $region62: #{cppd_head_forward_test.19} parent=5 // pred_check_branch
        %759 = sbr.rel (%p757) target = $region64
      $region63: #{cppd_head_forward_test.19} parent=5 // pred_region
        %s760 = ssub.s32 %s18, 2
        // Predicated region
        $region65: #{cppd_head_forward_test.19} parent=63 // pred_check
          %p761 = pneg %p241
        $region66: #{cppd_head_forward_test.19} parent=63 // pred_check_branch
          %763 = sbr.rel (%p761) target = $region68
        $region67: #{cppd_head_forward_test.19} parent=63 // pred_region
          %s764 = sand.u32 %s226, 1
          %s765 = scalar_lea.sflag [#allocation3], %s764
          %s766 = sand.u32 %s226, 1
          %s767 = smul.addr %s766, 8
          %s768 = scalar_lea.vmem [#allocation2], %s767
          %769 = dma.done %s765, 128
        $region68: #{cppd_head_forward_test.19} parent=63 // pred_fallthru
          _
      $region64: #{cppd_head_forward_test.19} parent=5 // pred_fallthru
        _
    $region6: #{cppd_head_forward_test.19} parent=1 // loop_footer
      %s22 = sadd.s32 1, %s18
    $region7: #{cppd_head_forward_test.19} parent=1 // loop_footer_branch
      %17 = sbr.rel target = $region3
    $region8: #{cppd_head_forward_test.19} parent=1 // loop_exit
      _
    %770 = vsyncpa [#allocation3], 1
    %s771 = scalar_lea.sflag [#allocation3], 1
    %772 = vsyncpa %s771, 1

// kernel: cppd_head_forward_test.18
$region0: #{cppd_head_forward_test.18}
  #allocation0 [shape = 'u32[]', space=smem, size = 0x4, offset = 0x4, fixed_abs, tag = 'smem constant byte address 0x4 - core index']
  #allocation1 [shape = 'u32[144,128]{1,0:T(1,128)}', space=vmem, size = 0x12000, scoped, tag = 'internal scratch']
  %s0 = inlined_call_operand.vmem [shape: bf16[2,24,64], index: 0, kind: input, shape index: {}]
  %s1 = inlined_call_operand.vmem [shape: bf16[2,16,64], index: 1, kind: input, shape index: {}]
  %s2 = inlined_call_operand.vmem [shape: bf16[64,64], index: 2, kind: input, shape index: {}]
  %s3 = inlined_call_operand.vmem [shape: f32[1,64], index: 3, kind: input, shape index: {}]
  %s4 = inlined_call_operand.vmem [shape: bf16[64,64], index: 4, kind: input, shape index: {}]
  %s5 = inlined_call_operand.vmem [shape: f32[1,64], index: 5, kind: input, shape index: {}]
  %s6 = inlined_call_operand.vmem [shape: bf16[64,64], index: 6, kind: input, shape index: {}]
  %s7 = inlined_call_operand.vmem [shape: f32[1,64], index: 7, kind: input, shape index: {}]
  %s8 = inlined_call_operand.vmem [shape: bf16[64,64], index: 8, kind: input, shape index: {}]
  %s9 = inlined_call_operand.vmem [shape: f32[1,64], index: 9, kind: input, shape index: {}]
  %s10 = inlined_call_operand.vmem [shape: f32[1,64], index: 10, kind: input, shape index: {}]
  %s11 = inlined_call_operand.vmem [shape: f32[1,64], index: 11, kind: input, shape index: {}]
  %s12 = inlined_call_operand.vmem [shape: bf16[2,8,64], index: 12, kind: output, shape index: {}]
  %s13 = sld [smem:[#allocation0]]
  $region81: #{cppd_head_forward_test.18} parent=0
    _
  %s15 = ssub.s32 1, %s13
  %s16 = scalar_select 0, %s15, %s13
  loop: start=0, step=1, limit=4
  $region2: #{cppd_head_forward_test.18} parent=0 // loop_pre_header
    _
  $region3: #{cppd_head_forward_test.18} parent=0 // loop_header
    %s18 = sphi 0, %s22
    %p19 = scmp.ge.s32.totalorder %s18, 4
    %s28 = sphi 0, %s30
    %s31 = sphi 0, %s28
    %s32 = sphi 0, %s31
    %s48 = sphi 0, %s32
    %s54 = sphi 0, %s56
    %s57 = sphi 0, %s54
    %s58 = sphi 0, %s57
    %s74 = sphi 0, %s58
    %s78 = sphi 0, %s78
    %s80 = sphi 0, %s78
    %s81 = sphi 0, %s80
    %s95 = sphi 0, %s81
    %s99 = sphi 0, %s99
    %s101 = sphi 0, %s99
    %s102 = sphi 0, %s101
    %s116 = sphi 0, %s102
    %s120 = sphi 0, %s120
    %s122 = sphi 0, %s120
    %s123 = sphi 0, %s122
    %s137 = sphi 0, %s123
    %s141 = sphi 0, %s141
    %s143 = sphi 0, %s141
    %s144 = sphi 0, %s143
    %s158 = sphi 0, %s144
    %s162 = sphi 0, %s162
    %s164 = sphi 0, %s162
    %s165 = sphi 0, %s164
    %s179 = sphi 0, %s165
    %s183 = sphi 0, %s183
    %s185 = sphi 0, %s183
    %s186 = sphi 0, %s185
    %s200 = sphi 0, %s186
    %s204 = sphi 0, %s204
    %s206 = sphi 0, %s204
    %s207 = sphi 0, %s206
    %s221 = sphi 0, %s207
    %s225 = sphi 0, %s225
    %s227 = sphi 0, %s225
    %s228 = sphi 0, %s227
    %s242 = sphi 0, %s228
    %s246 = sphi 0, %s246
    %s248 = sphi 0, %s246
    %s249 = sphi 0, %s248
    %s263 = sphi 0, %s249
    %s267 = sphi 0, %s267
    %s269 = sphi 0, %s267
    %s270 = sphi 0, %s269
    %s284 = sphi 0, %s270
    %s290 = sphi 0, %s292
    %s293 = sphi 0, %s290
    %s294 = sphi 0, %s293
    %s310 = sphi 0, %s294
  $region4: #{cppd_head_forward_test.18} parent=0 // loop_header_branch
    %21 = sbr.rel (%p19) target = $region8
  $region5: #{cppd_head_forward_test.18} parent=0 // loop_body
    %s23 = ssub.s32 %s18, 1
    %s24 = ssub.s32 %s18, 2
    %s25 = sadd.s32 %s18, 1
    %s26 = ssub.s32 %s18, %s25
    %p27 = scmp.eq.s32.totalorder %s26, 0
    %s29 = sadd.s32 %s28, 1
    %s30 = scalar_select %p27, %s28, %s29
    %p33 = pneg %p27
    %p34 = scmp.eq.s32.totalorder %s18, 1
    %p35 = por %p33, %p34
    %p36 = scmp.ne.s32.totalorder %s28, %s31
    %p37 = scmp.eq.s32.totalorder %s18, 0
    %p38 = por %p36, %p37
    %p39 = scmp.ne.s32.totalorder %s28, %s31
    %p40 = scmp.eq.s32.totalorder %s23, 1
    %p41 = por %p39, %p40
    %p42 = scmp.ne.s32.totalorder %s31, %s32
    %p43 = scmp.eq.s32.totalorder %s23, 0
    %p44 = por %p42, %p43
    %p45 = scmp.ne.s32.totalorder %s31, %s32
    %p46 = scmp.eq.s32.totalorder %s24, 1
    %p47 = por %p45, %p46
    %p49 = scmp.ne.s32.totalorder %s32, %s48
    %p50 = scmp.eq.s32.totalorder %s24, 0
    %p51 = por %p49, %p50
    %s52 = ssub.s32 %s18, %s25
    %p53 = scmp.eq.s32.totalorder %s52, 0
    %s55 = sadd.s32 %s54, 1
    %s56 = scalar_select %p53, %s54, %s55
    %p59 = pneg %p53
    %p60 = scmp.eq.s32.totalorder %s18, 1
    %p61 = por %p59, %p60
    %p62 = scmp.ne.s32.totalorder %s54, %s57
    %p63 = scmp.eq.s32.totalorder %s18, 0
    %p64 = por %p62, %p63
    %p65 = scmp.ne.s32.totalorder %s54, %s57
    %p66 = scmp.eq.s32.totalorder %s23, 1
    %p67 = por %p65, %p66
    %p68 = scmp.ne.s32.totalorder %s57, %s58
    %p69 = scmp.eq.s32.totalorder %s23, 0
    %p70 = por %p68, %p69
    %p71 = scmp.ne.s32.totalorder %s57, %s58
    %p72 = scmp.eq.s32.totalorder %s24, 1
    %p73 = por %p71, %p72
    %p75 = scmp.ne.s32.totalorder %s58, %s74
    %p76 = scmp.eq.s32.totalorder %s24, 0
    %p77 = por %p75, %p76
    %s79 = sadd.s32 %s78, 1
    %p82 = scmp.eq.s32.totalorder %s18, 1
    %p83 = scmp.ne.s32.totalorder %s78, %s80
    %p84 = scmp.eq.s32.totalorder %s18, 0
    %p85 = por %p83, %p84
    %p86 = scmp.ne.s32.totalorder %s78, %s80
    %p87 = scmp.eq.s32.totalorder %s23, 1
    %p88 = por %p86, %p87
    %p89 = scmp.ne.s32.totalorder %s80, %s81
    %p90 = scmp.eq.s32.totalorder %s23, 0
    %p91 = por %p89, %p90
    %p92 = scmp.ne.s32.totalorder %s80, %s81
    %p93 = scmp.eq.s32.totalorder %s24, 1
    %p94 = por %p92, %p93
    %p96 = scmp.ne.s32.totalorder %s81, %s95
    %p97 = scmp.eq.s32.totalorder %s24, 0
    %p98 = por %p96, %p97
    %s100 = sadd.s32 %s99, 1
    %p103 = scmp.eq.s32.totalorder %s18, 1
    %p104 = scmp.ne.s32.totalorder %s99, %s101
    %p105 = scmp.eq.s32.totalorder %s18, 0
    %p106 = por %p104, %p105
    %p107 = scmp.ne.s32.totalorder %s99, %s101
    %p108 = scmp.eq.s32.totalorder %s23, 1
    %p109 = por %p107, %p108
    %p110 = scmp.ne.s32.totalorder %s101, %s102
    %p111 = scmp.eq.s32.totalorder %s23, 0
    %p112 = por %p110, %p111
    %p113 = scmp.ne.s32.totalorder %s101, %s102
    %p114 = scmp.eq.s32.totalorder %s24, 1
    %p115 = por %p113, %p114
    %p117 = scmp.ne.s32.totalorder %s102, %s116
    %p118 = scmp.eq.s32.totalorder %s24, 0
    %p119 = por %p117, %p118
    %s121 = sadd.s32 %s120, 1
    %p124 = scmp.eq.s32.totalorder %s18, 1
    %p125 = scmp.ne.s32.totalorder %s120, %s122
    %p126 = scmp.eq.s32.totalorder %s18, 0
    %p127 = por %p125, %p126
    %p128 = scmp.ne.s32.totalorder %s120, %s122
    %p129 = scmp.eq.s32.totalorder %s23, 1
    %p130 = por %p128, %p129
    %p131 = scmp.ne.s32.totalorder %s122, %s123
    %p132 = scmp.eq.s32.totalorder %s23, 0
    %p133 = por %p131, %p132
    %p134 = scmp.ne.s32.totalorder %s122, %s123
    %p135 = scmp.eq.s32.totalorder %s24, 1
    %p136 = por %p134, %p135
    %p138 = scmp.ne.s32.totalorder %s123, %s137
    %p139 = scmp.eq.s32.totalorder %s24, 0
    %p140 = por %p138, %p139
    %s142 = sadd.s32 %s141, 1
    %p145 = scmp.eq.s32.totalorder %s18, 1
    %p146 = scmp.ne.s32.totalorder %s141, %s143
    %p147 = scmp.eq.s32.totalorder %s18, 0
    %p148 = por %p146, %p147
    %p149 = scmp.ne.s32.totalorder %s141, %s143
    %p150 = scmp.eq.s32.totalorder %s23, 1
    %p151 = por %p149, %p150
    %p152 = scmp.ne.s32.totalorder %s143, %s144
    %p153 = scmp.eq.s32.totalorder %s23, 0
    %p154 = por %p152, %p153
    %p155 = scmp.ne.s32.totalorder %s143, %s144
    %p156 = scmp.eq.s32.totalorder %s24, 1
    %p157 = por %p155, %p156
    %p159 = scmp.ne.s32.totalorder %s144, %s158
    %p160 = scmp.eq.s32.totalorder %s24, 0
    %p161 = por %p159, %p160
    %s163 = sadd.s32 %s162, 1
    %p166 = scmp.eq.s32.totalorder %s18, 1
    %p167 = scmp.ne.s32.totalorder %s162, %s164
    %p168 = scmp.eq.s32.totalorder %s18, 0
    %p169 = por %p167, %p168
    %p170 = scmp.ne.s32.totalorder %s162, %s164
    %p171 = scmp.eq.s32.totalorder %s23, 1
    %p172 = por %p170, %p171
    %p173 = scmp.ne.s32.totalorder %s164, %s165
    %p174 = scmp.eq.s32.totalorder %s23, 0
    %p175 = por %p173, %p174
    %p176 = scmp.ne.s32.totalorder %s164, %s165
    %p177 = scmp.eq.s32.totalorder %s24, 1
    %p178 = por %p176, %p177
    %p180 = scmp.ne.s32.totalorder %s165, %s179
    %p181 = scmp.eq.s32.totalorder %s24, 0
    %p182 = por %p180, %p181
    %s184 = sadd.s32 %s183, 1
    %p187 = scmp.eq.s32.totalorder %s18, 1
    %p188 = scmp.ne.s32.totalorder %s183, %s185
    %p189 = scmp.eq.s32.totalorder %s18, 0
    %p190 = por %p188, %p189
    %p191 = scmp.ne.s32.totalorder %s183, %s185
    %p192 = scmp.eq.s32.totalorder %s23, 1
    %p193 = por %p191, %p192
    %p194 = scmp.ne.s32.totalorder %s185, %s186
    %p195 = scmp.eq.s32.totalorder %s23, 0
    %p196 = por %p194, %p195
    %p197 = scmp.ne.s32.totalorder %s185, %s186
    %p198 = scmp.eq.s32.totalorder %s24, 1
    %p199 = por %p197, %p198
    %p201 = scmp.ne.s32.totalorder %s186, %s200
    %p202 = scmp.eq.s32.totalorder %s24, 0
    %p203 = por %p201, %p202
    %s205 = sadd.s32 %s204, 1
    %p208 = scmp.eq.s32.totalorder %s18, 1
    %p209 = scmp.ne.s32.totalorder %s204, %s206
    %p210 = scmp.eq.s32.totalorder %s18, 0
    %p211 = por %p209, %p210
    %p212 = scmp.ne.s32.totalorder %s204, %s206
    %p213 = scmp.eq.s32.totalorder %s23, 1
    %p214 = por %p212, %p213
    %p215 = scmp.ne.s32.totalorder %s206, %s207
    %p216 = scmp.eq.s32.totalorder %s23, 0
    %p217 = por %p215, %p216
    %p218 = scmp.ne.s32.totalorder %s206, %s207
    %p219 = scmp.eq.s32.totalorder %s24, 1
    %p220 = por %p218, %p219
    %p222 = scmp.ne.s32.totalorder %s207, %s221
    %p223 = scmp.eq.s32.totalorder %s24, 0
    %p224 = por %p222, %p223
    %s226 = sadd.s32 %s225, 1
    %p229 = scmp.eq.s32.totalorder %s18, 1
    %p230 = scmp.ne.s32.totalorder %s225, %s227
    %p231 = scmp.eq.s32.totalorder %s18, 0
    %p232 = por %p230, %p231
    %p233 = scmp.ne.s32.totalorder %s225, %s227
    %p234 = scmp.eq.s32.totalorder %s23, 1
    %p235 = por %p233, %p234
    %p236 = scmp.ne.s32.totalorder %s227, %s228
    %p237 = scmp.eq.s32.totalorder %s23, 0
    %p238 = por %p236, %p237
    %p239 = scmp.ne.s32.totalorder %s227, %s228
    %p240 = scmp.eq.s32.totalorder %s24, 1
    %p241 = por %p239, %p240
    %p243 = scmp.ne.s32.totalorder %s228, %s242
    %p244 = scmp.eq.s32.totalorder %s24, 0
    %p245 = por %p243, %p244
    %s247 = sadd.s32 %s246, 1
    %p250 = scmp.eq.s32.totalorder %s18, 1
    %p251 = scmp.ne.s32.totalorder %s246, %s248
    %p252 = scmp.eq.s32.totalorder %s18, 0
    %p253 = por %p251, %p252
    %p254 = scmp.ne.s32.totalorder %s246, %s248
    %p255 = scmp.eq.s32.totalorder %s23, 1
    %p256 = por %p254, %p255
    %p257 = scmp.ne.s32.totalorder %s248, %s249
    %p258 = scmp.eq.s32.totalorder %s23, 0
    %p259 = por %p257, %p258
    %p260 = scmp.ne.s32.totalorder %s248, %s249
    %p261 = scmp.eq.s32.totalorder %s24, 1
    %p262 = por %p260, %p261
    %p264 = scmp.ne.s32.totalorder %s249, %s263
    %p265 = scmp.eq.s32.totalorder %s24, 0
    %p266 = por %p264, %p265
    %s268 = sadd.s32 %s267, 1
    %p271 = scmp.eq.s32.totalorder %s18, 1
    %p272 = scmp.ne.s32.totalorder %s267, %s269
    %p273 = scmp.eq.s32.totalorder %s18, 0
    %p274 = por %p272, %p273
    %p275 = scmp.ne.s32.totalorder %s267, %s269
    %p276 = scmp.eq.s32.totalorder %s23, 1
    %p277 = por %p275, %p276
    %p278 = scmp.ne.s32.totalorder %s269, %s270
    %p279 = scmp.eq.s32.totalorder %s23, 0
    %p280 = por %p278, %p279
    %p281 = scmp.ne.s32.totalorder %s269, %s270
    %p282 = scmp.eq.s32.totalorder %s24, 1
    %p283 = por %p281, %p282
    %p285 = scmp.ne.s32.totalorder %s270, %s284
    %p286 = scmp.eq.s32.totalorder %s24, 0
    %p287 = por %p285, %p286
    %s288 = ssub.s32 %s18, %s25
    %p289 = scmp.eq.s32.totalorder %s288, 0
    %s291 = sadd.s32 %s290, 1
    %s292 = scalar_select %p289, %s290, %s291
    %p295 = pneg %p289
    %p296 = scmp.eq.s32.totalorder %s18, 1
    %p297 = por %p295, %p296
    %p298 = scmp.ne.s32.totalorder %s290, %s293
    %p299 = scmp.eq.s32.totalorder %s18, 0
    %p300 = por %p298, %p299
    %p301 = scmp.ne.s32.totalorder %s290, %s293
    %p302 = scmp.eq.s32.totalorder %s23, 1
    %p303 = por %p301, %p302
    %p304 = scmp.ne.s32.totalorder %s293, %s294
    %p305 = scmp.eq.s32.totalorder %s23, 0
    %p306 = por %p304, %p305
    %p307 = scmp.ne.s32.totalorder %s293, %s294
    %p308 = scmp.eq.s32.totalorder %s24, 1
    %p309 = por %p307, %p308
    %p311 = scmp.ne.s32.totalorder %s294, %s310
    %p312 = scmp.eq.s32.totalorder %s24, 0
    %p313 = por %p311, %p312
    %p314 = scmp.le.s32.totalorder 1, %s18
    %p315 = scmp.lt.s32.totalorder %s18, 3
    %p316 = pnand %p314, %p315
    %p317 = pneg %p316
    // Predicated region
    $region9: #{cppd_head_forward_test.18} parent=5 // pred_check
      _
    $region10: #{cppd_head_forward_test.18} parent=5 // pred_check_branch
      %319 = sbr.rel (%p316) target = $region12
    $region11: #{cppd_head_forward_test.18} parent=5 // pred_region
      %s320 = ssub.s32 %s18, 1
      // Predicated region
      $region13: #{cppd_head_forward_test.18} parent=11 // pred_check
        %p321 = pneg %p91
      $region14: #{cppd_head_forward_test.18} parent=11 // pred_check_branch
        %323 = sbr.rel (%p321) target = $region16
      $region15: #{cppd_head_forward_test.18} parent=11 // pred_region
        _
      $region16: #{cppd_head_forward_test.18} parent=11 // pred_fallthru
        _
      // Predicated region
      $region17: #{cppd_head_forward_test.18} parent=11 // pred_check
        %p324 = pneg %p112
      $region18: #{cppd_head_forward_test.18} parent=11 // pred_check_branch
        %326 = sbr.rel (%p324) target = $region20
      $region19: #{cppd_head_forward_test.18} parent=11 // pred_region
        _
      $region20: #{cppd_head_forward_test.18} parent=11 // pred_fallthru
        _
      // Predicated region
      $region21: #{cppd_head_forward_test.18} parent=11 // pred_check
        %p327 = pneg %p133
      $region22: #{cppd_head_forward_test.18} parent=11 // pred_check_branch
        %329 = sbr.rel (%p327) target = $region24
      $region23: #{cppd_head_forward_test.18} parent=11 // pred_region
        _
      $region24: #{cppd_head_forward_test.18} parent=11 // pred_fallthru
        _
      // Predicated region
      $region25: #{cppd_head_forward_test.18} parent=11 // pred_check
        %p330 = pneg %p154
      $region26: #{cppd_head_forward_test.18} parent=11 // pred_check_branch
        %332 = sbr.rel (%p330) target = $region28
      $region27: #{cppd_head_forward_test.18} parent=11 // pred_region
        _
      $region28: #{cppd_head_forward_test.18} parent=11 // pred_fallthru
        _
      // Predicated region
      $region29: #{cppd_head_forward_test.18} parent=11 // pred_check
        %p333 = pneg %p175
      $region30: #{cppd_head_forward_test.18} parent=11 // pred_check_branch
        %335 = sbr.rel (%p333) target = $region32
      $region31: #{cppd_head_forward_test.18} parent=11 // pred_region
        _
      $region32: #{cppd_head_forward_test.18} parent=11 // pred_fallthru
        _
      // Predicated region
      $region33: #{cppd_head_forward_test.18} parent=11 // pred_check
        %p336 = pneg %p196
      $region34: #{cppd_head_forward_test.18} parent=11 // pred_check_branch
        %338 = sbr.rel (%p336) target = $region36
      $region35: #{cppd_head_forward_test.18} parent=11 // pred_region
        _
      $region36: #{cppd_head_forward_test.18} parent=11 // pred_fallthru
        _
      // Predicated region
      $region37: #{cppd_head_forward_test.18} parent=11 // pred_check
        %p339 = pneg %p217
      $region38: #{cppd_head_forward_test.18} parent=11 // pred_check_branch
        %341 = sbr.rel (%p339) target = $region40
      $region39: #{cppd_head_forward_test.18} parent=11 // pred_region
        _
      $region40: #{cppd_head_forward_test.18} parent=11 // pred_fallthru
        _
      // Predicated region
      $region41: #{cppd_head_forward_test.18} parent=11 // pred_check
        %p342 = pneg %p238
      $region42: #{cppd_head_forward_test.18} parent=11 // pred_check_branch
        %344 = sbr.rel (%p342) target = $region44
      $region43: #{cppd_head_forward_test.18} parent=11 // pred_region
        _
      $region44: #{cppd_head_forward_test.18} parent=11 // pred_fallthru
        _
      // Predicated region
      $region45: #{cppd_head_forward_test.18} parent=11 // pred_check
        %p345 = pneg %p259
      $region46: #{cppd_head_forward_test.18} parent=11 // pred_check_branch
        %347 = sbr.rel (%p345) target = $region48
      $region47: #{cppd_head_forward_test.18} parent=11 // pred_region
        _
      $region48: #{cppd_head_forward_test.18} parent=11 // pred_fallthru
        _
      // Predicated region
      $region49: #{cppd_head_forward_test.18} parent=11 // pred_check
        %p348 = pneg %p280
      $region50: #{cppd_head_forward_test.18} parent=11 // pred_check_branch
        %350 = sbr.rel (%p348) target = $region52
      $region51: #{cppd_head_forward_test.18} parent=11 // pred_region
        _
      $region52: #{cppd_head_forward_test.18} parent=11 // pred_fallthru
        _
    $region12: #{cppd_head_forward_test.18} parent=5 // pred_fallthru
      _
    %p351 = scmp.lt.s32.totalorder %s18, 2
    // Predicated region
    $region53: #{cppd_head_forward_test.18} parent=5 // pred_check
      %p352 = pneg %p351
    $region54: #{cppd_head_forward_test.18} parent=5 // pred_check_branch
      %354 = sbr.rel (%p352) target = $region56
    $region55: #{cppd_head_forward_test.18} parent=5 // pred_region
      // Predicated region
      $region57: #{cppd_head_forward_test.18} parent=55 // pred_check
        %p355 = pneg %p38
      $region58: #{cppd_head_forward_test.18} parent=55 // pred_check_branch
        %357 = sbr.rel (%p355) target = $region60
      $region59: #{cppd_head_forward_test.18} parent=55 // pred_region
        %p358 = scmp.lt.s32.totalorder %s18, 1
        %s359 = scalar_select %p358, %s18, 1
        %s360 = smul.addr %s359, 3
        %s361 = smul.addr %s360, 4
        %s362 = scalar_lea.vmem %s0, %s361
      $region60: #{cppd_head_forward_test.18} parent=55 // pred_fallthru
        _
      // Predicated region
      $region61: #{cppd_head_forward_test.18} parent=55 // pred_check
        %p363 = pneg %p64
      $region62: #{cppd_head_forward_test.18} parent=55 // pred_check_branch
        %365 = sbr.rel (%p363) target = $region64
      $region63: #{cppd_head_forward_test.18} parent=55 // pred_region
        %p366 = scmp.lt.s32.totalorder %s18, 1
        %s367 = scalar_select %p366, %s18, 1
        %s368 = smul.addr %s367, 2
        %s369 = smul.addr %s368, 4
        %s370 = scalar_lea.vmem %s1, %s369
      $region64: #{cppd_head_forward_test.18} parent=55 // pred_fallthru
        _
    $region56: #{cppd_head_forward_test.18} parent=5 // pred_fallthru
      _
    %p371 = scmp.le.s32.totalorder 1, %s18
    %p372 = scmp.lt.s32.totalorder %s18, 3
    %p373 = pnand %p371, %p372
    %p374 = pneg %p373
    // Predicated region
    $region65: #{cppd_head_forward_test.18} parent=5 // pred_check
      _
    $region66: #{cppd_head_forward_test.18} parent=5 // pred_check_branch
      %376 = sbr.rel (%p373) target = $region68
    $region67: #{cppd_head_forward_test.18} parent=5 // pred_region
      %s377 = ssub.s32 %s18, 1
      %p378 = scmp.lt.s32.totalorder %s23, 1
      %s379 = scalar_select %p378, %s23, 1
      %s380 = smul.addr %s379, 3
      %s381 = smul.addr %s380, 4
      %s382 = scalar_lea.vmem %s0, %s381
      %p383 = pneg %p44
      %p384 = pneg %p41
      %p385 = scmp.lt.s32.totalorder %s23, 1
      %s386 = scalar_select %p385, %s23, 1
      %s387 = smul.addr %s386, 2
      %s388 = smul.addr %s387, 4
      %s389 = scalar_lea.vmem %s1, %s388
      %p390 = pneg %p70
      %p391 = pneg %p67
      %p392 = pneg %p91
      %p393 = pneg %p88
      %p394 = pneg %p112
      %p395 = pneg %p109
      %p396 = pneg %p133
      %p397 = pneg %p130
      %p398 = pneg %p154
      %p399 = pneg %p151
      %p400 = pneg %p175
      %p401 = pneg %p172
      %p402 = pneg %p196
      %p403 = pneg %p193
      %p404 = pneg %p217
      %p405 = pneg %p214
      %p406 = pneg %p238
      %p407 = pneg %p235
      %p408 = pneg %p259
      %p409 = pneg %p256
      %p410 = pneg %p280
      %p411 = pneg %p277
      %p412 = pneg %p306
      %p413 = pneg %p303
      %p414 = scmp.lt.s32.totalorder %s23, 1
      %s415 = scalar_select %p414, %s23, 1
      %s416 = smul.addr %s415, 4
      %s417 = scalar_lea.vmem %s12, %s416
      %p418 = scmp.lt.s32.totalorder %s23, 1
      %s419 = scalar_select %p418, %s23, 1
      %s420 = smul.addr %s419, 3
      %s421 = smul.addr %s420, 4
      %s422 = scalar_lea.vmem %s0, %s421
      %p423 = scmp.lt.s32.totalorder %s23, 1
      %s424 = scalar_select %p423, %s23, 1
      %s425 = smul.addr %s424, 2
      %s426 = smul.addr %s425, 4
      %s427 = scalar_lea.vmem %s1, %s426
      %p428 = scmp.lt.s32.totalorder %s23, 1
      %s429 = scalar_select %p428, %s23, 1
      %s430 = smul.addr %s429, 4
      %s431 = scalar_lea.vmem %s12, %s430
      %v433 = vld [vmem:[%s422] sm:$0xf]
      %v434 = vld [vmem:[%s427] sm:$0xf]
      %v435 = vld [vmem:[%s427 + $0x4] sm:$0xf]
      %v436 = vld [vmem:[%s2] sm:$0xf]
      %v437 = vld [vmem:[%s2 + $0x4] sm:$0xf]
      %v438 = vld [vmem:[%s2 + $0x8] sm:$0xf]
      %v439 = vld [vmem:[%s2 + $0xc] sm:$0xf]
      %v440 = vld [vmem:[%s2 + $0x10] sm:$0xf]
      %v441 = vld [vmem:[%s2 + $0x14] sm:$0xf]
      %v442 = vld [vmem:[%s2 + $0x18] sm:$0xf]
      %v443 = vld [vmem:[%s2 + $0x1c] sm:$0xf]
      %v444 = vld [vmem:[%s3] sm:$0x1]
      %v446 = vlaneseq
      %v447 = vshrl.u32 %v446, 7
      %v448 = vsub.s32 0, %v447
      %v449 = vrot.slane %v444, %v448
      %v459 = vunpack.c.l.b16 %v436
      %v460 = vunpack.c.l.b16 %v437
      %v461 = vunpack.c.l.b16 %v438
      %v462 = vunpack.c.l.b16 %v439
      %v463 = vunpack.c.l.b16 %v440
      %v464 = vunpack.c.l.b16 %v441
      %v465 = vunpack.c.l.b16 %v442
      %v466 = vunpack.c.l.b16 %v443
      %v467 = vpack.c.b16 %v460, %v459
      %v468 = vpack.c.b16 %v462, %v461
      %v469 = vpack.c.b16 %v464, %v463
      %v470 = vpack.c.b16 %v466, %v465
      %vm475 = vcmask 523264
      %v477 = vsel %vm475, %v433, 0
      %479 = vmatprep.subr.bf16.mxu0 0
      %480 = vmatpush1.bf16.msra.mxu0 %v467
      %481 = vmatprep.subr.bf16.mxu0 0
      %482 = vmatpush1.bf16.msra.mxu0 %v468
      %483 = vmatprep.subr.bf16.mxu0 0
      %484 = vmatpush1.bf16.msra.mxu0 %v469
      %485 = vmatprep.subr.bf16.mxu0 0
      %486 = vmatpush1.bf16.msra.mxu0 %v470
      %487 = vmatprep.subr.bf16.mxu0 0
      %488 = vmatpush1.bf16.msra.mxu0 0
      %489 = vmatprep.subr.bf16.mxu0 0
      %490 = vmatpush1.bf16.msra.mxu0 0
      %491 = vmatprep.subr.bf16.mxu0 0
      %492 = vmatpush1.bf16.msra.mxu0 0
      %493 = vmatprep.subr.bf16.mxu0 0
      %494 = vmatpush1.bf16.msra.mxu0 0
      %495 = vmatprep.subr.bf16.mxu0 0
      %496 = vmatpush1.bf16.msra.mxu0 0
      %497 = vmatprep.subr.bf16.mxu0 0
      %498 = vmatpush1.bf16.msra.mxu0 0
      %499 = vmatprep.subr.bf16.mxu0 0
      %500 = vmatpush1.bf16.msra.mxu0 0
      %501 = vmatprep.subr.bf16.mxu0 0
      %502 = vmatpush1.bf16.msra.mxu0 0
      %503 = vmatprep.subr.bf16.mxu0 0
      %504 = vmatpush1.bf16.msra.mxu0 0
      %505 = vmatprep.subr.bf16.mxu0 0
      %506 = vmatpush1.bf16.msra.mxu0 0
      %507 = vmatprep.subr.bf16.mxu0 0
      %508 = vmatpush1.bf16.msra.mxu0 0
      %509 = vmatprep.subr.bf16.mxu0 0
      %510 = vmatpush1.bf16.msra.mxu0 0
      %511 = vmatprep.mubr.bf16.mxu0 0
      %512 = vmatmul.mubr.bf16.gmra.mrb[0].mxu0 %v477
      %v513 = vpop.f32.mrb[0].mxu0
      %v514 = vadd.f32 %v449, %v513
      %v515 = vpop.f32.mrb[0].mxu0
      %v516 = vpop.f32.mrb[0].mxu0
      %v517 = vpop.f32.mrb[0].mxu0
      %518 = vdwg.mxu0
      %v519 = vld [vmem:[%s4] sm:$0xf]
      %v520 = vld [vmem:[%s4 + $0x4] sm:$0xf]
      %v521 = vld [vmem:[%s4 + $0x8] sm:$0xf]
      %v522 = vld [vmem:[%s4 + $0xc] sm:$0xf]
      %v523 = vld [vmem:[%s4 + $0x10] sm:$0xf]
      %v524 = vld [vmem:[%s4 + $0x14] sm:$0xf]
      %v525 = vld [vmem:[%s4 + $0x18] sm:$0xf]
      %v526 = vld [vmem:[%s4 + $0x1c] sm:$0xf]
      %v527 = vld [vmem:[%s5] sm:$0x1]
      %v529 = vlaneseq
      %v530 = vshrl.u32 %v529, 7
      %v531 = vsub.s32 0, %v530
      %v532 = vrot.slane %v527, %v531
      %v536 = vunpack.c.l.b16 %v434
      %v537 = vunpack.c.l.b16 %v435
      %v538 = vpack.c.b16 %v537, %v536
      %v547 = vunpack.c.l.b16 %v519
      %v548 = vunpack.c.l.b16 %v520
      %v549 = vunpack.c.l.b16 %v521
      %v550 = vunpack.c.l.b16 %v522
      %v551 = vunpack.c.l.b16 %v523
      %v552 = vunpack.c.l.b16 %v524
      %v553 = vunpack.c.l.b16 %v525
      %v554 = vunpack.c.l.b16 %v526
      %v555 = vpack.c.b16 %v548, %v547
      %v556 = vpack.c.b16 %v550, %v549
      %v557 = vpack.c.b16 %v552, %v551
      %v558 = vpack.c.b16 %v554, %v553
      %v564 = vsel %vm475, %v538, 0
      %566 = vmatprep.subr.bf16.mxu0 0
      %567 = vmatpush1.bf16.msra.mxu0 %v555
      %568 = vmatprep.subr.bf16.mxu0 0
      %569 = vmatpush1.bf16.msra.mxu0 %v556
      %570 = vmatprep.subr.bf16.mxu0 0
      %571 = vmatpush1.bf16.msra.mxu0 %v557
      %572 = vmatprep.subr.bf16.mxu0 0
      %573 = vmatpush1.bf16.msra.mxu0 %v558
      %574 = vmatprep.subr.bf16.mxu0 0
      %575 = vmatpush1.bf16.msra.mxu0 0
      %576 = vmatprep.subr.bf16.mxu0 0
      %577 = vmatpush1.bf16.msra.mxu0 0
      %578 = vmatprep.subr.bf16.mxu0 0
      %579 = vmatpush1.bf16.msra.mxu0 0
      %580 = vmatprep.subr.bf16.mxu0 0
      %581 = vmatpush1.bf16.msra.mxu0 0
      %582 = vmatprep.subr.bf16.mxu0 0
      %583 = vmatpush1.bf16.msra.mxu0 0
      %584 = vmatprep.subr.bf16.mxu0 0
      %585 = vmatpush1.bf16.msra.mxu0 0
      %586 = vmatprep.subr.bf16.mxu0 0
      %587 = vmatpush1.bf16.msra.mxu0 0
      %588 = vmatprep.subr.bf16.mxu0 0
      %589 = vmatpush1.bf16.msra.mxu0 0
      %590 = vmatprep.subr.bf16.mxu0 0
      %591 = vmatpush1.bf16.msra.mxu0 0
      %592 = vmatprep.subr.bf16.mxu0 0
      %593 = vmatpush1.bf16.msra.mxu0 0
      %594 = vmatprep.subr.bf16.mxu0 0
      %595 = vmatpush1.bf16.msra.mxu0 0
      %596 = vmatprep.subr.bf16.mxu0 0
      %597 = vmatpush1.bf16.msra.mxu0 0
      %598 = vmatprep.mubr.bf16.mxu0 0
      %599 = vmatmul.mubr.bf16.gmra.mrb[0].mxu0 %v564
      %v600 = vpop.f32.mrb[0].mxu0
      %v601 = vadd.f32 %v532, %v600
      %v602 = vpop.f32.mrb[0].mxu0
      %v603 = vpop.f32.mrb[0].mxu0
      %v604 = vadd.f32 %v532, %v603
      %v605 = vpop.f32.mrb[0].mxu0
      %606 = vdwg.mxu0
      %v607 = vld [vmem:[%s6] sm:$0xf]
      %v608 = vld [vmem:[%s6 + $0x4] sm:$0xf]
      %v609 = vld [vmem:[%s6 + $0x8] sm:$0xf]
      %v610 = vld [vmem:[%s6 + $0xc] sm:$0xf]
      %v611 = vld [vmem:[%s6 + $0x10] sm:$0xf]
      %v612 = vld [vmem:[%s6 + $0x14] sm:$0xf]
      %v613 = vld [vmem:[%s6 + $0x18] sm:$0xf]
      %v614 = vld [vmem:[%s6 + $0x1c] sm:$0xf]
      %v615 = vld [vmem:[%s7] sm:$0x1]
      %v617 = vlaneseq
      %v618 = vshrl.u32 %v617, 7
      %v619 = vsub.s32 0, %v618
      %v620 = vrot.slane %v615, %v619
      %v630 = vunpack.c.l.b16 %v607
      %v631 = vunpack.c.l.b16 %v608
      %v632 = vunpack.c.l.b16 %v609
      %v633 = vunpack.c.l.b16 %v610
      %v634 = vunpack.c.l.b16 %v611
      %v635 = vunpack.c.l.b16 %v612
      %v636 = vunpack.c.l.b16 %v613
      %v637 = vunpack.c.l.b16 %v614
      %v638 = vpack.c.b16 %v631, %v630
      %v639 = vpack.c.b16 %v633, %v632
      %v640 = vpack.c.b16 %v635, %v634
      %v641 = vpack.c.b16 %v637, %v636
      %646 = vmatprep.subr.bf16.mxu0 0
      %647 = vmatpush1.bf16.msra.mxu0 %v638
      %648 = vmatprep.subr.bf16.mxu0 0
      %649 = vmatpush1.bf16.msra.mxu0 %v639
      %650 = vmatprep.subr.bf16.mxu0 0
      %651 = vmatpush1.bf16.msra.mxu0 %v640
      %652 = vmatprep.subr.bf16.mxu0 0
      %653 = vmatpush1.bf16.msra.mxu0 %v641
      %654 = vmatprep.subr.bf16.mxu0 0
      %655 = vmatpush1.bf16.msra.mxu0 0
      %656 = vmatprep.subr.bf16.mxu0 0
      %657 = vmatpush1.bf16.msra.mxu0 0
      %658 = vmatprep.subr.bf16.mxu0 0
      %659 = vmatpush1.bf16.msra.mxu0 0
      %660 = vmatprep.subr.bf16.mxu0 0
      %661 = vmatpush1.bf16.msra.mxu0 0
      %662 = vmatprep.subr.bf16.mxu0 0
      %663 = vmatpush1.bf16.msra.mxu0 0
      %664 = vmatprep.subr.bf16.mxu0 0
      %665 = vmatpush1.bf16.msra.mxu0 0
      %666 = vmatprep.subr.bf16.mxu0 0
      %667 = vmatpush1.bf16.msra.mxu0 0
      %668 = vmatprep.subr.bf16.mxu0 0
      %669 = vmatpush1.bf16.msra.mxu0 0
      %670 = vmatprep.subr.bf16.mxu0 0
      %671 = vmatpush1.bf16.msra.mxu0 0
      %672 = vmatprep.subr.bf16.mxu0 0
      %673 = vmatpush1.bf16.msra.mxu0 0
      %674 = vmatprep.subr.bf16.mxu0 0
      %675 = vmatpush1.bf16.msra.mxu0 0
      %676 = vmatprep.subr.bf16.mxu0 0
      %677 = vmatpush1.bf16.msra.mxu0 0
      %678 = vmatprep.mubr.bf16.mxu0 0
      %679 = vmatmul.mubr.bf16.gmra.mrb[0].mxu0 %v564
      %v680 = vpop.f32.mrb[0].mxu0
      %v681 = vadd.f32 %v620, %v680
      %v682 = vpop.f32.mrb[0].mxu0
      %v683 = vpop.f32.mrb[0].mxu0
      %v684 = vadd.f32 %v620, %v683
      %v685 = vpop.f32.mrb[0].mxu0
      %686 = vdwg.mxu0
      %v687 = vpack.c.bf16 %v514, %v514
      %v688 = vpack.c.bf16 %v604, %v601
      %v689 = vpack.c.bf16 %v684, %v681
      %vm690 = vcmask 261120
      %v692 = vsel %vm690, %v687, 0
      %v695 = vsel %vm690, %v688, 0
      %697 = vmatprep.subr.bf16.mxu0 0
      %698 = vmatpush1.bf16.xpose.msra.mxu0 %v695
      %699 = vmatprep.subr.bf16.mxu0 0
      %700 = vmatpush1.bf16.xpose.msra.mxu0 0
      %701 = vmatprep.subr.bf16.mxu0 0
      %702 = vmatpush1.bf16.xpose.msra.mxu0 0
      %703 = vmatprep.subr.bf16.mxu0 0
      %704 = vmatpush1.bf16.xpose.msra.mxu0 0
      %705 = vmatprep.subr.bf16.mxu0 0
      %706 = vmatpush1.bf16.xpose.msra.mxu0 0
      %707 = vmatprep.subr.bf16.mxu0 0
      %708 = vmatpush1.bf16.xpose.msra.mxu0 0
      %709 = vmatprep.subr.bf16.mxu0 0
      %710 = vmatpush1.bf16.xpose.msra.mxu0 0
      %711 = vmatprep.subr.bf16.mxu0 0
      %712 = vmatpush1.bf16.xpose.msra.mxu0 0
      %713 = vmatprep.subr.bf16.mxu0 0
      %714 = vmatpush1.bf16.xpose.msra.mxu0 0
      %715 = vmatprep.subr.bf16.mxu0 0
      %716 = vmatpush1.bf16.xpose.msra.mxu0 0
      %717 = vmatprep.subr.bf16.mxu0 0
      %718 = vmatpush1.bf16.xpose.msra.mxu0 0
      %719 = vmatprep.subr.bf16.mxu0 0
      %720 = vmatpush1.bf16.xpose.msra.mxu0 0
      %721 = vmatprep.subr.bf16.mxu0 0
      %722 = vmatpush1.bf16.xpose.msra.mxu0 0
      %723 = vmatprep.subr.bf16.mxu0 0
      %724 = vmatpush1.bf16.xpose.msra.mxu0 0
      %725 = vmatprep.subr.bf16.mxu0 0
      %726 = vmatpush1.bf16.xpose.msra.mxu0 0
      %727 = vmatprep.subr.bf16.mxu0 0
      %728 = vmatpush1.bf16.xpose.msra.mxu0 0
      %729 = vmatprep.mubr.bf16.mxu0 0
      %730 = vmatmul.mubr.bf16.gmra.mrb[0].mxu0 %v692
      %v731 = vpop.f32.mrb[0].mxu0
      %v732 = vadd.f32 0.0, %v731
      %v733 = vpop.f32.mrb[0].mxu0
      %v734 = vpop.f32.mrb[0].mxu0
      %v735 = vpop.f32.mrb[0].mxu0
      %736 = vdwg.mxu0
      %vm737 = vcmask 130048
      %v738 = vsel %vm737, %v732, -inf
      %739 = vmax.xlane.f32.xlu0 %v738
      %v740 = vpop.xlane.xlu0 %739
      %v741 = vsub.f32 %v732, %v740
      %v742 = vmul.f32 %v741, 1.442695
      %v743 = vpow.pop %v742
      %v744 = vsel %vm737, %v743, 0.0
      %745 = vadd.xlane.f32.xlu0 %v744
      %v746 = vpop.xlane.xlu0 %745
      %v747 = vrcp.pop %v746
      %v748 = vmul.f32 %v743, %v747
      %v749 = vpack.c.bf16 %v748, %v748
      %v751 = vsel %vm737, %v749, 0
      %753 = vmatprep.subr.bf16.mxu0 0
      %754 = vmatpush1.bf16.msra.mxu0 %v689
      %755 = vmatprep.subr.bf16.mxu0 0
      %756 = vmatpush1.bf16.msra.mxu0 0
      %757 = vmatprep.subr.bf16.mxu0 0
      %758 = vmatpush1.bf16.msra.mxu0 0
      %759 = vmatprep.subr.bf16.mxu0 0
      %760 = vmatpush1.bf16.msra.mxu0 0
      %761 = vmatprep.subr.bf16.mxu0 0
      %762 = vmatpush1.bf16.msra.mxu0 0
      %763 = vmatprep.subr.bf16.mxu0 0
      %764 = vmatpush1.bf16.msra.mxu0 0
      %765 = vmatprep.subr.bf16.mxu0 0
      %766 = vmatpush1.bf16.msra.mxu0 0
      %767 = vmatprep.subr.bf16.mxu0 0
      %768 = vmatpush1.bf16.msra.mxu0 0
      %769 = vmatprep.subr.bf16.mxu0 0
      %770 = vmatpush1.bf16.msra.mxu0 0
      %771 = vmatprep.subr.bf16.mxu0 0
      %772 = vmatpush1.bf16.msra.mxu0 0
      %773 = vmatprep.subr.bf16.mxu0 0
      %774 = vmatpush1.bf16.msra.mxu0 0
      %775 = vmatprep.subr.bf16.mxu0 0
      %776 = vmatpush1.bf16.msra.mxu0 0
      %777 = vmatprep.subr.bf16.mxu0 0
      %778 = vmatpush1.bf16.msra.mxu0 0
      %779 = vmatprep.subr.bf16.mxu0 0
      %780 = vmatpush1.bf16.msra.mxu0 0
      %781 = vmatprep.subr.bf16.mxu0 0
      %782 = vmatpush1.bf16.msra.mxu0 0
      %783 = vmatprep.subr.bf16.mxu0 0
      %784 = vmatpush1.bf16.msra.mxu0 0
      %785 = vmatprep.mubr.bf16.mxu0 0
      %786 = vmatmul.mubr.bf16.gmra.mrb[0].mxu0 %v751
      %v787 = vpop.f32.mrb[0].mxu0
      %v788 = vadd.f32 0.0, %v787
      %v789 = vpop.f32.mrb[0].mxu0
      %v790 = vpop.f32.mrb[0].mxu0
      %v791 = vpop.f32.mrb[0].mxu0
      %792 = vdwg.mxu0
      %794 = vrot.lane.b32.xlu0 %v687, 96
      %v795 = vpop.permute.xlu0 %794
      %797 = vrot.lane.b32.xlu0 %v688, 96
      %v798 = vpop.permute.xlu0 %797
      %v800 = vsel %vm690, %v795, 0
      %v803 = vsel %vm690, %v798, 0
      %805 = vmatprep.subr.bf16.mxu0 0
      %806 = vmatpush1.bf16.xpose.msra.mxu0 %v803
      %807 = vmatprep.subr.bf16.mxu0 0
      %808 = vmatpush1.bf16.xpose.msra.mxu0 0
      %809 = vmatprep.subr.bf16.mxu0 0
      %810 = vmatpush1.bf16.xpose.msra.mxu0 0
      %811 = vmatprep.subr.bf16.mxu0 0
      %812 = vmatpush1.bf16.xpose.msra.mxu0 0
      %813 = vmatprep.subr.bf16.mxu0 0
      %814 = vmatpush1.bf16.xpose.msra.mxu0 0
      %815 = vmatprep.subr.bf16.mxu0 0
      %816 = vmatpush1.bf16.xpose.msra.mxu0 0
      %817 = vmatprep.subr.bf16.mxu0 0
      %818 = vmatpush1.bf16.xpose.msra.mxu0 0
      %819 = vmatprep.subr.bf16.mxu0 0
      %820 = vmatpush1.bf16.xpose.msra.mxu0 0
      %821 = vmatprep.subr.bf16.mxu0 0
      %822 = vmatpush1.bf16.xpose.msra.mxu0 0
      %823 = vmatprep.subr.bf16.mxu0 0
      %824 = vmatpush1.bf16.xpose.msra.mxu0 0
      %825 = vmatprep.subr.bf16.mxu0 0
      %826 = vmatpush1.bf16.xpose.msra.mxu0 0
      %827 = vmatprep.subr.bf16.mxu0 0
      %828 = vmatpush1.bf16.xpose.msra.mxu0 0
      %829 = vmatprep.subr.bf16.mxu0 0
      %830 = vmatpush1.bf16.xpose.msra.mxu0 0
      %831 = vmatprep.subr.bf16.mxu0 0
      %832 = vmatpush1.bf16.xpose.msra.mxu0 0
      %833 = vmatprep.subr.bf16.mxu0 0
      %834 = vmatpush1.bf16.xpose.msra.mxu0 0
      %835 = vmatprep.subr.bf16.mxu0 0
      %836 = vmatpush1.bf16.xpose.msra.mxu0 0
      %837 = vmatprep.mubr.bf16.mxu0 0
      %838 = vmatmul.mubr.bf16.gmra.mrb[0].mxu0 %v800
      %v839 = vpop.f32.mrb[0].mxu0
      %v840 = vadd.f32 0.0, %v839
      %v841 = vpop.f32.mrb[0].mxu0
      %v842 = vpop.f32.mrb[0].mxu0
      %v843 = vpop.f32.mrb[0].mxu0
      %844 = vdwg.mxu0
      %v845 = vsel %vm737, %v840, -inf
      %846 = vmax.xlane.f32.xlu0 %v845
      %v847 = vpop.xlane.xlu0 %846
      %v848 = vsub.f32 %v840, %v847
      %v849 = vmul.f32 %v848, 1.442695
      %v850 = vpow.pop %v849
      %v851 = vsel %vm737, %v850, 0.0
      %852 = vadd.xlane.f32.xlu0 %v851
      %v853 = vpop.xlane.xlu0 %852
      %v854 = vrcp.pop %v853
      %v855 = vmul.f32 %v850, %v854
      %v856 = vpack.c.bf16 %v855, %v855
      %858 = vrot.lane.b32.xlu0 %v689, 96
      %v859 = vpop.permute.xlu0 %858
      %v862 = vsel %vm737, %v856, 0
      %864 = vmatprep.subr.bf16.mxu0 0
      %865 = vmatpush1.bf16.msra.mxu0 %v859
      %866 = vmatprep.subr.bf16.mxu0 0
      %867 = vmatpush1.bf16.msra.mxu0 0
      %868 = vmatprep.subr.bf16.mxu0 0
      %869 = vmatpush1.bf16.msra.mxu0 0
      %870 = vmatprep.subr.bf16.mxu0 0
      %871 = vmatpush1.bf16.msra.mxu0 0
      %872 = vmatprep.subr.bf16.mxu0 0
      %873 = vmatpush1.bf16.msra.mxu0 0
      %874 = vmatprep.subr.bf16.mxu0 0
      %875 = vmatpush1.bf16.msra.mxu0 0
      %876 = vmatprep.subr.bf16.mxu0 0
      %877 = vmatpush1.bf16.msra.mxu0 0
      %878 = vmatprep.subr.bf16.mxu0 0
      %879 = vmatpush1.bf16.msra.mxu0 0
      %880 = vmatprep.subr.bf16.mxu0 0
      %881 = vmatpush1.bf16.msra.mxu0 0
      %882 = vmatprep.subr.bf16.mxu0 0
      %883 = vmatpush1.bf16.msra.mxu0 0
      %884 = vmatprep.subr.bf16.mxu0 0
      %885 = vmatpush1.bf16.msra.mxu0 0
      %886 = vmatprep.subr.bf16.mxu0 0
      %887 = vmatpush1.bf16.msra.mxu0 0
      %888 = vmatprep.subr.bf16.mxu0 0
      %889 = vmatpush1.bf16.msra.mxu0 0
      %890 = vmatprep.subr.bf16.mxu0 0
      %891 = vmatpush1.bf16.msra.mxu0 0
      %892 = vmatprep.subr.bf16.mxu0 0
      %893 = vmatpush1.bf16.msra.mxu0 0
      %894 = vmatprep.subr.bf16.mxu0 0
      %895 = vmatpush1.bf16.msra.mxu0 0
      %896 = vmatprep.mubr.bf16.mxu0 0
      %897 = vmatmul.mubr.bf16.gmra.mrb[0].mxu0 %v862
      %v898 = vpop.f32.mrb[0].mxu0
      %v899 = vadd.f32 0.0, %v898
      %v900 = vpop.f32.mrb[0].mxu0
      %v901 = vpop.f32.mrb[0].mxu0
      %v902 = vpop.f32.mrb[0].mxu0
      %903 = vdwg.mxu0
      %905 = vrot.lane.b32.xlu0 %v899, 32
      %v906 = vpop.permute.xlu0 %905
      %v908 = vsel %vm690, %v788, %v906
      %v909 = vpack.c.bf16 %v908, %v908
      %v910 = vld [vmem:[%s8] sm:$0xf]
      %v911 = vld [vmem:[%s8 + $0x4] sm:$0xf]
      %v912 = vld [vmem:[%s8 + $0x8] sm:$0xf]
      %v913 = vld [vmem:[%s8 + $0xc] sm:$0xf]
      %v914 = vld [vmem:[%s8 + $0x10] sm:$0xf]
      %v915 = vld [vmem:[%s8 + $0x14] sm:$0xf]
      %v916 = vld [vmem:[%s8 + $0x18] sm:$0xf]
      %v917 = vld [vmem:[%s8 + $0x1c] sm:$0xf]
      %v918 = vld [vmem:[%s9] sm:$0x1]
      %v920 = vlaneseq
      %v921 = vshrl.u32 %v920, 7
      %v922 = vsub.s32 0, %v921
      %v923 = vrot.slane %v918, %v922
      %v933 = vunpack.c.l.b16 %v910
      %v934 = vunpack.c.l.b16 %v911
      %v935 = vunpack.c.l.b16 %v912
      %v936 = vunpack.c.l.b16 %v913
      %v937 = vunpack.c.l.b16 %v914
      %v938 = vunpack.c.l.b16 %v915
      %v939 = vunpack.c.l.b16 %v916
      %v940 = vunpack.c.l.b16 %v917
      %v941 = vpack.c.b16 %v934, %v933
      %v942 = vpack.c.b16 %v936, %v935
      %v943 = vpack.c.b16 %v938, %v937
      %v944 = vpack.c.b16 %v940, %v939
      %v950 = vsel %vm475, %v909, 0
      %952 = vmatprep.subr.bf16.mxu0 0
      %953 = vmatpush1.bf16.msra.mxu0 %v941
      %954 = vmatprep.subr.bf16.mxu0 0
      %955 = vmatpush1.bf16.msra.mxu0 %v942
      %956 = vmatprep.subr.bf16.mxu0 0
      %957 = vmatpush1.bf16.msra.mxu0 %v943
      %958 = vmatprep.subr.bf16.mxu0 0
      %959 = vmatpush1.bf16.msra.mxu0 %v944
      %960 = vmatprep.subr.bf16.mxu0 0
      %961 = vmatpush1.bf16.msra.mxu0 0
      %962 = vmatprep.subr.bf16.mxu0 0
      %963 = vmatpush1.bf16.msra.mxu0 0
      %964 = vmatprep.subr.bf16.mxu0 0
      %965 = vmatpush1.bf16.msra.mxu0 0
      %966 = vmatprep.subr.bf16.mxu0 0
      %967 = vmatpush1.bf16.msra.mxu0 0
      %968 = vmatprep.subr.bf16.mxu0 0
      %969 = vmatpush1.bf16.msra.mxu0 0
      %970 = vmatprep.subr.bf16.mxu0 0
      %971 = vmatpush1.bf16.msra.mxu0 0
      %972 = vmatprep.subr.bf16.mxu0 0
      %973 = vmatpush1.bf16.msra.mxu0 0
      %974 = vmatprep.subr.bf16.mxu0 0
      %975 = vmatpush1.bf16.msra.mxu0 0
      %976 = vmatprep.subr.bf16.mxu0 0
      %977 = vmatpush1.bf16.msra.mxu0 0
      %978 = vmatprep.subr.bf16.mxu0 0
      %979 = vmatpush1.bf16.msra.mxu0 0
      %980 = vmatprep.subr.bf16.mxu0 0
      %981 = vmatpush1.bf16.msra.mxu0 0
      %982 = vmatprep.subr.bf16.mxu0 0
      %983 = vmatpush1.bf16.msra.mxu0 0
      %984 = vmatprep.mubr.bf16.mxu0 0
      %985 = vmatmul.mubr.bf16.gmra.mrb[0].mxu0 %v950
      %v986 = vpop.f32.mrb[0].mxu0
      %v987 = vadd.f32 %v923, %v986
      %v988 = vpop.f32.mrb[0].mxu0
      %v989 = vpop.f32.mrb[0].mxu0
      %v990 = vpop.f32.mrb[0].mxu0
      %991 = vdwg.mxu0
      %v992 = vunpack.c.l.bf16 %v433
      %v993 = vadd.f32 %v992, %v987
      %v994 = vld [vmem:[%s10] sm:$0x1]
      %v995 = vld [vmem:[%s11] sm:$0x1]
      %v996 = vsel %vm475, %v993, 0.0
      %997 = vadd.xlane.f32.xlu0 %v996
      %v998 = vpop.xlane.xlu0 %997
      %v999 = vrcp.pop 64.0
      %v1000 = vmul.f32 %v998, %v999
      %v1001 = vsub.f32 %v993, %v1000
      %v1002 = vmul.f32 %v1001, %v1001
      %v1003 = vsel %vm475, %v1002, 0.0
      %1004 = vadd.xlane.f32.xlu0 %v1003
      %v1005 = vpop.xlane.xlu0 %1004
      %v1006 = vmul.f32 %v1005, %v999
      %v1007 = vadd.f32 %v1006, 1e-06
      %v1008 = vrsqrt.pop %v1007
      %v1009 = vmul.f32 %v1001, %v1008
      %v1011 = vlaneseq
      %v1012 = vshrl.u32 %v1011, 7
      %v1013 = vsub.s32 0, %v1012
      %v1014 = vrot.slane %v994, %v1013
      %v1016 = vmul.f32 %v1009, %v1014
      %v1018 = vlaneseq
      %v1019 = vshrl.u32 %v1018, 7
      %v1020 = vsub.s32 0, %v1019
      %v1021 = vrot.slane %v995, %v1020
      %v1023 = vadd.f32 %v1016, %v1021
      %v1024 = vpack.c.bf16 %v1023, %v1023
      %vm1025 = vcmask 519168
      %1026 = vst.msk [vmem:[%s431] sm:$0xf] %vm1025, %v1024
      %p1027 = scmp.lt.s32.totalorder %s23, 1
      %s1028 = scalar_select %p1027, %s23, 1
      %s1029 = smul.addr %s1028, 4
      %s1030 = scalar_lea.vmem %s12, %s1029
      // Predicated region
      $region69: #{cppd_head_forward_test.18} parent=67 // pred_check
        %p1031 = pneg %p303
      $region70: #{cppd_head_forward_test.18} parent=67 // pred_check_branch
        %1033 = sbr.rel (%p1031) target = $region72
      $region71: #{cppd_head_forward_test.18} parent=67 // pred_region
        _
      $region72: #{cppd_head_forward_test.18} parent=67 // pred_fallthru
        _
    $region68: #{cppd_head_forward_test.18} parent=5 // pred_fallthru
      _
    %p1034 = scmp.le.s32.totalorder 2, %s18
    // Predicated region
    $region73: #{cppd_head_forward_test.18} parent=5 // pred_check
      %p1035 = pneg %p1034
    $region74: #{cppd_head_forward_test.18} parent=5 // pred_check_branch
      %1037 = sbr.rel (%p1035) target = $region76
    $region75: #{cppd_head_forward_test.18} parent=5 // pred_region
      %s1038 = ssub.s32 %s18, 2
      // Predicated region
      $region77: #{cppd_head_forward_test.18} parent=75 // pred_check
        %p1039 = pneg %p309
      $region78: #{cppd_head_forward_test.18} parent=75 // pred_check_branch
        %1041 = sbr.rel (%p1039) target = $region80
      $region79: #{cppd_head_forward_test.18} parent=75 // pred_region
        %p1042 = scmp.lt.s32.totalorder %s24, 1
        %s1043 = scalar_select %p1042, %s24, 1
        %s1044 = smul.addr %s1043, 4
        %s1045 = scalar_lea.vmem %s12, %s1044
      $region80: #{cppd_head_forward_test.18} parent=75 // pred_fallthru
        _
    $region76: #{cppd_head_forward_test.18} parent=5 // pred_fallthru
      _
  $region6: #{cppd_head_forward_test.18} parent=0 // loop_footer
    %s22 = sadd.s32 1, %s18
  $region7: #{cppd_head_forward_test.18} parent=0 // loop_footer_branch
    %17 = sbr.rel target = $region3
  $region8: #{cppd_head_forward_test.18} parent=0 // loop_exit
    _

</llo_original>
